<compile_context>
chip_gen: v7x
topology: tpu7x:2x2x1
jax: 0.10.0
libtpu: 0.0.40
codegen_flags: <defaults>
</compile_context>

<pallas_src>
import functools

import jax
import jax.numpy as jnp
from jax import lax
from jax.experimental import pallas as pl
from jax.experimental.pallas import tpu as pltpu

_INV_SQRT2 = 0.7071067811865476
_BN_EPS = 1e-5


# ----------------------------------------------------------------- elementwise helpers
def _erf(x):
    # Abramowitz & Stegun 7.1.26 (max abs err ~1.5e-7); torch.nn.GELU uses exact erf.
    p = 0.3275911
    a1, a2, a3, a4, a5 = 0.254829592, -0.284496736, 1.421413741, -1.453152027, 1.061405429
    ax = jnp.abs(x)
    t = pl.reciprocal(1.0 + p * ax, approx=True)      # EUP slot, off the VPU path
    poly = t * (a1 + t * (a2 + t * (a3 + t * (a4 + t * a5))))
    y = 1.0 - poly * jnp.exp(-(ax * ax))
    return jnp.where(x < 0.0, -y, y)


def _gelu(x):
    # erf-based GELU, matching torch.nn.GELU() default (approximate='none')
    return 0.5 * x * (1.0 + _erf(x * _INV_SQRT2))


# ----------------------------------------------------------------- roll-convention probe
@functools.lru_cache(maxsize=None)
def _roll_config():
    """Probe pltpu.roll once (eagerly, outside jit).  Returns (use_pltpu_roll, sign)
    such that pltpu.roll(v, shift=(sign*offset) % n, axis=0) == jnp.roll(v, offset).
    Falls back to jnp.roll inside the kernel if the probe cannot run."""
    def probe(o_ref):
        o_ref[...] = pltpu.roll(
            lax.broadcasted_iota(jnp.float32, (8, 128), 0), shift=1, axis=0)

    try:
        out = jax.device_get(
            pl.pallas_call(probe,
                           out_shape=jax.ShapeDtypeStruct((8, 128), jnp.float32))())
        if float(out[1, 0]) == 0.0:      # out[i] = x[i-1]  -> jnp.roll convention
            return True, 1
        if float(out[1, 0]) == 2.0:      # out[i] = x[i+1]  -> opposite convention
            return True, -1
    except Exception:
        pass
    return False, 1                      # fall back to jnp.roll inside the kernel


# ----------------------------------------------------------------- fused model kernel
def _qclr_kernel(*refs, dilations, proj_flags, cls_sigmoid, use_roll, roll_sign):
    it = iter(refs)
    x_ref = next(it)
    fc_w, fc_b = next(it), next(it)
    blocks = []
    for has_proj in proj_flags:
        w1, b1, w2, b2 = next(it), next(it), next(it), next(it)
        pw, pb = (next(it), next(it)) if has_proj else (None, None)
        blocks.append((w1, b1, w2, b2, pw, pb))
    rw1, rb1, rsc, rsh, rw2, rb2 = [next(it) for _ in range(6)]
    cw1, cb1, csc, csh, cw2, cb2 = [next(it) for _ in range(6)]
    out_ref = next(it)
    rep_ref = next(it)

    x = x_ref[...]
    bt, t, cin0 = x.shape
    n = bt * t
    # per-row time position; masks conv wrap-around after the (flattened) row shift
    tpos = lax.broadcasted_iota(jnp.int32, (bt, t, 1), 1).reshape(n, 1)

    def shift_rows(v, offset):
        # out[i] = v[i - offset] (wrapping); wrapped rows are masked by the caller.
        if use_roll:
            return pltpu.roll(v, shift=(roll_sign * offset) % n, axis=0)
        return jnp.roll(v, offset, axis=0)

    def conv3_same(v, w_ref, b_ref, d):
        # k=3 dilated conv with 'same' zero padding; time flattened into rows of v.
        acc = jnp.dot(v, w_ref[1], preferred_element_type=jnp.float32)
        if d < t:      # for d >= t both outer taps land entirely in the zero padding
            left = jnp.where(tpos >= d, shift_rows(v, d), 0.0)
            acc = acc + jnp.dot(left, w_ref[0], preferred_element_type=jnp.float32)
            right = jnp.where(tpos < t - d, shift_rows(v, -d), 0.0)
            acc = acc + jnp.dot(right, w_ref[2], preferred_element_type=jnp.float32)
        return acc + b_ref[...]

    # input_fc Linear prologue (channels-last: the .transpose(1,2) pair is a no-op)
    h = jnp.dot(x.reshape(n, cin0), fc_w[...],
                preferred_element_type=jnp.float32) + fc_b[...]

    # 6 fused ConvBlocks: conv -> GELU -> conv -> GELU, + projector/identity residual
    for d, (w1, b1, w2, b2, pw, pb) in zip(dilations, blocks):
        h1 = _gelu(conv3_same(h, w1, b1, d))
        if pw is not None:        # 1x1-conv projector on the block input
            res = jnp.dot(h, pw[...], preferred_element_type=jnp.float32) + pb[...]
        else:                     # Identity projector
            res = h
        h = _gelu(conv3_same(h1, w2, b2, d)) + res

    # global max-pool over time
    pooled = jnp.max(h.reshape(bt, t, h.shape[-1]), axis=1)          # (bt, d_model)

    # both heads: Linear -> folded-BN scale/shift -> ReLU -> Linear (fused, no launch)
    def head(w1, b1, sc, sh, w2, b2):
        z = jnp.dot(pooled, w1[...], preferred_element_type=jnp.float32) + b1[...]
        z = jnp.maximum(z * sc[...] + sh[...], 0.0)
        return jnp.dot(z, w2[...], preferred_element_type=jnp.float32) + b2[...]

    rep = head(rw1, rb1, rsc, rsh, rw2, rb2)
    y = head(cw1, cb1, csc, csh, cw2, cb2)
    if cls_sigmoid:
        y = jax.nn.sigmoid(y)
    out_ref[...] = y.reshape(out_ref.shape)
    rep_ref[...] = rep.reshape(rep_ref.shape)


# ----------------------------------------------------------------- generation-aware tiling
def _device_profile():
    try:
        kind = jax.devices()[0].device_kind.lower()
    except Exception:
        kind = ""
    two_cores = ("v7" in kind) or ("7x" in kind)        # v7x: 2 TCs share the grid
    try:
        vmem_phys = int(pltpu.get_tpu_info().vmem_capacity_bytes)
    except Exception:
        vmem_phys = (64 if two_cores else 128) * 1024 * 1024
    vmem_limit = min((vmem_phys * 3) // 4, 96 * 1024 * 1024)   # ~96MiB v5e/v6e, ~48MiB v7x
    step_budget = (8 if two_cores else 16) * 1024 * 1024       # live f32 working set/step
    return two_cores, vmem_limit, step_budget


def _pick_batch_tile(batch, seq_len, max_ch, two_cores, step_budget):
    # ~8 live f32 (seq_len, max_ch) intermediates per batch row inside the fused kernel
    per_row = max(1, seq_len * max_ch * 4 * 8)
    bt = max(1, step_budget // per_row)
    if two_cores and batch > 1:
        bt = min(bt, pl.cdiv(batch, 2))   # >=2 grid steps so both TensorCores get work
    return min(bt, batch)


# ----------------------------------------------------------------- wrapper
def qclr_forward(params, x_enc):
    b, t, enc_in = x_enc.shape
    blocks = params["blocks"]
    c_half = params["fc_b"].shape[-1]
    d_model = blocks[-1]["b1"].shape[-1]
    sim_dim = params["rep"]["w2"].shape[-1]
    ncls = params["cls"]["w2"].shape[-1]
    max_ch = max(enc_in, c_half, d_model)

    two_cores, vmem_limit, step_budget = _device_profile()
    bt = _pick_batch_tile(b, t, max_ch, two_cores, step_budget)
    grid = pl.cdiv(b, bt)
    b_pad = grid * bt

    x = x_enc.astype(jnp.float32)
    if b_pad != b:   # pad batch so every grid step is a full tile; padded rows dropped
        x = jnp.pad(x, ((0, b_pad - b), (0, 0), (0, 0)))

    use_roll, roll_sign = _roll_config()
    use_roll = use_roll and ((bt * t) % 8 == 0)   # keep sublane rolls tile-aligned
    # TODO(synk): if T is not a multiple of 8 the (bt,T,C)<->(bt*T,C) reshape may relayout.

    dilations, proj_flags = [], []
    args = [x, params["fc_w"], params["fc_b"]]
    for i, blk in enumerate(blocks):
        dilations.append(2 ** i)
        proj_flags.append("proj_w" in blk)
        args += [blk["w1"], blk["b1"], blk["w2"], blk["b2"]]
        if proj_flags[-1]:
            args += [blk["proj_w"], blk["proj_b"]]
    for name in ("rep", "cls"):
        hp = params[name]
        args += [hp["w1"], hp["b1"], hp["scale"], hp["shift"], hp["w2"], hp["b2"]]

    def full_spec(a):   # weights: full block, constant index map -> DMA'd once
        nd = a.ndim
        return pl.BlockSpec(a.shape, lambda i, _n=nd: (0,) * _n)

    in_specs = [pl.BlockSpec((bt, t, enc_in), lambda i: (i, 0, 0))]
    in_specs += [full_spec(a) for a in args[1:]]

    out_shapes = (jax.ShapeDtypeStruct((b_pad, 1, ncls), jnp.float32),
                  jax.ShapeDtypeStruct((b_pad, 1, sim_dim), jnp.float32))
    out_specs = (pl.BlockSpec((bt, 1, ncls), lambda i: (i, 0, 0)),
                 pl.BlockSpec((bt, 1, sim_dim), lambda i: (i, 0, 0)))

    kern = functools.partial(
        _qclr_kernel, dilations=tuple(dilations), proj_flags=tuple(proj_flags),
        cls_sigmoid=(ncls == 2), use_roll=use_roll, roll_sign=roll_sign)

    out, rep = pl.pallas_call(
        kern,
        out_shape=out_shapes,
        grid=(grid,),
        in_specs=in_specs,
        out_specs=out_specs,
        compiler_params=pltpu.CompilerParams(
            dimension_semantics=("parallel",),
            vmem_limit_bytes=int(vmem_limit)),
    )(*args)

    out = out.reshape(b_pad, ncls)[:b]
    rep = rep.reshape(b_pad, sim_dim)[:b]
    return out, rep


# ----------------------------------------------------------------- params
def init_params(key, enc_in, d_model, sim_dim, num_class, depth=5):
    c_half = d_model // 2
    keys = iter(jax.random.split(key, 128))

    def w(shape, scale=0.1):
        return scale * jax.random.normal(next(keys), shape, jnp.float32)

    params = {"fc_w": w((enc_in, c_half)), "fc_b": w((1, c_half))}

    channels = [c_half] * depth + [d_model]
    blocks = []
    in_prev = c_half
    for i, out_ch in enumerate(channels):
        blk = {"w1": w((3, in_prev, out_ch)), "b1": w((1, out_ch)),
               "w2": w((3, out_ch, out_ch)), "b2": w((1, out_ch))}
        final = i == len(channels) - 1
        if in_prev != out_ch or final:     # ConvBlock.projector = Conv1d(in, out, 1)
            blk["proj_w"] = w((in_prev, out_ch))
            blk["proj_b"] = w((1, out_ch))
        blocks.append(blk)
        in_prev = out_ch
    params["blocks"] = blocks

    def head(din, hid, dout):
        return {"w1": w((din, hid)), "b1": w((1, hid)),
                "gamma": 1.0 + w((1, hid)), "beta": w((1, hid)),
                "mean": w((1, hid)),
                "var": 1.0 + 0.1 * jnp.abs(jax.random.normal(next(keys), (1, hid),
                                                             jnp.float32)),
                "w2": w((hid, dout)), "b2": w((1, dout))}

    params["rep"] = head(d_model, d_model, sim_dim)    # proj_head_representation
    params["cls"] = head(d_model, d_model, num_class)  # proj_head_clinical_outcome
    return params


def prepare_params(raw):
    """One-time prep hoisted out of the forward pass: probe the hardware once and fold
    eval-mode BatchNorm1d running statistics into per-feature scale/shift."""
    _roll_config()   # warm the pltpu.roll convention probe eagerly (outside any jit)

    def fold(h):
        scale = h["gamma"] / jnp.sqrt(h["var"] + _BN_EPS)
        shift = h["beta"] - h["mean"] * scale
        return {"w1": h["w1"], "b1": h["b1"], "scale": scale, "shift": shift,
                "w2": h["w2"], "b2": h["b2"]}

    return {"fc_w": raw["fc_w"], "fc_b": raw["fc_b"], "blocks": raw["blocks"],
            "rep": fold(raw["rep"]), "cls": fold(raw["cls"])}


# ----------------------------------------------------------------- model
def model_forward(params, x_enc, x_mark_enc=None, x_dec=None, x_mark_dec=None, mask=None,
                  task_name="classification_qclr"):
    if task_name not in ("classification_qclr", "classification_qclr_asan",
                         "classification_asan"):
        return None
    # TODO(synk): Dropout(p=0.1) and BatchNorm1d are eval/inference-mode only.
    output, representation_vector = qclr_forward(params, x_enc)
    return output, representation_vector


# ----------------------------------------------------------------- main
if __name__ == "__main__":
    key = jax.random.PRNGKey(0)
    k_param, k_x, k_mark = jax.random.split(key, 3)

    # small, forward-consistent shapes
    B, T, ENC_IN = 2, 16, 4
    D_MODEL, SIM_DIM, NUM_CLASS = 32, 8, 2

    raw_params = init_params(k_param, ENC_IN, D_MODEL, SIM_DIM, NUM_CLASS)
    params = prepare_params(raw_params)     # BN fold + hardware probe (outside jit)

    x_enc = jax.random.normal(k_x, (B, T, ENC_IN), jnp.float32)
    x_mark_enc = jax.random.normal(k_mark, (B, T, 1), jnp.float32)  # unused by this path

    fwd = jax.jit(lambda p, xe, xm: model_forward(
        p, xe, xm, None, None, task_name="classification_qclr"))
    output, repr_vec = fwd(params, x_enc, x_mark_enc)
    jax.block_until_ready((output, repr_vec))

    assert output.shape == (B, NUM_CLASS)
    assert repr_vec.shape == (B, SIM_DIM)
    assert bool(jnp.all(jnp.isfinite(output))) and bool(jnp.all(jnp.isfinite(repr_vec)))
    print("KERNEL_OK")
</pallas_src>

<mosaic_0001>
module attributes {stable_mosaic.version = 11 : i64} {
  func.func @_qclr_kernel(%arg0: i32, %arg1: memref<2x16x4xf32, #tpu.memory_space<vmem>>, %arg2: memref<4x16xf32, #tpu.memory_space<vmem>>, %arg3: memref<1x16xf32, #tpu.memory_space<vmem>>, %arg4: memref<3x16x16xf32, #tpu.memory_space<vmem>>, %arg5: memref<1x16xf32, #tpu.memory_space<vmem>>, %arg6: memref<3x16x16xf32, #tpu.memory_space<vmem>>, %arg7: memref<1x16xf32, #tpu.memory_space<vmem>>, %arg8: memref<3x16x16xf32, #tpu.memory_space<vmem>>, %arg9: memref<1x16xf32, #tpu.memory_space<vmem>>, %arg10: memref<3x16x16xf32, #tpu.memory_space<vmem>>, %arg11: memref<1x16xf32, #tpu.memory_space<vmem>>, %arg12: memref<3x16x16xf32, #tpu.memory_space<vmem>>, %arg13: memref<1x16xf32, #tpu.memory_space<vmem>>, %arg14: memref<3x16x16xf32, #tpu.memory_space<vmem>>, %arg15: memref<1x16xf32, #tpu.memory_space<vmem>>, %arg16: memref<3x16x16xf32, #tpu.memory_space<vmem>>, %arg17: memref<1x16xf32, #tpu.memory_space<vmem>>, %arg18: memref<3x16x16xf32, #tpu.memory_space<vmem>>, %arg19: memref<1x16xf32, #tpu.memory_space<vmem>>, %arg20: memref<3x16x16xf32, #tpu.memory_space<vmem>>, %arg21: memref<1x16xf32, #tpu.memory_space<vmem>>, %arg22: memref<3x16x16xf32, #tpu.memory_space<vmem>>, %arg23: memref<1x16xf32, #tpu.memory_space<vmem>>, %arg24: memref<3x16x32xf32, #tpu.memory_space<vmem>>, %arg25: memref<1x32xf32, #tpu.memory_space<vmem>>, %arg26: memref<3x32x32xf32, #tpu.memory_space<vmem>>, %arg27: memref<1x32xf32, #tpu.memory_space<vmem>>, %arg28: memref<16x32xf32, #tpu.memory_space<vmem>>, %arg29: memref<1x32xf32, #tpu.memory_space<vmem>>, %arg30: memref<32x32xf32, #tpu.memory_space<vmem>>, %arg31: memref<1x32xf32, #tpu.memory_space<vmem>>, %arg32: memref<1x32xf32, #tpu.memory_space<vmem>>, %arg33: memref<1x32xf32, #tpu.memory_space<vmem>>, %arg34: memref<32x8xf32, #tpu.memory_space<vmem>>, %arg35: memref<1x8xf32, #tpu.memory_space<vmem>>, %arg36: memref<32x32xf32, #tpu.memory_space<vmem>>, %arg37: memref<1x32xf32, #tpu.memory_space<vmem>>, %arg38: memref<1x32xf32, #tpu.memory_space<vmem>>, %arg39: memref<1x32xf32, #tpu.memory_space<vmem>>, %arg40: memref<32x2xf32, #tpu.memory_space<vmem>>, %arg41: memref<1x2xf32, #tpu.memory_space<vmem>>, %arg42: memref<2x1x2xf32, #tpu.memory_space<vmem>>, %arg43: memref<2x1x8xf32, #tpu.memory_space<vmem>>) attributes {dimension_semantics = [#tpu.dimension_semantics<parallel>], iteration_bounds = array<i64: 1>, scalar_prefetch = 0 : i64, scratch_operands = 0 : i64, tpu.core_type = #tpu.core_type<tc>, window_params = [{transform_indices = @transform_0, window_bounds = array<i64: 2, 16, 4>}, {pipeline_mode = #tpu.pipeline_mode<synchronous>, transform_indices = @transform_1, window_bounds = array<i64: 4, 16>}, {pipeline_mode = #tpu.pipeline_mode<synchronous>, transform_indices = @transform_2, window_bounds = array<i64: 1, 16>}, {pipeline_mode = #tpu.pipeline_mode<synchronous>, transform_indices = @transform_3, window_bounds = array<i64: 3, 16, 16>}, {pipeline_mode = #tpu.pipeline_mode<synchronous>, transform_indices = @transform_4, window_bounds = array<i64: 1, 16>}, {pipeline_mode = #tpu.pipeline_mode<synchronous>, transform_indices = @transform_5, window_bounds = array<i64: 3, 16, 16>}, {pipeline_mode = #tpu.pipeline_mode<synchronous>, transform_indices = @transform_6, window_bounds = array<i64: 1, 16>}, {pipeline_mode = #tpu.pipeline_mode<synchronous>, transform_indices = @transform_7, window_bounds = array<i64: 3, 16, 16>}, {pipeline_mode = #tpu.pipeline_mode<synchronous>, transform_indices = @transform_8, window_bounds = array<i64: 1, 16>}, {pipeline_mode = #tpu.pipeline_mode<synchronous>, transform_indices = @transform_9, window_bounds = array<i64: 3, 16, 16>}, {pipeline_mode = #tpu.pipeline_mode<synchronous>, transform_indices = @transform_10, window_bounds = array<i64: 1, 16>}, {pipeline_mode = #tpu.pipeline_mode<synchronous>, transform_indices = @transform_11, window_bounds = array<i64: 3, 16, 16>}, {pipeline_mode = #tpu.pipeline_mode<synchronous>, transform_indices = @transform_12, window_bounds = array<i64: 1, 16>}, {pipeline_mode = #tpu.pipeline_mode<synchronous>, transform_indices = @transform_13, window_bounds = array<i64: 3, 16, 16>}, {pipeline_mode = #tpu.pipeline_mode<synchronous>, transform_indices = @transform_14, window_bounds = array<i64: 1, 16>}, {pipeline_mode = #tpu.pipeline_mode<synchronous>, transform_indices = @transform_15, window_bounds = array<i64: 3, 16, 16>}, {pipeline_mode = #tpu.pipeline_mode<synchronous>, transform_indices = @transform_16, window_bounds = array<i64: 1, 16>}, {pipeline_mode = #tpu.pipeline_mode<synchronous>, transform_indices = @transform_17, window_bounds = array<i64: 3, 16, 16>}, {pipeline_mode = #tpu.pipeline_mode<synchronous>, transform_indices = @transform_18, window_bounds = array<i64: 1, 16>}, {pipeline_mode = #tpu.pipeline_mode<synchronous>, transform_indices = @transform_19, window_bounds = array<i64: 3, 16, 16>}, {pipeline_mode = #tpu.pipeline_mode<synchronous>, transform_indices = @transform_20, window_bounds = array<i64: 1, 16>}, {pipeline_mode = #tpu.pipeline_mode<synchronous>, transform_indices = @transform_21, window_bounds = array<i64: 3, 16, 16>}, {pipeline_mode = #tpu.pipeline_mode<synchronous>, transform_indices = @transform_22, window_bounds = array<i64: 1, 16>}, {pipeline_mode = #tpu.pipeline_mode<synchronous>, transform_indices = @transform_23, window_bounds = array<i64: 3, 16, 32>}, {pipeline_mode = #tpu.pipeline_mode<synchronous>, transform_indices = @transform_24, window_bounds = array<i64: 1, 32>}, {pipeline_mode = #tpu.pipeline_mode<synchronous>, transform_indices = @transform_25, window_bounds = array<i64: 3, 32, 32>}, {pipeline_mode = #tpu.pipeline_mode<synchronous>, transform_indices = @transform_26, window_bounds = array<i64: 1, 32>}, {pipeline_mode = #tpu.pipeline_mode<synchronous>, transform_indices = @transform_27, window_bounds = array<i64: 16, 32>}, {pipeline_mode = #tpu.pipeline_mode<synchronous>, transform_indices = @transform_28, window_bounds = array<i64: 1, 32>}, {pipeline_mode = #tpu.pipeline_mode<synchronous>, transform_indices = @transform_29, window_bounds = array<i64: 32, 32>}, {pipeline_mode = #tpu.pipeline_mode<synchronous>, transform_indices = @transform_30, window_bounds = array<i64: 1, 32>}, {pipeline_mode = #tpu.pipeline_mode<synchronous>, transform_indices = @transform_31, window_bounds = array<i64: 1, 32>}, {pipeline_mode = #tpu.pipeline_mode<synchronous>, transform_indices = @transform_32, window_bounds = array<i64: 1, 32>}, {pipeline_mode = #tpu.pipeline_mode<synchronous>, transform_indices = @transform_33, window_bounds = array<i64: 32, 8>}, {pipeline_mode = #tpu.pipeline_mode<synchronous>, transform_indices = @transform_34, window_bounds = array<i64: 1, 8>}, {pipeline_mode = #tpu.pipeline_mode<synchronous>, transform_indices = @transform_35, window_bounds = array<i64: 32, 32>}, {pipeline_mode = #tpu.pipeline_mode<synchronous>, transform_indices = @transform_36, window_bounds = array<i64: 1, 32>}, {pipeline_mode = #tpu.pipeline_mode<synchronous>, transform_indices = @transform_37, window_bounds = array<i64: 1, 32>}, {pipeline_mode = #tpu.pipeline_mode<synchronous>, transform_indices = @transform_38, window_bounds = array<i64: 1, 32>}, {pipeline_mode = #tpu.pipeline_mode<synchronous>, transform_indices = @transform_39, window_bounds = array<i64: 32, 2>}, {pipeline_mode = #tpu.pipeline_mode<synchronous>, transform_indices = @transform_40, window_bounds = array<i64: 1, 2>}, {transform_indices = @transform_41, window_bounds = array<i64: 2, 1, 2>}, {transform_indices = @transform_42, window_bounds = array<i64: 2, 1, 8>}]} {
    %c0 = arith.constant 0 : index
    %c0_0 = arith.constant 0 : index
    %c0_1 = arith.constant 0 : index
    %0 = vector.load %arg1[%c0, %c0_0, %c0_1] : memref<2x16x4xf32, #tpu.memory_space<vmem>>, vector<2x16x4xf32>
    %1 = tpu.iota {dimensions = array<i32: 1>} : vector<2x16x1xi32>
    %2 = vector.shape_cast %1 : vector<2x16x1xi32> to vector<32x1xi32>
    %3 = vector.shape_cast %0 : vector<2x16x4xf32> to vector<32x4xf32>
    %c0_2 = arith.constant 0 : index
    %c0_3 = arith.constant 0 : index
    %4 = vector.load %arg2[%c0_2, %c0_3] : memref<4x16xf32, #tpu.memory_space<vmem>>, vector<4x16xf32>
    %cst = arith.constant dense<0.000000e+00> : vector<32x16xf32>
    %5 = tpu.matmul %3, %4, %cst {dimension_numbers = #tpu.dot_dimension_numbers<[1], [0], [0], [1], [0, 0, 1, 1], [], []>} : vector<32x4xf32>, vector<4x16xf32>, vector<32x16xf32> -> vector<32x16xf32>
    %c0_4 = arith.constant 0 : index
    %c0_5 = arith.constant 0 : index
    %6 = vector.load %arg3[%c0_4, %c0_5] : memref<1x16xf32, #tpu.memory_space<vmem>>, vector<1x16xf32>
    %7 = vector.broadcast %6 : vector<1x16xf32> to vector<32x16xf32>
    %8 = arith.addf %5, %7 : vector<32x16xf32>
    %c1 = arith.constant 1 : index
    %c0_6 = arith.constant 0 : index
    %c0_7 = arith.constant 0 : index
    %9 = vector.load %arg4[%c1, %c0_6, %c0_7] : memref<3x16x16xf32, #tpu.memory_space<vmem>>, vector<1x16x16xf32>
    %10 = vector.shape_cast %9 : vector<1x16x16xf32> to vector<16x16xf32>
    %cst_8 = arith.constant dense<0.000000e+00> : vector<32x16xf32>
    %11 = tpu.matmul %8, %10, %cst_8 {dimension_numbers = #tpu.dot_dimension_numbers<[1], [0], [0], [1], [0, 0, 1, 1], [], []>} : vector<32x16xf32>, vector<16x16xf32>, vector<32x16xf32> -> vector<32x16xf32>
    %c1_i32 = arith.constant 1 : i32
    %12 = vector.broadcast %c1_i32 : i32 to vector<32x1xi32>
    %13 = arith.cmpi sge, %2, %12 : vector<32x1xi32>
    %14 = vector.extract_strided_slice %8 {offsets = [31, 0], sizes = [1, 16], strides = [1, 1]} : vector<32x16xf32> to vector<1x16xf32>
    %15 = vector.extract_strided_slice %8 {offsets = [0, 0], sizes = [31, 16], strides = [1, 1]} : vector<32x16xf32> to vector<31x16xf32>
    %16 = tpu.concatenate %14, %15 in 0 : vector<1x16xf32>, vector<31x16xf32> -> vector<32x16xf32>
    %cst_9 = arith.constant 0.000000e+00 : f32
    %17 = vector.shape_cast %13 : vector<32x1xi1> to vector<32x1xi1>
    %18 = vector.broadcast %17 : vector<32x1xi1> to vector<32x16xi1>
    %19 = vector.broadcast %cst_9 : f32 to vector<32x16xf32>
    %20 = arith.select %18, %16, %19 : vector<32x16xi1>, vector<32x16xf32>
    %c0_10 = arith.constant 0 : index
    %c0_11 = arith.constant 0 : index
    %c0_12 = arith.constant 0 : index
    %21 = vector.load %arg4[%c0_10, %c0_11, %c0_12] : memref<3x16x16xf32, #tpu.memory_space<vmem>>, vector<1x16x16xf32>
    %22 = vector.shape_cast %21 : vector<1x16x16xf32> to vector<16x16xf32>
    %cst_13 = arith.constant dense<0.000000e+00> : vector<32x16xf32>
    %23 = tpu.matmul %20, %22, %cst_13 {dimension_numbers = #tpu.dot_dimension_numbers<[1], [0], [0], [1], [0, 0, 1, 1], [], []>} : vector<32x16xf32>, vector<16x16xf32>, vector<32x16xf32> -> vector<32x16xf32>
    %24 = arith.addf %11, %23 : vector<32x16xf32>
    %c15_i32 = arith.constant 15 : i32
    %25 = vector.broadcast %c15_i32 : i32 to vector<32x1xi32>
    %26 = arith.cmpi slt, %2, %25 : vector<32x1xi32>
    %27 = vector.extract_strided_slice %8 {offsets = [1, 0], sizes = [31, 16], strides = [1, 1]} : vector<32x16xf32> to vector<31x16xf32>
    %28 = vector.extract_strided_slice %8 {offsets = [0, 0], sizes = [1, 16], strides = [1, 1]} : vector<32x16xf32> to vector<1x16xf32>
    %29 = tpu.concatenate %27, %28 in 0 : vector<31x16xf32>, vector<1x16xf32> -> vector<32x16xf32>
    %cst_14 = arith.constant 0.000000e+00 : f32
    %30 = vector.shape_cast %26 : vector<32x1xi1> to vector<32x1xi1>
    %31 = vector.broadcast %30 : vector<32x1xi1> to vector<32x16xi1>
    %32 = vector.broadcast %cst_14 : f32 to vector<32x16xf32>
    %33 = arith.select %31, %29, %32 : vector<32x16xi1>, vector<32x16xf32>
    %c2 = arith.constant 2 : index
    %c0_15 = arith.constant 0 : index
    %c0_16 = arith.constant 0 : index
    %34 = vector.load %arg4[%c2, %c0_15, %c0_16] : memref<3x16x16xf32, #tpu.memory_space<vmem>>, vector<1x16x16xf32>
    %35 = vector.shape_cast %34 : vector<1x16x16xf32> to vector<16x16xf32>
    %cst_17 = arith.constant dense<0.000000e+00> : vector<32x16xf32>
    %36 = tpu.matmul %33, %35, %cst_17 {dimension_numbers = #tpu.dot_dimension_numbers<[1], [0], [0], [1], [0, 0, 1, 1], [], []>} : vector<32x16xf32>, vector<16x16xf32>, vector<32x16xf32> -> vector<32x16xf32>
    %37 = arith.addf %24, %36 : vector<32x16xf32>
    %c0_18 = arith.constant 0 : index
    %c0_19 = arith.constant 0 : index
    %38 = vector.load %arg5[%c0_18, %c0_19] : memref<1x16xf32, #tpu.memory_space<vmem>>, vector<1x16xf32>
    %39 = vector.broadcast %38 : vector<1x16xf32> to vector<32x16xf32>
    %40 = arith.addf %37, %39 : vector<32x16xf32>
    %cst_20 = arith.constant 5.000000e-01 : f32
    %41 = vector.broadcast %cst_20 : f32 to vector<32x16xf32>
    %42 = arith.mulf %41, %40 : vector<32x16xf32>
    %cst_21 = arith.constant 0.707106769 : f32
    %43 = vector.broadcast %cst_21 : f32 to vector<32x16xf32>
    %44 = arith.mulf %40, %43 : vector<32x16xf32>
    %45 = math.absf %44 : vector<32x16xf32>
    %cst_22 = arith.constant 0.327591091 : f32
    %46 = vector.broadcast %cst_22 : f32 to vector<32x16xf32>
    %47 = arith.mulf %46, %45 : vector<32x16xf32>
    %cst_23 = arith.constant 1.000000e+00 : f32
    %48 = vector.broadcast %cst_23 : f32 to vector<32x16xf32>
    %49 = arith.addf %48, %47 : vector<32x16xf32>
    %50 = tpu.reciprocal %49 {approx = true} : vector<32x16xf32> -> vector<32x16xf32>
    %cst_24 = arith.constant 1.06140542 : f32
    %51 = vector.broadcast %cst_24 : f32 to vector<32x16xf32>
    %52 = arith.mulf %50, %51 : vector<32x16xf32>
    %cst_25 = arith.constant -1.45315206 : f32
    %53 = vector.broadcast %cst_25 : f32 to vector<32x16xf32>
    %54 = arith.addf %53, %52 : vector<32x16xf32>
    %55 = arith.mulf %50, %54 : vector<32x16xf32>
    %cst_26 = arith.constant 1.42141378 : f32
    %56 = vector.broadcast %cst_26 : f32 to vector<32x16xf32>
    %57 = arith.addf %56, %55 : vector<32x16xf32>
    %58 = arith.mulf %50, %57 : vector<32x16xf32>
    %cst_27 = arith.constant -0.284496725 : f32
    %59 = vector.broadcast %cst_27 : f32 to vector<32x16xf32>
    %60 = arith.addf %59, %58 : vector<32x16xf32>
    %61 = arith.mulf %50, %60 : vector<32x16xf32>
    %cst_28 = arith.constant 0.254829586 : f32
    %62 = vector.broadcast %cst_28 : f32 to vector<32x16xf32>
    %63 = arith.addf %62, %61 : vector<32x16xf32>
    %64 = arith.mulf %50, %63 : vector<32x16xf32>
    %65 = arith.mulf %45, %45 : vector<32x16xf32>
    %cst_29 = arith.constant 0.000000e+00 : f32
    %66 = vector.broadcast %cst_29 : f32 to vector<32x16xf32>
    %67 = arith.subf %66, %65 : vector<32x16xf32>
    %68 = math.exp %67 : vector<32x16xf32>
    %69 = arith.mulf %64, %68 : vector<32x16xf32>
    %cst_30 = arith.constant 1.000000e+00 : f32
    %70 = vector.broadcast %cst_30 : f32 to vector<32x16xf32>
    %71 = arith.subf %70, %69 : vector<32x16xf32>
    %cst_31 = arith.constant 0.000000e+00 : f32
    %72 = vector.broadcast %cst_31 : f32 to vector<32x16xf32>
    %73 = arith.cmpf olt, %44, %72 : vector<32x16xf32>
    %cst_32 = arith.constant 0.000000e+00 : f32
    %74 = vector.broadcast %cst_32 : f32 to vector<32x16xf32>
    %75 = arith.subf %74, %71 : vector<32x16xf32>
    %76 = arith.select %73, %75, %71 : vector<32x16xi1>, vector<32x16xf32>
    %cst_33 = arith.constant 1.000000e+00 : f32
    %77 = vector.broadcast %cst_33 : f32 to vector<32x16xf32>
    %78 = arith.addf %77, %76 : vector<32x16xf32>
    %79 = arith.mulf %42, %78 : vector<32x16xf32>
    %c1_34 = arith.constant 1 : index
    %c0_35 = arith.constant 0 : index
    %c0_36 = arith.constant 0 : index
    %80 = vector.load %arg6[%c1_34, %c0_35, %c0_36] : memref<3x16x16xf32, #tpu.memory_space<vmem>>, vector<1x16x16xf32>
    %81 = vector.shape_cast %80 : vector<1x16x16xf32> to vector<16x16xf32>
    %cst_37 = arith.constant dense<0.000000e+00> : vector<32x16xf32>
    %82 = tpu.matmul %79, %81, %cst_37 {dimension_numbers = #tpu.dot_dimension_numbers<[1], [0], [0], [1], [0, 0, 1, 1], [], []>} : vector<32x16xf32>, vector<16x16xf32>, vector<32x16xf32> -> vector<32x16xf32>
    %c1_i32_38 = arith.constant 1 : i32
    %83 = vector.broadcast %c1_i32_38 : i32 to vector<32x1xi32>
    %84 = arith.cmpi sge, %2, %83 : vector<32x1xi32>
    %85 = vector.extract_strided_slice %79 {offsets = [31, 0], sizes = [1, 16], strides = [1, 1]} : vector<32x16xf32> to vector<1x16xf32>
    %86 = vector.extract_strided_slice %79 {offsets = [0, 0], sizes = [31, 16], strides = [1, 1]} : vector<32x16xf32> to vector<31x16xf32>
    %87 = tpu.concatenate %85, %86 in 0 : vector<1x16xf32>, vector<31x16xf32> -> vector<32x16xf32>
    %cst_39 = arith.constant 0.000000e+00 : f32
    %88 = vector.shape_cast %84 : vector<32x1xi1> to vector<32x1xi1>
    %89 = vector.broadcast %88 : vector<32x1xi1> to vector<32x16xi1>
    %90 = vector.broadcast %cst_39 : f32 to vector<32x16xf32>
    %91 = arith.select %89, %87, %90 : vector<32x16xi1>, vector<32x16xf32>
    %c0_40 = arith.constant 0 : index
    %c0_41 = arith.constant 0 : index
    %c0_42 = arith.constant 0 : index
    %92 = vector.load %arg6[%c0_40, %c0_41, %c0_42] : memref<3x16x16xf32, #tpu.memory_space<vmem>>, vector<1x16x16xf32>
    %93 = vector.shape_cast %92 : vector<1x16x16xf32> to vector<16x16xf32>
    %cst_43 = arith.constant dense<0.000000e+00> : vector<32x16xf32>
    %94 = tpu.matmul %91, %93, %cst_43 {dimension_numbers = #tpu.dot_dimension_numbers<[1], [0], [0], [1], [0, 0, 1, 1], [], []>} : vector<32x16xf32>, vector<16x16xf32>, vector<32x16xf32> -> vector<32x16xf32>
    %95 = arith.addf %82, %94 : vector<32x16xf32>
    %c15_i32_44 = arith.constant 15 : i32
    %96 = vector.broadcast %c15_i32_44 : i32 to vector<32x1xi32>
    %97 = arith.cmpi slt, %2, %96 : vector<32x1xi32>
    %98 = vector.extract_strided_slice %79 {offsets = [1, 0], sizes = [31, 16], strides = [1, 1]} : vector<32x16xf32> to vector<31x16xf32>
    %99 = vector.extract_strided_slice %79 {offsets = [0, 0], sizes = [1, 16], strides = [1, 1]} : vector<32x16xf32> to vector<1x16xf32>
    %100 = tpu.concatenate %98, %99 in 0 : vector<31x16xf32>, vector<1x16xf32> -> vector<32x16xf32>
    %cst_45 = arith.constant 0.000000e+00 : f32
    %101 = vector.shape_cast %97 : vector<32x1xi1> to vector<32x1xi1>
    %102 = vector.broadcast %101 : vector<32x1xi1> to vector<32x16xi1>
    %103 = vector.broadcast %cst_45 : f32 to vector<32x16xf32>
    %104 = arith.select %102, %100, %103 : vector<32x16xi1>, vector<32x16xf32>
    %c2_46 = arith.constant 2 : index
    %c0_47 = arith.constant 0 : index
    %c0_48 = arith.constant 0 : index
    %105 = vector.load %arg6[%c2_46, %c0_47, %c0_48] : memref<3x16x16xf32, #tpu.memory_space<vmem>>, vector<1x16x16xf32>
    %106 = vector.shape_cast %105 : vector<1x16x16xf32> to vector<16x16xf32>
    %cst_49 = arith.constant dense<0.000000e+00> : vector<32x16xf32>
    %107 = tpu.matmul %104, %106, %cst_49 {dimension_numbers = #tpu.dot_dimension_numbers<[1], [0], [0], [1], [0, 0, 1, 1], [], []>} : vector<32x16xf32>, vector<16x16xf32>, vector<32x16xf32> -> vector<32x16xf32>
    %108 = arith.addf %95, %107 : vector<32x16xf32>
    %c0_50 = arith.constant 0 : index
    %c0_51 = arith.constant 0 : index
    %109 = vector.load %arg7[%c0_50, %c0_51] : memref<1x16xf32, #tpu.memory_space<vmem>>, vector<1x16xf32>
    %110 = vector.broadcast %109 : vector<1x16xf32> to vector<32x16xf32>
    %111 = arith.addf %108, %110 : vector<32x16xf32>
    %cst_52 = arith.constant 5.000000e-01 : f32
    %112 = vector.broadcast %cst_52 : f32 to vector<32x16xf32>
    %113 = arith.mulf %112, %111 : vector<32x16xf32>
    %cst_53 = arith.constant 0.707106769 : f32
    %114 = vector.broadcast %cst_53 : f32 to vector<32x16xf32>
    %115 = arith.mulf %111, %114 : vector<32x16xf32>
    %116 = math.absf %115 : vector<32x16xf32>
    %cst_54 = arith.constant 0.327591091 : f32
    %117 = vector.broadcast %cst_54 : f32 to vector<32x16xf32>
    %118 = arith.mulf %117, %116 : vector<32x16xf32>
    %cst_55 = arith.constant 1.000000e+00 : f32
    %119 = vector.broadcast %cst_55 : f32 to vector<32x16xf32>
    %120 = arith.addf %119, %118 : vector<32x16xf32>
    %121 = tpu.reciprocal %120 {approx = true} : vector<32x16xf32> -> vector<32x16xf32>
    %cst_56 = arith.constant 1.06140542 : f32
    %122 = vector.broadcast %cst_56 : f32 to vector<32x16xf32>
    %123 = arith.mulf %121, %122 : vector<32x16xf32>
    %cst_57 = arith.constant -1.45315206 : f32
    %124 = vector.broadcast %cst_57 : f32 to vector<32x16xf32>
    %125 = arith.addf %124, %123 : vector<32x16xf32>
    %126 = arith.mulf %121, %125 : vector<32x16xf32>
    %cst_58 = arith.constant 1.42141378 : f32
    %127 = vector.broadcast %cst_58 : f32 to vector<32x16xf32>
    %128 = arith.addf %127, %126 : vector<32x16xf32>
    %129 = arith.mulf %121, %128 : vector<32x16xf32>
    %cst_59 = arith.constant -0.284496725 : f32
    %130 = vector.broadcast %cst_59 : f32 to vector<32x16xf32>
    %131 = arith.addf %130, %129 : vector<32x16xf32>
    %132 = arith.mulf %121, %131 : vector<32x16xf32>
    %cst_60 = arith.constant 0.254829586 : f32
    %133 = vector.broadcast %cst_60 : f32 to vector<32x16xf32>
    %134 = arith.addf %133, %132 : vector<32x16xf32>
    %135 = arith.mulf %121, %134 : vector<32x16xf32>
    %136 = arith.mulf %116, %116 : vector<32x16xf32>
    %cst_61 = arith.constant 0.000000e+00 : f32
    %137 = vector.broadcast %cst_61 : f32 to vector<32x16xf32>
    %138 = arith.subf %137, %136 : vector<32x16xf32>
    %139 = math.exp %138 : vector<32x16xf32>
    %140 = arith.mulf %135, %139 : vector<32x16xf32>
    %cst_62 = arith.constant 1.000000e+00 : f32
    %141 = vector.broadcast %cst_62 : f32 to vector<32x16xf32>
    %142 = arith.subf %141, %140 : vector<32x16xf32>
    %cst_63 = arith.constant 0.000000e+00 : f32
    %143 = vector.broadcast %cst_63 : f32 to vector<32x16xf32>
    %144 = arith.cmpf olt, %115, %143 : vector<32x16xf32>
    %cst_64 = arith.constant 0.000000e+00 : f32
    %145 = vector.broadcast %cst_64 : f32 to vector<32x16xf32>
    %146 = arith.subf %145, %142 : vector<32x16xf32>
    %147 = arith.select %144, %146, %142 : vector<32x16xi1>, vector<32x16xf32>
    %cst_65 = arith.constant 1.000000e+00 : f32
    %148 = vector.broadcast %cst_65 : f32 to vector<32x16xf32>
    %149 = arith.addf %148, %147 : vector<32x16xf32>
    %150 = arith.mulf %113, %149 : vector<32x16xf32>
    %151 = arith.addf %150, %8 : vector<32x16xf32>
    %c1_66 = arith.constant 1 : index
    %c0_67 = arith.constant 0 : index
    %c0_68 = arith.constant 0 : index
    %152 = vector.load %arg8[%c1_66, %c0_67, %c0_68] : memref<3x16x16xf32, #tpu.memory_space<vmem>>, vector<1x16x16xf32>
    %153 = vector.shape_cast %152 : vector<1x16x16xf32> to vector<16x16xf32>
    %cst_69 = arith.constant dense<0.000000e+00> : vector<32x16xf32>
    %154 = tpu.matmul %151, %153, %cst_69 {dimension_numbers = #tpu.dot_dimension_numbers<[1], [0], [0], [1], [0, 0, 1, 1], [], []>} : vector<32x16xf32>, vector<16x16xf32>, vector<32x16xf32> -> vector<32x16xf32>
    %c2_i32 = arith.constant 2 : i32
    %155 = vector.broadcast %c2_i32 : i32 to vector<32x1xi32>
    %156 = arith.cmpi sge, %2, %155 : vector<32x1xi32>
    %157 = vector.extract_strided_slice %151 {offsets = [30, 0], sizes = [2, 16], strides = [1, 1]} : vector<32x16xf32> to vector<2x16xf32>
    %158 = vector.extract_strided_slice %151 {offsets = [0, 0], sizes = [30, 16], strides = [1, 1]} : vector<32x16xf32> to vector<30x16xf32>
    %159 = tpu.concatenate %157, %158 in 0 : vector<2x16xf32>, vector<30x16xf32> -> vector<32x16xf32>
    %cst_70 = arith.constant 0.000000e+00 : f32
    %160 = vector.shape_cast %156 : vector<32x1xi1> to vector<32x1xi1>
    %161 = vector.broadcast %160 : vector<32x1xi1> to vector<32x16xi1>
    %162 = vector.broadcast %cst_70 : f32 to vector<32x16xf32>
    %163 = arith.select %161, %159, %162 : vector<32x16xi1>, vector<32x16xf32>
    %c0_71 = arith.constant 0 : index
    %c0_72 = arith.constant 0 : index
    %c0_73 = arith.constant 0 : index
    %164 = vector.load %arg8[%c0_71, %c0_72, %c0_73] : memref<3x16x16xf32, #tpu.memory_space<vmem>>, vector<1x16x16xf32>
    %165 = vector.shape_cast %164 : vector<1x16x16xf32> to vector<16x16xf32>
    %cst_74 = arith.constant dense<0.000000e+00> : vector<32x16xf32>
    %166 = tpu.matmul %163, %165, %cst_74 {dimension_numbers = #tpu.dot_dimension_numbers<[1], [0], [0], [1], [0, 0, 1, 1], [], []>} : vector<32x16xf32>, vector<16x16xf32>, vector<32x16xf32> -> vector<32x16xf32>
    %167 = arith.addf %154, %166 : vector<32x16xf32>
    %c14_i32 = arith.constant 14 : i32
    %168 = vector.broadcast %c14_i32 : i32 to vector<32x1xi32>
    %169 = arith.cmpi slt, %2, %168 : vector<32x1xi32>
    %170 = vector.extract_strided_slice %151 {offsets = [2, 0], sizes = [30, 16], strides = [1, 1]} : vector<32x16xf32> to vector<30x16xf32>
    %171 = vector.extract_strided_slice %151 {offsets = [0, 0], sizes = [2, 16], strides = [1, 1]} : vector<32x16xf32> to vector<2x16xf32>
    %172 = tpu.concatenate %170, %171 in 0 : vector<30x16xf32>, vector<2x16xf32> -> vector<32x16xf32>
    %cst_75 = arith.constant 0.000000e+00 : f32
    %173 = vector.shape_cast %169 : vector<32x1xi1> to vector<32x1xi1>
    %174 = vector.broadcast %173 : vector<32x1xi1> to vector<32x16xi1>
    %175 = vector.broadcast %cst_75 : f32 to vector<32x16xf32>
    %176 = arith.select %174, %172, %175 : vector<32x16xi1>, vector<32x16xf32>
    %c2_76 = arith.constant 2 : index
    %c0_77 = arith.constant 0 : index
    %c0_78 = arith.constant 0 : index
    %177 = vector.load %arg8[%c2_76, %c0_77, %c0_78] : memref<3x16x16xf32, #tpu.memory_space<vmem>>, vector<1x16x16xf32>
    %178 = vector.shape_cast %177 : vector<1x16x16xf32> to vector<16x16xf32>
    %cst_79 = arith.constant dense<0.000000e+00> : vector<32x16xf32>
    %179 = tpu.matmul %176, %178, %cst_79 {dimension_numbers = #tpu.dot_dimension_numbers<[1], [0], [0], [1], [0, 0, 1, 1], [], []>} : vector<32x16xf32>, vector<16x16xf32>, vector<32x16xf32> -> vector<32x16xf32>
    %180 = arith.addf %167, %179 : vector<32x16xf32>
    %c0_80 = arith.constant 0 : index
    %c0_81 = arith.constant 0 : index
    %181 = vector.load %arg9[%c0_80, %c0_81] : memref<1x16xf32, #tpu.memory_space<vmem>>, vector<1x16xf32>
    %182 = vector.broadcast %181 : vector<1x16xf32> to vector<32x16xf32>
    %183 = arith.addf %180, %182 : vector<32x16xf32>
    %cst_82 = arith.constant 5.000000e-01 : f32
    %184 = vector.broadcast %cst_82 : f32 to vector<32x16xf32>
    %185 = arith.mulf %184, %183 : vector<32x16xf32>
    %cst_83 = arith.constant 0.707106769 : f32
    %186 = vector.broadcast %cst_83 : f32 to vector<32x16xf32>
    %187 = arith.mulf %183, %186 : vector<32x16xf32>
    %188 = math.absf %187 : vector<32x16xf32>
    %cst_84 = arith.constant 0.327591091 : f32
    %189 = vector.broadcast %cst_84 : f32 to vector<32x16xf32>
    %190 = arith.mulf %189, %188 : vector<32x16xf32>
    %cst_85 = arith.constant 1.000000e+00 : f32
    %191 = vector.broadcast %cst_85 : f32 to vector<32x16xf32>
    %192 = arith.addf %191, %190 : vector<32x16xf32>
    %193 = tpu.reciprocal %192 {approx = true} : vector<32x16xf32> -> vector<32x16xf32>
    %cst_86 = arith.constant 1.06140542 : f32
    %194 = vector.broadcast %cst_86 : f32 to vector<32x16xf32>
    %195 = arith.mulf %193, %194 : vector<32x16xf32>
    %cst_87 = arith.constant -1.45315206 : f32
    %196 = vector.broadcast %cst_87 : f32 to vector<32x16xf32>
    %197 = arith.addf %196, %195 : vector<32x16xf32>
    %198 = arith.mulf %193, %197 : vector<32x16xf32>
    %cst_88 = arith.constant 1.42141378 : f32
    %199 = vector.broadcast %cst_88 : f32 to vector<32x16xf32>
    %200 = arith.addf %199, %198 : vector<32x16xf32>
    %201 = arith.mulf %193, %200 : vector<32x16xf32>
    %cst_89 = arith.constant -0.284496725 : f32
    %202 = vector.broadcast %cst_89 : f32 to vector<32x16xf32>
    %203 = arith.addf %202, %201 : vector<32x16xf32>
    %204 = arith.mulf %193, %203 : vector<32x16xf32>
    %cst_90 = arith.constant 0.254829586 : f32
    %205 = vector.broadcast %cst_90 : f32 to vector<32x16xf32>
    %206 = arith.addf %205, %204 : vector<32x16xf32>
    %207 = arith.mulf %193, %206 : vector<32x16xf32>
    %208 = arith.mulf %188, %188 : vector<32x16xf32>
    %cst_91 = arith.constant 0.000000e+00 : f32
    %209 = vector.broadcast %cst_91 : f32 to vector<32x16xf32>
    %210 = arith.subf %209, %208 : vector<32x16xf32>
    %211 = math.exp %210 : vector<32x16xf32>
    %212 = arith.mulf %207, %211 : vector<32x16xf32>
    %cst_92 = arith.constant 1.000000e+00 : f32
    %213 = vector.broadcast %cst_92 : f32 to vector<32x16xf32>
    %214 = arith.subf %213, %212 : vector<32x16xf32>
    %cst_93 = arith.constant 0.000000e+00 : f32
    %215 = vector.broadcast %cst_93 : f32 to vector<32x16xf32>
    %216 = arith.cmpf olt, %187, %215 : vector<32x16xf32>
    %cst_94 = arith.constant 0.000000e+00 : f32
    %217 = vector.broadcast %cst_94 : f32 to vector<32x16xf32>
    %218 = arith.subf %217, %214 : vector<32x16xf32>
    %219 = arith.select %216, %218, %214 : vector<32x16xi1>, vector<32x16xf32>
    %cst_95 = arith.constant 1.000000e+00 : f32
    %220 = vector.broadcast %cst_95 : f32 to vector<32x16xf32>
    %221 = arith.addf %220, %219 : vector<32x16xf32>
    %222 = arith.mulf %185, %221 : vector<32x16xf32>
    %c1_96 = arith.constant 1 : index
    %c0_97 = arith.constant 0 : index
    %c0_98 = arith.constant 0 : index
    %223 = vector.load %arg10[%c1_96, %c0_97, %c0_98] : memref<3x16x16xf32, #tpu.memory_space<vmem>>, vector<1x16x16xf32>
    %224 = vector.shape_cast %223 : vector<1x16x16xf32> to vector<16x16xf32>
    %cst_99 = arith.constant dense<0.000000e+00> : vector<32x16xf32>
    %225 = tpu.matmul %222, %224, %cst_99 {dimension_numbers = #tpu.dot_dimension_numbers<[1], [0], [0], [1], [0, 0, 1, 1], [], []>} : vector<32x16xf32>, vector<16x16xf32>, vector<32x16xf32> -> vector<32x16xf32>
    %c2_i32_100 = arith.constant 2 : i32
    %226 = vector.broadcast %c2_i32_100 : i32 to vector<32x1xi32>
    %227 = arith.cmpi sge, %2, %226 : vector<32x1xi32>
    %228 = vector.extract_strided_slice %222 {offsets = [30, 0], sizes = [2, 16], strides = [1, 1]} : vector<32x16xf32> to vector<2x16xf32>
    %229 = vector.extract_strided_slice %222 {offsets = [0, 0], sizes = [30, 16], strides = [1, 1]} : vector<32x16xf32> to vector<30x16xf32>
    %230 = tpu.concatenate %228, %229 in 0 : vector<2x16xf32>, vector<30x16xf32> -> vector<32x16xf32>
    %cst_101 = arith.constant 0.000000e+00 : f32
    %231 = vector.shape_cast %227 : vector<32x1xi1> to vector<32x1xi1>
    %232 = vector.broadcast %231 : vector<32x1xi1> to vector<32x16xi1>
    %233 = vector.broadcast %cst_101 : f32 to vector<32x16xf32>
    %234 = arith.select %232, %230, %233 : vector<32x16xi1>, vector<32x16xf32>
    %c0_102 = arith.constant 0 : index
    %c0_103 = arith.constant 0 : index
    %c0_104 = arith.constant 0 : index
    %235 = vector.load %arg10[%c0_102, %c0_103, %c0_104] : memref<3x16x16xf32, #tpu.memory_space<vmem>>, vector<1x16x16xf32>
    %236 = vector.shape_cast %235 : vector<1x16x16xf32> to vector<16x16xf32>
    %cst_105 = arith.constant dense<0.000000e+00> : vector<32x16xf32>
    %237 = tpu.matmul %234, %236, %cst_105 {dimension_numbers = #tpu.dot_dimension_numbers<[1], [0], [0], [1], [0, 0, 1, 1], [], []>} : vector<32x16xf32>, vector<16x16xf32>, vector<32x16xf32> -> vector<32x16xf32>
    %238 = arith.addf %225, %237 : vector<32x16xf32>
    %c14_i32_106 = arith.constant 14 : i32
    %239 = vector.broadcast %c14_i32_106 : i32 to vector<32x1xi32>
    %240 = arith.cmpi slt, %2, %239 : vector<32x1xi32>
    %241 = vector.extract_strided_slice %222 {offsets = [2, 0], sizes = [30, 16], strides = [1, 1]} : vector<32x16xf32> to vector<30x16xf32>
    %242 = vector.extract_strided_slice %222 {offsets = [0, 0], sizes = [2, 16], strides = [1, 1]} : vector<32x16xf32> to vector<2x16xf32>
    %243 = tpu.concatenate %241, %242 in 0 : vector<30x16xf32>, vector<2x16xf32> -> vector<32x16xf32>
    %cst_107 = arith.constant 0.000000e+00 : f32
    %244 = vector.shape_cast %240 : vector<32x1xi1> to vector<32x1xi1>
    %245 = vector.broadcast %244 : vector<32x1xi1> to vector<32x16xi1>
    %246 = vector.broadcast %cst_107 : f32 to vector<32x16xf32>
    %247 = arith.select %245, %243, %246 : vector<32x16xi1>, vector<32x16xf32>
    %c2_108 = arith.constant 2 : index
    %c0_109 = arith.constant 0 : index
    %c0_110 = arith.constant 0 : index
    %248 = vector.load %arg10[%c2_108, %c0_109, %c0_110] : memref<3x16x16xf32, #tpu.memory_space<vmem>>, vector<1x16x16xf32>
    %249 = vector.shape_cast %248 : vector<1x16x16xf32> to vector<16x16xf32>
    %cst_111 = arith.constant dense<0.000000e+00> : vector<32x16xf32>
    %250 = tpu.matmul %247, %249, %cst_111 {dimension_numbers = #tpu.dot_dimension_numbers<[1], [0], [0], [1], [0, 0, 1, 1], [], []>} : vector<32x16xf32>, vector<16x16xf32>, vector<32x16xf32> -> vector<32x16xf32>
    %251 = arith.addf %238, %250 : vector<32x16xf32>
    %c0_112 = arith.constant 0 : index
    %c0_113 = arith.constant 0 : index
    %252 = vector.load %arg11[%c0_112, %c0_113] : memref<1x16xf32, #tpu.memory_space<vmem>>, vector<1x16xf32>
    %253 = vector.broadcast %252 : vector<1x16xf32> to vector<32x16xf32>
    %254 = arith.addf %251, %253 : vector<32x16xf32>
    %cst_114 = arith.constant 5.000000e-01 : f32
    %255 = vector.broadcast %cst_114 : f32 to vector<32x16xf32>
    %256 = arith.mulf %255, %254 : vector<32x16xf32>
    %cst_115 = arith.constant 0.707106769 : f32
    %257 = vector.broadcast %cst_115 : f32 to vector<32x16xf32>
    %258 = arith.mulf %254, %257 : vector<32x16xf32>
    %259 = math.absf %258 : vector<32x16xf32>
    %cst_116 = arith.constant 0.327591091 : f32
    %260 = vector.broadcast %cst_116 : f32 to vector<32x16xf32>
    %261 = arith.mulf %260, %259 : vector<32x16xf32>
    %cst_117 = arith.constant 1.000000e+00 : f32
    %262 = vector.broadcast %cst_117 : f32 to vector<32x16xf32>
    %263 = arith.addf %262, %261 : vector<32x16xf32>
    %264 = tpu.reciprocal %263 {approx = true} : vector<32x16xf32> -> vector<32x16xf32>
    %cst_118 = arith.constant 1.06140542 : f32
    %265 = vector.broadcast %cst_118 : f32 to vector<32x16xf32>
    %266 = arith.mulf %264, %265 : vector<32x16xf32>
    %cst_119 = arith.constant -1.45315206 : f32
    %267 = vector.broadcast %cst_119 : f32 to vector<32x16xf32>
    %268 = arith.addf %267, %266 : vector<32x16xf32>
    %269 = arith.mulf %264, %268 : vector<32x16xf32>
    %cst_120 = arith.constant 1.42141378 : f32
    %270 = vector.broadcast %cst_120 : f32 to vector<32x16xf32>
    %271 = arith.addf %270, %269 : vector<32x16xf32>
    %272 = arith.mulf %264, %271 : vector<32x16xf32>
    %cst_121 = arith.constant -0.284496725 : f32
    %273 = vector.broadcast %cst_121 : f32 to vector<32x16xf32>
    %274 = arith.addf %273, %272 : vector<32x16xf32>
    %275 = arith.mulf %264, %274 : vector<32x16xf32>
    %cst_122 = arith.constant 0.254829586 : f32
    %276 = vector.broadcast %cst_122 : f32 to vector<32x16xf32>
    %277 = arith.addf %276, %275 : vector<32x16xf32>
    %278 = arith.mulf %264, %277 : vector<32x16xf32>
    %279 = arith.mulf %259, %259 : vector<32x16xf32>
    %cst_123 = arith.constant 0.000000e+00 : f32
    %280 = vector.broadcast %cst_123 : f32 to vector<32x16xf32>
    %281 = arith.subf %280, %279 : vector<32x16xf32>
    %282 = math.exp %281 : vector<32x16xf32>
    %283 = arith.mulf %278, %282 : vector<32x16xf32>
    %cst_124 = arith.constant 1.000000e+00 : f32
    %284 = vector.broadcast %cst_124 : f32 to vector<32x16xf32>
    %285 = arith.subf %284, %283 : vector<32x16xf32>
    %cst_125 = arith.constant 0.000000e+00 : f32
    %286 = vector.broadcast %cst_125 : f32 to vector<32x16xf32>
    %287 = arith.cmpf olt, %258, %286 : vector<32x16xf32>
    %cst_126 = arith.constant 0.000000e+00 : f32
    %288 = vector.broadcast %cst_126 : f32 to vector<32x16xf32>
    %289 = arith.subf %288, %285 : vector<32x16xf32>
    %290 = arith.select %287, %289, %285 : vector<32x16xi1>, vector<32x16xf32>
    %cst_127 = arith.constant 1.000000e+00 : f32
    %291 = vector.broadcast %cst_127 : f32 to vector<32x16xf32>
    %292 = arith.addf %291, %290 : vector<32x16xf32>
    %293 = arith.mulf %256, %292 : vector<32x16xf32>
    %294 = arith.addf %293, %151 : vector<32x16xf32>
    %c1_128 = arith.constant 1 : index
    %c0_129 = arith.constant 0 : index
    %c0_130 = arith.constant 0 : index
    %295 = vector.load %arg12[%c1_128, %c0_129, %c0_130] : memref<3x16x16xf32, #tpu.memory_space<vmem>>, vector<1x16x16xf32>
    %296 = vector.shape_cast %295 : vector<1x16x16xf32> to vector<16x16xf32>
    %cst_131 = arith.constant dense<0.000000e+00> : vector<32x16xf32>
    %297 = tpu.matmul %294, %296, %cst_131 {dimension_numbers = #tpu.dot_dimension_numbers<[1], [0], [0], [1], [0, 0, 1, 1], [], []>} : vector<32x16xf32>, vector<16x16xf32>, vector<32x16xf32> -> vector<32x16xf32>
    %c4_i32 = arith.constant 4 : i32
    %298 = vector.broadcast %c4_i32 : i32 to vector<32x1xi32>
    %299 = arith.cmpi sge, %2, %298 : vector<32x1xi32>
    %300 = vector.extract_strided_slice %294 {offsets = [28, 0], sizes = [4, 16], strides = [1, 1]} : vector<32x16xf32> to vector<4x16xf32>
    %301 = vector.extract_strided_slice %294 {offsets = [0, 0], sizes = [28, 16], strides = [1, 1]} : vector<32x16xf32> to vector<28x16xf32>
    %302 = tpu.concatenate %300, %301 in 0 : vector<4x16xf32>, vector<28x16xf32> -> vector<32x16xf32>
    %cst_132 = arith.constant 0.000000e+00 : f32
    %303 = vector.shape_cast %299 : vector<32x1xi1> to vector<32x1xi1>
    %304 = vector.broadcast %303 : vector<32x1xi1> to vector<32x16xi1>
    %305 = vector.broadcast %cst_132 : f32 to vector<32x16xf32>
    %306 = arith.select %304, %302, %305 : vector<32x16xi1>, vector<32x16xf32>
    %c0_133 = arith.constant 0 : index
    %c0_134 = arith.constant 0 : index
    %c0_135 = arith.constant 0 : index
    %307 = vector.load %arg12[%c0_133, %c0_134, %c0_135] : memref<3x16x16xf32, #tpu.memory_space<vmem>>, vector<1x16x16xf32>
    %308 = vector.shape_cast %307 : vector<1x16x16xf32> to vector<16x16xf32>
    %cst_136 = arith.constant dense<0.000000e+00> : vector<32x16xf32>
    %309 = tpu.matmul %306, %308, %cst_136 {dimension_numbers = #tpu.dot_dimension_numbers<[1], [0], [0], [1], [0, 0, 1, 1], [], []>} : vector<32x16xf32>, vector<16x16xf32>, vector<32x16xf32> -> vector<32x16xf32>
    %310 = arith.addf %297, %309 : vector<32x16xf32>
    %c12_i32 = arith.constant 12 : i32
    %311 = vector.broadcast %c12_i32 : i32 to vector<32x1xi32>
    %312 = arith.cmpi slt, %2, %311 : vector<32x1xi32>
    %313 = vector.extract_strided_slice %294 {offsets = [4, 0], sizes = [28, 16], strides = [1, 1]} : vector<32x16xf32> to vector<28x16xf32>
    %314 = vector.extract_strided_slice %294 {offsets = [0, 0], sizes = [4, 16], strides = [1, 1]} : vector<32x16xf32> to vector<4x16xf32>
    %315 = tpu.concatenate %313, %314 in 0 : vector<28x16xf32>, vector<4x16xf32> -> vector<32x16xf32>
    %cst_137 = arith.constant 0.000000e+00 : f32
    %316 = vector.shape_cast %312 : vector<32x1xi1> to vector<32x1xi1>
    %317 = vector.broadcast %316 : vector<32x1xi1> to vector<32x16xi1>
    %318 = vector.broadcast %cst_137 : f32 to vector<32x16xf32>
    %319 = arith.select %317, %315, %318 : vector<32x16xi1>, vector<32x16xf32>
    %c2_138 = arith.constant 2 : index
    %c0_139 = arith.constant 0 : index
    %c0_140 = arith.constant 0 : index
    %320 = vector.load %arg12[%c2_138, %c0_139, %c0_140] : memref<3x16x16xf32, #tpu.memory_space<vmem>>, vector<1x16x16xf32>
    %321 = vector.shape_cast %320 : vector<1x16x16xf32> to vector<16x16xf32>
    %cst_141 = arith.constant dense<0.000000e+00> : vector<32x16xf32>
    %322 = tpu.matmul %319, %321, %cst_141 {dimension_numbers = #tpu.dot_dimension_numbers<[1], [0], [0], [1], [0, 0, 1, 1], [], []>} : vector<32x16xf32>, vector<16x16xf32>, vector<32x16xf32> -> vector<32x16xf32>
    %323 = arith.addf %310, %322 : vector<32x16xf32>
    %c0_142 = arith.constant 0 : index
    %c0_143 = arith.constant 0 : index
    %324 = vector.load %arg13[%c0_142, %c0_143] : memref<1x16xf32, #tpu.memory_space<vmem>>, vector<1x16xf32>
    %325 = vector.broadcast %324 : vector<1x16xf32> to vector<32x16xf32>
    %326 = arith.addf %323, %325 : vector<32x16xf32>
    %cst_144 = arith.constant 5.000000e-01 : f32
    %327 = vector.broadcast %cst_144 : f32 to vector<32x16xf32>
    %328 = arith.mulf %327, %326 : vector<32x16xf32>
    %cst_145 = arith.constant 0.707106769 : f32
    %329 = vector.broadcast %cst_145 : f32 to vector<32x16xf32>
    %330 = arith.mulf %326, %329 : vector<32x16xf32>
    %331 = math.absf %330 : vector<32x16xf32>
    %cst_146 = arith.constant 0.327591091 : f32
    %332 = vector.broadcast %cst_146 : f32 to vector<32x16xf32>
    %333 = arith.mulf %332, %331 : vector<32x16xf32>
    %cst_147 = arith.constant 1.000000e+00 : f32
    %334 = vector.broadcast %cst_147 : f32 to vector<32x16xf32>
    %335 = arith.addf %334, %333 : vector<32x16xf32>
    %336 = tpu.reciprocal %335 {approx = true} : vector<32x16xf32> -> vector<32x16xf32>
    %cst_148 = arith.constant 1.06140542 : f32
    %337 = vector.broadcast %cst_148 : f32 to vector<32x16xf32>
    %338 = arith.mulf %336, %337 : vector<32x16xf32>
    %cst_149 = arith.constant -1.45315206 : f32
    %339 = vector.broadcast %cst_149 : f32 to vector<32x16xf32>
    %340 = arith.addf %339, %338 : vector<32x16xf32>
    %341 = arith.mulf %336, %340 : vector<32x16xf32>
    %cst_150 = arith.constant 1.42141378 : f32
    %342 = vector.broadcast %cst_150 : f32 to vector<32x16xf32>
    %343 = arith.addf %342, %341 : vector<32x16xf32>
    %344 = arith.mulf %336, %343 : vector<32x16xf32>
    %cst_151 = arith.constant -0.284496725 : f32
    %345 = vector.broadcast %cst_151 : f32 to vector<32x16xf32>
    %346 = arith.addf %345, %344 : vector<32x16xf32>
    %347 = arith.mulf %336, %346 : vector<32x16xf32>
    %cst_152 = arith.constant 0.254829586 : f32
    %348 = vector.broadcast %cst_152 : f32 to vector<32x16xf32>
    %349 = arith.addf %348, %347 : vector<32x16xf32>
    %350 = arith.mulf %336, %349 : vector<32x16xf32>
    %351 = arith.mulf %331, %331 : vector<32x16xf32>
    %cst_153 = arith.constant 0.000000e+00 : f32
    %352 = vector.broadcast %cst_153 : f32 to vector<32x16xf32>
    %353 = arith.subf %352, %351 : vector<32x16xf32>
    %354 = math.exp %353 : vector<32x16xf32>
    %355 = arith.mulf %350, %354 : vector<32x16xf32>
    %cst_154 = arith.constant 1.000000e+00 : f32
    %356 = vector.broadcast %cst_154 : f32 to vector<32x16xf32>
    %357 = arith.subf %356, %355 : vector<32x16xf32>
    %cst_155 = arith.constant 0.000000e+00 : f32
    %358 = vector.broadcast %cst_155 : f32 to vector<32x16xf32>
    %359 = arith.cmpf olt, %330, %358 : vector<32x16xf32>
    %cst_156 = arith.constant 0.000000e+00 : f32
    %360 = vector.broadcast %cst_156 : f32 to vector<32x16xf32>
    %361 = arith.subf %360, %357 : vector<32x16xf32>
    %362 = arith.select %359, %361, %357 : vector<32x16xi1>, vector<32x16xf32>
    %cst_157 = arith.constant 1.000000e+00 : f32
    %363 = vector.broadcast %cst_157 : f32 to vector<32x16xf32>
    %364 = arith.addf %363, %362 : vector<32x16xf32>
    %365 = arith.mulf %328, %364 : vector<32x16xf32>
    %c1_158 = arith.constant 1 : index
    %c0_159 = arith.constant 0 : index
    %c0_160 = arith.constant 0 : index
    %366 = vector.load %arg14[%c1_158, %c0_159, %c0_160] : memref<3x16x16xf32, #tpu.memory_space<vmem>>, vector<1x16x16xf32>
    %367 = vector.shape_cast %366 : vector<1x16x16xf32> to vector<16x16xf32>
    %cst_161 = arith.constant dense<0.000000e+00> : vector<32x16xf32>
    %368 = tpu.matmul %365, %367, %cst_161 {dimension_numbers = #tpu.dot_dimension_numbers<[1], [0], [0], [1], [0, 0, 1, 1], [], []>} : vector<32x16xf32>, vector<16x16xf32>, vector<32x16xf32> -> vector<32x16xf32>
    %c4_i32_162 = arith.constant 4 : i32
    %369 = vector.broadcast %c4_i32_162 : i32 to vector<32x1xi32>
    %370 = arith.cmpi sge, %2, %369 : vector<32x1xi32>
    %371 = vector.extract_strided_slice %365 {offsets = [28, 0], sizes = [4, 16], strides = [1, 1]} : vector<32x16xf32> to vector<4x16xf32>
    %372 = vector.extract_strided_slice %365 {offsets = [0, 0], sizes = [28, 16], strides = [1, 1]} : vector<32x16xf32> to vector<28x16xf32>
    %373 = tpu.concatenate %371, %372 in 0 : vector<4x16xf32>, vector<28x16xf32> -> vector<32x16xf32>
    %cst_163 = arith.constant 0.000000e+00 : f32
    %374 = vector.shape_cast %370 : vector<32x1xi1> to vector<32x1xi1>
    %375 = vector.broadcast %374 : vector<32x1xi1> to vector<32x16xi1>
    %376 = vector.broadcast %cst_163 : f32 to vector<32x16xf32>
    %377 = arith.select %375, %373, %376 : vector<32x16xi1>, vector<32x16xf32>
    %c0_164 = arith.constant 0 : index
    %c0_165 = arith.constant 0 : index
    %c0_166 = arith.constant 0 : index
    %378 = vector.load %arg14[%c0_164, %c0_165, %c0_166] : memref<3x16x16xf32, #tpu.memory_space<vmem>>, vector<1x16x16xf32>
    %379 = vector.shape_cast %378 : vector<1x16x16xf32> to vector<16x16xf32>
    %cst_167 = arith.constant dense<0.000000e+00> : vector<32x16xf32>
    %380 = tpu.matmul %377, %379, %cst_167 {dimension_numbers = #tpu.dot_dimension_numbers<[1], [0], [0], [1], [0, 0, 1, 1], [], []>} : vector<32x16xf32>, vector<16x16xf32>, vector<32x16xf32> -> vector<32x16xf32>
    %381 = arith.addf %368, %380 : vector<32x16xf32>
    %c12_i32_168 = arith.constant 12 : i32
    %382 = vector.broadcast %c12_i32_168 : i32 to vector<32x1xi32>
    %383 = arith.cmpi slt, %2, %382 : vector<32x1xi32>
    %384 = vector.extract_strided_slice %365 {offsets = [4, 0], sizes = [28, 16], strides = [1, 1]} : vector<32x16xf32> to vector<28x16xf32>
    %385 = vector.extract_strided_slice %365 {offsets = [0, 0], sizes = [4, 16], strides = [1, 1]} : vector<32x16xf32> to vector<4x16xf32>
    %386 = tpu.concatenate %384, %385 in 0 : vector<28x16xf32>, vector<4x16xf32> -> vector<32x16xf32>
    %cst_169 = arith.constant 0.000000e+00 : f32
    %387 = vector.shape_cast %383 : vector<32x1xi1> to vector<32x1xi1>
    %388 = vector.broadcast %387 : vector<32x1xi1> to vector<32x16xi1>
    %389 = vector.broadcast %cst_169 : f32 to vector<32x16xf32>
    %390 = arith.select %388, %386, %389 : vector<32x16xi1>, vector<32x16xf32>
    %c2_170 = arith.constant 2 : index
    %c0_171 = arith.constant 0 : index
    %c0_172 = arith.constant 0 : index
    %391 = vector.load %arg14[%c2_170, %c0_171, %c0_172] : memref<3x16x16xf32, #tpu.memory_space<vmem>>, vector<1x16x16xf32>
    %392 = vector.shape_cast %391 : vector<1x16x16xf32> to vector<16x16xf32>
    %cst_173 = arith.constant dense<0.000000e+00> : vector<32x16xf32>
    %393 = tpu.matmul %390, %392, %cst_173 {dimension_numbers = #tpu.dot_dimension_numbers<[1], [0], [0], [1], [0, 0, 1, 1], [], []>} : vector<32x16xf32>, vector<16x16xf32>, vector<32x16xf32> -> vector<32x16xf32>
    %394 = arith.addf %381, %393 : vector<32x16xf32>
    %c0_174 = arith.constant 0 : index
    %c0_175 = arith.constant 0 : index
    %395 = vector.load %arg15[%c0_174, %c0_175] : memref<1x16xf32, #tpu.memory_space<vmem>>, vector<1x16xf32>
    %396 = vector.broadcast %395 : vector<1x16xf32> to vector<32x16xf32>
    %397 = arith.addf %394, %396 : vector<32x16xf32>
    %cst_176 = arith.constant 5.000000e-01 : f32
    %398 = vector.broadcast %cst_176 : f32 to vector<32x16xf32>
    %399 = arith.mulf %398, %397 : vector<32x16xf32>
    %cst_177 = arith.constant 0.707106769 : f32
    %400 = vector.broadcast %cst_177 : f32 to vector<32x16xf32>
    %401 = arith.mulf %397, %400 : vector<32x16xf32>
    %402 = math.absf %401 : vector<32x16xf32>
    %cst_178 = arith.constant 0.327591091 : f32
    %403 = vector.broadcast %cst_178 : f32 to vector<32x16xf32>
    %404 = arith.mulf %403, %402 : vector<32x16xf32>
    %cst_179 = arith.constant 1.000000e+00 : f32
    %405 = vector.broadcast %cst_179 : f32 to vector<32x16xf32>
    %406 = arith.addf %405, %404 : vector<32x16xf32>
    %407 = tpu.reciprocal %406 {approx = true} : vector<32x16xf32> -> vector<32x16xf32>
    %cst_180 = arith.constant 1.06140542 : f32
    %408 = vector.broadcast %cst_180 : f32 to vector<32x16xf32>
    %409 = arith.mulf %407, %408 : vector<32x16xf32>
    %cst_181 = arith.constant -1.45315206 : f32
    %410 = vector.broadcast %cst_181 : f32 to vector<32x16xf32>
    %411 = arith.addf %410, %409 : vector<32x16xf32>
    %412 = arith.mulf %407, %411 : vector<32x16xf32>
    %cst_182 = arith.constant 1.42141378 : f32
    %413 = vector.broadcast %cst_182 : f32 to vector<32x16xf32>
    %414 = arith.addf %413, %412 : vector<32x16xf32>
    %415 = arith.mulf %407, %414 : vector<32x16xf32>
    %cst_183 = arith.constant -0.284496725 : f32
    %416 = vector.broadcast %cst_183 : f32 to vector<32x16xf32>
    %417 = arith.addf %416, %415 : vector<32x16xf32>
    %418 = arith.mulf %407, %417 : vector<32x16xf32>
    %cst_184 = arith.constant 0.254829586 : f32
    %419 = vector.broadcast %cst_184 : f32 to vector<32x16xf32>
    %420 = arith.addf %419, %418 : vector<32x16xf32>
    %421 = arith.mulf %407, %420 : vector<32x16xf32>
    %422 = arith.mulf %402, %402 : vector<32x16xf32>
    %cst_185 = arith.constant 0.000000e+00 : f32
    %423 = vector.broadcast %cst_185 : f32 to vector<32x16xf32>
    %424 = arith.subf %423, %422 : vector<32x16xf32>
    %425 = math.exp %424 : vector<32x16xf32>
    %426 = arith.mulf %421, %425 : vector<32x16xf32>
    %cst_186 = arith.constant 1.000000e+00 : f32
    %427 = vector.broadcast %cst_186 : f32 to vector<32x16xf32>
    %428 = arith.subf %427, %426 : vector<32x16xf32>
    %cst_187 = arith.constant 0.000000e+00 : f32
    %429 = vector.broadcast %cst_187 : f32 to vector<32x16xf32>
    %430 = arith.cmpf olt, %401, %429 : vector<32x16xf32>
    %cst_188 = arith.constant 0.000000e+00 : f32
    %431 = vector.broadcast %cst_188 : f32 to vector<32x16xf32>
    %432 = arith.subf %431, %428 : vector<32x16xf32>
    %433 = arith.select %430, %432, %428 : vector<32x16xi1>, vector<32x16xf32>
    %cst_189 = arith.constant 1.000000e+00 : f32
    %434 = vector.broadcast %cst_189 : f32 to vector<32x16xf32>
    %435 = arith.addf %434, %433 : vector<32x16xf32>
    %436 = arith.mulf %399, %435 : vector<32x16xf32>
    %437 = arith.addf %436, %294 : vector<32x16xf32>
    %c1_190 = arith.constant 1 : index
    %c0_191 = arith.constant 0 : index
    %c0_192 = arith.constant 0 : index
    %438 = vector.load %arg16[%c1_190, %c0_191, %c0_192] : memref<3x16x16xf32, #tpu.memory_space<vmem>>, vector<1x16x16xf32>
    %439 = vector.shape_cast %438 : vector<1x16x16xf32> to vector<16x16xf32>
    %cst_193 = arith.constant dense<0.000000e+00> : vector<32x16xf32>
    %440 = tpu.matmul %437, %439, %cst_193 {dimension_numbers = #tpu.dot_dimension_numbers<[1], [0], [0], [1], [0, 0, 1, 1], [], []>} : vector<32x16xf32>, vector<16x16xf32>, vector<32x16xf32> -> vector<32x16xf32>
    %c8_i32 = arith.constant 8 : i32
    %441 = vector.broadcast %c8_i32 : i32 to vector<32x1xi32>
    %442 = arith.cmpi sge, %2, %441 : vector<32x1xi32>
    %443 = vector.extract_strided_slice %437 {offsets = [24, 0], sizes = [8, 16], strides = [1, 1]} : vector<32x16xf32> to vector<8x16xf32>
    %444 = vector.extract_strided_slice %437 {offsets = [0, 0], sizes = [24, 16], strides = [1, 1]} : vector<32x16xf32> to vector<24x16xf32>
    %445 = tpu.concatenate %443, %444 in 0 : vector<8x16xf32>, vector<24x16xf32> -> vector<32x16xf32>
    %cst_194 = arith.constant 0.000000e+00 : f32
    %446 = vector.shape_cast %442 : vector<32x1xi1> to vector<32x1xi1>
    %447 = vector.broadcast %446 : vector<32x1xi1> to vector<32x16xi1>
    %448 = vector.broadcast %cst_194 : f32 to vector<32x16xf32>
    %449 = arith.select %447, %445, %448 : vector<32x16xi1>, vector<32x16xf32>
    %c0_195 = arith.constant 0 : index
    %c0_196 = arith.constant 0 : index
    %c0_197 = arith.constant 0 : index
    %450 = vector.load %arg16[%c0_195, %c0_196, %c0_197] : memref<3x16x16xf32, #tpu.memory_space<vmem>>, vector<1x16x16xf32>
    %451 = vector.shape_cast %450 : vector<1x16x16xf32> to vector<16x16xf32>
    %cst_198 = arith.constant dense<0.000000e+00> : vector<32x16xf32>
    %452 = tpu.matmul %449, %451, %cst_198 {dimension_numbers = #tpu.dot_dimension_numbers<[1], [0], [0], [1], [0, 0, 1, 1], [], []>} : vector<32x16xf32>, vector<16x16xf32>, vector<32x16xf32> -> vector<32x16xf32>
    %453 = arith.addf %440, %452 : vector<32x16xf32>
    %c8_i32_199 = arith.constant 8 : i32
    %454 = vector.broadcast %c8_i32_199 : i32 to vector<32x1xi32>
    %455 = arith.cmpi slt, %2, %454 : vector<32x1xi32>
    %456 = vector.extract_strided_slice %437 {offsets = [8, 0], sizes = [24, 16], strides = [1, 1]} : vector<32x16xf32> to vector<24x16xf32>
    %457 = vector.extract_strided_slice %437 {offsets = [0, 0], sizes = [8, 16], strides = [1, 1]} : vector<32x16xf32> to vector<8x16xf32>
    %458 = tpu.concatenate %456, %457 in 0 : vector<24x16xf32>, vector<8x16xf32> -> vector<32x16xf32>
    %cst_200 = arith.constant 0.000000e+00 : f32
    %459 = vector.shape_cast %455 : vector<32x1xi1> to vector<32x1xi1>
    %460 = vector.broadcast %459 : vector<32x1xi1> to vector<32x16xi1>
    %461 = vector.broadcast %cst_200 : f32 to vector<32x16xf32>
    %462 = arith.select %460, %458, %461 : vector<32x16xi1>, vector<32x16xf32>
    %c2_201 = arith.constant 2 : index
    %c0_202 = arith.constant 0 : index
    %c0_203 = arith.constant 0 : index
    %463 = vector.load %arg16[%c2_201, %c0_202, %c0_203] : memref<3x16x16xf32, #tpu.memory_space<vmem>>, vector<1x16x16xf32>
    %464 = vector.shape_cast %463 : vector<1x16x16xf32> to vector<16x16xf32>
    %cst_204 = arith.constant dense<0.000000e+00> : vector<32x16xf32>
    %465 = tpu.matmul %462, %464, %cst_204 {dimension_numbers = #tpu.dot_dimension_numbers<[1], [0], [0], [1], [0, 0, 1, 1], [], []>} : vector<32x16xf32>, vector<16x16xf32>, vector<32x16xf32> -> vector<32x16xf32>
    %466 = arith.addf %453, %465 : vector<32x16xf32>
    %c0_205 = arith.constant 0 : index
    %c0_206 = arith.constant 0 : index
    %467 = vector.load %arg17[%c0_205, %c0_206] : memref<1x16xf32, #tpu.memory_space<vmem>>, vector<1x16xf32>
    %468 = vector.broadcast %467 : vector<1x16xf32> to vector<32x16xf32>
    %469 = arith.addf %466, %468 : vector<32x16xf32>
    %cst_207 = arith.constant 5.000000e-01 : f32
    %470 = vector.broadcast %cst_207 : f32 to vector<32x16xf32>
    %471 = arith.mulf %470, %469 : vector<32x16xf32>
    %cst_208 = arith.constant 0.707106769 : f32
    %472 = vector.broadcast %cst_208 : f32 to vector<32x16xf32>
    %473 = arith.mulf %469, %472 : vector<32x16xf32>
    %474 = math.absf %473 : vector<32x16xf32>
    %cst_209 = arith.constant 0.327591091 : f32
    %475 = vector.broadcast %cst_209 : f32 to vector<32x16xf32>
    %476 = arith.mulf %475, %474 : vector<32x16xf32>
    %cst_210 = arith.constant 1.000000e+00 : f32
    %477 = vector.broadcast %cst_210 : f32 to vector<32x16xf32>
    %478 = arith.addf %477, %476 : vector<32x16xf32>
    %479 = tpu.reciprocal %478 {approx = true} : vector<32x16xf32> -> vector<32x16xf32>
    %cst_211 = arith.constant 1.06140542 : f32
    %480 = vector.broadcast %cst_211 : f32 to vector<32x16xf32>
    %481 = arith.mulf %479, %480 : vector<32x16xf32>
    %cst_212 = arith.constant -1.45315206 : f32
    %482 = vector.broadcast %cst_212 : f32 to vector<32x16xf32>
    %483 = arith.addf %482, %481 : vector<32x16xf32>
    %484 = arith.mulf %479, %483 : vector<32x16xf32>
    %cst_213 = arith.constant 1.42141378 : f32
    %485 = vector.broadcast %cst_213 : f32 to vector<32x16xf32>
    %486 = arith.addf %485, %484 : vector<32x16xf32>
    %487 = arith.mulf %479, %486 : vector<32x16xf32>
    %cst_214 = arith.constant -0.284496725 : f32
    %488 = vector.broadcast %cst_214 : f32 to vector<32x16xf32>
    %489 = arith.addf %488, %487 : vector<32x16xf32>
    %490 = arith.mulf %479, %489 : vector<32x16xf32>
    %cst_215 = arith.constant 0.254829586 : f32
    %491 = vector.broadcast %cst_215 : f32 to vector<32x16xf32>
    %492 = arith.addf %491, %490 : vector<32x16xf32>
    %493 = arith.mulf %479, %492 : vector<32x16xf32>
    %494 = arith.mulf %474, %474 : vector<32x16xf32>
    %cst_216 = arith.constant 0.000000e+00 : f32
    %495 = vector.broadcast %cst_216 : f32 to vector<32x16xf32>
    %496 = arith.subf %495, %494 : vector<32x16xf32>
    %497 = math.exp %496 : vector<32x16xf32>
    %498 = arith.mulf %493, %497 : vector<32x16xf32>
    %cst_217 = arith.constant 1.000000e+00 : f32
    %499 = vector.broadcast %cst_217 : f32 to vector<32x16xf32>
    %500 = arith.subf %499, %498 : vector<32x16xf32>
    %cst_218 = arith.constant 0.000000e+00 : f32
    %501 = vector.broadcast %cst_218 : f32 to vector<32x16xf32>
    %502 = arith.cmpf olt, %473, %501 : vector<32x16xf32>
    %cst_219 = arith.constant 0.000000e+00 : f32
    %503 = vector.broadcast %cst_219 : f32 to vector<32x16xf32>
    %504 = arith.subf %503, %500 : vector<32x16xf32>
    %505 = arith.select %502, %504, %500 : vector<32x16xi1>, vector<32x16xf32>
    %cst_220 = arith.constant 1.000000e+00 : f32
    %506 = vector.broadcast %cst_220 : f32 to vector<32x16xf32>
    %507 = arith.addf %506, %505 : vector<32x16xf32>
    %508 = arith.mulf %471, %507 : vector<32x16xf32>
    %c1_221 = arith.constant 1 : index
    %c0_222 = arith.constant 0 : index
    %c0_223 = arith.constant 0 : index
    %509 = vector.load %arg18[%c1_221, %c0_222, %c0_223] : memref<3x16x16xf32, #tpu.memory_space<vmem>>, vector<1x16x16xf32>
    %510 = vector.shape_cast %509 : vector<1x16x16xf32> to vector<16x16xf32>
    %cst_224 = arith.constant dense<0.000000e+00> : vector<32x16xf32>
    %511 = tpu.matmul %508, %510, %cst_224 {dimension_numbers = #tpu.dot_dimension_numbers<[1], [0], [0], [1], [0, 0, 1, 1], [], []>} : vector<32x16xf32>, vector<16x16xf32>, vector<32x16xf32> -> vector<32x16xf32>
    %c8_i32_225 = arith.constant 8 : i32
    %512 = vector.broadcast %c8_i32_225 : i32 to vector<32x1xi32>
    %513 = arith.cmpi sge, %2, %512 : vector<32x1xi32>
    %514 = vector.extract_strided_slice %508 {offsets = [24, 0], sizes = [8, 16], strides = [1, 1]} : vector<32x16xf32> to vector<8x16xf32>
    %515 = vector.extract_strided_slice %508 {offsets = [0, 0], sizes = [24, 16], strides = [1, 1]} : vector<32x16xf32> to vector<24x16xf32>
    %516 = tpu.concatenate %514, %515 in 0 : vector<8x16xf32>, vector<24x16xf32> -> vector<32x16xf32>
    %cst_226 = arith.constant 0.000000e+00 : f32
    %517 = vector.shape_cast %513 : vector<32x1xi1> to vector<32x1xi1>
    %518 = vector.broadcast %517 : vector<32x1xi1> to vector<32x16xi1>
    %519 = vector.broadcast %cst_226 : f32 to vector<32x16xf32>
    %520 = arith.select %518, %516, %519 : vector<32x16xi1>, vector<32x16xf32>
    %c0_227 = arith.constant 0 : index
    %c0_228 = arith.constant 0 : index
    %c0_229 = arith.constant 0 : index
    %521 = vector.load %arg18[%c0_227, %c0_228, %c0_229] : memref<3x16x16xf32, #tpu.memory_space<vmem>>, vector<1x16x16xf32>
    %522 = vector.shape_cast %521 : vector<1x16x16xf32> to vector<16x16xf32>
    %cst_230 = arith.constant dense<0.000000e+00> : vector<32x16xf32>
    %523 = tpu.matmul %520, %522, %cst_230 {dimension_numbers = #tpu.dot_dimension_numbers<[1], [0], [0], [1], [0, 0, 1, 1], [], []>} : vector<32x16xf32>, vector<16x16xf32>, vector<32x16xf32> -> vector<32x16xf32>
    %524 = arith.addf %511, %523 : vector<32x16xf32>
    %c8_i32_231 = arith.constant 8 : i32
    %525 = vector.broadcast %c8_i32_231 : i32 to vector<32x1xi32>
    %526 = arith.cmpi slt, %2, %525 : vector<32x1xi32>
    %527 = vector.extract_strided_slice %508 {offsets = [8, 0], sizes = [24, 16], strides = [1, 1]} : vector<32x16xf32> to vector<24x16xf32>
    %528 = vector.extract_strided_slice %508 {offsets = [0, 0], sizes = [8, 16], strides = [1, 1]} : vector<32x16xf32> to vector<8x16xf32>
    %529 = tpu.concatenate %527, %528 in 0 : vector<24x16xf32>, vector<8x16xf32> -> vector<32x16xf32>
    %cst_232 = arith.constant 0.000000e+00 : f32
    %530 = vector.shape_cast %526 : vector<32x1xi1> to vector<32x1xi1>
    %531 = vector.broadcast %530 : vector<32x1xi1> to vector<32x16xi1>
    %532 = vector.broadcast %cst_232 : f32 to vector<32x16xf32>
    %533 = arith.select %531, %529, %532 : vector<32x16xi1>, vector<32x16xf32>
    %c2_233 = arith.constant 2 : index
    %c0_234 = arith.constant 0 : index
    %c0_235 = arith.constant 0 : index
    %534 = vector.load %arg18[%c2_233, %c0_234, %c0_235] : memref<3x16x16xf32, #tpu.memory_space<vmem>>, vector<1x16x16xf32>
    %535 = vector.shape_cast %534 : vector<1x16x16xf32> to vector<16x16xf32>
    %cst_236 = arith.constant dense<0.000000e+00> : vector<32x16xf32>
    %536 = tpu.matmul %533, %535, %cst_236 {dimension_numbers = #tpu.dot_dimension_numbers<[1], [0], [0], [1], [0, 0, 1, 1], [], []>} : vector<32x16xf32>, vector<16x16xf32>, vector<32x16xf32> -> vector<32x16xf32>
    %537 = arith.addf %524, %536 : vector<32x16xf32>
    %c0_237 = arith.constant 0 : index
    %c0_238 = arith.constant 0 : index
    %538 = vector.load %arg19[%c0_237, %c0_238] : memref<1x16xf32, #tpu.memory_space<vmem>>, vector<1x16xf32>
    %539 = vector.broadcast %538 : vector<1x16xf32> to vector<32x16xf32>
    %540 = arith.addf %537, %539 : vector<32x16xf32>
    %cst_239 = arith.constant 5.000000e-01 : f32
    %541 = vector.broadcast %cst_239 : f32 to vector<32x16xf32>
    %542 = arith.mulf %541, %540 : vector<32x16xf32>
    %cst_240 = arith.constant 0.707106769 : f32
    %543 = vector.broadcast %cst_240 : f32 to vector<32x16xf32>
    %544 = arith.mulf %540, %543 : vector<32x16xf32>
    %545 = math.absf %544 : vector<32x16xf32>
    %cst_241 = arith.constant 0.327591091 : f32
    %546 = vector.broadcast %cst_241 : f32 to vector<32x16xf32>
    %547 = arith.mulf %546, %545 : vector<32x16xf32>
    %cst_242 = arith.constant 1.000000e+00 : f32
    %548 = vector.broadcast %cst_242 : f32 to vector<32x16xf32>
    %549 = arith.addf %548, %547 : vector<32x16xf32>
    %550 = tpu.reciprocal %549 {approx = true} : vector<32x16xf32> -> vector<32x16xf32>
    %cst_243 = arith.constant 1.06140542 : f32
    %551 = vector.broadcast %cst_243 : f32 to vector<32x16xf32>
    %552 = arith.mulf %550, %551 : vector<32x16xf32>
    %cst_244 = arith.constant -1.45315206 : f32
    %553 = vector.broadcast %cst_244 : f32 to vector<32x16xf32>
    %554 = arith.addf %553, %552 : vector<32x16xf32>
    %555 = arith.mulf %550, %554 : vector<32x16xf32>
    %cst_245 = arith.constant 1.42141378 : f32
    %556 = vector.broadcast %cst_245 : f32 to vector<32x16xf32>
    %557 = arith.addf %556, %555 : vector<32x16xf32>
    %558 = arith.mulf %550, %557 : vector<32x16xf32>
    %cst_246 = arith.constant -0.284496725 : f32
    %559 = vector.broadcast %cst_246 : f32 to vector<32x16xf32>
    %560 = arith.addf %559, %558 : vector<32x16xf32>
    %561 = arith.mulf %550, %560 : vector<32x16xf32>
    %cst_247 = arith.constant 0.254829586 : f32
    %562 = vector.broadcast %cst_247 : f32 to vector<32x16xf32>
    %563 = arith.addf %562, %561 : vector<32x16xf32>
    %564 = arith.mulf %550, %563 : vector<32x16xf32>
    %565 = arith.mulf %545, %545 : vector<32x16xf32>
    %cst_248 = arith.constant 0.000000e+00 : f32
    %566 = vector.broadcast %cst_248 : f32 to vector<32x16xf32>
    %567 = arith.subf %566, %565 : vector<32x16xf32>
    %568 = math.exp %567 : vector<32x16xf32>
    %569 = arith.mulf %564, %568 : vector<32x16xf32>
    %cst_249 = arith.constant 1.000000e+00 : f32
    %570 = vector.broadcast %cst_249 : f32 to vector<32x16xf32>
    %571 = arith.subf %570, %569 : vector<32x16xf32>
    %cst_250 = arith.constant 0.000000e+00 : f32
    %572 = vector.broadcast %cst_250 : f32 to vector<32x16xf32>
    %573 = arith.cmpf olt, %544, %572 : vector<32x16xf32>
    %cst_251 = arith.constant 0.000000e+00 : f32
    %574 = vector.broadcast %cst_251 : f32 to vector<32x16xf32>
    %575 = arith.subf %574, %571 : vector<32x16xf32>
    %576 = arith.select %573, %575, %571 : vector<32x16xi1>, vector<32x16xf32>
    %cst_252 = arith.constant 1.000000e+00 : f32
    %577 = vector.broadcast %cst_252 : f32 to vector<32x16xf32>
    %578 = arith.addf %577, %576 : vector<32x16xf32>
    %579 = arith.mulf %542, %578 : vector<32x16xf32>
    %580 = arith.addf %579, %437 : vector<32x16xf32>
    %c1_253 = arith.constant 1 : index
    %c0_254 = arith.constant 0 : index
    %c0_255 = arith.constant 0 : index
    %581 = vector.load %arg20[%c1_253, %c0_254, %c0_255] : memref<3x16x16xf32, #tpu.memory_space<vmem>>, vector<1x16x16xf32>
    %582 = vector.shape_cast %581 : vector<1x16x16xf32> to vector<16x16xf32>
    %cst_256 = arith.constant dense<0.000000e+00> : vector<32x16xf32>
    %583 = tpu.matmul %580, %582, %cst_256 {dimension_numbers = #tpu.dot_dimension_numbers<[1], [0], [0], [1], [0, 0, 1, 1], [], []>} : vector<32x16xf32>, vector<16x16xf32>, vector<32x16xf32> -> vector<32x16xf32>
    %c0_257 = arith.constant 0 : index
    %c0_258 = arith.constant 0 : index
    %584 = vector.load %arg21[%c0_257, %c0_258] : memref<1x16xf32, #tpu.memory_space<vmem>>, vector<1x16xf32>
    %585 = vector.broadcast %584 : vector<1x16xf32> to vector<32x16xf32>
    %586 = arith.addf %583, %585 : vector<32x16xf32>
    %cst_259 = arith.constant 5.000000e-01 : f32
    %587 = vector.broadcast %cst_259 : f32 to vector<32x16xf32>
    %588 = arith.mulf %587, %586 : vector<32x16xf32>
    %cst_260 = arith.constant 0.707106769 : f32
    %589 = vector.broadcast %cst_260 : f32 to vector<32x16xf32>
    %590 = arith.mulf %586, %589 : vector<32x16xf32>
    %591 = math.absf %590 : vector<32x16xf32>
    %cst_261 = arith.constant 0.327591091 : f32
    %592 = vector.broadcast %cst_261 : f32 to vector<32x16xf32>
    %593 = arith.mulf %592, %591 : vector<32x16xf32>
    %cst_262 = arith.constant 1.000000e+00 : f32
    %594 = vector.broadcast %cst_262 : f32 to vector<32x16xf32>
    %595 = arith.addf %594, %593 : vector<32x16xf32>
    %596 = tpu.reciprocal %595 {approx = true} : vector<32x16xf32> -> vector<32x16xf32>
    %cst_263 = arith.constant 1.06140542 : f32
    %597 = vector.broadcast %cst_263 : f32 to vector<32x16xf32>
    %598 = arith.mulf %596, %597 : vector<32x16xf32>
    %cst_264 = arith.constant -1.45315206 : f32
    %599 = vector.broadcast %cst_264 : f32 to vector<32x16xf32>
    %600 = arith.addf %599, %598 : vector<32x16xf32>
    %601 = arith.mulf %596, %600 : vector<32x16xf32>
    %cst_265 = arith.constant 1.42141378 : f32
    %602 = vector.broadcast %cst_265 : f32 to vector<32x16xf32>
    %603 = arith.addf %602, %601 : vector<32x16xf32>
    %604 = arith.mulf %596, %603 : vector<32x16xf32>
    %cst_266 = arith.constant -0.284496725 : f32
    %605 = vector.broadcast %cst_266 : f32 to vector<32x16xf32>
    %606 = arith.addf %605, %604 : vector<32x16xf32>
    %607 = arith.mulf %596, %606 : vector<32x16xf32>
    %cst_267 = arith.constant 0.254829586 : f32
    %608 = vector.broadcast %cst_267 : f32 to vector<32x16xf32>
    %609 = arith.addf %608, %607 : vector<32x16xf32>
    %610 = arith.mulf %596, %609 : vector<32x16xf32>
    %611 = arith.mulf %591, %591 : vector<32x16xf32>
    %cst_268 = arith.constant 0.000000e+00 : f32
    %612 = vector.broadcast %cst_268 : f32 to vector<32x16xf32>
    %613 = arith.subf %612, %611 : vector<32x16xf32>
    %614 = math.exp %613 : vector<32x16xf32>
    %615 = arith.mulf %610, %614 : vector<32x16xf32>
    %cst_269 = arith.constant 1.000000e+00 : f32
    %616 = vector.broadcast %cst_269 : f32 to vector<32x16xf32>
    %617 = arith.subf %616, %615 : vector<32x16xf32>
    %cst_270 = arith.constant 0.000000e+00 : f32
    %618 = vector.broadcast %cst_270 : f32 to vector<32x16xf32>
    %619 = arith.cmpf olt, %590, %618 : vector<32x16xf32>
    %cst_271 = arith.constant 0.000000e+00 : f32
    %620 = vector.broadcast %cst_271 : f32 to vector<32x16xf32>
    %621 = arith.subf %620, %617 : vector<32x16xf32>
    %622 = arith.select %619, %621, %617 : vector<32x16xi1>, vector<32x16xf32>
    %cst_272 = arith.constant 1.000000e+00 : f32
    %623 = vector.broadcast %cst_272 : f32 to vector<32x16xf32>
    %624 = arith.addf %623, %622 : vector<32x16xf32>
    %625 = arith.mulf %588, %624 : vector<32x16xf32>
    %c1_273 = arith.constant 1 : index
    %c0_274 = arith.constant 0 : index
    %c0_275 = arith.constant 0 : index
    %626 = vector.load %arg22[%c1_273, %c0_274, %c0_275] : memref<3x16x16xf32, #tpu.memory_space<vmem>>, vector<1x16x16xf32>
    %627 = vector.shape_cast %626 : vector<1x16x16xf32> to vector<16x16xf32>
    %cst_276 = arith.constant dense<0.000000e+00> : vector<32x16xf32>
    %628 = tpu.matmul %625, %627, %cst_276 {dimension_numbers = #tpu.dot_dimension_numbers<[1], [0], [0], [1], [0, 0, 1, 1], [], []>} : vector<32x16xf32>, vector<16x16xf32>, vector<32x16xf32> -> vector<32x16xf32>
    %c0_277 = arith.constant 0 : index
    %c0_278 = arith.constant 0 : index
    %629 = vector.load %arg23[%c0_277, %c0_278] : memref<1x16xf32, #tpu.memory_space<vmem>>, vector<1x16xf32>
    %630 = vector.broadcast %629 : vector<1x16xf32> to vector<32x16xf32>
    %631 = arith.addf %628, %630 : vector<32x16xf32>
    %cst_279 = arith.constant 5.000000e-01 : f32
    %632 = vector.broadcast %cst_279 : f32 to vector<32x16xf32>
    %633 = arith.mulf %632, %631 : vector<32x16xf32>
    %cst_280 = arith.constant 0.707106769 : f32
    %634 = vector.broadcast %cst_280 : f32 to vector<32x16xf32>
    %635 = arith.mulf %631, %634 : vector<32x16xf32>
    %636 = math.absf %635 : vector<32x16xf32>
    %cst_281 = arith.constant 0.327591091 : f32
    %637 = vector.broadcast %cst_281 : f32 to vector<32x16xf32>
    %638 = arith.mulf %637, %636 : vector<32x16xf32>
    %cst_282 = arith.constant 1.000000e+00 : f32
    %639 = vector.broadcast %cst_282 : f32 to vector<32x16xf32>
    %640 = arith.addf %639, %638 : vector<32x16xf32>
    %641 = tpu.reciprocal %640 {approx = true} : vector<32x16xf32> -> vector<32x16xf32>
    %cst_283 = arith.constant 1.06140542 : f32
    %642 = vector.broadcast %cst_283 : f32 to vector<32x16xf32>
    %643 = arith.mulf %641, %642 : vector<32x16xf32>
    %cst_284 = arith.constant -1.45315206 : f32
    %644 = vector.broadcast %cst_284 : f32 to vector<32x16xf32>
    %645 = arith.addf %644, %643 : vector<32x16xf32>
    %646 = arith.mulf %641, %645 : vector<32x16xf32>
    %cst_285 = arith.constant 1.42141378 : f32
    %647 = vector.broadcast %cst_285 : f32 to vector<32x16xf32>
    %648 = arith.addf %647, %646 : vector<32x16xf32>
    %649 = arith.mulf %641, %648 : vector<32x16xf32>
    %cst_286 = arith.constant -0.284496725 : f32
    %650 = vector.broadcast %cst_286 : f32 to vector<32x16xf32>
    %651 = arith.addf %650, %649 : vector<32x16xf32>
    %652 = arith.mulf %641, %651 : vector<32x16xf32>
    %cst_287 = arith.constant 0.254829586 : f32
    %653 = vector.broadcast %cst_287 : f32 to vector<32x16xf32>
    %654 = arith.addf %653, %652 : vector<32x16xf32>
    %655 = arith.mulf %641, %654 : vector<32x16xf32>
    %656 = arith.mulf %636, %636 : vector<32x16xf32>
    %cst_288 = arith.constant 0.000000e+00 : f32
    %657 = vector.broadcast %cst_288 : f32 to vector<32x16xf32>
    %658 = arith.subf %657, %656 : vector<32x16xf32>
    %659 = math.exp %658 : vector<32x16xf32>
    %660 = arith.mulf %655, %659 : vector<32x16xf32>
    %cst_289 = arith.constant 1.000000e+00 : f32
    %661 = vector.broadcast %cst_289 : f32 to vector<32x16xf32>
    %662 = arith.subf %661, %660 : vector<32x16xf32>
    %cst_290 = arith.constant 0.000000e+00 : f32
    %663 = vector.broadcast %cst_290 : f32 to vector<32x16xf32>
    %664 = arith.cmpf olt, %635, %663 : vector<32x16xf32>
    %cst_291 = arith.constant 0.000000e+00 : f32
    %665 = vector.broadcast %cst_291 : f32 to vector<32x16xf32>
    %666 = arith.subf %665, %662 : vector<32x16xf32>
    %667 = arith.select %664, %666, %662 : vector<32x16xi1>, vector<32x16xf32>
    %cst_292 = arith.constant 1.000000e+00 : f32
    %668 = vector.broadcast %cst_292 : f32 to vector<32x16xf32>
    %669 = arith.addf %668, %667 : vector<32x16xf32>
    %670 = arith.mulf %633, %669 : vector<32x16xf32>
    %671 = arith.addf %670, %580 : vector<32x16xf32>
    %c1_293 = arith.constant 1 : index
    %c0_294 = arith.constant 0 : index
    %c0_295 = arith.constant 0 : index
    %672 = vector.load %arg24[%c1_293, %c0_294, %c0_295] : memref<3x16x32xf32, #tpu.memory_space<vmem>>, vector<1x16x32xf32>
    %673 = vector.shape_cast %672 : vector<1x16x32xf32> to vector<16x32xf32>
    %cst_296 = arith.constant dense<0.000000e+00> : vector<32x32xf32>
    %674 = tpu.matmul %671, %673, %cst_296 {dimension_numbers = #tpu.dot_dimension_numbers<[1], [0], [0], [1], [0, 0, 1, 1], [], []>} : vector<32x16xf32>, vector<16x32xf32>, vector<32x32xf32> -> vector<32x32xf32>
    %c0_297 = arith.constant 0 : index
    %c0_298 = arith.constant 0 : index
    %675 = vector.load %arg25[%c0_297, %c0_298] : memref<1x32xf32, #tpu.memory_space<vmem>>, vector<1x32xf32>
    %676 = vector.broadcast %675 : vector<1x32xf32> to vector<32x32xf32>
    %677 = arith.addf %674, %676 : vector<32x32xf32>
    %cst_299 = arith.constant 5.000000e-01 : f32
    %678 = vector.broadcast %cst_299 : f32 to vector<32x32xf32>
    %679 = arith.mulf %678, %677 : vector<32x32xf32>
    %cst_300 = arith.constant 0.707106769 : f32
    %680 = vector.broadcast %cst_300 : f32 to vector<32x32xf32>
    %681 = arith.mulf %677, %680 : vector<32x32xf32>
    %682 = math.absf %681 : vector<32x32xf32>
    %cst_301 = arith.constant 0.327591091 : f32
    %683 = vector.broadcast %cst_301 : f32 to vector<32x32xf32>
    %684 = arith.mulf %683, %682 : vector<32x32xf32>
    %cst_302 = arith.constant 1.000000e+00 : f32
    %685 = vector.broadcast %cst_302 : f32 to vector<32x32xf32>
    %686 = arith.addf %685, %684 : vector<32x32xf32>
    %687 = tpu.reciprocal %686 {approx = true} : vector<32x32xf32> -> vector<32x32xf32>
    %cst_303 = arith.constant 1.06140542 : f32
    %688 = vector.broadcast %cst_303 : f32 to vector<32x32xf32>
    %689 = arith.mulf %687, %688 : vector<32x32xf32>
    %cst_304 = arith.constant -1.45315206 : f32
    %690 = vector.broadcast %cst_304 : f32 to vector<32x32xf32>
    %691 = arith.addf %690, %689 : vector<32x32xf32>
    %692 = arith.mulf %687, %691 : vector<32x32xf32>
    %cst_305 = arith.constant 1.42141378 : f32
    %693 = vector.broadcast %cst_305 : f32 to vector<32x32xf32>
    %694 = arith.addf %693, %692 : vector<32x32xf32>
    %695 = arith.mulf %687, %694 : vector<32x32xf32>
    %cst_306 = arith.constant -0.284496725 : f32
    %696 = vector.broadcast %cst_306 : f32 to vector<32x32xf32>
    %697 = arith.addf %696, %695 : vector<32x32xf32>
    %698 = arith.mulf %687, %697 : vector<32x32xf32>
    %cst_307 = arith.constant 0.254829586 : f32
    %699 = vector.broadcast %cst_307 : f32 to vector<32x32xf32>
    %700 = arith.addf %699, %698 : vector<32x32xf32>
    %701 = arith.mulf %687, %700 : vector<32x32xf32>
    %702 = arith.mulf %682, %682 : vector<32x32xf32>
    %cst_308 = arith.constant 0.000000e+00 : f32
    %703 = vector.broadcast %cst_308 : f32 to vector<32x32xf32>
    %704 = arith.subf %703, %702 : vector<32x32xf32>
    %705 = math.exp %704 : vector<32x32xf32>
    %706 = arith.mulf %701, %705 : vector<32x32xf32>
    %cst_309 = arith.constant 1.000000e+00 : f32
    %707 = vector.broadcast %cst_309 : f32 to vector<32x32xf32>
    %708 = arith.subf %707, %706 : vector<32x32xf32>
    %cst_310 = arith.constant 0.000000e+00 : f32
    %709 = vector.broadcast %cst_310 : f32 to vector<32x32xf32>
    %710 = arith.cmpf olt, %681, %709 : vector<32x32xf32>
    %cst_311 = arith.constant 0.000000e+00 : f32
    %711 = vector.broadcast %cst_311 : f32 to vector<32x32xf32>
    %712 = arith.subf %711, %708 : vector<32x32xf32>
    %713 = arith.select %710, %712, %708 : vector<32x32xi1>, vector<32x32xf32>
    %cst_312 = arith.constant 1.000000e+00 : f32
    %714 = vector.broadcast %cst_312 : f32 to vector<32x32xf32>
    %715 = arith.addf %714, %713 : vector<32x32xf32>
    %716 = arith.mulf %679, %715 : vector<32x32xf32>
    %c0_313 = arith.constant 0 : index
    %c0_314 = arith.constant 0 : index
    %717 = vector.load %arg28[%c0_313, %c0_314] : memref<16x32xf32, #tpu.memory_space<vmem>>, vector<16x32xf32>
    %cst_315 = arith.constant dense<0.000000e+00> : vector<32x32xf32>
    %718 = tpu.matmul %671, %717, %cst_315 {dimension_numbers = #tpu.dot_dimension_numbers<[1], [0], [0], [1], [0, 0, 1, 1], [], []>} : vector<32x16xf32>, vector<16x32xf32>, vector<32x32xf32> -> vector<32x32xf32>
    %c0_316 = arith.constant 0 : index
    %c0_317 = arith.constant 0 : index
    %719 = vector.load %arg29[%c0_316, %c0_317] : memref<1x32xf32, #tpu.memory_space<vmem>>, vector<1x32xf32>
    %720 = vector.broadcast %719 : vector<1x32xf32> to vector<32x32xf32>
    %721 = arith.addf %718, %720 : vector<32x32xf32>
    %c1_318 = arith.constant 1 : index
    %c0_319 = arith.constant 0 : index
    %c0_320 = arith.constant 0 : index
    %722 = vector.load %arg26[%c1_318, %c0_319, %c0_320] : memref<3x32x32xf32, #tpu.memory_space<vmem>>, vector<1x32x32xf32>
    %723 = vector.shape_cast %722 : vector<1x32x32xf32> to vector<32x32xf32>
    %cst_321 = arith.constant dense<0.000000e+00> : vector<32x32xf32>
    %724 = tpu.matmul %716, %723, %cst_321 {dimension_numbers = #tpu.dot_dimension_numbers<[1], [0], [0], [1], [0, 0, 1, 1], [], []>} : vector<32x32xf32>, vector<32x32xf32>, vector<32x32xf32> -> vector<32x32xf32>
    %c0_322 = arith.constant 0 : index
    %c0_323 = arith.constant 0 : index
    %725 = vector.load %arg27[%c0_322, %c0_323] : memref<1x32xf32, #tpu.memory_space<vmem>>, vector<1x32xf32>
    %726 = vector.broadcast %725 : vector<1x32xf32> to vector<32x32xf32>
    %727 = arith.addf %724, %726 : vector<32x32xf32>
    %cst_324 = arith.constant 5.000000e-01 : f32
    %728 = vector.broadcast %cst_324 : f32 to vector<32x32xf32>
    %729 = arith.mulf %728, %727 : vector<32x32xf32>
    %cst_325 = arith.constant 0.707106769 : f32
    %730 = vector.broadcast %cst_325 : f32 to vector<32x32xf32>
    %731 = arith.mulf %727, %730 : vector<32x32xf32>
    %732 = math.absf %731 : vector<32x32xf32>
    %cst_326 = arith.constant 0.327591091 : f32
    %733 = vector.broadcast %cst_326 : f32 to vector<32x32xf32>
    %734 = arith.mulf %733, %732 : vector<32x32xf32>
    %cst_327 = arith.constant 1.000000e+00 : f32
    %735 = vector.broadcast %cst_327 : f32 to vector<32x32xf32>
    %736 = arith.addf %735, %734 : vector<32x32xf32>
    %737 = tpu.reciprocal %736 {approx = true} : vector<32x32xf32> -> vector<32x32xf32>
    %cst_328 = arith.constant 1.06140542 : f32
    %738 = vector.broadcast %cst_328 : f32 to vector<32x32xf32>
    %739 = arith.mulf %737, %738 : vector<32x32xf32>
    %cst_329 = arith.constant -1.45315206 : f32
    %740 = vector.broadcast %cst_329 : f32 to vector<32x32xf32>
    %741 = arith.addf %740, %739 : vector<32x32xf32>
    %742 = arith.mulf %737, %741 : vector<32x32xf32>
    %cst_330 = arith.constant 1.42141378 : f32
    %743 = vector.broadcast %cst_330 : f32 to vector<32x32xf32>
    %744 = arith.addf %743, %742 : vector<32x32xf32>
    %745 = arith.mulf %737, %744 : vector<32x32xf32>
    %cst_331 = arith.constant -0.284496725 : f32
    %746 = vector.broadcast %cst_331 : f32 to vector<32x32xf32>
    %747 = arith.addf %746, %745 : vector<32x32xf32>
    %748 = arith.mulf %737, %747 : vector<32x32xf32>
    %cst_332 = arith.constant 0.254829586 : f32
    %749 = vector.broadcast %cst_332 : f32 to vector<32x32xf32>
    %750 = arith.addf %749, %748 : vector<32x32xf32>
    %751 = arith.mulf %737, %750 : vector<32x32xf32>
    %752 = arith.mulf %732, %732 : vector<32x32xf32>
    %cst_333 = arith.constant 0.000000e+00 : f32
    %753 = vector.broadcast %cst_333 : f32 to vector<32x32xf32>
    %754 = arith.subf %753, %752 : vector<32x32xf32>
    %755 = math.exp %754 : vector<32x32xf32>
    %756 = arith.mulf %751, %755 : vector<32x32xf32>
    %cst_334 = arith.constant 1.000000e+00 : f32
    %757 = vector.broadcast %cst_334 : f32 to vector<32x32xf32>
    %758 = arith.subf %757, %756 : vector<32x32xf32>
    %cst_335 = arith.constant 0.000000e+00 : f32
    %759 = vector.broadcast %cst_335 : f32 to vector<32x32xf32>
    %760 = arith.cmpf olt, %731, %759 : vector<32x32xf32>
    %cst_336 = arith.constant 0.000000e+00 : f32
    %761 = vector.broadcast %cst_336 : f32 to vector<32x32xf32>
    %762 = arith.subf %761, %758 : vector<32x32xf32>
    %763 = arith.select %760, %762, %758 : vector<32x32xi1>, vector<32x32xf32>
    %cst_337 = arith.constant 1.000000e+00 : f32
    %764 = vector.broadcast %cst_337 : f32 to vector<32x32xf32>
    %765 = arith.addf %764, %763 : vector<32x32xf32>
    %766 = arith.mulf %729, %765 : vector<32x32xf32>
    %767 = arith.addf %766, %721 : vector<32x32xf32>
    %768 = vector.shape_cast %767 : vector<32x32xf32> to vector<2x16x32xf32>
    %cst_338 = arith.constant dense<0xFF800000> : vector<2x32xf32>
    %769 = vector.multi_reduction <maximumf>, %768, %cst_338 [1] : vector<2x16x32xf32> to vector<2x32xf32>
    %c0_339 = arith.constant 0 : index
    %c0_340 = arith.constant 0 : index
    %770 = vector.load %arg30[%c0_339, %c0_340] : memref<32x32xf32, #tpu.memory_space<vmem>>, vector<32x32xf32>
    %cst_341 = arith.constant dense<0.000000e+00> : vector<2x32xf32>
    %771 = tpu.matmul %769, %770, %cst_341 {dimension_numbers = #tpu.dot_dimension_numbers<[1], [0], [0], [1], [0, 0, 1, 1], [], []>} : vector<2x32xf32>, vector<32x32xf32>, vector<2x32xf32> -> vector<2x32xf32>
    %c0_342 = arith.constant 0 : index
    %c0_343 = arith.constant 0 : index
    %772 = vector.load %arg31[%c0_342, %c0_343] : memref<1x32xf32, #tpu.memory_space<vmem>>, vector<1x32xf32>
    %773 = vector.broadcast %772 : vector<1x32xf32> to vector<2x32xf32>
    %774 = arith.addf %771, %773 : vector<2x32xf32>
    %c0_344 = arith.constant 0 : index
    %c0_345 = arith.constant 0 : index
    %775 = vector.load %arg32[%c0_344, %c0_345] : memref<1x32xf32, #tpu.memory_space<vmem>>, vector<1x32xf32>
    %776 = vector.broadcast %775 : vector<1x32xf32> to vector<2x32xf32>
    %777 = arith.mulf %774, %776 : vector<2x32xf32>
    %c0_346 = arith.constant 0 : index
    %c0_347 = arith.constant 0 : index
    %778 = vector.load %arg33[%c0_346, %c0_347] : memref<1x32xf32, #tpu.memory_space<vmem>>, vector<1x32xf32>
    %779 = vector.broadcast %778 : vector<1x32xf32> to vector<2x32xf32>
    %780 = arith.addf %777, %779 : vector<2x32xf32>
    %cst_348 = arith.constant 0.000000e+00 : f32
    %781 = vector.broadcast %cst_348 : f32 to vector<2x32xf32>
    %782 = arith.maximumf %780, %781 : vector<2x32xf32>
    %c0_349 = arith.constant 0 : index
    %c0_350 = arith.constant 0 : index
    %783 = vector.load %arg34[%c0_349, %c0_350] : memref<32x8xf32, #tpu.memory_space<vmem>>, vector<32x8xf32>
    %cst_351 = arith.constant dense<0.000000e+00> : vector<2x8xf32>
    %784 = tpu.matmul %782, %783, %cst_351 {dimension_numbers = #tpu.dot_dimension_numbers<[1], [0], [0], [1], [0, 0, 1, 1], [], []>} : vector<2x32xf32>, vector<32x8xf32>, vector<2x8xf32> -> vector<2x8xf32>
    %c0_352 = arith.constant 0 : index
    %c0_353 = arith.constant 0 : index
    %785 = vector.load %arg35[%c0_352, %c0_353] : memref<1x8xf32, #tpu.memory_space<vmem>>, vector<1x8xf32>
    %786 = vector.broadcast %785 : vector<1x8xf32> to vector<2x8xf32>
    %787 = arith.addf %784, %786 : vector<2x8xf32>
    %c0_354 = arith.constant 0 : index
    %c0_355 = arith.constant 0 : index
    %788 = vector.load %arg36[%c0_354, %c0_355] : memref<32x32xf32, #tpu.memory_space<vmem>>, vector<32x32xf32>
    %cst_356 = arith.constant dense<0.000000e+00> : vector<2x32xf32>
    %789 = tpu.matmul %769, %788, %cst_356 {dimension_numbers = #tpu.dot_dimension_numbers<[1], [0], [0], [1], [0, 0, 1, 1], [], []>} : vector<2x32xf32>, vector<32x32xf32>, vector<2x32xf32> -> vector<2x32xf32>
    %c0_357 = arith.constant 0 : index
    %c0_358 = arith.constant 0 : index
    %790 = vector.load %arg37[%c0_357, %c0_358] : memref<1x32xf32, #tpu.memory_space<vmem>>, vector<1x32xf32>
    %791 = vector.broadcast %790 : vector<1x32xf32> to vector<2x32xf32>
    %792 = arith.addf %789, %791 : vector<2x32xf32>
    %c0_359 = arith.constant 0 : index
    %c0_360 = arith.constant 0 : index
    %793 = vector.load %arg38[%c0_359, %c0_360] : memref<1x32xf32, #tpu.memory_space<vmem>>, vector<1x32xf32>
    %794 = vector.broadcast %793 : vector<1x32xf32> to vector<2x32xf32>
    %795 = arith.mulf %792, %794 : vector<2x32xf32>
    %c0_361 = arith.constant 0 : index
    %c0_362 = arith.constant 0 : index
    %796 = vector.load %arg39[%c0_361, %c0_362] : memref<1x32xf32, #tpu.memory_space<vmem>>, vector<1x32xf32>
    %797 = vector.broadcast %796 : vector<1x32xf32> to vector<2x32xf32>
    %798 = arith.addf %795, %797 : vector<2x32xf32>
    %cst_363 = arith.constant 0.000000e+00 : f32
    %799 = vector.broadcast %cst_363 : f32 to vector<2x32xf32>
    %800 = arith.maximumf %798, %799 : vector<2x32xf32>
    %c0_364 = arith.constant 0 : index
    %c0_365 = arith.constant 0 : index
    %801 = vector.load %arg40[%c0_364, %c0_365] : memref<32x2xf32, #tpu.memory_space<vmem>>, vector<32x2xf32>
    %cst_366 = arith.constant dense<0.000000e+00> : vector<2x2xf32>
    %802 = tpu.matmul %800, %801, %cst_366 {dimension_numbers = #tpu.dot_dimension_numbers<[1], [0], [0], [1], [0, 0, 1, 1], [], []>} : vector<2x32xf32>, vector<32x2xf32>, vector<2x2xf32> -> vector<2x2xf32>
    %c0_367 = arith.constant 0 : index
    %c0_368 = arith.constant 0 : index
    %803 = vector.load %arg41[%c0_367, %c0_368] : memref<1x2xf32, #tpu.memory_space<vmem>>, vector<1x2xf32>
    %804 = vector.broadcast %803 : vector<1x2xf32> to vector<2x2xf32>
    %805 = arith.addf %802, %804 : vector<2x2xf32>
    %806 = arith.negf %805 : vector<2x2xf32>
    %807 = math.exp %806 : vector<2x2xf32>
    %cst_369 = arith.constant 1.000000e+00 : f32
    %808 = vector.broadcast %cst_369 : f32 to vector<2x2xf32>
    %809 = arith.addf %808, %807 : vector<2x2xf32>
    %810 = arith.divf %808, %809 : vector<2x2xf32>
    %811 = vector.shape_cast %810 : vector<2x2xf32> to vector<2x1x2xf32>
    %c0_370 = arith.constant 0 : index
    %c0_371 = arith.constant 0 : index
    %c0_372 = arith.constant 0 : index
    %812 = vector.load %arg42[%c0_370, %c0_371, %c0_372] : memref<2x1x2xf32, #tpu.memory_space<vmem>>, vector<2x1x2xf32>
    tpu.vector_store %arg42[%c0_370, %c0_371, %c0_372], %811 {strides = array<i32>} : memref<2x1x2xf32, #tpu.memory_space<vmem>>, vector<2x1x2xf32>,
    %813 = vector.shape_cast %787 : vector<2x8xf32> to vector<2x1x8xf32>
    %c0_373 = arith.constant 0 : index
    %c0_374 = arith.constant 0 : index
    %c0_375 = arith.constant 0 : index
    %814 = vector.load %arg43[%c0_373, %c0_374, %c0_375] : memref<2x1x8xf32, #tpu.memory_space<vmem>>, vector<2x1x8xf32>
    tpu.vector_store %arg43[%c0_373, %c0_374, %c0_375], %813 {strides = array<i32>} : memref<2x1x8xf32, #tpu.memory_space<vmem>>, vector<2x1x8xf32>,
    return
  }
  func.func @transform_0(%arg0: i32) -> (i32, i32, i32) {
    %c0_i32 = arith.constant 0 : i32
    %c0_i32_0 = arith.constant 0 : i32
    %c0_i32_1 = arith.constant 0 : i32
    return %arg0, %c0_i32, %c0_i32_0 : i32, i32, i32
  }
  func.func @transform_1(%arg0: i32) -> (i32, i32) {
    %c0_i32 = arith.constant 0 : i32
    %c0_i32_0 = arith.constant 0 : i32
    %c0_i32_1 = arith.constant 0 : i32
    return %c0_i32, %c0_i32_0 : i32, i32
  }
  func.func @transform_2(%arg0: i32) -> (i32, i32) {
    %c0_i32 = arith.constant 0 : i32
    %c0_i32_0 = arith.constant 0 : i32
    %c0_i32_1 = arith.constant 0 : i32
    return %c0_i32, %c0_i32_0 : i32, i32
  }
  func.func @transform_3(%arg0: i32) -> (i32, i32, i32) {
    %c0_i32 = arith.constant 0 : i32
    %c0_i32_0 = arith.constant 0 : i32
    %c0_i32_1 = arith.constant 0 : i32
    %c0_i32_2 = arith.constant 0 : i32
    return %c0_i32, %c0_i32_0, %c0_i32_1 : i32, i32, i32
  }
  func.func @transform_4(%arg0: i32) -> (i32, i32) {
    %c0_i32 = arith.constant 0 : i32
    %c0_i32_0 = arith.constant 0 : i32
    %c0_i32_1 = arith.constant 0 : i32
    return %c0_i32, %c0_i32_0 : i32, i32
  }
  func.func @transform_5(%arg0: i32) -> (i32, i32, i32) {
    %c0_i32 = arith.constant 0 : i32
    %c0_i32_0 = arith.constant 0 : i32
    %c0_i32_1 = arith.constant 0 : i32
    %c0_i32_2 = arith.constant 0 : i32
    return %c0_i32, %c0_i32_0, %c0_i32_1 : i32, i32, i32
  }
  func.func @transform_6(%arg0: i32) -> (i32, i32) {
    %c0_i32 = arith.constant 0 : i32
    %c0_i32_0 = arith.constant 0 : i32
    %c0_i32_1 = arith.constant 0 : i32
    return %c0_i32, %c0_i32_0 : i32, i32
  }
  func.func @transform_7(%arg0: i32) -> (i32, i32, i32) {
    %c0_i32 = arith.constant 0 : i32
    %c0_i32_0 = arith.constant 0 : i32
    %c0_i32_1 = arith.constant 0 : i32
    %c0_i32_2 = arith.constant 0 : i32
    return %c0_i32, %c0_i32_0, %c0_i32_1 : i32, i32, i32
  }
  func.func @transform_8(%arg0: i32) -> (i32, i32) {
    %c0_i32 = arith.constant 0 : i32
    %c0_i32_0 = arith.constant 0 : i32
    %c0_i32_1 = arith.constant 0 : i32
    return %c0_i32, %c0_i32_0 : i32, i32
  }
  func.func @transform_9(%arg0: i32) -> (i32, i32, i32) {
    %c0_i32 = arith.constant 0 : i32
    %c0_i32_0 = arith.constant 0 : i32
    %c0_i32_1 = arith.constant 0 : i32
    %c0_i32_2 = arith.constant 0 : i32
    return %c0_i32, %c0_i32_0, %c0_i32_1 : i32, i32, i32
  }
  func.func @transform_10(%arg0: i32) -> (i32, i32) {
    %c0_i32 = arith.constant 0 : i32
    %c0_i32_0 = arith.constant 0 : i32
    %c0_i32_1 = arith.constant 0 : i32
    return %c0_i32, %c0_i32_0 : i32, i32
  }
  func.func @transform_11(%arg0: i32) -> (i32, i32, i32) {
    %c0_i32 = arith.constant 0 : i32
    %c0_i32_0 = arith.constant 0 : i32
    %c0_i32_1 = arith.constant 0 : i32
    %c0_i32_2 = arith.constant 0 : i32
    return %c0_i32, %c0_i32_0, %c0_i32_1 : i32, i32, i32
  }
  func.func @transform_12(%arg0: i32) -> (i32, i32) {
    %c0_i32 = arith.constant 0 : i32
    %c0_i32_0 = arith.constant 0 : i32
    %c0_i32_1 = arith.constant 0 : i32
    return %c0_i32, %c0_i32_0 : i32, i32
  }
  func.func @transform_13(%arg0: i32) -> (i32, i32, i32) {
    %c0_i32 = arith.constant 0 : i32
    %c0_i32_0 = arith.constant 0 : i32
    %c0_i32_1 = arith.constant 0 : i32
    %c0_i32_2 = arith.constant 0 : i32
    return %c0_i32, %c0_i32_0, %c0_i32_1 : i32, i32, i32
  }
  func.func @transform_14(%arg0: i32) -> (i32, i32) {
    %c0_i32 = arith.constant 0 : i32
    %c0_i32_0 = arith.constant 0 : i32
    %c0_i32_1 = arith.constant 0 : i32
    return %c0_i32, %c0_i32_0 : i32, i32
  }
  func.func @transform_15(%arg0: i32) -> (i32, i32, i32) {
    %c0_i32 = arith.constant 0 : i32
    %c0_i32_0 = arith.constant 0 : i32
    %c0_i32_1 = arith.constant 0 : i32
    %c0_i32_2 = arith.constant 0 : i32
    return %c0_i32, %c0_i32_0, %c0_i32_1 : i32, i32, i32
  }
  func.func @transform_16(%arg0: i32) -> (i32, i32) {
    %c0_i32 = arith.constant 0 : i32
    %c0_i32_0 = arith.constant 0 : i32
    %c0_i32_1 = arith.constant 0 : i32
    return %c0_i32, %c0_i32_0 : i32, i32
  }
  func.func @transform_17(%arg0: i32) -> (i32, i32, i32) {
    %c0_i32 = arith.constant 0 : i32
    %c0_i32_0 = arith.constant 0 : i32
    %c0_i32_1 = arith.constant 0 : i32
    %c0_i32_2 = arith.constant 0 : i32
    return %c0_i32, %c0_i32_0, %c0_i32_1 : i32, i32, i32
  }
  func.func @transform_18(%arg0: i32) -> (i32, i32) {
    %c0_i32 = arith.constant 0 : i32
    %c0_i32_0 = arith.constant 0 : i32
    %c0_i32_1 = arith.constant 0 : i32
    return %c0_i32, %c0_i32_0 : i32, i32
  }
  func.func @transform_19(%arg0: i32) -> (i32, i32, i32) {
    %c0_i32 = arith.constant 0 : i32
    %c0_i32_0 = arith.constant 0 : i32
    %c0_i32_1 = arith.constant 0 : i32
    %c0_i32_2 = arith.constant 0 : i32
    return %c0_i32, %c0_i32_0, %c0_i32_1 : i32, i32, i32
  }
  func.func @transform_20(%arg0: i32) -> (i32, i32) {
    %c0_i32 = arith.constant 0 : i32
    %c0_i32_0 = arith.constant 0 : i32
    %c0_i32_1 = arith.constant 0 : i32
    return %c0_i32, %c0_i32_0 : i32, i32
  }
  func.func @transform_21(%arg0: i32) -> (i32, i32, i32) {
    %c0_i32 = arith.constant 0 : i32
    %c0_i32_0 = arith.constant 0 : i32
    %c0_i32_1 = arith.constant 0 : i32
    %c0_i32_2 = arith.constant 0 : i32
    return %c0_i32, %c0_i32_0, %c0_i32_1 : i32, i32, i32
  }
  func.func @transform_22(%arg0: i32) -> (i32, i32) {
    %c0_i32 = arith.constant 0 : i32
    %c0_i32_0 = arith.constant 0 : i32
    %c0_i32_1 = arith.constant 0 : i32
    return %c0_i32, %c0_i32_0 : i32, i32
  }
  func.func @transform_23(%arg0: i32) -> (i32, i32, i32) {
    %c0_i32 = arith.constant 0 : i32
    %c0_i32_0 = arith.constant 0 : i32
    %c0_i32_1 = arith.constant 0 : i32
    %c0_i32_2 = arith.constant 0 : i32
    return %c0_i32, %c0_i32_0, %c0_i32_1 : i32, i32, i32
  }
  func.func @transform_24(%arg0: i32) -> (i32, i32) {
    %c0_i32 = arith.constant 0 : i32
    %c0_i32_0 = arith.constant 0 : i32
    %c0_i32_1 = arith.constant 0 : i32
    return %c0_i32, %c0_i32_0 : i32, i32
  }
  func.func @transform_25(%arg0: i32) -> (i32, i32, i32) {
    %c0_i32 = arith.constant 0 : i32
    %c0_i32_0 = arith.constant 0 : i32
    %c0_i32_1 = arith.constant 0 : i32
    %c0_i32_2 = arith.constant 0 : i32
    return %c0_i32, %c0_i32_0, %c0_i32_1 : i32, i32, i32
  }
  func.func @transform_26(%arg0: i32) -> (i32, i32) {
    %c0_i32 = arith.constant 0 : i32
    %c0_i32_0 = arith.constant 0 : i32
    %c0_i32_1 = arith.constant 0 : i32
    return %c0_i32, %c0_i32_0 : i32, i32
  }
  func.func @transform_27(%arg0: i32) -> (i32, i32) {
    %c0_i32 = arith.constant 0 : i32
    %c0_i32_0 = arith.constant 0 : i32
    %c0_i32_1 = arith.constant 0 : i32
    return %c0_i32, %c0_i32_0 : i32, i32
  }
  func.func @transform_28(%arg0: i32) -> (i32, i32) {
    %c0_i32 = arith.constant 0 : i32
    %c0_i32_0 = arith.constant 0 : i32
    %c0_i32_1 = arith.constant 0 : i32
    return %c0_i32, %c0_i32_0 : i32, i32
  }
  func.func @transform_29(%arg0: i32) -> (i32, i32) {
    %c0_i32 = arith.constant 0 : i32
    %c0_i32_0 = arith.constant 0 : i32
    %c0_i32_1 = arith.constant 0 : i32
    return %c0_i32, %c0_i32_0 : i32, i32
  }
  func.func @transform_30(%arg0: i32) -> (i32, i32) {
    %c0_i32 = arith.constant 0 : i32
    %c0_i32_0 = arith.constant 0 : i32
    %c0_i32_1 = arith.constant 0 : i32
    return %c0_i32, %c0_i32_0 : i32, i32
  }
  func.func @transform_31(%arg0: i32) -> (i32, i32) {
    %c0_i32 = arith.constant 0 : i32
    %c0_i32_0 = arith.constant 0 : i32
    %c0_i32_1 = arith.constant 0 : i32
    return %c0_i32, %c0_i32_0 : i32, i32
  }
  func.func @transform_32(%arg0: i32) -> (i32, i32) {
    %c0_i32 = arith.constant 0 : i32
    %c0_i32_0 = arith.constant 0 : i32
    %c0_i32_1 = arith.constant 0 : i32
    return %c0_i32, %c0_i32_0 : i32, i32
  }
  func.func @transform_33(%arg0: i32) -> (i32, i32) {
    %c0_i32 = arith.constant 0 : i32
    %c0_i32_0 = arith.constant 0 : i32
    %c0_i32_1 = arith.constant 0 : i32
    return %c0_i32, %c0_i32_0 : i32, i32
  }
  func.func @transform_34(%arg0: i32) -> (i32, i32) {
    %c0_i32 = arith.constant 0 : i32
    %c0_i32_0 = arith.constant 0 : i32
    %c0_i32_1 = arith.constant 0 : i32
    return %c0_i32, %c0_i32_0 : i32, i32
  }
  func.func @transform_35(%arg0: i32) -> (i32, i32) {
    %c0_i32 = arith.constant 0 : i32
    %c0_i32_0 = arith.constant 0 : i32
    %c0_i32_1 = arith.constant 0 : i32
    return %c0_i32, %c0_i32_0 : i32, i32
  }
  func.func @transform_36(%arg0: i32) -> (i32, i32) {
    %c0_i32 = arith.constant 0 : i32
    %c0_i32_0 = arith.constant 0 : i32
    %c0_i32_1 = arith.constant 0 : i32
    return %c0_i32, %c0_i32_0 : i32, i32
  }
  func.func @transform_37(%arg0: i32) -> (i32, i32) {
    %c0_i32 = arith.constant 0 : i32
    %c0_i32_0 = arith.constant 0 : i32
    %c0_i32_1 = arith.constant 0 : i32
    return %c0_i32, %c0_i32_0 : i32, i32
  }
  func.func @transform_38(%arg0: i32) -> (i32, i32) {
    %c0_i32 = arith.constant 0 : i32
    %c0_i32_0 = arith.constant 0 : i32
    %c0_i32_1 = arith.constant 0 : i32
    return %c0_i32, %c0_i32_0 : i32, i32
  }
  func.func @transform_39(%arg0: i32) -> (i32, i32) {
    %c0_i32 = arith.constant 0 : i32
    %c0_i32_0 = arith.constant 0 : i32
    %c0_i32_1 = arith.constant 0 : i32
    return %c0_i32, %c0_i32_0 : i32, i32
  }
  func.func @transform_40(%arg0: i32) -> (i32, i32) {
    %c0_i32 = arith.constant 0 : i32
    %c0_i32_0 = arith.constant 0 : i32
    %c0_i32_1 = arith.constant 0 : i32
    return %c0_i32, %c0_i32_0 : i32, i32
  }
  func.func @transform_41(%arg0: i32) -> (i32, i32, i32) {
    %c0_i32 = arith.constant 0 : i32
    %c0_i32_0 = arith.constant 0 : i32
    %c0_i32_1 = arith.constant 0 : i32
    return %arg0, %c0_i32, %c0_i32_0 : i32, i32, i32
  }
  func.func @transform_42(%arg0: i32) -> (i32, i32, i32) {
    %c0_i32 = arith.constant 0 : i32
    %c0_i32_0 = arith.constant 0 : i32
    %c0_i32_1 = arith.constant 0 : i32
    return %arg0, %c0_i32, %c0_i32_0 : i32, i32, i32
  }
}

</mosaic_0001>

<llo_original>
// kernel: _lambda_.1
$region0: #{_lambda_.1}
  #allocation0 [shape = 'u32[]', space=smem, size = 0x4, offset = 0x4, fixed_abs, tag = 'smem constant byte address 0x4 - core index']
  #allocation1 [shape = 'u32[144,128]{1,0:T(1,128)}', space=vmem, size = 0x12000, scoped, tag = 'internal scratch']
  %s0 = inlined_call_operand.smem [shape: u32[43], index: -1, kind: input, shape index: {}]
  %s1 = sld [smem:[%s0]]
  %s2 = scalar_lea.smem %s0, 1
  %s3 = sld [smem:[%s2]]
  %s4 = scalar_lea.smem %s0, 2
  %s5 = sld [smem:[%s4]]
  %s6 = scalar_lea.smem %s0, 3
  %s7 = sld [smem:[%s6]]
  %s8 = scalar_lea.smem %s0, 4
  %s9 = sld [smem:[%s8]]
  %s10 = scalar_lea.smem %s0, 5
  %s11 = sld [smem:[%s10]]
  %s12 = scalar_lea.smem %s0, 6
  %s13 = sld [smem:[%s12]]
  %s14 = scalar_lea.smem %s0, 7
  %s15 = sld [smem:[%s14]]
  %s16 = scalar_lea.smem %s0, 8
  %s17 = sld [smem:[%s16]]
  %s18 = scalar_lea.smem %s0, 9
  %s19 = sld [smem:[%s18]]
  %s20 = scalar_lea.smem %s0, 10
  %s21 = sld [smem:[%s20]]
  %s22 = scalar_lea.smem %s0, 11
  %s23 = sld [smem:[%s22]]
  %s24 = scalar_lea.smem %s0, 12
  %s25 = sld [smem:[%s24]]
  %s26 = scalar_lea.smem %s0, 13
  %s27 = sld [smem:[%s26]]
  %s28 = scalar_lea.smem %s0, 14
  %s29 = sld [smem:[%s28]]
  %s30 = scalar_lea.smem %s0, 15
  %s31 = sld [smem:[%s30]]
  %s32 = scalar_lea.smem %s0, 16
  %s33 = sld [smem:[%s32]]
  %s34 = scalar_lea.smem %s0, 17
  %s35 = sld [smem:[%s34]]
  %s36 = scalar_lea.smem %s0, 18
  %s37 = sld [smem:[%s36]]
  %s38 = scalar_lea.smem %s0, 19
  %s39 = sld [smem:[%s38]]
  %s40 = scalar_lea.smem %s0, 20
  %s41 = sld [smem:[%s40]]
  %s42 = scalar_lea.smem %s0, 21
  %s43 = sld [smem:[%s42]]
  %s44 = scalar_lea.smem %s0, 22
  %s45 = sld [smem:[%s44]]
  %s46 = scalar_lea.smem %s0, 23
  %s47 = sld [smem:[%s46]]
  %s48 = scalar_lea.smem %s0, 24
  %s49 = sld [smem:[%s48]]
  %s50 = scalar_lea.smem %s0, 25
  %s51 = sld [smem:[%s50]]
  %s52 = scalar_lea.smem %s0, 26
  %s53 = sld [smem:[%s52]]
  %s54 = scalar_lea.smem %s0, 27
  %s55 = sld [smem:[%s54]]
  %s56 = scalar_lea.smem %s0, 28
  %s57 = sld [smem:[%s56]]
  %s58 = scalar_lea.smem %s0, 29
  %s59 = sld [smem:[%s58]]
  %s60 = scalar_lea.smem %s0, 30
  %s61 = sld [smem:[%s60]]
  %s62 = scalar_lea.smem %s0, 31
  %s63 = sld [smem:[%s62]]
  %s64 = scalar_lea.smem %s0, 32
  %s65 = sld [smem:[%s64]]
  %s66 = scalar_lea.smem %s0, 33
  %s67 = sld [smem:[%s66]]
  %s68 = scalar_lea.smem %s0, 34
  %s69 = sld [smem:[%s68]]
  %s70 = scalar_lea.smem %s0, 35
  %s71 = sld [smem:[%s70]]
  %s72 = scalar_lea.smem %s0, 36
  %s73 = sld [smem:[%s72]]
  %s74 = scalar_lea.smem %s0, 37
  %s75 = sld [smem:[%s74]]
  %s76 = scalar_lea.smem %s0, 38
  %s77 = sld [smem:[%s76]]
  %s78 = scalar_lea.smem %s0, 39
  %s79 = sld [smem:[%s78]]
  %s80 = scalar_lea.smem %s0, 40
  %s81 = sld [smem:[%s80]]
  %s82 = scalar_lea.smem %s0, 41
  %s83 = sld [smem:[%s82]]
  %s84 = scalar_lea.smem %s0, 42
  %s85 = sld [smem:[%s84]]
  %86 = xla_tuple %s83, %s85
  %s87 = sld [smem:[#allocation0]]
  $region346: #{_lambda_.1} parent=0
    _
  %s89 = ssub.s32 1, %s87
  %s90 = scalar_select 0, %s89, %s87
  $region1: #{_lambda_.1} parent=0
    #allocation2 [shape = 'u8[16384]{0}', space=vmem, size = 0x4000, scoped, tag = 'input window, operand 0, single buffered']
    #allocation3 [shape = 's32[1]{0}', space=sflag, size = 0x4, scoped, tag = 'scoped memory for _lambda_.1']
    #allocation4 [shape = 's32[1]{0}', space=sflag, size = 0x4, scoped, tag = 'scoped memory for _lambda_.1']
    #allocation5 [shape = 'u8[2048]{0}', space=vmem, size = 0x800, scoped, tag = 'input window, operand 1, single buffered']
    #allocation6 [shape = 's32[1]{0}', space=sflag, size = 0x4, scoped, tag = 'scoped memory for _lambda_.1']
    #allocation7 [shape = 'u8[512]{0}', space=vmem, size = 0x400, scoped, tag = 'input window, operand 2, single buffered']
    #allocation8 [shape = 'u8[24576]{0}', space=vmem, size = 0x6000, scoped, tag = 'input window, operand 3, single buffered']
    #allocation9 [shape = 's32[1]{0}', space=sflag, size = 0x4, scoped, tag = 'scoped memory for _lambda_.1']
    #allocation10 [shape = 'u8[512]{0}', space=vmem, size = 0x400, scoped, tag = 'input window, operand 4, single buffered']
    #allocation11 [shape = 'u8[24576]{0}', space=vmem, size = 0x6000, scoped, tag = 'input window, operand 5, single buffered']
    #allocation12 [shape = 's32[1]{0}', space=sflag, size = 0x4, scoped, tag = 'scoped memory for _lambda_.1']
    #allocation13 [shape = 'u8[512]{0}', space=vmem, size = 0x400, scoped, tag = 'input window, operand 6, single buffered']
    #allocation14 [shape = 'u8[24576]{0}', space=vmem, size = 0x6000, scoped, tag = 'input window, operand 7, single buffered']
    #allocation15 [shape = 's32[1]{0}', space=sflag, size = 0x4, scoped, tag = 'scoped memory for _lambda_.1']
    #allocation16 [shape = 'u8[512]{0}', space=vmem, size = 0x400, scoped, tag = 'input window, operand 8, single buffered']
    #allocation17 [shape = 'u8[24576]{0}', space=vmem, size = 0x6000, scoped, tag = 'input window, operand 9, single buffered']
    #allocation18 [shape = 's32[1]{0}', space=sflag, size = 0x4, scoped, tag = 'scoped memory for _lambda_.1']
    #allocation19 [shape = 'u8[512]{0}', space=vmem, size = 0x400, scoped, tag = 'input window, operand 10, single buffered']
    #allocation20 [shape = 'u8[24576]{0}', space=vmem, size = 0x6000, scoped, tag = 'input window, operand 11, single buffered']
    #allocation21 [shape = 's32[1]{0}', space=sflag, size = 0x4, scoped, tag = 'scoped memory for _lambda_.1']
    #allocation22 [shape = 'u8[512]{0}', space=vmem, size = 0x400, scoped, tag = 'input window, operand 12, single buffered']
    #allocation23 [shape = 'u8[24576]{0}', space=vmem, size = 0x6000, scoped, tag = 'input window, operand 13, single buffered']
    #allocation24 [shape = 's32[1]{0}', space=sflag, size = 0x4, scoped, tag = 'scoped memory for _lambda_.1']
    #allocation25 [shape = 'u8[512]{0}', space=vmem, size = 0x400, scoped, tag = 'input window, operand 14, single buffered']
    #allocation26 [shape = 'u8[24576]{0}', space=vmem, size = 0x6000, scoped, tag = 'input window, operand 15, single buffered']
    #allocation27 [shape = 's32[1]{0}', space=sflag, size = 0x4, scoped, tag = 'scoped memory for _lambda_.1']
    #allocation28 [shape = 'u8[512]{0}', space=vmem, size = 0x400, scoped, tag = 'input window, operand 16, single buffered']
    #allocation29 [shape = 'u8[24576]{0}', space=vmem, size = 0x6000, scoped, tag = 'input window, operand 17, single buffered']
    #allocation30 [shape = 's32[1]{0}', space=sflag, size = 0x4, scoped, tag = 'scoped memory for _lambda_.1']
    #allocation31 [shape = 'u8[512]{0}', space=vmem, size = 0x400, scoped, tag = 'input window, operand 18, single buffered']
    #allocation32 [shape = 'u8[24576]{0}', space=vmem, size = 0x6000, scoped, tag = 'input window, operand 19, single buffered']
    #allocation33 [shape = 's32[1]{0}', space=sflag, size = 0x4, scoped, tag = 'scoped memory for _lambda_.1']
    #allocation34 [shape = 'u8[512]{0}', space=vmem, size = 0x400, scoped, tag = 'input window, operand 20, single buffered']
    #allocation35 [shape = 'u8[24576]{0}', space=vmem, size = 0x6000, scoped, tag = 'input window, operand 21, single buffered']
    #allocation36 [shape = 's32[1]{0}', space=sflag, size = 0x4, scoped, tag = 'scoped memory for _lambda_.1']
    #allocation37 [shape = 'u8[512]{0}', space=vmem, size = 0x400, scoped, tag = 'input window, operand 22, single buffered']
    #allocation38 [shape = 'u8[24576]{0}', space=vmem, size = 0x6000, scoped, tag = 'input window, operand 23, single buffered']
    #allocation39 [shape = 's32[1]{0}', space=sflag, size = 0x4, scoped, tag = 'scoped memory for _lambda_.1']
    #allocation40 [shape = 'u8[512]{0}', space=vmem, size = 0x400, scoped, tag = 'input window, operand 24, single buffered']
    #allocation41 [shape = 'u8[49152]{0}', space=vmem, size = 0xc000, scoped, tag = 'input window, operand 25, single buffered']
    #allocation42 [shape = 's32[1]{0}', space=sflag, size = 0x4, scoped, tag = 'scoped memory for _lambda_.1']
    #allocation43 [shape = 'u8[512]{0}', space=vmem, size = 0x400, scoped, tag = 'input window, operand 26, single buffered']
    #allocation44 [shape = 'u8[8192]{0}', space=vmem, size = 0x2000, scoped, tag = 'input window, operand 27, single buffered']
    #allocation45 [shape = 's32[1]{0}', space=sflag, size = 0x4, scoped, tag = 'scoped memory for _lambda_.1']
    #allocation46 [shape = 'u8[512]{0}', space=vmem, size = 0x400, scoped, tag = 'input window, operand 28, single buffered']
    #allocation47 [shape = 'u8[16384]{0}', space=vmem, size = 0x4000, scoped, tag = 'input window, operand 29, single buffered']
    #allocation48 [shape = 's32[1]{0}', space=sflag, size = 0x4, scoped, tag = 'scoped memory for _lambda_.1']
    #allocation49 [shape = 'u8[512]{0}', space=vmem, size = 0x400, scoped, tag = 'input window, operand 30, single buffered']
    #allocation50 [shape = 'u8[512]{0}', space=vmem, size = 0x400, scoped, tag = 'input window, operand 31, single buffered']
    #allocation51 [shape = 's32[1]{0}', space=sflag, size = 0x4, scoped, tag = 'scoped memory for _lambda_.1']
    #allocation52 [shape = 'u8[512]{0}', space=vmem, size = 0x400, scoped, tag = 'input window, operand 32, single buffered']
    #allocation53 [shape = 'u8[16384]{0}', space=vmem, size = 0x4000, scoped, tag = 'input window, operand 33, single buffered']
    #allocation54 [shape = 's32[1]{0}', space=sflag, size = 0x4, scoped, tag = 'scoped memory for _lambda_.1']
    #allocation55 [shape = 'u8[512]{0}', space=vmem, size = 0x400, scoped, tag = 'input window, operand 34, single buffered']
    #allocation56 [shape = 'u8[16384]{0}', space=vmem, size = 0x4000, scoped, tag = 'input window, operand 35, single buffered']
    #allocation57 [shape = 's32[1]{0}', space=sflag, size = 0x4, scoped, tag = 'scoped memory for _lambda_.1']
    #allocation58 [shape = 'u8[512]{0}', space=vmem, size = 0x400, scoped, tag = 'input window, operand 36, single buffered']
    #allocation59 [shape = 'u8[512]{0}', space=vmem, size = 0x400, scoped, tag = 'input window, operand 37, single buffered']
    #allocation60 [shape = 's32[1]{0}', space=sflag, size = 0x4, scoped, tag = 'scoped memory for _lambda_.1']
    #allocation61 [shape = 'u8[512]{0}', space=vmem, size = 0x400, scoped, tag = 'input window, operand 38, single buffered']
    #allocation62 [shape = 'u8[16384]{0}', space=vmem, size = 0x4000, scoped, tag = 'input window, operand 39, single buffered']
    #allocation63 [shape = 's32[1]{0}', space=sflag, size = 0x4, scoped, tag = 'scoped memory for _lambda_.1']
    #allocation64 [shape = 'u8[512]{0}', space=vmem, size = 0x400, scoped, tag = 'input window, operand 40, single buffered']
    #allocation65 [shape = 'u8[1024]{0}', space=vmem, size = 0x400, scoped, tag = 'output window, operand 0, single buffered']
    #allocation66 [shape = 'u8[1024]{0}', space=vmem, size = 0x400, scoped, tag = 'output window, operand 1, single buffered']
    #allocation67 [shape = 's32[1]{0}', space=sflag, size = 0x4, scoped, tag = 'scoped memory for _lambda_.1']
    %91 = vsyncpa [#allocation3], 0
    %92 = vsyncpa [#allocation6], 0
    %93 = vsyncpa [#allocation9], 0
    %94 = vsyncpa [#allocation12], 0
    %95 = vsyncpa [#allocation15], 0
    %96 = vsyncpa [#allocation18], 0
    %97 = vsyncpa [#allocation21], 0
    %98 = vsyncpa [#allocation24], 0
    %99 = vsyncpa [#allocation27], 0
    %100 = vsyncpa [#allocation30], 0
    %101 = vsyncpa [#allocation33], 0
    %102 = vsyncpa [#allocation36], 0
    %103 = vsyncpa [#allocation39], 0
    %104 = vsyncpa [#allocation42], 0
    %105 = vsyncpa [#allocation45], 0
    %106 = vsyncpa [#allocation48], 0
    %107 = vsyncpa [#allocation51], 0
    %108 = vsyncpa [#allocation54], 0
    %109 = vsyncpa [#allocation57], 0
    %110 = vsyncpa [#allocation60], 0
    %111 = vsyncpa [#allocation63], 0
    %112 = vsyncpa [#allocation4], 0
    %113 = vsyncpa [#allocation67], 0
    // Predicated region
    $region2: #{_lambda_.1} parent=1 // pred_check
      _
    $region3: #{_lambda_.1} parent=1 // pred_check_branch
      %115 = sbr.rel (0) target = $region5
    $region4: #{_lambda_.1} parent=1 // pred_region
      %s117 = ssub.s32 512, 512
      %118 = vsyncadd [#allocation3], %s117
      %s119 = sshll.u32 [#allocation2], 4
      %s120 = int_to_ptr.vmem [resolvable:$true] %s119
      %125 = dma.hbm_to_vmem [thread:$0]  %s1, 512, %s120, [#allocation3], 128, 128, 8
    $region5: #{_lambda_.1} parent=1 // pred_fallthru
      _
    // Predicated region
    $region6: #{_lambda_.1} parent=1 // pred_check
      _
    $region7: #{_lambda_.1} parent=1 // pred_check_branch
      %127 = sbr.rel (0) target = $region9
    $region8: #{_lambda_.1} parent=1 // pred_region
      %s129 = ssub.s32 64, 64
      %130 = vsyncadd [#allocation6], %s129
      %s132 = sshll.u32 [#allocation5], 4
      %s133 = int_to_ptr.vmem [resolvable:$true] %s132
      %135 = dma.hbm_to_vmem [thread:$0]  %s3, 64, %s133, [#allocation6]
    $region9: #{_lambda_.1} parent=1 // pred_fallthru
      _
    // Predicated region
    $region10: #{_lambda_.1} parent=1 // pred_check
      _
    $region11: #{_lambda_.1} parent=1 // pred_check_branch
      %137 = sbr.rel (0) target = $region13
    $region12: #{_lambda_.1} parent=1 // pred_region
      %s139 = ssub.s32 16, 16
      %140 = vsyncadd [#allocation6], %s139
      %s142 = sshll.u32 [#allocation7], 4
      %s143 = int_to_ptr.vmem [resolvable:$true] %s142
      %145 = dma.hbm_to_vmem [thread:$0]  %s5, 16, %s143, [#allocation6]
    $region13: #{_lambda_.1} parent=1 // pred_fallthru
      _
    // Predicated region
    $region14: #{_lambda_.1} parent=1 // pred_check
      _
    $region15: #{_lambda_.1} parent=1 // pred_check_branch
      %147 = sbr.rel (0) target = $region17
    $region16: #{_lambda_.1} parent=1 // pred_region
      %s149 = ssub.s32 768, 768
      %150 = vsyncadd [#allocation9], %s149
      %s151 = sshll.u32 [#allocation8], 4
      %s152 = int_to_ptr.vmem [resolvable:$true] %s151
      %157 = dma.hbm_to_vmem [thread:$0]  %s7, 768, %s152, [#allocation9], 128, 128, 8
    $region17: #{_lambda_.1} parent=1 // pred_fallthru
      _
    // Predicated region
    $region18: #{_lambda_.1} parent=1 // pred_check
      _
    $region19: #{_lambda_.1} parent=1 // pred_check_branch
      %159 = sbr.rel (0) target = $region21
    $region20: #{_lambda_.1} parent=1 // pred_region
      %s161 = ssub.s32 16, 16
      %162 = vsyncadd [#allocation9], %s161
      %s164 = sshll.u32 [#allocation10], 4
      %s165 = int_to_ptr.vmem [resolvable:$true] %s164
      %167 = dma.hbm_to_vmem [thread:$0]  %s9, 16, %s165, [#allocation9]
    $region21: #{_lambda_.1} parent=1 // pred_fallthru
      _
    // Predicated region
    $region22: #{_lambda_.1} parent=1 // pred_check
      _
    $region23: #{_lambda_.1} parent=1 // pred_check_branch
      %169 = sbr.rel (0) target = $region25
    $region24: #{_lambda_.1} parent=1 // pred_region
      %s171 = ssub.s32 768, 768
      %172 = vsyncadd [#allocation12], %s171
      %s173 = sshll.u32 [#allocation11], 4
      %s174 = int_to_ptr.vmem [resolvable:$true] %s173
      %179 = dma.hbm_to_vmem [thread:$0]  %s11, 768, %s174, [#allocation12], 128, 128, 8
    $region25: #{_lambda_.1} parent=1 // pred_fallthru
      _
    // Predicated region
    $region26: #{_lambda_.1} parent=1 // pred_check
      _
    $region27: #{_lambda_.1} parent=1 // pred_check_branch
      %181 = sbr.rel (0) target = $region29
    $region28: #{_lambda_.1} parent=1 // pred_region
      %s183 = ssub.s32 16, 16
      %184 = vsyncadd [#allocation12], %s183
      %s186 = sshll.u32 [#allocation13], 4
      %s187 = int_to_ptr.vmem [resolvable:$true] %s186
      %189 = dma.hbm_to_vmem [thread:$0]  %s13, 16, %s187, [#allocation12]
    $region29: #{_lambda_.1} parent=1 // pred_fallthru
      _
    // Predicated region
    $region30: #{_lambda_.1} parent=1 // pred_check
      _
    $region31: #{_lambda_.1} parent=1 // pred_check_branch
      %191 = sbr.rel (0) target = $region33
    $region32: #{_lambda_.1} parent=1 // pred_region
      %s193 = ssub.s32 768, 768
      %194 = vsyncadd [#allocation15], %s193
      %s195 = sshll.u32 [#allocation14], 4
      %s196 = int_to_ptr.vmem [resolvable:$true] %s195
      %201 = dma.hbm_to_vmem [thread:$0]  %s15, 768, %s196, [#allocation15], 128, 128, 8
    $region33: #{_lambda_.1} parent=1 // pred_fallthru
      _
    // Predicated region
    $region34: #{_lambda_.1} parent=1 // pred_check
      _
    $region35: #{_lambda_.1} parent=1 // pred_check_branch
      %203 = sbr.rel (0) target = $region37
    $region36: #{_lambda_.1} parent=1 // pred_region
      %s205 = ssub.s32 16, 16
      %206 = vsyncadd [#allocation15], %s205
      %s208 = sshll.u32 [#allocation16], 4
      %s209 = int_to_ptr.vmem [resolvable:$true] %s208
      %211 = dma.hbm_to_vmem [thread:$0]  %s17, 16, %s209, [#allocation15]
    $region37: #{_lambda_.1} parent=1 // pred_fallthru
      _
    // Predicated region
    $region38: #{_lambda_.1} parent=1 // pred_check
      _
    $region39: #{_lambda_.1} parent=1 // pred_check_branch
      %213 = sbr.rel (0) target = $region41
    $region40: #{_lambda_.1} parent=1 // pred_region
      %s215 = ssub.s32 768, 768
      %216 = vsyncadd [#allocation18], %s215
      %s217 = sshll.u32 [#allocation17], 4
      %s218 = int_to_ptr.vmem [resolvable:$true] %s217
      %223 = dma.hbm_to_vmem [thread:$0]  %s19, 768, %s218, [#allocation18], 128, 128, 8
    $region41: #{_lambda_.1} parent=1 // pred_fallthru
      _
    // Predicated region
    $region42: #{_lambda_.1} parent=1 // pred_check
      _
    $region43: #{_lambda_.1} parent=1 // pred_check_branch
      %225 = sbr.rel (0) target = $region45
    $region44: #{_lambda_.1} parent=1 // pred_region
      %s227 = ssub.s32 16, 16
      %228 = vsyncadd [#allocation18], %s227
      %s230 = sshll.u32 [#allocation19], 4
      %s231 = int_to_ptr.vmem [resolvable:$true] %s230
      %233 = dma.hbm_to_vmem [thread:$0]  %s21, 16, %s231, [#allocation18]
    $region45: #{_lambda_.1} parent=1 // pred_fallthru
      _
    // Predicated region
    $region46: #{_lambda_.1} parent=1 // pred_check
      _
    $region47: #{_lambda_.1} parent=1 // pred_check_branch
      %235 = sbr.rel (0) target = $region49
    $region48: #{_lambda_.1} parent=1 // pred_region
      %s237 = ssub.s32 768, 768
      %238 = vsyncadd [#allocation21], %s237
      %s239 = sshll.u32 [#allocation20], 4
      %s240 = int_to_ptr.vmem [resolvable:$true] %s239
      %245 = dma.hbm_to_vmem [thread:$0]  %s23, 768, %s240, [#allocation21], 128, 128, 8
    $region49: #{_lambda_.1} parent=1 // pred_fallthru
      _
    // Predicated region
    $region50: #{_lambda_.1} parent=1 // pred_check
      _
    $region51: #{_lambda_.1} parent=1 // pred_check_branch
      %247 = sbr.rel (0) target = $region53
    $region52: #{_lambda_.1} parent=1 // pred_region
      %s249 = ssub.s32 16, 16
      %250 = vsyncadd [#allocation21], %s249
      %s252 = sshll.u32 [#allocation22], 4
      %s253 = int_to_ptr.vmem [resolvable:$true] %s252
      %255 = dma.hbm_to_vmem [thread:$0]  %s25, 16, %s253, [#allocation21]
    $region53: #{_lambda_.1} parent=1 // pred_fallthru
      _
    // Predicated region
    $region54: #{_lambda_.1} parent=1 // pred_check
      _
    $region55: #{_lambda_.1} parent=1 // pred_check_branch
      %257 = sbr.rel (0) target = $region57
    $region56: #{_lambda_.1} parent=1 // pred_region
      %s259 = ssub.s32 768, 768
      %260 = vsyncadd [#allocation24], %s259
      %s261 = sshll.u32 [#allocation23], 4
      %s262 = int_to_ptr.vmem [resolvable:$true] %s261
      %267 = dma.hbm_to_vmem [thread:$0]  %s27, 768, %s262, [#allocation24], 128, 128, 8
    $region57: #{_lambda_.1} parent=1 // pred_fallthru
      _
    // Predicated region
    $region58: #{_lambda_.1} parent=1 // pred_check
      _
    $region59: #{_lambda_.1} parent=1 // pred_check_branch
      %269 = sbr.rel (0) target = $region61
    $region60: #{_lambda_.1} parent=1 // pred_region
      %s271 = ssub.s32 16, 16
      %272 = vsyncadd [#allocation24], %s271
      %s274 = sshll.u32 [#allocation25], 4
      %s275 = int_to_ptr.vmem [resolvable:$true] %s274
      %277 = dma.hbm_to_vmem [thread:$0]  %s29, 16, %s275, [#allocation24]
    $region61: #{_lambda_.1} parent=1 // pred_fallthru
      _
    // Predicated region
    $region62: #{_lambda_.1} parent=1 // pred_check
      _
    $region63: #{_lambda_.1} parent=1 // pred_check_branch
      %279 = sbr.rel (0) target = $region65
    $region64: #{_lambda_.1} parent=1 // pred_region
      %s281 = ssub.s32 768, 768
      %282 = vsyncadd [#allocation27], %s281
      %s283 = sshll.u32 [#allocation26], 4
      %s284 = int_to_ptr.vmem [resolvable:$true] %s283
      %289 = dma.hbm_to_vmem [thread:$0]  %s31, 768, %s284, [#allocation27], 128, 128, 8
    $region65: #{_lambda_.1} parent=1 // pred_fallthru
      _
    // Predicated region
    $region66: #{_lambda_.1} parent=1 // pred_check
      _
    $region67: #{_lambda_.1} parent=1 // pred_check_branch
      %291 = sbr.rel (0) target = $region69
    $region68: #{_lambda_.1} parent=1 // pred_region
      %s293 = ssub.s32 16, 16
      %294 = vsyncadd [#allocation27], %s293
      %s296 = sshll.u32 [#allocation28], 4
      %s297 = int_to_ptr.vmem [resolvable:$true] %s296
      %299 = dma.hbm_to_vmem [thread:$0]  %s33, 16, %s297, [#allocation27]
    $region69: #{_lambda_.1} parent=1 // pred_fallthru
      _
    // Predicated region
    $region70: #{_lambda_.1} parent=1 // pred_check
      _
    $region71: #{_lambda_.1} parent=1 // pred_check_branch
      %301 = sbr.rel (0) target = $region73
    $region72: #{_lambda_.1} parent=1 // pred_region
      %s303 = ssub.s32 768, 768
      %304 = vsyncadd [#allocation30], %s303
      %s305 = sshll.u32 [#allocation29], 4
      %s306 = int_to_ptr.vmem [resolvable:$true] %s305
      %311 = dma.hbm_to_vmem [thread:$0]  %s35, 768, %s306, [#allocation30], 128, 128, 8
    $region73: #{_lambda_.1} parent=1 // pred_fallthru
      _
    // Predicated region
    $region74: #{_lambda_.1} parent=1 // pred_check
      _
    $region75: #{_lambda_.1} parent=1 // pred_check_branch
      %313 = sbr.rel (0) target = $region77
    $region76: #{_lambda_.1} parent=1 // pred_region
      %s315 = ssub.s32 16, 16
      %316 = vsyncadd [#allocation30], %s315
      %s318 = sshll.u32 [#allocation31], 4
      %s319 = int_to_ptr.vmem [resolvable:$true] %s318
      %321 = dma.hbm_to_vmem [thread:$0]  %s37, 16, %s319, [#allocation30]
    $region77: #{_lambda_.1} parent=1 // pred_fallthru
      _
    // Predicated region
    $region78: #{_lambda_.1} parent=1 // pred_check
      _
    $region79: #{_lambda_.1} parent=1 // pred_check_branch
      %323 = sbr.rel (0) target = $region81
    $region80: #{_lambda_.1} parent=1 // pred_region
      %s325 = ssub.s32 768, 768
      %326 = vsyncadd [#allocation33], %s325
      %s327 = sshll.u32 [#allocation32], 4
      %s328 = int_to_ptr.vmem [resolvable:$true] %s327
      %333 = dma.hbm_to_vmem [thread:$0]  %s39, 768, %s328, [#allocation33], 128, 128, 8
    $region81: #{_lambda_.1} parent=1 // pred_fallthru
      _
    // Predicated region
    $region82: #{_lambda_.1} parent=1 // pred_check
      _
    $region83: #{_lambda_.1} parent=1 // pred_check_branch
      %335 = sbr.rel (0) target = $region85
    $region84: #{_lambda_.1} parent=1 // pred_region
      %s337 = ssub.s32 16, 16
      %338 = vsyncadd [#allocation33], %s337
      %s340 = sshll.u32 [#allocation34], 4
      %s341 = int_to_ptr.vmem [resolvable:$true] %s340
      %343 = dma.hbm_to_vmem [thread:$0]  %s41, 16, %s341, [#allocation33]
    $region85: #{_lambda_.1} parent=1 // pred_fallthru
      _
    // Predicated region
    $region86: #{_lambda_.1} parent=1 // pred_check
      _
    $region87: #{_lambda_.1} parent=1 // pred_check_branch
      %345 = sbr.rel (0) target = $region89
    $region88: #{_lambda_.1} parent=1 // pred_region
      %s347 = ssub.s32 768, 768
      %348 = vsyncadd [#allocation36], %s347
      %s349 = sshll.u32 [#allocation35], 4
      %s350 = int_to_ptr.vmem [resolvable:$true] %s349
      %355 = dma.hbm_to_vmem [thread:$0]  %s43, 768, %s350, [#allocation36], 128, 128, 8
    $region89: #{_lambda_.1} parent=1 // pred_fallthru
      _
    // Predicated region
    $region90: #{_lambda_.1} parent=1 // pred_check
      _
    $region91: #{_lambda_.1} parent=1 // pred_check_branch
      %357 = sbr.rel (0) target = $region93
    $region92: #{_lambda_.1} parent=1 // pred_region
      %s359 = ssub.s32 16, 16
      %360 = vsyncadd [#allocation36], %s359
      %s362 = sshll.u32 [#allocation37], 4
      %s363 = int_to_ptr.vmem [resolvable:$true] %s362
      %365 = dma.hbm_to_vmem [thread:$0]  %s45, 16, %s363, [#allocation36]
    $region93: #{_lambda_.1} parent=1 // pred_fallthru
      _
    // Predicated region
    $region94: #{_lambda_.1} parent=1 // pred_check
      _
    $region95: #{_lambda_.1} parent=1 // pred_check_branch
      %367 = sbr.rel (0) target = $region97
    $region96: #{_lambda_.1} parent=1 // pred_region
      %s369 = ssub.s32 768, 768
      %370 = vsyncadd [#allocation39], %s369
      %s371 = sshll.u32 [#allocation38], 4
      %s372 = int_to_ptr.vmem [resolvable:$true] %s371
      %377 = dma.hbm_to_vmem [thread:$0]  %s47, 768, %s372, [#allocation39], 128, 128, 8
    $region97: #{_lambda_.1} parent=1 // pred_fallthru
      _
    // Predicated region
    $region98: #{_lambda_.1} parent=1 // pred_check
      _
    $region99: #{_lambda_.1} parent=1 // pred_check_branch
      %379 = sbr.rel (0) target = $region101
    $region100: #{_lambda_.1} parent=1 // pred_region
      %s381 = ssub.s32 16, 16
      %382 = vsyncadd [#allocation39], %s381
      %s384 = sshll.u32 [#allocation40], 4
      %s385 = int_to_ptr.vmem [resolvable:$true] %s384
      %387 = dma.hbm_to_vmem [thread:$0]  %s49, 16, %s385, [#allocation39]
    $region101: #{_lambda_.1} parent=1 // pred_fallthru
      _
    // Predicated region
    $region102: #{_lambda_.1} parent=1 // pred_check
      _
    $region103: #{_lambda_.1} parent=1 // pred_check_branch
      %389 = sbr.rel (0) target = $region105
    $region104: #{_lambda_.1} parent=1 // pred_region
      %s391 = ssub.s32 1536, 1536
      %392 = vsyncadd [#allocation42], %s391
      %s393 = sshll.u32 [#allocation41], 4
      %s394 = int_to_ptr.vmem [resolvable:$true] %s393
      %399 = dma.hbm_to_vmem [thread:$0]  %s51, 1536, %s394, [#allocation42], 128, 128, 8
    $region105: #{_lambda_.1} parent=1 // pred_fallthru
      _
    // Predicated region
    $region106: #{_lambda_.1} parent=1 // pred_check
      _
    $region107: #{_lambda_.1} parent=1 // pred_check_branch
      %401 = sbr.rel (0) target = $region109
    $region108: #{_lambda_.1} parent=1 // pred_region
      %s403 = ssub.s32 16, 16
      %404 = vsyncadd [#allocation42], %s403
      %s406 = sshll.u32 [#allocation43], 4
      %s407 = int_to_ptr.vmem [resolvable:$true] %s406
      %409 = dma.hbm_to_vmem [thread:$0]  %s53, 16, %s407, [#allocation42]
    $region109: #{_lambda_.1} parent=1 // pred_fallthru
      _
    // Predicated region
    $region110: #{_lambda_.1} parent=1 // pred_check
      _
    $region111: #{_lambda_.1} parent=1 // pred_check_branch
      %411 = sbr.rel (0) target = $region113
    $region112: #{_lambda_.1} parent=1 // pred_region
      %s413 = ssub.s32 256, 256
      %414 = vsyncadd [#allocation45], %s413
      %s415 = sshll.u32 [#allocation44], 4
      %s416 = int_to_ptr.vmem [resolvable:$true] %s415
      %421 = dma.hbm_to_vmem [thread:$0]  %s55, 256, %s416, [#allocation45], 128, 128, 8
    $region113: #{_lambda_.1} parent=1 // pred_fallthru
      _
    // Predicated region
    $region114: #{_lambda_.1} parent=1 // pred_check
      _
    $region115: #{_lambda_.1} parent=1 // pred_check_branch
      %423 = sbr.rel (0) target = $region117
    $region116: #{_lambda_.1} parent=1 // pred_region
      %s425 = ssub.s32 16, 16
      %426 = vsyncadd [#allocation45], %s425
      %s428 = sshll.u32 [#allocation46], 4
      %s429 = int_to_ptr.vmem [resolvable:$true] %s428
      %431 = dma.hbm_to_vmem [thread:$0]  %s57, 16, %s429, [#allocation45]
    $region117: #{_lambda_.1} parent=1 // pred_fallthru
      _
    // Predicated region
    $region118: #{_lambda_.1} parent=1 // pred_check
      _
    $region119: #{_lambda_.1} parent=1 // pred_check_branch
      %433 = sbr.rel (0) target = $region121
    $region120: #{_lambda_.1} parent=1 // pred_region
      %s435 = ssub.s32 512, 512
      %436 = vsyncadd [#allocation48], %s435
      %s437 = sshll.u32 [#allocation47], 4
      %s438 = int_to_ptr.vmem [resolvable:$true] %s437
      %443 = dma.hbm_to_vmem [thread:$0]  %s59, 512, %s438, [#allocation48], 128, 128, 8
    $region121: #{_lambda_.1} parent=1 // pred_fallthru
      _
    // Predicated region
    $region122: #{_lambda_.1} parent=1 // pred_check
      _
    $region123: #{_lambda_.1} parent=1 // pred_check_branch
      %445 = sbr.rel (0) target = $region125
    $region124: #{_lambda_.1} parent=1 // pred_region
      %s447 = ssub.s32 16, 16
      %448 = vsyncadd [#allocation48], %s447
      %s450 = sshll.u32 [#allocation49], 4
      %s451 = int_to_ptr.vmem [resolvable:$true] %s450
      %453 = dma.hbm_to_vmem [thread:$0]  %s61, 16, %s451, [#allocation48]
    $region125: #{_lambda_.1} parent=1 // pred_fallthru
      _
    // Predicated region
    $region126: #{_lambda_.1} parent=1 // pred_check
      _
    $region127: #{_lambda_.1} parent=1 // pred_check_branch
      %455 = sbr.rel (0) target = $region129
    $region128: #{_lambda_.1} parent=1 // pred_region
      %s457 = ssub.s32 16, 16
      %458 = vsyncadd [#allocation51], %s457
      %s460 = sshll.u32 [#allocation50], 4
      %s461 = int_to_ptr.vmem [resolvable:$true] %s460
      %463 = dma.hbm_to_vmem [thread:$0]  %s63, 16, %s461, [#allocation51]
    $region129: #{_lambda_.1} parent=1 // pred_fallthru
      _
    // Predicated region
    $region130: #{_lambda_.1} parent=1 // pred_check
      _
    $region131: #{_lambda_.1} parent=1 // pred_check_branch
      %465 = sbr.rel (0) target = $region133
    $region132: #{_lambda_.1} parent=1 // pred_region
      %s467 = ssub.s32 16, 16
      %468 = vsyncadd [#allocation51], %s467
      %s470 = sshll.u32 [#allocation52], 4
      %s471 = int_to_ptr.vmem [resolvable:$true] %s470
      %473 = dma.hbm_to_vmem [thread:$0]  %s65, 16, %s471, [#allocation51]
    $region133: #{_lambda_.1} parent=1 // pred_fallthru
      _
    // Predicated region
    $region134: #{_lambda_.1} parent=1 // pred_check
      _
    $region135: #{_lambda_.1} parent=1 // pred_check_branch
      %475 = sbr.rel (0) target = $region137
    $region136: #{_lambda_.1} parent=1 // pred_region
      %s477 = ssub.s32 512, 512
      %478 = vsyncadd [#allocation54], %s477
      %s479 = sshll.u32 [#allocation53], 4
      %s480 = int_to_ptr.vmem [resolvable:$true] %s479
      %485 = dma.hbm_to_vmem [thread:$0]  %s67, 512, %s480, [#allocation54], 128, 128, 8
    $region137: #{_lambda_.1} parent=1 // pred_fallthru
      _
    // Predicated region
    $region138: #{_lambda_.1} parent=1 // pred_check
      _
    $region139: #{_lambda_.1} parent=1 // pred_check_branch
      %487 = sbr.rel (0) target = $region141
    $region140: #{_lambda_.1} parent=1 // pred_region
      %s489 = ssub.s32 16, 16
      %490 = vsyncadd [#allocation54], %s489
      %s492 = sshll.u32 [#allocation55], 4
      %s493 = int_to_ptr.vmem [resolvable:$true] %s492
      %495 = dma.hbm_to_vmem [thread:$0]  %s69, 16, %s493, [#allocation54]
    $region141: #{_lambda_.1} parent=1 // pred_fallthru
      _
    // Predicated region
    $region142: #{_lambda_.1} parent=1 // pred_check
      _
    $region143: #{_lambda_.1} parent=1 // pred_check_branch
      %497 = sbr.rel (0) target = $region145
    $region144: #{_lambda_.1} parent=1 // pred_region
      %s499 = ssub.s32 512, 512
      %500 = vsyncadd [#allocation57], %s499
      %s501 = sshll.u32 [#allocation56], 4
      %s502 = int_to_ptr.vmem [resolvable:$true] %s501
      %507 = dma.hbm_to_vmem [thread:$0]  %s71, 512, %s502, [#allocation57], 128, 128, 8
    $region145: #{_lambda_.1} parent=1 // pred_fallthru
      _
    // Predicated region
    $region146: #{_lambda_.1} parent=1 // pred_check
      _
    $region147: #{_lambda_.1} parent=1 // pred_check_branch
      %509 = sbr.rel (0) target = $region149
    $region148: #{_lambda_.1} parent=1 // pred_region
      %s511 = ssub.s32 16, 16
      %512 = vsyncadd [#allocation57], %s511
      %s514 = sshll.u32 [#allocation58], 4
      %s515 = int_to_ptr.vmem [resolvable:$true] %s514
      %517 = dma.hbm_to_vmem [thread:$0]  %s73, 16, %s515, [#allocation57]
    $region149: #{_lambda_.1} parent=1 // pred_fallthru
      _
    // Predicated region
    $region150: #{_lambda_.1} parent=1 // pred_check
      _
    $region151: #{_lambda_.1} parent=1 // pred_check_branch
      %519 = sbr.rel (0) target = $region153
    $region152: #{_lambda_.1} parent=1 // pred_region
      %s521 = ssub.s32 16, 16
      %522 = vsyncadd [#allocation60], %s521
      %s524 = sshll.u32 [#allocation59], 4
      %s525 = int_to_ptr.vmem [resolvable:$true] %s524
      %527 = dma.hbm_to_vmem [thread:$0]  %s75, 16, %s525, [#allocation60]
    $region153: #{_lambda_.1} parent=1 // pred_fallthru
      _
    // Predicated region
    $region154: #{_lambda_.1} parent=1 // pred_check
      _
    $region155: #{_lambda_.1} parent=1 // pred_check_branch
      %529 = sbr.rel (0) target = $region157
    $region156: #{_lambda_.1} parent=1 // pred_region
      %s531 = ssub.s32 16, 16
      %532 = vsyncadd [#allocation60], %s531
      %s534 = sshll.u32 [#allocation61], 4
      %s535 = int_to_ptr.vmem [resolvable:$true] %s534
      %537 = dma.hbm_to_vmem [thread:$0]  %s77, 16, %s535, [#allocation60]
    $region157: #{_lambda_.1} parent=1 // pred_fallthru
      _
    // Predicated region
    $region158: #{_lambda_.1} parent=1 // pred_check
      _
    $region159: #{_lambda_.1} parent=1 // pred_check_branch
      %539 = sbr.rel (0) target = $region161
    $region160: #{_lambda_.1} parent=1 // pred_region
      %s541 = ssub.s32 512, 512
      %542 = vsyncadd [#allocation63], %s541
      %s543 = sshll.u32 [#allocation62], 4
      %s544 = int_to_ptr.vmem [resolvable:$true] %s543
      %549 = dma.hbm_to_vmem [thread:$0]  %s79, 512, %s544, [#allocation63], 128, 128, 8
    $region161: #{_lambda_.1} parent=1 // pred_fallthru
      _
    // Predicated region
    $region162: #{_lambda_.1} parent=1 // pred_check
      _
    $region163: #{_lambda_.1} parent=1 // pred_check_branch
      %551 = sbr.rel (0) target = $region165
    $region164: #{_lambda_.1} parent=1 // pred_region
      %s553 = ssub.s32 16, 16
      %554 = vsyncadd [#allocation63], %s553
      %s556 = sshll.u32 [#allocation64], 4
      %s557 = int_to_ptr.vmem [resolvable:$true] %s556
      %559 = dma.hbm_to_vmem [thread:$0]  %s81, 16, %s557, [#allocation63]
    $region165: #{_lambda_.1} parent=1 // pred_fallthru
      _
    // Predicated region
    $region166: #{_lambda_.1} parent=1 // pred_check
      _
    $region167: #{_lambda_.1} parent=1 // pred_check_branch
      %561 = sbr.rel (0) target = $region169
    $region168: #{_lambda_.1} parent=1 // pred_region
      %562 = dma.done [#allocation3], 512
    $region169: #{_lambda_.1} parent=1 // pred_fallthru
      _
    // Predicated region
    $region170: #{_lambda_.1} parent=1 // pred_check
      _
    $region171: #{_lambda_.1} parent=1 // pred_check_branch
      %564 = sbr.rel (0) target = $region173
    $region172: #{_lambda_.1} parent=1 // pred_region
      %565 = dma.done [#allocation6], 64
    $region173: #{_lambda_.1} parent=1 // pred_fallthru
      _
    // Predicated region
    $region174: #{_lambda_.1} parent=1 // pred_check
      _
    $region175: #{_lambda_.1} parent=1 // pred_check_branch
      %567 = sbr.rel (0) target = $region177
    $region176: #{_lambda_.1} parent=1 // pred_region
      %568 = dma.done [#allocation6], 16
    $region177: #{_lambda_.1} parent=1 // pred_fallthru
      _
    // Predicated region
    $region178: #{_lambda_.1} parent=1 // pred_check
      _
    $region179: #{_lambda_.1} parent=1 // pred_check_branch
      %570 = sbr.rel (0) target = $region181
    $region180: #{_lambda_.1} parent=1 // pred_region
      %571 = dma.done [#allocation9], 768
    $region181: #{_lambda_.1} parent=1 // pred_fallthru
      _
    // Predicated region
    $region182: #{_lambda_.1} parent=1 // pred_check
      _
    $region183: #{_lambda_.1} parent=1 // pred_check_branch
      %573 = sbr.rel (0) target = $region185
    $region184: #{_lambda_.1} parent=1 // pred_region
      %574 = dma.done [#allocation9], 16
    $region185: #{_lambda_.1} parent=1 // pred_fallthru
      _
    // Predicated region
    $region186: #{_lambda_.1} parent=1 // pred_check
      _
    $region187: #{_lambda_.1} parent=1 // pred_check_branch
      %576 = sbr.rel (0) target = $region189
    $region188: #{_lambda_.1} parent=1 // pred_region
      %577 = dma.done [#allocation12], 768
    $region189: #{_lambda_.1} parent=1 // pred_fallthru
      _
    // Predicated region
    $region190: #{_lambda_.1} parent=1 // pred_check
      _
    $region191: #{_lambda_.1} parent=1 // pred_check_branch
      %579 = sbr.rel (0) target = $region193
    $region192: #{_lambda_.1} parent=1 // pred_region
      %580 = dma.done [#allocation12], 16
    $region193: #{_lambda_.1} parent=1 // pred_fallthru
      _
    // Predicated region
    $region194: #{_lambda_.1} parent=1 // pred_check
      _
    $region195: #{_lambda_.1} parent=1 // pred_check_branch
      %582 = sbr.rel (0) target = $region197
    $region196: #{_lambda_.1} parent=1 // pred_region
      %583 = dma.done [#allocation15], 768
    $region197: #{_lambda_.1} parent=1 // pred_fallthru
      _
    // Predicated region
    $region198: #{_lambda_.1} parent=1 // pred_check
      _
    $region199: #{_lambda_.1} parent=1 // pred_check_branch
      %585 = sbr.rel (0) target = $region201
    $region200: #{_lambda_.1} parent=1 // pred_region
      %586 = dma.done [#allocation15], 16
    $region201: #{_lambda_.1} parent=1 // pred_fallthru
      _
    // Predicated region
    $region202: #{_lambda_.1} parent=1 // pred_check
      _
    $region203: #{_lambda_.1} parent=1 // pred_check_branch
      %588 = sbr.rel (0) target = $region205
    $region204: #{_lambda_.1} parent=1 // pred_region
      %589 = dma.done [#allocation18], 768
    $region205: #{_lambda_.1} parent=1 // pred_fallthru
      _
    // Predicated region
    $region206: #{_lambda_.1} parent=1 // pred_check
      _
    $region207: #{_lambda_.1} parent=1 // pred_check_branch
      %591 = sbr.rel (0) target = $region209
    $region208: #{_lambda_.1} parent=1 // pred_region
      %592 = dma.done [#allocation18], 16
    $region209: #{_lambda_.1} parent=1 // pred_fallthru
      _
    // Predicated region
    $region210: #{_lambda_.1} parent=1 // pred_check
      _
    $region211: #{_lambda_.1} parent=1 // pred_check_branch
      %594 = sbr.rel (0) target = $region213
    $region212: #{_lambda_.1} parent=1 // pred_region
      %595 = dma.done [#allocation21], 768
    $region213: #{_lambda_.1} parent=1 // pred_fallthru
      _
    // Predicated region
    $region214: #{_lambda_.1} parent=1 // pred_check
      _
    $region215: #{_lambda_.1} parent=1 // pred_check_branch
      %597 = sbr.rel (0) target = $region217
    $region216: #{_lambda_.1} parent=1 // pred_region
      %598 = dma.done [#allocation21], 16
    $region217: #{_lambda_.1} parent=1 // pred_fallthru
      _
    // Predicated region
    $region218: #{_lambda_.1} parent=1 // pred_check
      _
    $region219: #{_lambda_.1} parent=1 // pred_check_branch
      %600 = sbr.rel (0) target = $region221
    $region220: #{_lambda_.1} parent=1 // pred_region
      %601 = dma.done [#allocation24], 768
    $region221: #{_lambda_.1} parent=1 // pred_fallthru
      _
    // Predicated region
    $region222: #{_lambda_.1} parent=1 // pred_check
      _
    $region223: #{_lambda_.1} parent=1 // pred_check_branch
      %603 = sbr.rel (0) target = $region225
    $region224: #{_lambda_.1} parent=1 // pred_region
      %604 = dma.done [#allocation24], 16
    $region225: #{_lambda_.1} parent=1 // pred_fallthru
      _
    // Predicated region
    $region226: #{_lambda_.1} parent=1 // pred_check
      _
    $region227: #{_lambda_.1} parent=1 // pred_check_branch
      %606 = sbr.rel (0) target = $region229
    $region228: #{_lambda_.1} parent=1 // pred_region
      %607 = dma.done [#allocation27], 768
    $region229: #{_lambda_.1} parent=1 // pred_fallthru
      _
    // Predicated region
    $region230: #{_lambda_.1} parent=1 // pred_check
      _
    $region231: #{_lambda_.1} parent=1 // pred_check_branch
      %609 = sbr.rel (0) target = $region233
    $region232: #{_lambda_.1} parent=1 // pred_region
      %610 = dma.done [#allocation27], 16
    $region233: #{_lambda_.1} parent=1 // pred_fallthru
      _
    // Predicated region
    $region234: #{_lambda_.1} parent=1 // pred_check
      _
    $region235: #{_lambda_.1} parent=1 // pred_check_branch
      %612 = sbr.rel (0) target = $region237
    $region236: #{_lambda_.1} parent=1 // pred_region
      %613 = dma.done [#allocation30], 768
    $region237: #{_lambda_.1} parent=1 // pred_fallthru
      _
    // Predicated region
    $region238: #{_lambda_.1} parent=1 // pred_check
      _
    $region239: #{_lambda_.1} parent=1 // pred_check_branch
      %615 = sbr.rel (0) target = $region241
    $region240: #{_lambda_.1} parent=1 // pred_region
      %616 = dma.done [#allocation30], 16
    $region241: #{_lambda_.1} parent=1 // pred_fallthru
      _
    // Predicated region
    $region242: #{_lambda_.1} parent=1 // pred_check
      _
    $region243: #{_lambda_.1} parent=1 // pred_check_branch
      %618 = sbr.rel (0) target = $region245
    $region244: #{_lambda_.1} parent=1 // pred_region
      %619 = dma.done [#allocation33], 768
    $region245: #{_lambda_.1} parent=1 // pred_fallthru
      _
    // Predicated region
    $region246: #{_lambda_.1} parent=1 // pred_check
      _
    $region247: #{_lambda_.1} parent=1 // pred_check_branch
      %621 = sbr.rel (0) target = $region249
    $region248: #{_lambda_.1} parent=1 // pred_region
      %622 = dma.done [#allocation33], 16
    $region249: #{_lambda_.1} parent=1 // pred_fallthru
      _
    // Predicated region
    $region250: #{_lambda_.1} parent=1 // pred_check
      _
    $region251: #{_lambda_.1} parent=1 // pred_check_branch
      %624 = sbr.rel (0) target = $region253
    $region252: #{_lambda_.1} parent=1 // pred_region
      %625 = dma.done [#allocation36], 768
    $region253: #{_lambda_.1} parent=1 // pred_fallthru
      _
    // Predicated region
    $region254: #{_lambda_.1} parent=1 // pred_check
      _
    $region255: #{_lambda_.1} parent=1 // pred_check_branch
      %627 = sbr.rel (0) target = $region257
    $region256: #{_lambda_.1} parent=1 // pred_region
      %628 = dma.done [#allocation36], 16
    $region257: #{_lambda_.1} parent=1 // pred_fallthru
      _
    // Predicated region
    $region258: #{_lambda_.1} parent=1 // pred_check
      _
    $region259: #{_lambda_.1} parent=1 // pred_check_branch
      %630 = sbr.rel (0) target = $region261
    $region260: #{_lambda_.1} parent=1 // pred_region
      %631 = dma.done [#allocation39], 768
    $region261: #{_lambda_.1} parent=1 // pred_fallthru
      _
    // Predicated region
    $region262: #{_lambda_.1} parent=1 // pred_check
      _
    $region263: #{_lambda_.1} parent=1 // pred_check_branch
      %633 = sbr.rel (0) target = $region265
    $region264: #{_lambda_.1} parent=1 // pred_region
      %634 = dma.done [#allocation39], 16
    $region265: #{_lambda_.1} parent=1 // pred_fallthru
      _
    // Predicated region
    $region266: #{_lambda_.1} parent=1 // pred_check
      _
    $region267: #{_lambda_.1} parent=1 // pred_check_branch
      %636 = sbr.rel (0) target = $region269
    $region268: #{_lambda_.1} parent=1 // pred_region
      %637 = dma.done [#allocation42], 1536
    $region269: #{_lambda_.1} parent=1 // pred_fallthru
      _
    // Predicated region
    $region270: #{_lambda_.1} parent=1 // pred_check
      _
    $region271: #{_lambda_.1} parent=1 // pred_check_branch
      %639 = sbr.rel (0) target = $region273
    $region272: #{_lambda_.1} parent=1 // pred_region
      %640 = dma.done [#allocation42], 16
    $region273: #{_lambda_.1} parent=1 // pred_fallthru
      _
    // Predicated region
    $region274: #{_lambda_.1} parent=1 // pred_check
      _
    $region275: #{_lambda_.1} parent=1 // pred_check_branch
      %642 = sbr.rel (0) target = $region277
    $region276: #{_lambda_.1} parent=1 // pred_region
      %643 = dma.done [#allocation45], 256
    $region277: #{_lambda_.1} parent=1 // pred_fallthru
      _
    // Predicated region
    $region278: #{_lambda_.1} parent=1 // pred_check
      _
    $region279: #{_lambda_.1} parent=1 // pred_check_branch
      %645 = sbr.rel (0) target = $region281
    $region280: #{_lambda_.1} parent=1 // pred_region
      %646 = dma.done [#allocation45], 16
    $region281: #{_lambda_.1} parent=1 // pred_fallthru
      _
    // Predicated region
    $region282: #{_lambda_.1} parent=1 // pred_check
      _
    $region283: #{_lambda_.1} parent=1 // pred_check_branch
      %648 = sbr.rel (0) target = $region285
    $region284: #{_lambda_.1} parent=1 // pred_region
      %649 = dma.done [#allocation48], 512
    $region285: #{_lambda_.1} parent=1 // pred_fallthru
      _
    // Predicated region
    $region286: #{_lambda_.1} parent=1 // pred_check
      _
    $region287: #{_lambda_.1} parent=1 // pred_check_branch
      %651 = sbr.rel (0) target = $region289
    $region288: #{_lambda_.1} parent=1 // pred_region
      %652 = dma.done [#allocation48], 16
    $region289: #{_lambda_.1} parent=1 // pred_fallthru
      _
    // Predicated region
    $region290: #{_lambda_.1} parent=1 // pred_check
      _
    $region291: #{_lambda_.1} parent=1 // pred_check_branch
      %654 = sbr.rel (0) target = $region293
    $region292: #{_lambda_.1} parent=1 // pred_region
      %655 = dma.done [#allocation51], 16
    $region293: #{_lambda_.1} parent=1 // pred_fallthru
      _
    // Predicated region
    $region294: #{_lambda_.1} parent=1 // pred_check
      _
    $region295: #{_lambda_.1} parent=1 // pred_check_branch
      %657 = sbr.rel (0) target = $region297
    $region296: #{_lambda_.1} parent=1 // pred_region
      %658 = dma.done [#allocation51], 16
    $region297: #{_lambda_.1} parent=1 // pred_fallthru
      _
    // Predicated region
    $region298: #{_lambda_.1} parent=1 // pred_check
      _
    $region299: #{_lambda_.1} parent=1 // pred_check_branch
      %660 = sbr.rel (0) target = $region301
    $region300: #{_lambda_.1} parent=1 // pred_region
      %661 = dma.done [#allocation54], 512
    $region301: #{_lambda_.1} parent=1 // pred_fallthru
      _
    // Predicated region
    $region302: #{_lambda_.1} parent=1 // pred_check
      _
    $region303: #{_lambda_.1} parent=1 // pred_check_branch
      %663 = sbr.rel (0) target = $region305
    $region304: #{_lambda_.1} parent=1 // pred_region
      %664 = dma.done [#allocation54], 16
    $region305: #{_lambda_.1} parent=1 // pred_fallthru
      _
    // Predicated region
    $region306: #{_lambda_.1} parent=1 // pred_check
      _
    $region307: #{_lambda_.1} parent=1 // pred_check_branch
      %666 = sbr.rel (0) target = $region309
    $region308: #{_lambda_.1} parent=1 // pred_region
      %667 = dma.done [#allocation57], 512
    $region309: #{_lambda_.1} parent=1 // pred_fallthru
      _
    // Predicated region
    $region310: #{_lambda_.1} parent=1 // pred_check
      _
    $region311: #{_lambda_.1} parent=1 // pred_check_branch
      %669 = sbr.rel (0) target = $region313
    $region312: #{_lambda_.1} parent=1 // pred_region
      %670 = dma.done [#allocation57], 16
    $region313: #{_lambda_.1} parent=1 // pred_fallthru
      _
    // Predicated region
    $region314: #{_lambda_.1} parent=1 // pred_check
      _
    $region315: #{_lambda_.1} parent=1 // pred_check_branch
      %672 = sbr.rel (0) target = $region317
    $region316: #{_lambda_.1} parent=1 // pred_region
      %673 = dma.done [#allocation60], 16
    $region317: #{_lambda_.1} parent=1 // pred_fallthru
      _
    // Predicated region
    $region318: #{_lambda_.1} parent=1 // pred_check
      _
    $region319: #{_lambda_.1} parent=1 // pred_check_branch
      %675 = sbr.rel (0) target = $region321
    $region320: #{_lambda_.1} parent=1 // pred_region
      %676 = dma.done [#allocation60], 16
    $region321: #{_lambda_.1} parent=1 // pred_fallthru
      _
    // Predicated region
    $region322: #{_lambda_.1} parent=1 // pred_check
      _
    $region323: #{_lambda_.1} parent=1 // pred_check_branch
      %678 = sbr.rel (0) target = $region325
    $region324: #{_lambda_.1} parent=1 // pred_region
      %679 = dma.done [#allocation63], 512
    $region325: #{_lambda_.1} parent=1 // pred_fallthru
      _
    // Predicated region
    $region326: #{_lambda_.1} parent=1 // pred_check
      _
    $region327: #{_lambda_.1} parent=1 // pred_check_branch
      %681 = sbr.rel (0) target = $region329
    $region328: #{_lambda_.1} parent=1 // pred_region
      %682 = dma.done [#allocation63], 16
    $region329: #{_lambda_.1} parent=1 // pred_fallthru
      _
    %v683 = vld [vmem:[#allocation2] sm:$0xff]
    %v684 = vld [vmem:[#allocation2 + $0x8] sm:$0xff]
    %v685 = vld [vmem:[#allocation2 + $0x10] sm:$0xff]
    %v686 = vld [vmem:[#allocation2 + $0x18] sm:$0xff]
    %v687 = vlaneseq
    %v688 = vshrl.u32 %v687, 7
    %v689 = vadd.s32 %v688, 8
    %v690 = vld [vmem:[#allocation5] sm:$0xf]
    %v691 = vld [vmem:[#allocation7] sm:$0x1]
    %v693 = vlaneseq
    %v694 = vshrl.u32 %v693, 7
    %v695 = vsub.s32 0, %v694
    %v696 = vrot.slane %v691, %v695
    %vm698 = vcmask 31744
    %v700 = vsel %vm698, %v683, 0
    %v703 = vsel %vm698, %v684, 0
    %v706 = vsel %vm698, %v685, 0
    %v709 = vsel %vm698, %v686, 0
    %vm711 = vcmask 1043456
    %v713 = vsel %vm711, %v690, 0
    %715 = vmatprep.subr.mxu0 0.0
    %716 = vmatpush1.msra.mxu0 %v713
    %717 = vmatprep.subr.mxu0 0.0
    %718 = vmatpush1.msra.mxu0 0.0
    %719 = vmatprep.subr.mxu0 0.0
    %720 = vmatpush1.msra.mxu0 0.0
    %721 = vmatprep.subr.mxu0 0.0
    %722 = vmatpush1.msra.mxu0 0.0
    %723 = vmatprep.subr.mxu0 0.0
    %724 = vmatpush1.msra.mxu0 0.0
    %725 = vmatprep.subr.mxu0 0.0
    %726 = vmatpush1.msra.mxu0 0.0
    %727 = vmatprep.subr.mxu0 0.0
    %728 = vmatpush1.msra.mxu0 0.0
    %729 = vmatprep.subr.mxu0 0.0
    %730 = vmatpush1.msra.mxu0 0.0
    %731 = vmatprep.subr.mxu0 0.0
    %732 = vmatpush1.msra.mxu0 0.0
    %733 = vmatprep.subr.mxu0 0.0
    %734 = vmatpush1.msra.mxu0 0.0
    %735 = vmatprep.subr.mxu0 0.0
    %736 = vmatpush1.msra.mxu0 0.0
    %737 = vmatprep.subr.mxu0 0.0
    %738 = vmatpush1.msra.mxu0 0.0
    %739 = vmatprep.subr.mxu0 0.0
    %740 = vmatpush1.msra.mxu0 0.0
    %741 = vmatprep.subr.mxu0 0.0
    %742 = vmatpush1.msra.mxu0 0.0
    %743 = vmatprep.subr.mxu0 0.0
    %744 = vmatpush1.msra.mxu0 0.0
    %745 = vmatprep.subr.mxu0 0.0
    %746 = vmatpush1.msra.mxu0 0.0
    %747 = vmatprep.subr.mxu0 0.0
    %748 = vmatpush1.msra.mxu0 0.0
    %749 = vmatprep.subr.mxu0 0.0
    %750 = vmatpush1.msra.mxu0 0.0
    %751 = vmatprep.subr.mxu0 0.0
    %752 = vmatpush1.msra.mxu0 0.0
    %753 = vmatprep.subr.mxu0 0.0
    %754 = vmatpush1.msra.mxu0 0.0
    %755 = vmatprep.subr.mxu0 0.0
    %756 = vmatpush1.msra.mxu0 0.0
    %757 = vmatprep.subr.mxu0 0.0
    %758 = vmatpush1.msra.mxu0 0.0
    %759 = vmatprep.subr.mxu0 0.0
    %760 = vmatpush1.msra.mxu0 0.0
    %761 = vmatprep.subr.mxu0 0.0
    %762 = vmatpush1.msra.mxu0 0.0
    %763 = vmatprep.subr.mxu0 0.0
    %764 = vmatpush1.msra.mxu0 0.0
    %765 = vmatprep.subr.mxu0 0.0
    %766 = vmatpush1.msra.mxu0 0.0
    %767 = vmatprep.subr.mxu0 0.0
    %768 = vmatpush1.msra.mxu0 0.0
    %769 = vmatprep.subr.mxu0 0.0
    %770 = vmatpush1.msra.mxu0 0.0
    %771 = vmatprep.subr.mxu0 0.0
    %772 = vmatpush1.msra.mxu0 0.0
    %773 = vmatprep.subr.mxu0 0.0
    %774 = vmatpush1.msra.mxu0 0.0
    %775 = vmatprep.subr.mxu0 0.0
    %776 = vmatpush1.msra.mxu0 0.0
    %777 = vmatprep.subr.mxu0 0.0
    %778 = vmatpush1.msra.mxu0 0.0
    %779 = vmatprep.mubr.f32.mxu0 0.0
    %780 = vmatmul.mubr.f32.gmra.mrb[0].mxu0 %v700
    %v781 = vpop.f32.mrb[0].mxu0
    %v782 = vadd.f32 %v696, %v781
    %v783 = vpop.f32.mrb[0].mxu0
    %784 = vmatprep.mubr.f32.mxu0 0.0
    %785 = vmatmul.mubr.f32.gmra.mrb[0].mxu0 %v703
    %v786 = vpop.f32.mrb[0].mxu0
    %v787 = vadd.f32 %v696, %v786
    %v788 = vpop.f32.mrb[0].mxu0
    %789 = vmatprep.mubr.f32.mxu0 0.0
    %790 = vmatmul.mubr.f32.gmra.mrb[0].mxu0 %v706
    %v791 = vpop.f32.mrb[0].mxu0
    %v792 = vadd.f32 %v696, %v791
    %v793 = vpop.f32.mrb[0].mxu0
    %794 = vmatprep.mubr.f32.mxu0 0.0
    %795 = vmatmul.mubr.f32.gmra.mrb[0].mxu0 %v709
    %v796 = vpop.f32.mrb[0].mxu0
    %v797 = vadd.f32 %v696, %v796
    %v798 = vpop.f32.mrb[0].mxu0
    %799 = vdwg.mxu0
    %s800 = scalar_lea.vmem [#allocation8], 16
    %v801 = vld [vmem:[%s800] sm:$0xff]
    %v802 = vld [vmem:[%s800 + $0x8] sm:$0xff]
    %vm803 = vcmp.ge.s32.totalorder %v688, 1
    %vm804 = vcmp.ge.s32.totalorder %v689, 1
    %v806 = vrot.slane %v797, 7
    %vm811 = vcmask 1040384
    %v812 = vrot.slane %v782, 7
    %v813 = vrot.slane %v787, 7
    %v814 = vsel %vm811, %v812, %v813
    %v815 = vrot.slane %v792, 7
    %v816 = vsel %vm811, %v813, %v815
    %v817 = vsel %vm811, %v815, %v806
    %v822 = vsel %vm811, %v806, %v812
    %v823 = vsel %vm803, 1, 0
    %v824 = vsel %vm804, 1, 0
    %vm825 = vcmp.eq.s32.totalorder %v823, 1
    %vm826 = vcmp.eq.s32.totalorder %v824, 1
    %v827 = vsel %vm825, %v822, 0.0
    %v828 = vsel %vm826, %v814, 0.0
    %v829 = vsel %vm825, %v816, 0.0
    %v830 = vsel %vm826, %v817, 0.0
    %v831 = vld [vmem:[#allocation8] sm:$0xff]
    %v832 = vld [vmem:[#allocation8 + $0x8] sm:$0xff]
    %vm833 = vcmask 130048
    %v835 = vsel %vm833, %v827, 0
    %v838 = vsel %vm833, %v828, 0
    %v841 = vsel %vm833, %v829, 0
    %v844 = vsel %vm833, %v830, 0
    %846 = vmatprep.subr.mxu0 0.0
    %847 = vmatpush1.msra.mxu0 %v831
    %848 = vmatprep.subr.mxu0 0.0
    %849 = vmatpush1.msra.mxu0 %v832
    %850 = vmatprep.subr.mxu0 0.0
    %851 = vmatpush1.msra.mxu0 0.0
    %852 = vmatprep.subr.mxu0 0.0
    %853 = vmatpush1.msra.mxu0 0.0
    %854 = vmatprep.subr.mxu0 0.0
    %855 = vmatpush1.msra.mxu0 0.0
    %856 = vmatprep.subr.mxu0 0.0
    %857 = vmatpush1.msra.mxu0 0.0
    %858 = vmatprep.subr.mxu0 0.0
    %859 = vmatpush1.msra.mxu0 0.0
    %860 = vmatprep.subr.mxu0 0.0
    %861 = vmatpush1.msra.mxu0 0.0
    %862 = vmatprep.subr.mxu0 0.0
    %863 = vmatpush1.msra.mxu0 0.0
    %864 = vmatprep.subr.mxu0 0.0
    %865 = vmatpush1.msra.mxu0 0.0
    %866 = vmatprep.subr.mxu0 0.0
    %867 = vmatpush1.msra.mxu0 0.0
    %868 = vmatprep.subr.mxu0 0.0
    %869 = vmatpush1.msra.mxu0 0.0
    %870 = vmatprep.subr.mxu0 0.0
    %871 = vmatpush1.msra.mxu0 0.0
    %872 = vmatprep.subr.mxu0 0.0
    %873 = vmatpush1.msra.mxu0 0.0
    %874 = vmatprep.subr.mxu0 0.0
    %875 = vmatpush1.msra.mxu0 0.0
    %876 = vmatprep.subr.mxu0 0.0
    %877 = vmatpush1.msra.mxu0 0.0
    %878 = vmatprep.subr.mxu0 0.0
    %879 = vmatpush1.msra.mxu0 0.0
    %880 = vmatprep.subr.mxu0 0.0
    %881 = vmatpush1.msra.mxu0 0.0
    %882 = vmatprep.subr.mxu0 0.0
    %883 = vmatpush1.msra.mxu0 0.0
    %884 = vmatprep.subr.mxu0 0.0
    %885 = vmatpush1.msra.mxu0 0.0
    %886 = vmatprep.subr.mxu0 0.0
    %887 = vmatpush1.msra.mxu0 0.0
    %888 = vmatprep.subr.mxu0 0.0
    %889 = vmatpush1.msra.mxu0 0.0
    %890 = vmatprep.subr.mxu0 0.0
    %891 = vmatpush1.msra.mxu0 0.0
    %892 = vmatprep.subr.mxu0 0.0
    %893 = vmatpush1.msra.mxu0 0.0
    %894 = vmatprep.subr.mxu0 0.0
    %895 = vmatpush1.msra.mxu0 0.0
    %896 = vmatprep.subr.mxu0 0.0
    %897 = vmatpush1.msra.mxu0 0.0
    %898 = vmatprep.subr.mxu0 0.0
    %899 = vmatpush1.msra.mxu0 0.0
    %900 = vmatprep.subr.mxu0 0.0
    %901 = vmatpush1.msra.mxu0 0.0
    %902 = vmatprep.subr.mxu0 0.0
    %903 = vmatpush1.msra.mxu0 0.0
    %904 = vmatprep.subr.mxu0 0.0
    %905 = vmatpush1.msra.mxu0 0.0
    %906 = vmatprep.subr.mxu0 0.0
    %907 = vmatpush1.msra.mxu0 0.0
    %908 = vmatprep.subr.mxu0 0.0
    %909 = vmatpush1.msra.mxu0 0.0
    %910 = vmatprep.mubr.f32.mxu0 0.0
    %911 = vmatmul.mubr.f32.gmra.mrb[0].mxu0 %v835
    %v912 = vpop.f32.mrb[0].mxu0
    %v913 = vadd.f32 0.0, %v912
    %v914 = vpop.f32.mrb[0].mxu0
    %915 = vmatprep.mubr.f32.mxu0 0.0
    %916 = vmatmul.mubr.f32.gmra.mrb[0].mxu0 %v838
    %v917 = vpop.f32.mrb[0].mxu0
    %v918 = vadd.f32 0.0, %v917
    %v919 = vpop.f32.mrb[0].mxu0
    %920 = vmatprep.mubr.f32.mxu0 0.0
    %921 = vmatmul.mubr.f32.gmra.mrb[0].mxu0 %v841
    %v922 = vpop.f32.mrb[0].mxu0
    %v923 = vadd.f32 0.0, %v922
    %v924 = vpop.f32.mrb[0].mxu0
    %925 = vmatprep.mubr.f32.mxu0 0.0
    %926 = vmatmul.mubr.f32.gmra.mrb[0].mxu0 %v844
    %v927 = vpop.f32.mrb[0].mxu0
    %v928 = vadd.f32 0.0, %v927
    %v929 = vpop.f32.mrb[0].mxu0
    %930 = vdwg.mxu0
    %v931 = vsel %vm833, %v782, 0
    %v933 = vsel %vm833, %v787, 0
    %v935 = vsel %vm833, %v792, 0
    %v937 = vsel %vm833, %v797, 0
    %939 = vmatprep.subr.mxu0 0.0
    %940 = vmatpush1.msra.mxu0 %v801
    %941 = vmatprep.subr.mxu0 0.0
    %942 = vmatpush1.msra.mxu0 %v802
    %943 = vmatprep.subr.mxu0 0.0
    %944 = vmatpush1.msra.mxu0 0.0
    %945 = vmatprep.subr.mxu0 0.0
    %946 = vmatpush1.msra.mxu0 0.0
    %947 = vmatprep.subr.mxu0 0.0
    %948 = vmatpush1.msra.mxu0 0.0
    %949 = vmatprep.subr.mxu0 0.0
    %950 = vmatpush1.msra.mxu0 0.0
    %951 = vmatprep.subr.mxu0 0.0
    %952 = vmatpush1.msra.mxu0 0.0
    %953 = vmatprep.subr.mxu0 0.0
    %954 = vmatpush1.msra.mxu0 0.0
    %955 = vmatprep.subr.mxu0 0.0
    %956 = vmatpush1.msra.mxu0 0.0
    %957 = vmatprep.subr.mxu0 0.0
    %958 = vmatpush1.msra.mxu0 0.0
    %959 = vmatprep.subr.mxu0 0.0
    %960 = vmatpush1.msra.mxu0 0.0
    %961 = vmatprep.subr.mxu0 0.0
    %962 = vmatpush1.msra.mxu0 0.0
    %963 = vmatprep.subr.mxu0 0.0
    %964 = vmatpush1.msra.mxu0 0.0
    %965 = vmatprep.subr.mxu0 0.0
    %966 = vmatpush1.msra.mxu0 0.0
    %967 = vmatprep.subr.mxu0 0.0
    %968 = vmatpush1.msra.mxu0 0.0
    %969 = vmatprep.subr.mxu0 0.0
    %970 = vmatpush1.msra.mxu0 0.0
    %971 = vmatprep.subr.mxu0 0.0
    %972 = vmatpush1.msra.mxu0 0.0
    %973 = vmatprep.subr.mxu0 0.0
    %974 = vmatpush1.msra.mxu0 0.0
    %975 = vmatprep.subr.mxu0 0.0
    %976 = vmatpush1.msra.mxu0 0.0
    %977 = vmatprep.subr.mxu0 0.0
    %978 = vmatpush1.msra.mxu0 0.0
    %979 = vmatprep.subr.mxu0 0.0
    %980 = vmatpush1.msra.mxu0 0.0
    %981 = vmatprep.subr.mxu0 0.0
    %982 = vmatpush1.msra.mxu0 0.0
    %983 = vmatprep.subr.mxu0 0.0
    %984 = vmatpush1.msra.mxu0 0.0
    %985 = vmatprep.subr.mxu0 0.0
    %986 = vmatpush1.msra.mxu0 0.0
    %987 = vmatprep.subr.mxu0 0.0
    %988 = vmatpush1.msra.mxu0 0.0
    %989 = vmatprep.subr.mxu0 0.0
    %990 = vmatpush1.msra.mxu0 0.0
    %991 = vmatprep.subr.mxu0 0.0
    %992 = vmatpush1.msra.mxu0 0.0
    %993 = vmatprep.subr.mxu0 0.0
    %994 = vmatpush1.msra.mxu0 0.0
    %995 = vmatprep.subr.mxu0 0.0
    %996 = vmatpush1.msra.mxu0 0.0
    %997 = vmatprep.subr.mxu0 0.0
    %998 = vmatpush1.msra.mxu0 0.0
    %999 = vmatprep.subr.mxu0 0.0
    %1000 = vmatpush1.msra.mxu0 0.0
    %1001 = vmatprep.subr.mxu0 0.0
    %1002 = vmatpush1.msra.mxu0 0.0
    %1003 = vmatprep.mubr.f32.mxu0 0.0
    %1004 = vmatmul.mubr.f32.gmra.mrb[0].mxu0 %v931
    %v1005 = vpop.f32.mrb[0].mxu0
    %v1006 = vadd.f32 %v913, %v1005
    %v1007 = vpop.f32.mrb[0].mxu0
    %1008 = vmatprep.mubr.f32.mxu0 0.0
    %1009 = vmatmul.mubr.f32.gmra.mrb[0].mxu0 %v933
    %v1010 = vpop.f32.mrb[0].mxu0
    %v1011 = vadd.f32 %v918, %v1010
    %v1012 = vpop.f32.mrb[0].mxu0
    %1013 = vmatprep.mubr.f32.mxu0 0.0
    %1014 = vmatmul.mubr.f32.gmra.mrb[0].mxu0 %v935
    %v1015 = vpop.f32.mrb[0].mxu0
    %v1016 = vadd.f32 %v923, %v1015
    %v1017 = vpop.f32.mrb[0].mxu0
    %1018 = vmatprep.mubr.f32.mxu0 0.0
    %1019 = vmatmul.mubr.f32.gmra.mrb[0].mxu0 %v937
    %v1020 = vpop.f32.mrb[0].mxu0
    %v1021 = vadd.f32 %v928, %v1020
    %v1022 = vpop.f32.mrb[0].mxu0
    %1023 = vdwg.mxu0
    %vm1024 = vcmp.lt.s32.totalorder %v688, 15
    %vm1025 = vcmp.lt.s32.totalorder %v689, 15
    %vm1026 = vcmask 1046528
    %v1027 = vrot.slane %v782, 1
    %v1028 = vrot.slane %v787, 1
    %v1029 = vsel %vm1026, %v1027, %v1028
    %v1030 = vrot.slane %v792, 1
    %v1031 = vsel %vm1026, %v1028, %v1030
    %v1032 = vrot.slane %v797, 1
    %v1033 = vsel %vm1026, %v1030, %v1032
    %v1039 = vsel %vm1026, %v1032, %v1027
    %v1040 = vsel %vm1024, 1, 0
    %v1041 = vsel %vm1025, 1, 0
    %vm1042 = vcmp.eq.s32.totalorder %v1040, 1
    %vm1043 = vcmp.eq.s32.totalorder %v1041, 1
    %v1044 = vsel %vm1042, %v1029, 0.0
    %v1045 = vsel %vm1043, %v1031, 0.0
    %v1046 = vsel %vm1042, %v1033, 0.0
    %v1047 = vsel %vm1043, %v1039, 0.0
    %s1048 = scalar_lea.vmem [#allocation8], 32
    %v1049 = vld [vmem:[%s1048] sm:$0xff]
    %v1050 = vld [vmem:[%s1048 + $0x8] sm:$0xff]
    %v1052 = vsel %vm833, %v1044, 0
    %v1055 = vsel %vm833, %v1045, 0
    %v1058 = vsel %vm833, %v1046, 0
    %v1061 = vsel %vm833, %v1047, 0
    %1063 = vmatprep.subr.mxu0 0.0
    %1064 = vmatpush1.msra.mxu0 %v1049
    %1065 = vmatprep.subr.mxu0 0.0
    %1066 = vmatpush1.msra.mxu0 %v1050
    %1067 = vmatprep.subr.mxu0 0.0
    %1068 = vmatpush1.msra.mxu0 0.0
    %1069 = vmatprep.subr.mxu0 0.0
    %1070 = vmatpush1.msra.mxu0 0.0
    %1071 = vmatprep.subr.mxu0 0.0
    %1072 = vmatpush1.msra.mxu0 0.0
    %1073 = vmatprep.subr.mxu0 0.0
    %1074 = vmatpush1.msra.mxu0 0.0
    %1075 = vmatprep.subr.mxu0 0.0
    %1076 = vmatpush1.msra.mxu0 0.0
    %1077 = vmatprep.subr.mxu0 0.0
    %1078 = vmatpush1.msra.mxu0 0.0
    %1079 = vmatprep.subr.mxu0 0.0
    %1080 = vmatpush1.msra.mxu0 0.0
    %1081 = vmatprep.subr.mxu0 0.0
    %1082 = vmatpush1.msra.mxu0 0.0
    %1083 = vmatprep.subr.mxu0 0.0
    %1084 = vmatpush1.msra.mxu0 0.0
    %1085 = vmatprep.subr.mxu0 0.0
    %1086 = vmatpush1.msra.mxu0 0.0
    %1087 = vmatprep.subr.mxu0 0.0
    %1088 = vmatpush1.msra.mxu0 0.0
    %1089 = vmatprep.subr.mxu0 0.0
    %1090 = vmatpush1.msra.mxu0 0.0
    %1091 = vmatprep.subr.mxu0 0.0
    %1092 = vmatpush1.msra.mxu0 0.0
    %1093 = vmatprep.subr.mxu0 0.0
    %1094 = vmatpush1.msra.mxu0 0.0
    %1095 = vmatprep.subr.mxu0 0.0
    %1096 = vmatpush1.msra.mxu0 0.0
    %1097 = vmatprep.subr.mxu0 0.0
    %1098 = vmatpush1.msra.mxu0 0.0
    %1099 = vmatprep.subr.mxu0 0.0
    %1100 = vmatpush1.msra.mxu0 0.0
    %1101 = vmatprep.subr.mxu0 0.0
    %1102 = vmatpush1.msra.mxu0 0.0
    %1103 = vmatprep.subr.mxu0 0.0
    %1104 = vmatpush1.msra.mxu0 0.0
    %1105 = vmatprep.subr.mxu0 0.0
    %1106 = vmatpush1.msra.mxu0 0.0
    %1107 = vmatprep.subr.mxu0 0.0
    %1108 = vmatpush1.msra.mxu0 0.0
    %1109 = vmatprep.subr.mxu0 0.0
    %1110 = vmatpush1.msra.mxu0 0.0
    %1111 = vmatprep.subr.mxu0 0.0
    %1112 = vmatpush1.msra.mxu0 0.0
    %1113 = vmatprep.subr.mxu0 0.0
    %1114 = vmatpush1.msra.mxu0 0.0
    %1115 = vmatprep.subr.mxu0 0.0
    %1116 = vmatpush1.msra.mxu0 0.0
    %1117 = vmatprep.subr.mxu0 0.0
    %1118 = vmatpush1.msra.mxu0 0.0
    %1119 = vmatprep.subr.mxu0 0.0
    %1120 = vmatpush1.msra.mxu0 0.0
    %1121 = vmatprep.subr.mxu0 0.0
    %1122 = vmatpush1.msra.mxu0 0.0
    %1123 = vmatprep.subr.mxu0 0.0
    %1124 = vmatpush1.msra.mxu0 0.0
    %1125 = vmatprep.subr.mxu0 0.0
    %1126 = vmatpush1.msra.mxu0 0.0
    %1127 = vmatprep.mubr.f32.mxu0 0.0
    %1128 = vmatmul.mubr.f32.gmra.mrb[0].mxu0 %v1052
    %v1129 = vpop.f32.mrb[0].mxu0
    %v1130 = vadd.f32 0.0, %v1129
    %v1131 = vpop.f32.mrb[0].mxu0
    %1132 = vmatprep.mubr.f32.mxu0 0.0
    %1133 = vmatmul.mubr.f32.gmra.mrb[0].mxu0 %v1055
    %v1134 = vpop.f32.mrb[0].mxu0
    %v1135 = vadd.f32 0.0, %v1134
    %v1136 = vpop.f32.mrb[0].mxu0
    %1137 = vmatprep.mubr.f32.mxu0 0.0
    %1138 = vmatmul.mubr.f32.gmra.mrb[0].mxu0 %v1058
    %v1139 = vpop.f32.mrb[0].mxu0
    %v1140 = vadd.f32 0.0, %v1139
    %v1141 = vpop.f32.mrb[0].mxu0
    %1142 = vmatprep.mubr.f32.mxu0 0.0
    %1143 = vmatmul.mubr.f32.gmra.mrb[0].mxu0 %v1061
    %v1144 = vpop.f32.mrb[0].mxu0
    %v1145 = vadd.f32 0.0, %v1144
    %v1146 = vpop.f32.mrb[0].mxu0
    %1147 = vdwg.mxu0
    %v1148 = vadd.f32 %v1006, %v1130
    %v1149 = vadd.f32 %v1011, %v1135
    %v1150 = vadd.f32 %v1016, %v1140
    %v1151 = vadd.f32 %v1021, %v1145
    %v1152 = vld [vmem:[#allocation10] sm:$0x1]
    %v1154 = vlaneseq
    %v1155 = vshrl.u32 %v1154, 7
    %v1156 = vsub.s32 0, %v1155
    %v1157 = vrot.slane %v1152, %v1156
    %v1159 = vadd.f32 %v1148, %v1157
    %v1160 = vadd.f32 %v1149, %v1157
    %v1161 = vadd.f32 %v1150, %v1157
    %v1162 = vadd.f32 %v1151, %v1157
    %v1163 = vmul.f32 %v1159, 0.5
    %v1164 = vmul.f32 %v1160, 0.5
    %v1165 = vmul.f32 %v1161, 0.5
    %v1166 = vmul.f32 %v1162, 0.5
    %v1167 = vmul.f32 %v1159, 0.70710677
    %v1168 = vmul.f32 %v1160, 0.70710677
    %v1169 = vmul.f32 %v1161, 0.70710677
    %v1170 = vmul.f32 %v1162, 0.70710677
    %v1171 = vand.u32 2147483647, %v1167
    %v1172 = vand.u32 2147483647, %v1168
    %v1173 = vand.u32 2147483647, %v1169
    %v1174 = vand.u32 2147483647, %v1170
    %v1175 = vmul.f32 %v1171, 0.3275911
    %v1176 = vmul.f32 %v1172, 0.3275911
    %v1177 = vmul.f32 %v1173, 0.3275911
    %v1178 = vmul.f32 %v1174, 0.3275911
    %v1179 = vadd.f32 %v1175, 1.0
    %v1180 = vadd.f32 %v1176, 1.0
    %v1181 = vadd.f32 %v1177, 1.0
    %v1182 = vadd.f32 %v1178, 1.0
    %v1183 = vrcp.pop %v1179
    %v1184 = vrcp.pop %v1180
    %v1185 = vrcp.pop %v1181
    %v1186 = vrcp.pop %v1182
    %v1187 = vmul.f32 %v1183, 1.0614054
    %v1188 = vmul.f32 %v1184, 1.0614054
    %v1189 = vmul.f32 %v1185, 1.0614054
    %v1190 = vmul.f32 %v1186, 1.0614054
    %v1191 = vadd.f32 %v1187, -1.4531521
    %v1192 = vadd.f32 %v1188, -1.4531521
    %v1193 = vadd.f32 %v1189, -1.4531521
    %v1194 = vadd.f32 %v1190, -1.4531521
    %v1195 = vmul.f32 %v1183, %v1191
    %v1196 = vmul.f32 %v1184, %v1192
    %v1197 = vmul.f32 %v1185, %v1193
    %v1198 = vmul.f32 %v1186, %v1194
    %v1199 = vadd.f32 %v1195, 1.4214138
    %v1200 = vadd.f32 %v1196, 1.4214138
    %v1201 = vadd.f32 %v1197, 1.4214138
    %v1202 = vadd.f32 %v1198, 1.4214138
    %v1203 = vmul.f32 %v1183, %v1199
    %v1204 = vmul.f32 %v1184, %v1200
    %v1205 = vmul.f32 %v1185, %v1201
    %v1206 = vmul.f32 %v1186, %v1202
    %v1207 = vadd.f32 %v1203, -0.28449672
    %v1208 = vadd.f32 %v1204, -0.28449672
    %v1209 = vadd.f32 %v1205, -0.28449672
    %v1210 = vadd.f32 %v1206, -0.28449672
    %v1211 = vmul.f32 %v1183, %v1207
    %v1212 = vmul.f32 %v1184, %v1208
    %v1213 = vmul.f32 %v1185, %v1209
    %v1214 = vmul.f32 %v1186, %v1210
    %v1215 = vadd.f32 %v1211, 0.2548296
    %v1216 = vadd.f32 %v1212, 0.2548296
    %v1217 = vadd.f32 %v1213, 0.2548296
    %v1218 = vadd.f32 %v1214, 0.2548296
    %v1219 = vmul.f32 %v1183, %v1215
    %v1220 = vmul.f32 %v1184, %v1216
    %v1221 = vmul.f32 %v1185, %v1217
    %v1222 = vmul.f32 %v1186, %v1218
    %v1223 = vmul.f32 %v1171, %v1171
    %v1224 = vmul.f32 %v1172, %v1172
    %v1225 = vmul.f32 %v1173, %v1173
    %v1226 = vmul.f32 %v1174, %v1174
    %v1227 = vsub.f32 0.0, %v1223
    %v1228 = vsub.f32 0.0, %v1224
    %v1229 = vsub.f32 0.0, %v1225
    %v1230 = vsub.f32 0.0, %v1226
    %v1231 = vmul.f32 %v1227, 1.442695
    %v1232 = vpow.pop %v1231
    %v1233 = vmul.f32 %v1228, 1.442695
    %v1234 = vpow.pop %v1233
    %v1235 = vmul.f32 %v1229, 1.442695
    %v1236 = vpow.pop %v1235
    %v1237 = vmul.f32 %v1230, 1.442695
    %v1238 = vpow.pop %v1237
    %v1239 = vmul.f32 %v1219, %v1232
    %v1240 = vmul.f32 %v1220, %v1234
    %v1241 = vmul.f32 %v1221, %v1236
    %v1242 = vmul.f32 %v1222, %v1238
    %v1243 = vsub.f32 1.0, %v1239
    %v1244 = vsub.f32 1.0, %v1240
    %v1245 = vsub.f32 1.0, %v1241
    %v1246 = vsub.f32 1.0, %v1242
    %vm1247 = vcmp.lt.f32.partialorder %v1167, 0.0
    %vm1248 = vcmp.lt.f32.partialorder %v1168, 0.0
    %vm1249 = vcmp.lt.f32.partialorder %v1169, 0.0
    %vm1250 = vcmp.lt.f32.partialorder %v1170, 0.0
    %v1251 = vsub.f32 0.0, %v1243
    %v1252 = vsub.f32 0.0, %v1244
    %v1253 = vsub.f32 0.0, %v1245
    %v1254 = vsub.f32 0.0, %v1246
    %v1255 = vsel %vm1247, %v1251, %v1243
    %v1256 = vsel %vm1248, %v1252, %v1244
    %v1257 = vsel %vm1249, %v1253, %v1245
    %v1258 = vsel %vm1250, %v1254, %v1246
    %v1259 = vadd.f32 %v1255, 1.0
    %v1260 = vadd.f32 %v1256, 1.0
    %v1261 = vadd.f32 %v1257, 1.0
    %v1262 = vadd.f32 %v1258, 1.0
    %v1263 = vmul.f32 %v1163, %v1259
    %v1264 = vmul.f32 %v1164, %v1260
    %v1265 = vmul.f32 %v1165, %v1261
    %v1266 = vmul.f32 %v1166, %v1262
    %s1267 = scalar_lea.vmem [#allocation11], 16
    %v1268 = vld [vmem:[%s1267] sm:$0xff]
    %v1269 = vld [vmem:[%s1267 + $0x8] sm:$0xff]
    %v1271 = vrot.slane %v1266, 7
    %v1276 = vrot.slane %v1263, 7
    %v1277 = vrot.slane %v1264, 7
    %v1278 = vsel %vm811, %v1276, %v1277
    %v1279 = vrot.slane %v1265, 7
    %v1280 = vsel %vm811, %v1277, %v1279
    %v1281 = vsel %vm811, %v1279, %v1271
    %v1286 = vsel %vm811, %v1271, %v1276
    %v1287 = vsel %vm825, %v1286, 0.0
    %v1288 = vsel %vm826, %v1278, 0.0
    %v1289 = vsel %vm825, %v1280, 0.0
    %v1290 = vsel %vm826, %v1281, 0.0
    %v1291 = vld [vmem:[#allocation11] sm:$0xff]
    %v1292 = vld [vmem:[#allocation11 + $0x8] sm:$0xff]
    %v1294 = vsel %vm833, %v1287, 0
    %v1297 = vsel %vm833, %v1288, 0
    %v1300 = vsel %vm833, %v1289, 0
    %v1303 = vsel %vm833, %v1290, 0
    %1305 = vmatprep.subr.mxu0 0.0
    %1306 = vmatpush1.msra.mxu0 %v1291
    %1307 = vmatprep.subr.mxu0 0.0
    %1308 = vmatpush1.msra.mxu0 %v1292
    %1309 = vmatprep.subr.mxu0 0.0
    %1310 = vmatpush1.msra.mxu0 0.0
    %1311 = vmatprep.subr.mxu0 0.0
    %1312 = vmatpush1.msra.mxu0 0.0
    %1313 = vmatprep.subr.mxu0 0.0
    %1314 = vmatpush1.msra.mxu0 0.0
    %1315 = vmatprep.subr.mxu0 0.0
    %1316 = vmatpush1.msra.mxu0 0.0
    %1317 = vmatprep.subr.mxu0 0.0
    %1318 = vmatpush1.msra.mxu0 0.0
    %1319 = vmatprep.subr.mxu0 0.0
    %1320 = vmatpush1.msra.mxu0 0.0
    %1321 = vmatprep.subr.mxu0 0.0
    %1322 = vmatpush1.msra.mxu0 0.0
    %1323 = vmatprep.subr.mxu0 0.0
    %1324 = vmatpush1.msra.mxu0 0.0
    %1325 = vmatprep.subr.mxu0 0.0
    %1326 = vmatpush1.msra.mxu0 0.0
    %1327 = vmatprep.subr.mxu0 0.0
    %1328 = vmatpush1.msra.mxu0 0.0
    %1329 = vmatprep.subr.mxu0 0.0
    %1330 = vmatpush1.msra.mxu0 0.0
    %1331 = vmatprep.subr.mxu0 0.0
    %1332 = vmatpush1.msra.mxu0 0.0
    %1333 = vmatprep.subr.mxu0 0.0
    %1334 = vmatpush1.msra.mxu0 0.0
    %1335 = vmatprep.subr.mxu0 0.0
    %1336 = vmatpush1.msra.mxu0 0.0
    %1337 = vmatprep.subr.mxu0 0.0
    %1338 = vmatpush1.msra.mxu0 0.0
    %1339 = vmatprep.subr.mxu0 0.0
    %1340 = vmatpush1.msra.mxu0 0.0
    %1341 = vmatprep.subr.mxu0 0.0
    %1342 = vmatpush1.msra.mxu0 0.0
    %1343 = vmatprep.subr.mxu0 0.0
    %1344 = vmatpush1.msra.mxu0 0.0
    %1345 = vmatprep.subr.mxu0 0.0
    %1346 = vmatpush1.msra.mxu0 0.0
    %1347 = vmatprep.subr.mxu0 0.0
    %1348 = vmatpush1.msra.mxu0 0.0
    %1349 = vmatprep.subr.mxu0 0.0
    %1350 = vmatpush1.msra.mxu0 0.0
    %1351 = vmatprep.subr.mxu0 0.0
    %1352 = vmatpush1.msra.mxu0 0.0
    %1353 = vmatprep.subr.mxu0 0.0
    %1354 = vmatpush1.msra.mxu0 0.0
    %1355 = vmatprep.subr.mxu0 0.0
    %1356 = vmatpush1.msra.mxu0 0.0
    %1357 = vmatprep.subr.mxu0 0.0
    %1358 = vmatpush1.msra.mxu0 0.0
    %1359 = vmatprep.subr.mxu0 0.0
    %1360 = vmatpush1.msra.mxu0 0.0
    %1361 = vmatprep.subr.mxu0 0.0
    %1362 = vmatpush1.msra.mxu0 0.0
    %1363 = vmatprep.subr.mxu0 0.0
    %1364 = vmatpush1.msra.mxu0 0.0
    %1365 = vmatprep.subr.mxu0 0.0
    %1366 = vmatpush1.msra.mxu0 0.0
    %1367 = vmatprep.subr.mxu0 0.0
    %1368 = vmatpush1.msra.mxu0 0.0
    %1369 = vmatprep.mubr.f32.mxu0 0.0
    %1370 = vmatmul.mubr.f32.gmra.mrb[0].mxu0 %v1294
    %v1371 = vpop.f32.mrb[0].mxu0
    %v1372 = vadd.f32 0.0, %v1371
    %v1373 = vpop.f32.mrb[0].mxu0
    %1374 = vmatprep.mubr.f32.mxu0 0.0
    %1375 = vmatmul.mubr.f32.gmra.mrb[0].mxu0 %v1297
    %v1376 = vpop.f32.mrb[0].mxu0
    %v1377 = vadd.f32 0.0, %v1376
    %v1378 = vpop.f32.mrb[0].mxu0
    %1379 = vmatprep.mubr.f32.mxu0 0.0
    %1380 = vmatmul.mubr.f32.gmra.mrb[0].mxu0 %v1300
    %v1381 = vpop.f32.mrb[0].mxu0
    %v1382 = vadd.f32 0.0, %v1381
    %v1383 = vpop.f32.mrb[0].mxu0
    %1384 = vmatprep.mubr.f32.mxu0 0.0
    %1385 = vmatmul.mubr.f32.gmra.mrb[0].mxu0 %v1303
    %v1386 = vpop.f32.mrb[0].mxu0
    %v1387 = vadd.f32 0.0, %v1386
    %v1388 = vpop.f32.mrb[0].mxu0
    %1389 = vdwg.mxu0
    %v1390 = vsel %vm833, %v1263, 0
    %v1392 = vsel %vm833, %v1264, 0
    %v1394 = vsel %vm833, %v1265, 0
    %v1396 = vsel %vm833, %v1266, 0
    %1398 = vmatprep.subr.mxu0 0.0
    %1399 = vmatpush1.msra.mxu0 %v1268
    %1400 = vmatprep.subr.mxu0 0.0
    %1401 = vmatpush1.msra.mxu0 %v1269
    %1402 = vmatprep.subr.mxu0 0.0
    %1403 = vmatpush1.msra.mxu0 0.0
    %1404 = vmatprep.subr.mxu0 0.0
    %1405 = vmatpush1.msra.mxu0 0.0
    %1406 = vmatprep.subr.mxu0 0.0
    %1407 = vmatpush1.msra.mxu0 0.0
    %1408 = vmatprep.subr.mxu0 0.0
    %1409 = vmatpush1.msra.mxu0 0.0
    %1410 = vmatprep.subr.mxu0 0.0
    %1411 = vmatpush1.msra.mxu0 0.0
    %1412 = vmatprep.subr.mxu0 0.0
    %1413 = vmatpush1.msra.mxu0 0.0
    %1414 = vmatprep.subr.mxu0 0.0
    %1415 = vmatpush1.msra.mxu0 0.0
    %1416 = vmatprep.subr.mxu0 0.0
    %1417 = vmatpush1.msra.mxu0 0.0
    %1418 = vmatprep.subr.mxu0 0.0
    %1419 = vmatpush1.msra.mxu0 0.0
    %1420 = vmatprep.subr.mxu0 0.0
    %1421 = vmatpush1.msra.mxu0 0.0
    %1422 = vmatprep.subr.mxu0 0.0
    %1423 = vmatpush1.msra.mxu0 0.0
    %1424 = vmatprep.subr.mxu0 0.0
    %1425 = vmatpush1.msra.mxu0 0.0
    %1426 = vmatprep.subr.mxu0 0.0
    %1427 = vmatpush1.msra.mxu0 0.0
    %1428 = vmatprep.subr.mxu0 0.0
    %1429 = vmatpush1.msra.mxu0 0.0
    %1430 = vmatprep.subr.mxu0 0.0
    %1431 = vmatpush1.msra.mxu0 0.0
    %1432 = vmatprep.subr.mxu0 0.0
    %1433 = vmatpush1.msra.mxu0 0.0
    %1434 = vmatprep.subr.mxu0 0.0
    %1435 = vmatpush1.msra.mxu0 0.0
    %1436 = vmatprep.subr.mxu0 0.0
    %1437 = vmatpush1.msra.mxu0 0.0
    %1438 = vmatprep.subr.mxu0 0.0
    %1439 = vmatpush1.msra.mxu0 0.0
    %1440 = vmatprep.subr.mxu0 0.0
    %1441 = vmatpush1.msra.mxu0 0.0
    %1442 = vmatprep.subr.mxu0 0.0
    %1443 = vmatpush1.msra.mxu0 0.0
    %1444 = vmatprep.subr.mxu0 0.0
    %1445 = vmatpush1.msra.mxu0 0.0
    %1446 = vmatprep.subr.mxu0 0.0
    %1447 = vmatpush1.msra.mxu0 0.0
    %1448 = vmatprep.subr.mxu0 0.0
    %1449 = vmatpush1.msra.mxu0 0.0
    %1450 = vmatprep.subr.mxu0 0.0
    %1451 = vmatpush1.msra.mxu0 0.0
    %1452 = vmatprep.subr.mxu0 0.0
    %1453 = vmatpush1.msra.mxu0 0.0
    %1454 = vmatprep.subr.mxu0 0.0
    %1455 = vmatpush1.msra.mxu0 0.0
    %1456 = vmatprep.subr.mxu0 0.0
    %1457 = vmatpush1.msra.mxu0 0.0
    %1458 = vmatprep.subr.mxu0 0.0
    %1459 = vmatpush1.msra.mxu0 0.0
    %1460 = vmatprep.subr.mxu0 0.0
    %1461 = vmatpush1.msra.mxu0 0.0
    %1462 = vmatprep.mubr.f32.mxu0 0.0
    %1463 = vmatmul.mubr.f32.gmra.mrb[0].mxu0 %v1390
    %v1464 = vpop.f32.mrb[0].mxu0
    %v1465 = vadd.f32 %v1372, %v1464
    %v1466 = vpop.f32.mrb[0].mxu0
    %1467 = vmatprep.mubr.f32.mxu0 0.0
    %1468 = vmatmul.mubr.f32.gmra.mrb[0].mxu0 %v1392
    %v1469 = vpop.f32.mrb[0].mxu0
    %v1470 = vadd.f32 %v1377, %v1469
    %v1471 = vpop.f32.mrb[0].mxu0
    %1472 = vmatprep.mubr.f32.mxu0 0.0
    %1473 = vmatmul.mubr.f32.gmra.mrb[0].mxu0 %v1394
    %v1474 = vpop.f32.mrb[0].mxu0
    %v1475 = vadd.f32 %v1382, %v1474
    %v1476 = vpop.f32.mrb[0].mxu0
    %1477 = vmatprep.mubr.f32.mxu0 0.0
    %1478 = vmatmul.mubr.f32.gmra.mrb[0].mxu0 %v1396
    %v1479 = vpop.f32.mrb[0].mxu0
    %v1480 = vadd.f32 %v1387, %v1479
    %v1481 = vpop.f32.mrb[0].mxu0
    %1482 = vdwg.mxu0
    %v1483 = vrot.slane %v1263, 1
    %v1484 = vrot.slane %v1264, 1
    %v1485 = vsel %vm1026, %v1483, %v1484
    %v1486 = vrot.slane %v1265, 1
    %v1487 = vsel %vm1026, %v1484, %v1486
    %v1488 = vrot.slane %v1266, 1
    %v1489 = vsel %vm1026, %v1486, %v1488
    %v1495 = vsel %vm1026, %v1488, %v1483
    %v1496 = vsel %vm1042, %v1485, 0.0
    %v1497 = vsel %vm1043, %v1487, 0.0
    %v1498 = vsel %vm1042, %v1489, 0.0
    %v1499 = vsel %vm1043, %v1495, 0.0
    %s1500 = scalar_lea.vmem [#allocation11], 32
    %v1501 = vld [vmem:[%s1500] sm:$0xff]
    %v1502 = vld [vmem:[%s1500 + $0x8] sm:$0xff]
    %v1504 = vsel %vm833, %v1496, 0
    %v1507 = vsel %vm833, %v1497, 0
    %v1510 = vsel %vm833, %v1498, 0
    %v1513 = vsel %vm833, %v1499, 0
    %1515 = vmatprep.subr.mxu0 0.0
    %1516 = vmatpush1.msra.mxu0 %v1501
    %1517 = vmatprep.subr.mxu0 0.0
    %1518 = vmatpush1.msra.mxu0 %v1502
    %1519 = vmatprep.subr.mxu0 0.0
    %1520 = vmatpush1.msra.mxu0 0.0
    %1521 = vmatprep.subr.mxu0 0.0
    %1522 = vmatpush1.msra.mxu0 0.0
    %1523 = vmatprep.subr.mxu0 0.0
    %1524 = vmatpush1.msra.mxu0 0.0
    %1525 = vmatprep.subr.mxu0 0.0
    %1526 = vmatpush1.msra.mxu0 0.0
    %1527 = vmatprep.subr.mxu0 0.0
    %1528 = vmatpush1.msra.mxu0 0.0
    %1529 = vmatprep.subr.mxu0 0.0
    %1530 = vmatpush1.msra.mxu0 0.0
    %1531 = vmatprep.subr.mxu0 0.0
    %1532 = vmatpush1.msra.mxu0 0.0
    %1533 = vmatprep.subr.mxu0 0.0
    %1534 = vmatpush1.msra.mxu0 0.0
    %1535 = vmatprep.subr.mxu0 0.0
    %1536 = vmatpush1.msra.mxu0 0.0
    %1537 = vmatprep.subr.mxu0 0.0
    %1538 = vmatpush1.msra.mxu0 0.0
    %1539 = vmatprep.subr.mxu0 0.0
    %1540 = vmatpush1.msra.mxu0 0.0
    %1541 = vmatprep.subr.mxu0 0.0
    %1542 = vmatpush1.msra.mxu0 0.0
    %1543 = vmatprep.subr.mxu0 0.0
    %1544 = vmatpush1.msra.mxu0 0.0
    %1545 = vmatprep.subr.mxu0 0.0
    %1546 = vmatpush1.msra.mxu0 0.0
    %1547 = vmatprep.subr.mxu0 0.0
    %1548 = vmatpush1.msra.mxu0 0.0
    %1549 = vmatprep.subr.mxu0 0.0
    %1550 = vmatpush1.msra.mxu0 0.0
    %1551 = vmatprep.subr.mxu0 0.0
    %1552 = vmatpush1.msra.mxu0 0.0
    %1553 = vmatprep.subr.mxu0 0.0
    %1554 = vmatpush1.msra.mxu0 0.0
    %1555 = vmatprep.subr.mxu0 0.0
    %1556 = vmatpush1.msra.mxu0 0.0
    %1557 = vmatprep.subr.mxu0 0.0
    %1558 = vmatpush1.msra.mxu0 0.0
    %1559 = vmatprep.subr.mxu0 0.0
    %1560 = vmatpush1.msra.mxu0 0.0
    %1561 = vmatprep.subr.mxu0 0.0
    %1562 = vmatpush1.msra.mxu0 0.0
    %1563 = vmatprep.subr.mxu0 0.0
    %1564 = vmatpush1.msra.mxu0 0.0
    %1565 = vmatprep.subr.mxu0 0.0
    %1566 = vmatpush1.msra.mxu0 0.0
    %1567 = vmatprep.subr.mxu0 0.0
    %1568 = vmatpush1.msra.mxu0 0.0
    %1569 = vmatprep.subr.mxu0 0.0
    %1570 = vmatpush1.msra.mxu0 0.0
    %1571 = vmatprep.subr.mxu0 0.0
    %1572 = vmatpush1.msra.mxu0 0.0
    %1573 = vmatprep.subr.mxu0 0.0
    %1574 = vmatpush1.msra.mxu0 0.0
    %1575 = vmatprep.subr.mxu0 0.0
    %1576 = vmatpush1.msra.mxu0 0.0
    %1577 = vmatprep.subr.mxu0 0.0
    %1578 = vmatpush1.msra.mxu0 0.0
    %1579 = vmatprep.mubr.f32.mxu0 0.0
    %1580 = vmatmul.mubr.f32.gmra.mrb[0].mxu0 %v1504
    %v1581 = vpop.f32.mrb[0].mxu0
    %v1582 = vadd.f32 0.0, %v1581
    %v1583 = vpop.f32.mrb[0].mxu0
    %1584 = vmatprep.mubr.f32.mxu0 0.0
    %1585 = vmatmul.mubr.f32.gmra.mrb[0].mxu0 %v1507
    %v1586 = vpop.f32.mrb[0].mxu0
    %v1587 = vadd.f32 0.0, %v1586
    %v1588 = vpop.f32.mrb[0].mxu0
    %1589 = vmatprep.mubr.f32.mxu0 0.0
    %1590 = vmatmul.mubr.f32.gmra.mrb[0].mxu0 %v1510
    %v1591 = vpop.f32.mrb[0].mxu0
    %v1592 = vadd.f32 0.0, %v1591
    %v1593 = vpop.f32.mrb[0].mxu0
    %1594 = vmatprep.mubr.f32.mxu0 0.0
    %1595 = vmatmul.mubr.f32.gmra.mrb[0].mxu0 %v1513
    %v1596 = vpop.f32.mrb[0].mxu0
    %v1597 = vadd.f32 0.0, %v1596
    %v1598 = vpop.f32.mrb[0].mxu0
    %1599 = vdwg.mxu0
    %v1600 = vadd.f32 %v1465, %v1582
    %v1601 = vadd.f32 %v1470, %v1587
    %v1602 = vadd.f32 %v1475, %v1592
    %v1603 = vadd.f32 %v1480, %v1597
    %v1604 = vld [vmem:[#allocation13] sm:$0x1]
    %v1606 = vlaneseq
    %v1607 = vshrl.u32 %v1606, 7
    %v1608 = vsub.s32 0, %v1607
    %v1609 = vrot.slane %v1604, %v1608
    %v1611 = vadd.f32 %v1600, %v1609
    %v1612 = vadd.f32 %v1601, %v1609
    %v1613 = vadd.f32 %v1602, %v1609
    %v1614 = vadd.f32 %v1603, %v1609
    %v1615 = vmul.f32 %v1611, 0.5
    %v1616 = vmul.f32 %v1612, 0.5
    %v1617 = vmul.f32 %v1613, 0.5
    %v1618 = vmul.f32 %v1614, 0.5
    %v1619 = vmul.f32 %v1611, 0.70710677
    %v1620 = vmul.f32 %v1612, 0.70710677
    %v1621 = vmul.f32 %v1613, 0.70710677
    %v1622 = vmul.f32 %v1614, 0.70710677
    %v1623 = vand.u32 2147483647, %v1619
    %v1624 = vand.u32 2147483647, %v1620
    %v1625 = vand.u32 2147483647, %v1621
    %v1626 = vand.u32 2147483647, %v1622
    %v1627 = vmul.f32 %v1623, 0.3275911
    %v1628 = vmul.f32 %v1624, 0.3275911
    %v1629 = vmul.f32 %v1625, 0.3275911
    %v1630 = vmul.f32 %v1626, 0.3275911
    %v1631 = vadd.f32 %v1627, 1.0
    %v1632 = vadd.f32 %v1628, 1.0
    %v1633 = vadd.f32 %v1629, 1.0
    %v1634 = vadd.f32 %v1630, 1.0
    %v1635 = vrcp.pop %v1631
    %v1636 = vrcp.pop %v1632
    %v1637 = vrcp.pop %v1633
    %v1638 = vrcp.pop %v1634
    %v1639 = vmul.f32 %v1635, 1.0614054
    %v1640 = vmul.f32 %v1636, 1.0614054
    %v1641 = vmul.f32 %v1637, 1.0614054
    %v1642 = vmul.f32 %v1638, 1.0614054
    %v1643 = vadd.f32 %v1639, -1.4531521
    %v1644 = vadd.f32 %v1640, -1.4531521
    %v1645 = vadd.f32 %v1641, -1.4531521
    %v1646 = vadd.f32 %v1642, -1.4531521
    %v1647 = vmul.f32 %v1635, %v1643
    %v1648 = vmul.f32 %v1636, %v1644
    %v1649 = vmul.f32 %v1637, %v1645
    %v1650 = vmul.f32 %v1638, %v1646
    %v1651 = vadd.f32 %v1647, 1.4214138
    %v1652 = vadd.f32 %v1648, 1.4214138
    %v1653 = vadd.f32 %v1649, 1.4214138
    %v1654 = vadd.f32 %v1650, 1.4214138
    %v1655 = vmul.f32 %v1635, %v1651
    %v1656 = vmul.f32 %v1636, %v1652
    %v1657 = vmul.f32 %v1637, %v1653
    %v1658 = vmul.f32 %v1638, %v1654
    %v1659 = vadd.f32 %v1655, -0.28449672
    %v1660 = vadd.f32 %v1656, -0.28449672
    %v1661 = vadd.f32 %v1657, -0.28449672
    %v1662 = vadd.f32 %v1658, -0.28449672
    %v1663 = vmul.f32 %v1635, %v1659
    %v1664 = vmul.f32 %v1636, %v1660
    %v1665 = vmul.f32 %v1637, %v1661
    %v1666 = vmul.f32 %v1638, %v1662
    %v1667 = vadd.f32 %v1663, 0.2548296
    %v1668 = vadd.f32 %v1664, 0.2548296
    %v1669 = vadd.f32 %v1665, 0.2548296
    %v1670 = vadd.f32 %v1666, 0.2548296
    %v1671 = vmul.f32 %v1635, %v1667
    %v1672 = vmul.f32 %v1636, %v1668
    %v1673 = vmul.f32 %v1637, %v1669
    %v1674 = vmul.f32 %v1638, %v1670
    %v1675 = vmul.f32 %v1623, %v1623
    %v1676 = vmul.f32 %v1624, %v1624
    %v1677 = vmul.f32 %v1625, %v1625
    %v1678 = vmul.f32 %v1626, %v1626
    %v1679 = vsub.f32 0.0, %v1675
    %v1680 = vsub.f32 0.0, %v1676
    %v1681 = vsub.f32 0.0, %v1677
    %v1682 = vsub.f32 0.0, %v1678
    %v1683 = vmul.f32 %v1679, 1.442695
    %v1684 = vpow.pop %v1683
    %v1685 = vmul.f32 %v1680, 1.442695
    %v1686 = vpow.pop %v1685
    %v1687 = vmul.f32 %v1681, 1.442695
    %v1688 = vpow.pop %v1687
    %v1689 = vmul.f32 %v1682, 1.442695
    %v1690 = vpow.pop %v1689
    %v1691 = vmul.f32 %v1671, %v1684
    %v1692 = vmul.f32 %v1672, %v1686
    %v1693 = vmul.f32 %v1673, %v1688
    %v1694 = vmul.f32 %v1674, %v1690
    %v1695 = vsub.f32 1.0, %v1691
    %v1696 = vsub.f32 1.0, %v1692
    %v1697 = vsub.f32 1.0, %v1693
    %v1698 = vsub.f32 1.0, %v1694
    %vm1699 = vcmp.lt.f32.partialorder %v1619, 0.0
    %vm1700 = vcmp.lt.f32.partialorder %v1620, 0.0
    %vm1701 = vcmp.lt.f32.partialorder %v1621, 0.0
    %vm1702 = vcmp.lt.f32.partialorder %v1622, 0.0
    %v1703 = vsub.f32 0.0, %v1695
    %v1704 = vsub.f32 0.0, %v1696
    %v1705 = vsub.f32 0.0, %v1697
    %v1706 = vsub.f32 0.0, %v1698
    %v1707 = vsel %vm1699, %v1703, %v1695
    %v1708 = vsel %vm1700, %v1704, %v1696
    %v1709 = vsel %vm1701, %v1705, %v1697
    %v1710 = vsel %vm1702, %v1706, %v1698
    %v1711 = vadd.f32 %v1707, 1.0
    %v1712 = vadd.f32 %v1708, 1.0
    %v1713 = vadd.f32 %v1709, 1.0
    %v1714 = vadd.f32 %v1710, 1.0
    %v1715 = vmul.f32 %v1615, %v1711
    %v1716 = vmul.f32 %v1616, %v1712
    %v1717 = vmul.f32 %v1617, %v1713
    %v1718 = vmul.f32 %v1618, %v1714
    %v1719 = vadd.f32 %v1715, %v782
    %v1720 = vadd.f32 %v1716, %v787
    %v1721 = vadd.f32 %v1717, %v792
    %v1722 = vadd.f32 %v1718, %v797
    %s1723 = scalar_lea.vmem [#allocation14], 16
    %v1724 = vld [vmem:[%s1723] sm:$0xff]
    %v1725 = vld [vmem:[%s1723 + $0x8] sm:$0xff]
    %vm1726 = vcmp.ge.s32.totalorder %v688, 2
    %vm1727 = vcmp.ge.s32.totalorder %v689, 2
    %v1729 = vrot.slane %v1722, 6
    %vm1734 = vcmask 1041408
    %v1735 = vrot.slane %v1719, 6
    %v1736 = vrot.slane %v1720, 6
    %v1737 = vsel %vm1734, %v1735, %v1736
    %v1738 = vrot.slane %v1721, 6
    %v1739 = vsel %vm1734, %v1736, %v1738
    %v1740 = vsel %vm1734, %v1738, %v1729
    %v1745 = vsel %vm1734, %v1729, %v1735
    %v1746 = vsel %vm1726, 1, 0
    %v1747 = vsel %vm1727, 1, 0
    %vm1748 = vcmp.eq.s32.totalorder %v1746, 1
    %vm1749 = vcmp.eq.s32.totalorder %v1747, 1
    %v1750 = vsel %vm1748, %v1745, 0.0
    %v1751 = vsel %vm1749, %v1737, 0.0
    %v1752 = vsel %vm1748, %v1739, 0.0
    %v1753 = vsel %vm1749, %v1740, 0.0
    %v1754 = vld [vmem:[#allocation14] sm:$0xff]
    %v1755 = vld [vmem:[#allocation14 + $0x8] sm:$0xff]
    %v1757 = vsel %vm833, %v1750, 0
    %v1760 = vsel %vm833, %v1751, 0
    %v1763 = vsel %vm833, %v1752, 0
    %v1766 = vsel %vm833, %v1753, 0
    %1768 = vmatprep.subr.mxu0 0.0
    %1769 = vmatpush1.msra.mxu0 %v1754
    %1770 = vmatprep.subr.mxu0 0.0
    %1771 = vmatpush1.msra.mxu0 %v1755
    %1772 = vmatprep.subr.mxu0 0.0
    %1773 = vmatpush1.msra.mxu0 0.0
    %1774 = vmatprep.subr.mxu0 0.0
    %1775 = vmatpush1.msra.mxu0 0.0
    %1776 = vmatprep.subr.mxu0 0.0
    %1777 = vmatpush1.msra.mxu0 0.0
    %1778 = vmatprep.subr.mxu0 0.0
    %1779 = vmatpush1.msra.mxu0 0.0
    %1780 = vmatprep.subr.mxu0 0.0
    %1781 = vmatpush1.msra.mxu0 0.0
    %1782 = vmatprep.subr.mxu0 0.0
    %1783 = vmatpush1.msra.mxu0 0.0
    %1784 = vmatprep.subr.mxu0 0.0
    %1785 = vmatpush1.msra.mxu0 0.0
    %1786 = vmatprep.subr.mxu0 0.0
    %1787 = vmatpush1.msra.mxu0 0.0
    %1788 = vmatprep.subr.mxu0 0.0
    %1789 = vmatpush1.msra.mxu0 0.0
    %1790 = vmatprep.subr.mxu0 0.0
    %1791 = vmatpush1.msra.mxu0 0.0
    %1792 = vmatprep.subr.mxu0 0.0
    %1793 = vmatpush1.msra.mxu0 0.0
    %1794 = vmatprep.subr.mxu0 0.0
    %1795 = vmatpush1.msra.mxu0 0.0
    %1796 = vmatprep.subr.mxu0 0.0
    %1797 = vmatpush1.msra.mxu0 0.0
    %1798 = vmatprep.subr.mxu0 0.0
    %1799 = vmatpush1.msra.mxu0 0.0
    %1800 = vmatprep.subr.mxu0 0.0
    %1801 = vmatpush1.msra.mxu0 0.0
    %1802 = vmatprep.subr.mxu0 0.0
    %1803 = vmatpush1.msra.mxu0 0.0
    %1804 = vmatprep.subr.mxu0 0.0
    %1805 = vmatpush1.msra.mxu0 0.0
    %1806 = vmatprep.subr.mxu0 0.0
    %1807 = vmatpush1.msra.mxu0 0.0
    %1808 = vmatprep.subr.mxu0 0.0
    %1809 = vmatpush1.msra.mxu0 0.0
    %1810 = vmatprep.subr.mxu0 0.0
    %1811 = vmatpush1.msra.mxu0 0.0
    %1812 = vmatprep.subr.mxu0 0.0
    %1813 = vmatpush1.msra.mxu0 0.0
    %1814 = vmatprep.subr.mxu0 0.0
    %1815 = vmatpush1.msra.mxu0 0.0
    %1816 = vmatprep.subr.mxu0 0.0
    %1817 = vmatpush1.msra.mxu0 0.0
    %1818 = vmatprep.subr.mxu0 0.0
    %1819 = vmatpush1.msra.mxu0 0.0
    %1820 = vmatprep.subr.mxu0 0.0
    %1821 = vmatpush1.msra.mxu0 0.0
    %1822 = vmatprep.subr.mxu0 0.0
    %1823 = vmatpush1.msra.mxu0 0.0
    %1824 = vmatprep.subr.mxu0 0.0
    %1825 = vmatpush1.msra.mxu0 0.0
    %1826 = vmatprep.subr.mxu0 0.0
    %1827 = vmatpush1.msra.mxu0 0.0
    %1828 = vmatprep.subr.mxu0 0.0
    %1829 = vmatpush1.msra.mxu0 0.0
    %1830 = vmatprep.subr.mxu0 0.0
    %1831 = vmatpush1.msra.mxu0 0.0
    %1832 = vmatprep.mubr.f32.mxu0 0.0
    %1833 = vmatmul.mubr.f32.gmra.mrb[0].mxu0 %v1757
    %v1834 = vpop.f32.mrb[0].mxu0
    %v1835 = vadd.f32 0.0, %v1834
    %v1836 = vpop.f32.mrb[0].mxu0
    %1837 = vmatprep.mubr.f32.mxu0 0.0
    %1838 = vmatmul.mubr.f32.gmra.mrb[0].mxu0 %v1760
    %v1839 = vpop.f32.mrb[0].mxu0
    %v1840 = vadd.f32 0.0, %v1839
    %v1841 = vpop.f32.mrb[0].mxu0
    %1842 = vmatprep.mubr.f32.mxu0 0.0
    %1843 = vmatmul.mubr.f32.gmra.mrb[0].mxu0 %v1763
    %v1844 = vpop.f32.mrb[0].mxu0
    %v1845 = vadd.f32 0.0, %v1844
    %v1846 = vpop.f32.mrb[0].mxu0
    %1847 = vmatprep.mubr.f32.mxu0 0.0
    %1848 = vmatmul.mubr.f32.gmra.mrb[0].mxu0 %v1766
    %v1849 = vpop.f32.mrb[0].mxu0
    %v1850 = vadd.f32 0.0, %v1849
    %v1851 = vpop.f32.mrb[0].mxu0
    %1852 = vdwg.mxu0
    %v1853 = vsel %vm833, %v1719, 0
    %v1855 = vsel %vm833, %v1720, 0
    %v1857 = vsel %vm833, %v1721, 0
    %v1859 = vsel %vm833, %v1722, 0
    %1861 = vmatprep.subr.mxu0 0.0
    %1862 = vmatpush1.msra.mxu0 %v1724
    %1863 = vmatprep.subr.mxu0 0.0
    %1864 = vmatpush1.msra.mxu0 %v1725
    %1865 = vmatprep.subr.mxu0 0.0
    %1866 = vmatpush1.msra.mxu0 0.0
    %1867 = vmatprep.subr.mxu0 0.0
    %1868 = vmatpush1.msra.mxu0 0.0
    %1869 = vmatprep.subr.mxu0 0.0
    %1870 = vmatpush1.msra.mxu0 0.0
    %1871 = vmatprep.subr.mxu0 0.0
    %1872 = vmatpush1.msra.mxu0 0.0
    %1873 = vmatprep.subr.mxu0 0.0
    %1874 = vmatpush1.msra.mxu0 0.0
    %1875 = vmatprep.subr.mxu0 0.0
    %1876 = vmatpush1.msra.mxu0 0.0
    %1877 = vmatprep.subr.mxu0 0.0
    %1878 = vmatpush1.msra.mxu0 0.0
    %1879 = vmatprep.subr.mxu0 0.0
    %1880 = vmatpush1.msra.mxu0 0.0
    %1881 = vmatprep.subr.mxu0 0.0
    %1882 = vmatpush1.msra.mxu0 0.0
    %1883 = vmatprep.subr.mxu0 0.0
    %1884 = vmatpush1.msra.mxu0 0.0
    %1885 = vmatprep.subr.mxu0 0.0
    %1886 = vmatpush1.msra.mxu0 0.0
    %1887 = vmatprep.subr.mxu0 0.0
    %1888 = vmatpush1.msra.mxu0 0.0
    %1889 = vmatprep.subr.mxu0 0.0
    %1890 = vmatpush1.msra.mxu0 0.0
    %1891 = vmatprep.subr.mxu0 0.0
    %1892 = vmatpush1.msra.mxu0 0.0
    %1893 = vmatprep.subr.mxu0 0.0
    %1894 = vmatpush1.msra.mxu0 0.0
    %1895 = vmatprep.subr.mxu0 0.0
    %1896 = vmatpush1.msra.mxu0 0.0
    %1897 = vmatprep.subr.mxu0 0.0
    %1898 = vmatpush1.msra.mxu0 0.0
    %1899 = vmatprep.subr.mxu0 0.0
    %1900 = vmatpush1.msra.mxu0 0.0
    %1901 = vmatprep.subr.mxu0 0.0
    %1902 = vmatpush1.msra.mxu0 0.0
    %1903 = vmatprep.subr.mxu0 0.0
    %1904 = vmatpush1.msra.mxu0 0.0
    %1905 = vmatprep.subr.mxu0 0.0
    %1906 = vmatpush1.msra.mxu0 0.0
    %1907 = vmatprep.subr.mxu0 0.0
    %1908 = vmatpush1.msra.mxu0 0.0
    %1909 = vmatprep.subr.mxu0 0.0
    %1910 = vmatpush1.msra.mxu0 0.0
    %1911 = vmatprep.subr.mxu0 0.0
    %1912 = vmatpush1.msra.mxu0 0.0
    %1913 = vmatprep.subr.mxu0 0.0
    %1914 = vmatpush1.msra.mxu0 0.0
    %1915 = vmatprep.subr.mxu0 0.0
    %1916 = vmatpush1.msra.mxu0 0.0
    %1917 = vmatprep.subr.mxu0 0.0
    %1918 = vmatpush1.msra.mxu0 0.0
    %1919 = vmatprep.subr.mxu0 0.0
    %1920 = vmatpush1.msra.mxu0 0.0
    %1921 = vmatprep.subr.mxu0 0.0
    %1922 = vmatpush1.msra.mxu0 0.0
    %1923 = vmatprep.subr.mxu0 0.0
    %1924 = vmatpush1.msra.mxu0 0.0
    %1925 = vmatprep.mubr.f32.mxu0 0.0
    %1926 = vmatmul.mubr.f32.gmra.mrb[0].mxu0 %v1853
    %v1927 = vpop.f32.mrb[0].mxu0
    %v1928 = vadd.f32 %v1835, %v1927
    %v1929 = vpop.f32.mrb[0].mxu0
    %1930 = vmatprep.mubr.f32.mxu0 0.0
    %1931 = vmatmul.mubr.f32.gmra.mrb[0].mxu0 %v1855
    %v1932 = vpop.f32.mrb[0].mxu0
    %v1933 = vadd.f32 %v1840, %v1932
    %v1934 = vpop.f32.mrb[0].mxu0
    %1935 = vmatprep.mubr.f32.mxu0 0.0
    %1936 = vmatmul.mubr.f32.gmra.mrb[0].mxu0 %v1857
    %v1937 = vpop.f32.mrb[0].mxu0
    %v1938 = vadd.f32 %v1845, %v1937
    %v1939 = vpop.f32.mrb[0].mxu0
    %1940 = vmatprep.mubr.f32.mxu0 0.0
    %1941 = vmatmul.mubr.f32.gmra.mrb[0].mxu0 %v1859
    %v1942 = vpop.f32.mrb[0].mxu0
    %v1943 = vadd.f32 %v1850, %v1942
    %v1944 = vpop.f32.mrb[0].mxu0
    %1945 = vdwg.mxu0
    %vm1946 = vcmp.lt.s32.totalorder %v688, 14
    %vm1947 = vcmp.lt.s32.totalorder %v689, 14
    %vm1948 = vcmask 1045504
    %v1949 = vrot.slane %v1719, 2
    %v1950 = vrot.slane %v1720, 2
    %v1951 = vsel %vm1948, %v1949, %v1950
    %v1952 = vrot.slane %v1721, 2
    %v1953 = vsel %vm1948, %v1950, %v1952
    %v1954 = vrot.slane %v1722, 2
    %v1955 = vsel %vm1948, %v1952, %v1954
    %v1961 = vsel %vm1948, %v1954, %v1949
    %v1962 = vsel %vm1946, 1, 0
    %v1963 = vsel %vm1947, 1, 0
    %vm1964 = vcmp.eq.s32.totalorder %v1962, 1
    %vm1965 = vcmp.eq.s32.totalorder %v1963, 1
    %v1966 = vsel %vm1964, %v1951, 0.0
    %v1967 = vsel %vm1965, %v1953, 0.0
    %v1968 = vsel %vm1964, %v1955, 0.0
    %v1969 = vsel %vm1965, %v1961, 0.0
    %s1970 = scalar_lea.vmem [#allocation14], 32
    %v1971 = vld [vmem:[%s1970] sm:$0xff]
    %v1972 = vld [vmem:[%s1970 + $0x8] sm:$0xff]
    %v1974 = vsel %vm833, %v1966, 0
    %v1977 = vsel %vm833, %v1967, 0
    %v1980 = vsel %vm833, %v1968, 0
    %v1983 = vsel %vm833, %v1969, 0
    %1985 = vmatprep.subr.mxu0 0.0
    %1986 = vmatpush1.msra.mxu0 %v1971
    %1987 = vmatprep.subr.mxu0 0.0
    %1988 = vmatpush1.msra.mxu0 %v1972
    %1989 = vmatprep.subr.mxu0 0.0
    %1990 = vmatpush1.msra.mxu0 0.0
    %1991 = vmatprep.subr.mxu0 0.0
    %1992 = vmatpush1.msra.mxu0 0.0
    %1993 = vmatprep.subr.mxu0 0.0
    %1994 = vmatpush1.msra.mxu0 0.0
    %1995 = vmatprep.subr.mxu0 0.0
    %1996 = vmatpush1.msra.mxu0 0.0
    %1997 = vmatprep.subr.mxu0 0.0
    %1998 = vmatpush1.msra.mxu0 0.0
    %1999 = vmatprep.subr.mxu0 0.0
    %2000 = vmatpush1.msra.mxu0 0.0
    %2001 = vmatprep.subr.mxu0 0.0
    %2002 = vmatpush1.msra.mxu0 0.0
    %2003 = vmatprep.subr.mxu0 0.0
    %2004 = vmatpush1.msra.mxu0 0.0
    %2005 = vmatprep.subr.mxu0 0.0
    %2006 = vmatpush1.msra.mxu0 0.0
    %2007 = vmatprep.subr.mxu0 0.0
    %2008 = vmatpush1.msra.mxu0 0.0
    %2009 = vmatprep.subr.mxu0 0.0
    %2010 = vmatpush1.msra.mxu0 0.0
    %2011 = vmatprep.subr.mxu0 0.0
    %2012 = vmatpush1.msra.mxu0 0.0
    %2013 = vmatprep.subr.mxu0 0.0
    %2014 = vmatpush1.msra.mxu0 0.0
    %2015 = vmatprep.subr.mxu0 0.0
    %2016 = vmatpush1.msra.mxu0 0.0
    %2017 = vmatprep.subr.mxu0 0.0
    %2018 = vmatpush1.msra.mxu0 0.0
    %2019 = vmatprep.subr.mxu0 0.0
    %2020 = vmatpush1.msra.mxu0 0.0
    %2021 = vmatprep.subr.mxu0 0.0
    %2022 = vmatpush1.msra.mxu0 0.0
    %2023 = vmatprep.subr.mxu0 0.0
    %2024 = vmatpush1.msra.mxu0 0.0
    %2025 = vmatprep.subr.mxu0 0.0
    %2026 = vmatpush1.msra.mxu0 0.0
    %2027 = vmatprep.subr.mxu0 0.0
    %2028 = vmatpush1.msra.mxu0 0.0
    %2029 = vmatprep.subr.mxu0 0.0
    %2030 = vmatpush1.msra.mxu0 0.0
    %2031 = vmatprep.subr.mxu0 0.0
    %2032 = vmatpush1.msra.mxu0 0.0
    %2033 = vmatprep.subr.mxu0 0.0
    %2034 = vmatpush1.msra.mxu0 0.0
    %2035 = vmatprep.subr.mxu0 0.0
    %2036 = vmatpush1.msra.mxu0 0.0
    %2037 = vmatprep.subr.mxu0 0.0
    %2038 = vmatpush1.msra.mxu0 0.0
    %2039 = vmatprep.subr.mxu0 0.0
    %2040 = vmatpush1.msra.mxu0 0.0
    %2041 = vmatprep.subr.mxu0 0.0
    %2042 = vmatpush1.msra.mxu0 0.0
    %2043 = vmatprep.subr.mxu0 0.0
    %2044 = vmatpush1.msra.mxu0 0.0
    %2045 = vmatprep.subr.mxu0 0.0
    %2046 = vmatpush1.msra.mxu0 0.0
    %2047 = vmatprep.subr.mxu0 0.0
    %2048 = vmatpush1.msra.mxu0 0.0
    %2049 = vmatprep.mubr.f32.mxu0 0.0
    %2050 = vmatmul.mubr.f32.gmra.mrb[0].mxu0 %v1974
    %v2051 = vpop.f32.mrb[0].mxu0
    %v2052 = vadd.f32 0.0, %v2051
    %v2053 = vpop.f32.mrb[0].mxu0
    %2054 = vmatprep.mubr.f32.mxu0 0.0
    %2055 = vmatmul.mubr.f32.gmra.mrb[0].mxu0 %v1977
    %v2056 = vpop.f32.mrb[0].mxu0
    %v2057 = vadd.f32 0.0, %v2056
    %v2058 = vpop.f32.mrb[0].mxu0
    %2059 = vmatprep.mubr.f32.mxu0 0.0
    %2060 = vmatmul.mubr.f32.gmra.mrb[0].mxu0 %v1980
    %v2061 = vpop.f32.mrb[0].mxu0
    %v2062 = vadd.f32 0.0, %v2061
    %v2063 = vpop.f32.mrb[0].mxu0
    %2064 = vmatprep.mubr.f32.mxu0 0.0
    %2065 = vmatmul.mubr.f32.gmra.mrb[0].mxu0 %v1983
    %v2066 = vpop.f32.mrb[0].mxu0
    %v2067 = vadd.f32 0.0, %v2066
    %v2068 = vpop.f32.mrb[0].mxu0
    %2069 = vdwg.mxu0
    %v2070 = vadd.f32 %v1928, %v2052
    %v2071 = vadd.f32 %v1933, %v2057
    %v2072 = vadd.f32 %v1938, %v2062
    %v2073 = vadd.f32 %v1943, %v2067
    %v2074 = vld [vmem:[#allocation16] sm:$0x1]
    %v2076 = vlaneseq
    %v2077 = vshrl.u32 %v2076, 7
    %v2078 = vsub.s32 0, %v2077
    %v2079 = vrot.slane %v2074, %v2078
    %v2081 = vadd.f32 %v2070, %v2079
    %v2082 = vadd.f32 %v2071, %v2079
    %v2083 = vadd.f32 %v2072, %v2079
    %v2084 = vadd.f32 %v2073, %v2079
    %v2085 = vmul.f32 %v2081, 0.5
    %v2086 = vmul.f32 %v2082, 0.5
    %v2087 = vmul.f32 %v2083, 0.5
    %v2088 = vmul.f32 %v2084, 0.5
    %v2089 = vmul.f32 %v2081, 0.70710677
    %v2090 = vmul.f32 %v2082, 0.70710677
    %v2091 = vmul.f32 %v2083, 0.70710677
    %v2092 = vmul.f32 %v2084, 0.70710677
    %v2093 = vand.u32 2147483647, %v2089
    %v2094 = vand.u32 2147483647, %v2090
    %v2095 = vand.u32 2147483647, %v2091
    %v2096 = vand.u32 2147483647, %v2092
    %v2097 = vmul.f32 %v2093, 0.3275911
    %v2098 = vmul.f32 %v2094, 0.3275911
    %v2099 = vmul.f32 %v2095, 0.3275911
    %v2100 = vmul.f32 %v2096, 0.3275911
    %v2101 = vadd.f32 %v2097, 1.0
    %v2102 = vadd.f32 %v2098, 1.0
    %v2103 = vadd.f32 %v2099, 1.0
    %v2104 = vadd.f32 %v2100, 1.0
    %v2105 = vrcp.pop %v2101
    %v2106 = vrcp.pop %v2102
    %v2107 = vrcp.pop %v2103
    %v2108 = vrcp.pop %v2104
    %v2109 = vmul.f32 %v2105, 1.0614054
    %v2110 = vmul.f32 %v2106, 1.0614054
    %v2111 = vmul.f32 %v2107, 1.0614054
    %v2112 = vmul.f32 %v2108, 1.0614054
    %v2113 = vadd.f32 %v2109, -1.4531521
    %v2114 = vadd.f32 %v2110, -1.4531521
    %v2115 = vadd.f32 %v2111, -1.4531521
    %v2116 = vadd.f32 %v2112, -1.4531521
    %v2117 = vmul.f32 %v2105, %v2113
    %v2118 = vmul.f32 %v2106, %v2114
    %v2119 = vmul.f32 %v2107, %v2115
    %v2120 = vmul.f32 %v2108, %v2116
    %v2121 = vadd.f32 %v2117, 1.4214138
    %v2122 = vadd.f32 %v2118, 1.4214138
    %v2123 = vadd.f32 %v2119, 1.4214138
    %v2124 = vadd.f32 %v2120, 1.4214138
    %v2125 = vmul.f32 %v2105, %v2121
    %v2126 = vmul.f32 %v2106, %v2122
    %v2127 = vmul.f32 %v2107, %v2123
    %v2128 = vmul.f32 %v2108, %v2124
    %v2129 = vadd.f32 %v2125, -0.28449672
    %v2130 = vadd.f32 %v2126, -0.28449672
    %v2131 = vadd.f32 %v2127, -0.28449672
    %v2132 = vadd.f32 %v2128, -0.28449672
    %v2133 = vmul.f32 %v2105, %v2129
    %v2134 = vmul.f32 %v2106, %v2130
    %v2135 = vmul.f32 %v2107, %v2131
    %v2136 = vmul.f32 %v2108, %v2132
    %v2137 = vadd.f32 %v2133, 0.2548296
    %v2138 = vadd.f32 %v2134, 0.2548296
    %v2139 = vadd.f32 %v2135, 0.2548296
    %v2140 = vadd.f32 %v2136, 0.2548296
    %v2141 = vmul.f32 %v2105, %v2137
    %v2142 = vmul.f32 %v2106, %v2138
    %v2143 = vmul.f32 %v2107, %v2139
    %v2144 = vmul.f32 %v2108, %v2140
    %v2145 = vmul.f32 %v2093, %v2093
    %v2146 = vmul.f32 %v2094, %v2094
    %v2147 = vmul.f32 %v2095, %v2095
    %v2148 = vmul.f32 %v2096, %v2096
    %v2149 = vsub.f32 0.0, %v2145
    %v2150 = vsub.f32 0.0, %v2146
    %v2151 = vsub.f32 0.0, %v2147
    %v2152 = vsub.f32 0.0, %v2148
    %v2153 = vmul.f32 %v2149, 1.442695
    %v2154 = vpow.pop %v2153
    %v2155 = vmul.f32 %v2150, 1.442695
    %v2156 = vpow.pop %v2155
    %v2157 = vmul.f32 %v2151, 1.442695
    %v2158 = vpow.pop %v2157
    %v2159 = vmul.f32 %v2152, 1.442695
    %v2160 = vpow.pop %v2159
    %v2161 = vmul.f32 %v2141, %v2154
    %v2162 = vmul.f32 %v2142, %v2156
    %v2163 = vmul.f32 %v2143, %v2158
    %v2164 = vmul.f32 %v2144, %v2160
    %v2165 = vsub.f32 1.0, %v2161
    %v2166 = vsub.f32 1.0, %v2162
    %v2167 = vsub.f32 1.0, %v2163
    %v2168 = vsub.f32 1.0, %v2164
    %vm2169 = vcmp.lt.f32.partialorder %v2089, 0.0
    %vm2170 = vcmp.lt.f32.partialorder %v2090, 0.0
    %vm2171 = vcmp.lt.f32.partialorder %v2091, 0.0
    %vm2172 = vcmp.lt.f32.partialorder %v2092, 0.0
    %v2173 = vsub.f32 0.0, %v2165
    %v2174 = vsub.f32 0.0, %v2166
    %v2175 = vsub.f32 0.0, %v2167
    %v2176 = vsub.f32 0.0, %v2168
    %v2177 = vsel %vm2169, %v2173, %v2165
    %v2178 = vsel %vm2170, %v2174, %v2166
    %v2179 = vsel %vm2171, %v2175, %v2167
    %v2180 = vsel %vm2172, %v2176, %v2168
    %v2181 = vadd.f32 %v2177, 1.0
    %v2182 = vadd.f32 %v2178, 1.0
    %v2183 = vadd.f32 %v2179, 1.0
    %v2184 = vadd.f32 %v2180, 1.0
    %v2185 = vmul.f32 %v2085, %v2181
    %v2186 = vmul.f32 %v2086, %v2182
    %v2187 = vmul.f32 %v2087, %v2183
    %v2188 = vmul.f32 %v2088, %v2184
    %s2189 = scalar_lea.vmem [#allocation17], 16
    %v2190 = vld [vmem:[%s2189] sm:$0xff]
    %v2191 = vld [vmem:[%s2189 + $0x8] sm:$0xff]
    %v2193 = vrot.slane %v2188, 6
    %v2198 = vrot.slane %v2185, 6
    %v2199 = vrot.slane %v2186, 6
    %v2200 = vsel %vm1734, %v2198, %v2199
    %v2201 = vrot.slane %v2187, 6
    %v2202 = vsel %vm1734, %v2199, %v2201
    %v2203 = vsel %vm1734, %v2201, %v2193
    %v2208 = vsel %vm1734, %v2193, %v2198
    %v2209 = vsel %vm1748, %v2208, 0.0
    %v2210 = vsel %vm1749, %v2200, 0.0
    %v2211 = vsel %vm1748, %v2202, 0.0
    %v2212 = vsel %vm1749, %v2203, 0.0
    %v2213 = vld [vmem:[#allocation17] sm:$0xff]
    %v2214 = vld [vmem:[#allocation17 + $0x8] sm:$0xff]
    %v2216 = vsel %vm833, %v2209, 0
    %v2219 = vsel %vm833, %v2210, 0
    %v2222 = vsel %vm833, %v2211, 0
    %v2225 = vsel %vm833, %v2212, 0
    %2227 = vmatprep.subr.mxu0 0.0
    %2228 = vmatpush1.msra.mxu0 %v2213
    %2229 = vmatprep.subr.mxu0 0.0
    %2230 = vmatpush1.msra.mxu0 %v2214
    %2231 = vmatprep.subr.mxu0 0.0
    %2232 = vmatpush1.msra.mxu0 0.0
    %2233 = vmatprep.subr.mxu0 0.0
    %2234 = vmatpush1.msra.mxu0 0.0
    %2235 = vmatprep.subr.mxu0 0.0
    %2236 = vmatpush1.msra.mxu0 0.0
    %2237 = vmatprep.subr.mxu0 0.0
    %2238 = vmatpush1.msra.mxu0 0.0
    %2239 = vmatprep.subr.mxu0 0.0
    %2240 = vmatpush1.msra.mxu0 0.0
    %2241 = vmatprep.subr.mxu0 0.0
    %2242 = vmatpush1.msra.mxu0 0.0
    %2243 = vmatprep.subr.mxu0 0.0
    %2244 = vmatpush1.msra.mxu0 0.0
    %2245 = vmatprep.subr.mxu0 0.0
    %2246 = vmatpush1.msra.mxu0 0.0
    %2247 = vmatprep.subr.mxu0 0.0
    %2248 = vmatpush1.msra.mxu0 0.0
    %2249 = vmatprep.subr.mxu0 0.0
    %2250 = vmatpush1.msra.mxu0 0.0
    %2251 = vmatprep.subr.mxu0 0.0
    %2252 = vmatpush1.msra.mxu0 0.0
    %2253 = vmatprep.subr.mxu0 0.0
    %2254 = vmatpush1.msra.mxu0 0.0
    %2255 = vmatprep.subr.mxu0 0.0
    %2256 = vmatpush1.msra.mxu0 0.0
    %2257 = vmatprep.subr.mxu0 0.0
    %2258 = vmatpush1.msra.mxu0 0.0
    %2259 = vmatprep.subr.mxu0 0.0
    %2260 = vmatpush1.msra.mxu0 0.0
    %2261 = vmatprep.subr.mxu0 0.0
    %2262 = vmatpush1.msra.mxu0 0.0
    %2263 = vmatprep.subr.mxu0 0.0
    %2264 = vmatpush1.msra.mxu0 0.0
    %2265 = vmatprep.subr.mxu0 0.0
    %2266 = vmatpush1.msra.mxu0 0.0
    %2267 = vmatprep.subr.mxu0 0.0
    %2268 = vmatpush1.msra.mxu0 0.0
    %2269 = vmatprep.subr.mxu0 0.0
    %2270 = vmatpush1.msra.mxu0 0.0
    %2271 = vmatprep.subr.mxu0 0.0
    %2272 = vmatpush1.msra.mxu0 0.0
    %2273 = vmatprep.subr.mxu0 0.0
    %2274 = vmatpush1.msra.mxu0 0.0
    %2275 = vmatprep.subr.mxu0 0.0
    %2276 = vmatpush1.msra.mxu0 0.0
    %2277 = vmatprep.subr.mxu0 0.0
    %2278 = vmatpush1.msra.mxu0 0.0
    %2279 = vmatprep.subr.mxu0 0.0
    %2280 = vmatpush1.msra.mxu0 0.0
    %2281 = vmatprep.subr.mxu0 0.0
    %2282 = vmatpush1.msra.mxu0 0.0
    %2283 = vmatprep.subr.mxu0 0.0
    %2284 = vmatpush1.msra.mxu0 0.0
    %2285 = vmatprep.subr.mxu0 0.0
    %2286 = vmatpush1.msra.mxu0 0.0
    %2287 = vmatprep.subr.mxu0 0.0
    %2288 = vmatpush1.msra.mxu0 0.0
    %2289 = vmatprep.subr.mxu0 0.0
    %2290 = vmatpush1.msra.mxu0 0.0
    %2291 = vmatprep.mubr.f32.mxu0 0.0
    %2292 = vmatmul.mubr.f32.gmra.mrb[0].mxu0 %v2216
    %v2293 = vpop.f32.mrb[0].mxu0
    %v2294 = vadd.f32 0.0, %v2293
    %v2295 = vpop.f32.mrb[0].mxu0
    %2296 = vmatprep.mubr.f32.mxu0 0.0
    %2297 = vmatmul.mubr.f32.gmra.mrb[0].mxu0 %v2219
    %v2298 = vpop.f32.mrb[0].mxu0
    %v2299 = vadd.f32 0.0, %v2298
    %v2300 = vpop.f32.mrb[0].mxu0
    %2301 = vmatprep.mubr.f32.mxu0 0.0
    %2302 = vmatmul.mubr.f32.gmra.mrb[0].mxu0 %v2222
    %v2303 = vpop.f32.mrb[0].mxu0
    %v2304 = vadd.f32 0.0, %v2303
    %v2305 = vpop.f32.mrb[0].mxu0
    %2306 = vmatprep.mubr.f32.mxu0 0.0
    %2307 = vmatmul.mubr.f32.gmra.mrb[0].mxu0 %v2225
    %v2308 = vpop.f32.mrb[0].mxu0
    %v2309 = vadd.f32 0.0, %v2308
    %v2310 = vpop.f32.mrb[0].mxu0
    %2311 = vdwg.mxu0
    %v2312 = vsel %vm833, %v2185, 0
    %v2314 = vsel %vm833, %v2186, 0
    %v2316 = vsel %vm833, %v2187, 0
    %v2318 = vsel %vm833, %v2188, 0
    %2320 = vmatprep.subr.mxu0 0.0
    %2321 = vmatpush1.msra.mxu0 %v2190
    %2322 = vmatprep.subr.mxu0 0.0
    %2323 = vmatpush1.msra.mxu0 %v2191
    %2324 = vmatprep.subr.mxu0 0.0
    %2325 = vmatpush1.msra.mxu0 0.0
    %2326 = vmatprep.subr.mxu0 0.0
    %2327 = vmatpush1.msra.mxu0 0.0
    %2328 = vmatprep.subr.mxu0 0.0
    %2329 = vmatpush1.msra.mxu0 0.0
    %2330 = vmatprep.subr.mxu0 0.0
    %2331 = vmatpush1.msra.mxu0 0.0
    %2332 = vmatprep.subr.mxu0 0.0
    %2333 = vmatpush1.msra.mxu0 0.0
    %2334 = vmatprep.subr.mxu0 0.0
    %2335 = vmatpush1.msra.mxu0 0.0
    %2336 = vmatprep.subr.mxu0 0.0
    %2337 = vmatpush1.msra.mxu0 0.0
    %2338 = vmatprep.subr.mxu0 0.0
    %2339 = vmatpush1.msra.mxu0 0.0
    %2340 = vmatprep.subr.mxu0 0.0
    %2341 = vmatpush1.msra.mxu0 0.0
    %2342 = vmatprep.subr.mxu0 0.0
    %2343 = vmatpush1.msra.mxu0 0.0
    %2344 = vmatprep.subr.mxu0 0.0
    %2345 = vmatpush1.msra.mxu0 0.0
    %2346 = vmatprep.subr.mxu0 0.0
    %2347 = vmatpush1.msra.mxu0 0.0
    %2348 = vmatprep.subr.mxu0 0.0
    %2349 = vmatpush1.msra.mxu0 0.0
    %2350 = vmatprep.subr.mxu0 0.0
    %2351 = vmatpush1.msra.mxu0 0.0
    %2352 = vmatprep.subr.mxu0 0.0
    %2353 = vmatpush1.msra.mxu0 0.0
    %2354 = vmatprep.subr.mxu0 0.0
    %2355 = vmatpush1.msra.mxu0 0.0
    %2356 = vmatprep.subr.mxu0 0.0
    %2357 = vmatpush1.msra.mxu0 0.0
    %2358 = vmatprep.subr.mxu0 0.0
    %2359 = vmatpush1.msra.mxu0 0.0
    %2360 = vmatprep.subr.mxu0 0.0
    %2361 = vmatpush1.msra.mxu0 0.0
    %2362 = vmatprep.subr.mxu0 0.0
    %2363 = vmatpush1.msra.mxu0 0.0
    %2364 = vmatprep.subr.mxu0 0.0
    %2365 = vmatpush1.msra.mxu0 0.0
    %2366 = vmatprep.subr.mxu0 0.0
    %2367 = vmatpush1.msra.mxu0 0.0
    %2368 = vmatprep.subr.mxu0 0.0
    %2369 = vmatpush1.msra.mxu0 0.0
    %2370 = vmatprep.subr.mxu0 0.0
    %2371 = vmatpush1.msra.mxu0 0.0
    %2372 = vmatprep.subr.mxu0 0.0
    %2373 = vmatpush1.msra.mxu0 0.0
    %2374 = vmatprep.subr.mxu0 0.0
    %2375 = vmatpush1.msra.mxu0 0.0
    %2376 = vmatprep.subr.mxu0 0.0
    %2377 = vmatpush1.msra.mxu0 0.0
    %2378 = vmatprep.subr.mxu0 0.0
    %2379 = vmatpush1.msra.mxu0 0.0
    %2380 = vmatprep.subr.mxu0 0.0
    %2381 = vmatpush1.msra.mxu0 0.0
    %2382 = vmatprep.subr.mxu0 0.0
    %2383 = vmatpush1.msra.mxu0 0.0
    %2384 = vmatprep.mubr.f32.mxu0 0.0
    %2385 = vmatmul.mubr.f32.gmra.mrb[0].mxu0 %v2312
    %v2386 = vpop.f32.mrb[0].mxu0
    %v2387 = vadd.f32 %v2294, %v2386
    %v2388 = vpop.f32.mrb[0].mxu0
    %2389 = vmatprep.mubr.f32.mxu0 0.0
    %2390 = vmatmul.mubr.f32.gmra.mrb[0].mxu0 %v2314
    %v2391 = vpop.f32.mrb[0].mxu0
    %v2392 = vadd.f32 %v2299, %v2391
    %v2393 = vpop.f32.mrb[0].mxu0
    %2394 = vmatprep.mubr.f32.mxu0 0.0
    %2395 = vmatmul.mubr.f32.gmra.mrb[0].mxu0 %v2316
    %v2396 = vpop.f32.mrb[0].mxu0
    %v2397 = vadd.f32 %v2304, %v2396
    %v2398 = vpop.f32.mrb[0].mxu0
    %2399 = vmatprep.mubr.f32.mxu0 0.0
    %2400 = vmatmul.mubr.f32.gmra.mrb[0].mxu0 %v2318
    %v2401 = vpop.f32.mrb[0].mxu0
    %v2402 = vadd.f32 %v2309, %v2401
    %v2403 = vpop.f32.mrb[0].mxu0
    %2404 = vdwg.mxu0
    %v2405 = vrot.slane %v2185, 2
    %v2406 = vrot.slane %v2186, 2
    %v2407 = vsel %vm1948, %v2405, %v2406
    %v2408 = vrot.slane %v2187, 2
    %v2409 = vsel %vm1948, %v2406, %v2408
    %v2410 = vrot.slane %v2188, 2
    %v2411 = vsel %vm1948, %v2408, %v2410
    %v2417 = vsel %vm1948, %v2410, %v2405
    %v2418 = vsel %vm1964, %v2407, 0.0
    %v2419 = vsel %vm1965, %v2409, 0.0
    %v2420 = vsel %vm1964, %v2411, 0.0
    %v2421 = vsel %vm1965, %v2417, 0.0
    %s2422 = scalar_lea.vmem [#allocation17], 32
    %v2423 = vld [vmem:[%s2422] sm:$0xff]
    %v2424 = vld [vmem:[%s2422 + $0x8] sm:$0xff]
    %v2426 = vsel %vm833, %v2418, 0
    %v2429 = vsel %vm833, %v2419, 0
    %v2432 = vsel %vm833, %v2420, 0
    %v2435 = vsel %vm833, %v2421, 0
    %2437 = vmatprep.subr.mxu0 0.0
    %2438 = vmatpush1.msra.mxu0 %v2423
    %2439 = vmatprep.subr.mxu0 0.0
    %2440 = vmatpush1.msra.mxu0 %v2424
    %2441 = vmatprep.subr.mxu0 0.0
    %2442 = vmatpush1.msra.mxu0 0.0
    %2443 = vmatprep.subr.mxu0 0.0
    %2444 = vmatpush1.msra.mxu0 0.0
    %2445 = vmatprep.subr.mxu0 0.0
    %2446 = vmatpush1.msra.mxu0 0.0
    %2447 = vmatprep.subr.mxu0 0.0
    %2448 = vmatpush1.msra.mxu0 0.0
    %2449 = vmatprep.subr.mxu0 0.0
    %2450 = vmatpush1.msra.mxu0 0.0
    %2451 = vmatprep.subr.mxu0 0.0
    %2452 = vmatpush1.msra.mxu0 0.0
    %2453 = vmatprep.subr.mxu0 0.0
    %2454 = vmatpush1.msra.mxu0 0.0
    %2455 = vmatprep.subr.mxu0 0.0
    %2456 = vmatpush1.msra.mxu0 0.0
    %2457 = vmatprep.subr.mxu0 0.0
    %2458 = vmatpush1.msra.mxu0 0.0
    %2459 = vmatprep.subr.mxu0 0.0
    %2460 = vmatpush1.msra.mxu0 0.0
    %2461 = vmatprep.subr.mxu0 0.0
    %2462 = vmatpush1.msra.mxu0 0.0
    %2463 = vmatprep.subr.mxu0 0.0
    %2464 = vmatpush1.msra.mxu0 0.0
    %2465 = vmatprep.subr.mxu0 0.0
    %2466 = vmatpush1.msra.mxu0 0.0
    %2467 = vmatprep.subr.mxu0 0.0
    %2468 = vmatpush1.msra.mxu0 0.0
    %2469 = vmatprep.subr.mxu0 0.0
    %2470 = vmatpush1.msra.mxu0 0.0
    %2471 = vmatprep.subr.mxu0 0.0
    %2472 = vmatpush1.msra.mxu0 0.0
    %2473 = vmatprep.subr.mxu0 0.0
    %2474 = vmatpush1.msra.mxu0 0.0
    %2475 = vmatprep.subr.mxu0 0.0
    %2476 = vmatpush1.msra.mxu0 0.0
    %2477 = vmatprep.subr.mxu0 0.0
    %2478 = vmatpush1.msra.mxu0 0.0
    %2479 = vmatprep.subr.mxu0 0.0
    %2480 = vmatpush1.msra.mxu0 0.0
    %2481 = vmatprep.subr.mxu0 0.0
    %2482 = vmatpush1.msra.mxu0 0.0
    %2483 = vmatprep.subr.mxu0 0.0
    %2484 = vmatpush1.msra.mxu0 0.0
    %2485 = vmatprep.subr.mxu0 0.0
    %2486 = vmatpush1.msra.mxu0 0.0
    %2487 = vmatprep.subr.mxu0 0.0
    %2488 = vmatpush1.msra.mxu0 0.0
    %2489 = vmatprep.subr.mxu0 0.0
    %2490 = vmatpush1.msra.mxu0 0.0
    %2491 = vmatprep.subr.mxu0 0.0
    %2492 = vmatpush1.msra.mxu0 0.0
    %2493 = vmatprep.subr.mxu0 0.0
    %2494 = vmatpush1.msra.mxu0 0.0
    %2495 = vmatprep.subr.mxu0 0.0
    %2496 = vmatpush1.msra.mxu0 0.0
    %2497 = vmatprep.subr.mxu0 0.0
    %2498 = vmatpush1.msra.mxu0 0.0
    %2499 = vmatprep.subr.mxu0 0.0
    %2500 = vmatpush1.msra.mxu0 0.0
    %2501 = vmatprep.mubr.f32.mxu0 0.0
    %2502 = vmatmul.mubr.f32.gmra.mrb[0].mxu0 %v2426
    %v2503 = vpop.f32.mrb[0].mxu0
    %v2504 = vadd.f32 0.0, %v2503
    %v2505 = vpop.f32.mrb[0].mxu0
    %2506 = vmatprep.mubr.f32.mxu0 0.0
    %2507 = vmatmul.mubr.f32.gmra.mrb[0].mxu0 %v2429
    %v2508 = vpop.f32.mrb[0].mxu0
    %v2509 = vadd.f32 0.0, %v2508
    %v2510 = vpop.f32.mrb[0].mxu0
    %2511 = vmatprep.mubr.f32.mxu0 0.0
    %2512 = vmatmul.mubr.f32.gmra.mrb[0].mxu0 %v2432
    %v2513 = vpop.f32.mrb[0].mxu0
    %v2514 = vadd.f32 0.0, %v2513
    %v2515 = vpop.f32.mrb[0].mxu0
    %2516 = vmatprep.mubr.f32.mxu0 0.0
    %2517 = vmatmul.mubr.f32.gmra.mrb[0].mxu0 %v2435
    %v2518 = vpop.f32.mrb[0].mxu0
    %v2519 = vadd.f32 0.0, %v2518
    %v2520 = vpop.f32.mrb[0].mxu0
    %2521 = vdwg.mxu0
    %v2522 = vadd.f32 %v2387, %v2504
    %v2523 = vadd.f32 %v2392, %v2509
    %v2524 = vadd.f32 %v2397, %v2514
    %v2525 = vadd.f32 %v2402, %v2519
    %v2526 = vld [vmem:[#allocation19] sm:$0x1]
    %v2528 = vlaneseq
    %v2529 = vshrl.u32 %v2528, 7
    %v2530 = vsub.s32 0, %v2529
    %v2531 = vrot.slane %v2526, %v2530
    %v2533 = vadd.f32 %v2522, %v2531
    %v2534 = vadd.f32 %v2523, %v2531
    %v2535 = vadd.f32 %v2524, %v2531
    %v2536 = vadd.f32 %v2525, %v2531
    %v2537 = vmul.f32 %v2533, 0.5
    %v2538 = vmul.f32 %v2534, 0.5
    %v2539 = vmul.f32 %v2535, 0.5
    %v2540 = vmul.f32 %v2536, 0.5
    %v2541 = vmul.f32 %v2533, 0.70710677
    %v2542 = vmul.f32 %v2534, 0.70710677
    %v2543 = vmul.f32 %v2535, 0.70710677
    %v2544 = vmul.f32 %v2536, 0.70710677
    %v2545 = vand.u32 2147483647, %v2541
    %v2546 = vand.u32 2147483647, %v2542
    %v2547 = vand.u32 2147483647, %v2543
    %v2548 = vand.u32 2147483647, %v2544
    %v2549 = vmul.f32 %v2545, 0.3275911
    %v2550 = vmul.f32 %v2546, 0.3275911
    %v2551 = vmul.f32 %v2547, 0.3275911
    %v2552 = vmul.f32 %v2548, 0.3275911
    %v2553 = vadd.f32 %v2549, 1.0
    %v2554 = vadd.f32 %v2550, 1.0
    %v2555 = vadd.f32 %v2551, 1.0
    %v2556 = vadd.f32 %v2552, 1.0
    %v2557 = vrcp.pop %v2553
    %v2558 = vrcp.pop %v2554
    %v2559 = vrcp.pop %v2555
    %v2560 = vrcp.pop %v2556
    %v2561 = vmul.f32 %v2557, 1.0614054
    %v2562 = vmul.f32 %v2558, 1.0614054
    %v2563 = vmul.f32 %v2559, 1.0614054
    %v2564 = vmul.f32 %v2560, 1.0614054
    %v2565 = vadd.f32 %v2561, -1.4531521
    %v2566 = vadd.f32 %v2562, -1.4531521
    %v2567 = vadd.f32 %v2563, -1.4531521
    %v2568 = vadd.f32 %v2564, -1.4531521
    %v2569 = vmul.f32 %v2557, %v2565
    %v2570 = vmul.f32 %v2558, %v2566
    %v2571 = vmul.f32 %v2559, %v2567
    %v2572 = vmul.f32 %v2560, %v2568
    %v2573 = vadd.f32 %v2569, 1.4214138
    %v2574 = vadd.f32 %v2570, 1.4214138
    %v2575 = vadd.f32 %v2571, 1.4214138
    %v2576 = vadd.f32 %v2572, 1.4214138
    %v2577 = vmul.f32 %v2557, %v2573
    %v2578 = vmul.f32 %v2558, %v2574
    %v2579 = vmul.f32 %v2559, %v2575
    %v2580 = vmul.f32 %v2560, %v2576
    %v2581 = vadd.f32 %v2577, -0.28449672
    %v2582 = vadd.f32 %v2578, -0.28449672
    %v2583 = vadd.f32 %v2579, -0.28449672
    %v2584 = vadd.f32 %v2580, -0.28449672
    %v2585 = vmul.f32 %v2557, %v2581
    %v2586 = vmul.f32 %v2558, %v2582
    %v2587 = vmul.f32 %v2559, %v2583
    %v2588 = vmul.f32 %v2560, %v2584
    %v2589 = vadd.f32 %v2585, 0.2548296
    %v2590 = vadd.f32 %v2586, 0.2548296
    %v2591 = vadd.f32 %v2587, 0.2548296
    %v2592 = vadd.f32 %v2588, 0.2548296
    %v2593 = vmul.f32 %v2557, %v2589
    %v2594 = vmul.f32 %v2558, %v2590
    %v2595 = vmul.f32 %v2559, %v2591
    %v2596 = vmul.f32 %v2560, %v2592
    %v2597 = vmul.f32 %v2545, %v2545
    %v2598 = vmul.f32 %v2546, %v2546
    %v2599 = vmul.f32 %v2547, %v2547
    %v2600 = vmul.f32 %v2548, %v2548
    %v2601 = vsub.f32 0.0, %v2597
    %v2602 = vsub.f32 0.0, %v2598
    %v2603 = vsub.f32 0.0, %v2599
    %v2604 = vsub.f32 0.0, %v2600
    %v2605 = vmul.f32 %v2601, 1.442695
    %v2606 = vpow.pop %v2605
    %v2607 = vmul.f32 %v2602, 1.442695
    %v2608 = vpow.pop %v2607
    %v2609 = vmul.f32 %v2603, 1.442695
    %v2610 = vpow.pop %v2609
    %v2611 = vmul.f32 %v2604, 1.442695
    %v2612 = vpow.pop %v2611
    %v2613 = vmul.f32 %v2593, %v2606
    %v2614 = vmul.f32 %v2594, %v2608
    %v2615 = vmul.f32 %v2595, %v2610
    %v2616 = vmul.f32 %v2596, %v2612
    %v2617 = vsub.f32 1.0, %v2613
    %v2618 = vsub.f32 1.0, %v2614
    %v2619 = vsub.f32 1.0, %v2615
    %v2620 = vsub.f32 1.0, %v2616
    %vm2621 = vcmp.lt.f32.partialorder %v2541, 0.0
    %vm2622 = vcmp.lt.f32.partialorder %v2542, 0.0
    %vm2623 = vcmp.lt.f32.partialorder %v2543, 0.0
    %vm2624 = vcmp.lt.f32.partialorder %v2544, 0.0
    %v2625 = vsub.f32 0.0, %v2617
    %v2626 = vsub.f32 0.0, %v2618
    %v2627 = vsub.f32 0.0, %v2619
    %v2628 = vsub.f32 0.0, %v2620
    %v2629 = vsel %vm2621, %v2625, %v2617
    %v2630 = vsel %vm2622, %v2626, %v2618
    %v2631 = vsel %vm2623, %v2627, %v2619
    %v2632 = vsel %vm2624, %v2628, %v2620
    %v2633 = vadd.f32 %v2629, 1.0
    %v2634 = vadd.f32 %v2630, 1.0
    %v2635 = vadd.f32 %v2631, 1.0
    %v2636 = vadd.f32 %v2632, 1.0
    %v2637 = vmul.f32 %v2537, %v2633
    %v2638 = vmul.f32 %v2538, %v2634
    %v2639 = vmul.f32 %v2539, %v2635
    %v2640 = vmul.f32 %v2540, %v2636
    %v2641 = vadd.f32 %v2637, %v1719
    %v2642 = vadd.f32 %v2638, %v1720
    %v2643 = vadd.f32 %v2639, %v1721
    %v2644 = vadd.f32 %v2640, %v1722
    %s2645 = scalar_lea.vmem [#allocation20], 16
    %v2646 = vld [vmem:[%s2645] sm:$0xff]
    %v2647 = vld [vmem:[%s2645 + $0x8] sm:$0xff]
    %vm2648 = vcmp.ge.s32.totalorder %v688, 4
    %vm2649 = vcmp.ge.s32.totalorder %v689, 4
    %v2651 = vrot.slane %v2644, 4
    %v2656 = vrot.slane %v2641, 4
    %v2657 = vrot.slane %v2642, 4
    %v2658 = vsel %vm711, %v2656, %v2657
    %v2659 = vrot.slane %v2643, 4
    %v2660 = vsel %vm711, %v2657, %v2659
    %v2661 = vsel %vm711, %v2659, %v2651
    %v2666 = vsel %vm711, %v2651, %v2656
    %v2667 = vsel %vm2648, 1, 0
    %v2668 = vsel %vm2649, 1, 0
    %vm2669 = vcmp.eq.s32.totalorder %v2667, 1
    %vm2670 = vcmp.eq.s32.totalorder %v2668, 1
    %v2671 = vsel %vm2669, %v2666, 0.0
    %v2672 = vsel %vm2670, %v2658, 0.0
    %v2673 = vsel %vm2669, %v2660, 0.0
    %v2674 = vsel %vm2670, %v2661, 0.0
    %v2675 = vld [vmem:[#allocation20] sm:$0xff]
    %v2676 = vld [vmem:[#allocation20 + $0x8] sm:$0xff]
    %v2678 = vsel %vm833, %v2671, 0
    %v2681 = vsel %vm833, %v2672, 0
    %v2684 = vsel %vm833, %v2673, 0
    %v2687 = vsel %vm833, %v2674, 0
    %2689 = vmatprep.subr.mxu0 0.0
    %2690 = vmatpush1.msra.mxu0 %v2675
    %2691 = vmatprep.subr.mxu0 0.0
    %2692 = vmatpush1.msra.mxu0 %v2676
    %2693 = vmatprep.subr.mxu0 0.0
    %2694 = vmatpush1.msra.mxu0 0.0
    %2695 = vmatprep.subr.mxu0 0.0
    %2696 = vmatpush1.msra.mxu0 0.0
    %2697 = vmatprep.subr.mxu0 0.0
    %2698 = vmatpush1.msra.mxu0 0.0
    %2699 = vmatprep.subr.mxu0 0.0
    %2700 = vmatpush1.msra.mxu0 0.0
    %2701 = vmatprep.subr.mxu0 0.0
    %2702 = vmatpush1.msra.mxu0 0.0
    %2703 = vmatprep.subr.mxu0 0.0
    %2704 = vmatpush1.msra.mxu0 0.0
    %2705 = vmatprep.subr.mxu0 0.0
    %2706 = vmatpush1.msra.mxu0 0.0
    %2707 = vmatprep.subr.mxu0 0.0
    %2708 = vmatpush1.msra.mxu0 0.0
    %2709 = vmatprep.subr.mxu0 0.0
    %2710 = vmatpush1.msra.mxu0 0.0
    %2711 = vmatprep.subr.mxu0 0.0
    %2712 = vmatpush1.msra.mxu0 0.0
    %2713 = vmatprep.subr.mxu0 0.0
    %2714 = vmatpush1.msra.mxu0 0.0
    %2715 = vmatprep.subr.mxu0 0.0
    %2716 = vmatpush1.msra.mxu0 0.0
    %2717 = vmatprep.subr.mxu0 0.0
    %2718 = vmatpush1.msra.mxu0 0.0
    %2719 = vmatprep.subr.mxu0 0.0
    %2720 = vmatpush1.msra.mxu0 0.0
    %2721 = vmatprep.subr.mxu0 0.0
    %2722 = vmatpush1.msra.mxu0 0.0
    %2723 = vmatprep.subr.mxu0 0.0
    %2724 = vmatpush1.msra.mxu0 0.0
    %2725 = vmatprep.subr.mxu0 0.0
    %2726 = vmatpush1.msra.mxu0 0.0
    %2727 = vmatprep.subr.mxu0 0.0
    %2728 = vmatpush1.msra.mxu0 0.0
    %2729 = vmatprep.subr.mxu0 0.0
    %2730 = vmatpush1.msra.mxu0 0.0
    %2731 = vmatprep.subr.mxu0 0.0
    %2732 = vmatpush1.msra.mxu0 0.0
    %2733 = vmatprep.subr.mxu0 0.0
    %2734 = vmatpush1.msra.mxu0 0.0
    %2735 = vmatprep.subr.mxu0 0.0
    %2736 = vmatpush1.msra.mxu0 0.0
    %2737 = vmatprep.subr.mxu0 0.0
    %2738 = vmatpush1.msra.mxu0 0.0
    %2739 = vmatprep.subr.mxu0 0.0
    %2740 = vmatpush1.msra.mxu0 0.0
    %2741 = vmatprep.subr.mxu0 0.0
    %2742 = vmatpush1.msra.mxu0 0.0
    %2743 = vmatprep.subr.mxu0 0.0
    %2744 = vmatpush1.msra.mxu0 0.0
    %2745 = vmatprep.subr.mxu0 0.0
    %2746 = vmatpush1.msra.mxu0 0.0
    %2747 = vmatprep.subr.mxu0 0.0
    %2748 = vmatpush1.msra.mxu0 0.0
    %2749 = vmatprep.subr.mxu0 0.0
    %2750 = vmatpush1.msra.mxu0 0.0
    %2751 = vmatprep.subr.mxu0 0.0
    %2752 = vmatpush1.msra.mxu0 0.0
    %2753 = vmatprep.mubr.f32.mxu0 0.0
    %2754 = vmatmul.mubr.f32.gmra.mrb[0].mxu0 %v2678
    %v2755 = vpop.f32.mrb[0].mxu0
    %v2756 = vadd.f32 0.0, %v2755
    %v2757 = vpop.f32.mrb[0].mxu0
    %2758 = vmatprep.mubr.f32.mxu0 0.0
    %2759 = vmatmul.mubr.f32.gmra.mrb[0].mxu0 %v2681
    %v2760 = vpop.f32.mrb[0].mxu0
    %v2761 = vadd.f32 0.0, %v2760
    %v2762 = vpop.f32.mrb[0].mxu0
    %2763 = vmatprep.mubr.f32.mxu0 0.0
    %2764 = vmatmul.mubr.f32.gmra.mrb[0].mxu0 %v2684
    %v2765 = vpop.f32.mrb[0].mxu0
    %v2766 = vadd.f32 0.0, %v2765
    %v2767 = vpop.f32.mrb[0].mxu0
    %2768 = vmatprep.mubr.f32.mxu0 0.0
    %2769 = vmatmul.mubr.f32.gmra.mrb[0].mxu0 %v2687
    %v2770 = vpop.f32.mrb[0].mxu0
    %v2771 = vadd.f32 0.0, %v2770
    %v2772 = vpop.f32.mrb[0].mxu0
    %2773 = vdwg.mxu0
    %v2774 = vsel %vm833, %v2641, 0
    %v2776 = vsel %vm833, %v2642, 0
    %v2778 = vsel %vm833, %v2643, 0
    %v2780 = vsel %vm833, %v2644, 0
    %2782 = vmatprep.subr.mxu0 0.0
    %2783 = vmatpush1.msra.mxu0 %v2646
    %2784 = vmatprep.subr.mxu0 0.0
    %2785 = vmatpush1.msra.mxu0 %v2647
    %2786 = vmatprep.subr.mxu0 0.0
    %2787 = vmatpush1.msra.mxu0 0.0
    %2788 = vmatprep.subr.mxu0 0.0
    %2789 = vmatpush1.msra.mxu0 0.0
    %2790 = vmatprep.subr.mxu0 0.0
    %2791 = vmatpush1.msra.mxu0 0.0
    %2792 = vmatprep.subr.mxu0 0.0
    %2793 = vmatpush1.msra.mxu0 0.0
    %2794 = vmatprep.subr.mxu0 0.0
    %2795 = vmatpush1.msra.mxu0 0.0
    %2796 = vmatprep.subr.mxu0 0.0
    %2797 = vmatpush1.msra.mxu0 0.0
    %2798 = vmatprep.subr.mxu0 0.0
    %2799 = vmatpush1.msra.mxu0 0.0
    %2800 = vmatprep.subr.mxu0 0.0
    %2801 = vmatpush1.msra.mxu0 0.0
    %2802 = vmatprep.subr.mxu0 0.0
    %2803 = vmatpush1.msra.mxu0 0.0
    %2804 = vmatprep.subr.mxu0 0.0
    %2805 = vmatpush1.msra.mxu0 0.0
    %2806 = vmatprep.subr.mxu0 0.0
    %2807 = vmatpush1.msra.mxu0 0.0
    %2808 = vmatprep.subr.mxu0 0.0
    %2809 = vmatpush1.msra.mxu0 0.0
    %2810 = vmatprep.subr.mxu0 0.0
    %2811 = vmatpush1.msra.mxu0 0.0
    %2812 = vmatprep.subr.mxu0 0.0
    %2813 = vmatpush1.msra.mxu0 0.0
    %2814 = vmatprep.subr.mxu0 0.0
    %2815 = vmatpush1.msra.mxu0 0.0
    %2816 = vmatprep.subr.mxu0 0.0
    %2817 = vmatpush1.msra.mxu0 0.0
    %2818 = vmatprep.subr.mxu0 0.0
    %2819 = vmatpush1.msra.mxu0 0.0
    %2820 = vmatprep.subr.mxu0 0.0
    %2821 = vmatpush1.msra.mxu0 0.0
    %2822 = vmatprep.subr.mxu0 0.0
    %2823 = vmatpush1.msra.mxu0 0.0
    %2824 = vmatprep.subr.mxu0 0.0
    %2825 = vmatpush1.msra.mxu0 0.0
    %2826 = vmatprep.subr.mxu0 0.0
    %2827 = vmatpush1.msra.mxu0 0.0
    %2828 = vmatprep.subr.mxu0 0.0
    %2829 = vmatpush1.msra.mxu0 0.0
    %2830 = vmatprep.subr.mxu0 0.0
    %2831 = vmatpush1.msra.mxu0 0.0
    %2832 = vmatprep.subr.mxu0 0.0
    %2833 = vmatpush1.msra.mxu0 0.0
    %2834 = vmatprep.subr.mxu0 0.0
    %2835 = vmatpush1.msra.mxu0 0.0
    %2836 = vmatprep.subr.mxu0 0.0
    %2837 = vmatpush1.msra.mxu0 0.0
    %2838 = vmatprep.subr.mxu0 0.0
    %2839 = vmatpush1.msra.mxu0 0.0
    %2840 = vmatprep.subr.mxu0 0.0
    %2841 = vmatpush1.msra.mxu0 0.0
    %2842 = vmatprep.subr.mxu0 0.0
    %2843 = vmatpush1.msra.mxu0 0.0
    %2844 = vmatprep.subr.mxu0 0.0
    %2845 = vmatpush1.msra.mxu0 0.0
    %2846 = vmatprep.mubr.f32.mxu0 0.0
    %2847 = vmatmul.mubr.f32.gmra.mrb[0].mxu0 %v2774
    %v2848 = vpop.f32.mrb[0].mxu0
    %v2849 = vadd.f32 %v2756, %v2848
    %v2850 = vpop.f32.mrb[0].mxu0
    %2851 = vmatprep.mubr.f32.mxu0 0.0
    %2852 = vmatmul.mubr.f32.gmra.mrb[0].mxu0 %v2776
    %v2853 = vpop.f32.mrb[0].mxu0
    %v2854 = vadd.f32 %v2761, %v2853
    %v2855 = vpop.f32.mrb[0].mxu0
    %2856 = vmatprep.mubr.f32.mxu0 0.0
    %2857 = vmatmul.mubr.f32.gmra.mrb[0].mxu0 %v2778
    %v2858 = vpop.f32.mrb[0].mxu0
    %v2859 = vadd.f32 %v2766, %v2858
    %v2860 = vpop.f32.mrb[0].mxu0
    %2861 = vmatprep.mubr.f32.mxu0 0.0
    %2862 = vmatmul.mubr.f32.gmra.mrb[0].mxu0 %v2780
    %v2863 = vpop.f32.mrb[0].mxu0
    %v2864 = vadd.f32 %v2771, %v2863
    %v2865 = vpop.f32.mrb[0].mxu0
    %2866 = vdwg.mxu0
    %vm2867 = vcmp.lt.s32.totalorder %v688, 12
    %vm2868 = vcmp.lt.s32.totalorder %v689, 12
    %v2869 = vsel %vm2867, 1, 0
    %v2870 = vsel %vm2868, 1, 0
    %vm2871 = vcmp.eq.s32.totalorder %v2869, 1
    %vm2872 = vcmp.eq.s32.totalorder %v2870, 1
    %v2873 = vsel %vm2871, %v2658, 0.0
    %v2874 = vsel %vm2872, %v2660, 0.0
    %v2875 = vsel %vm2871, %v2661, 0.0
    %v2876 = vsel %vm2872, %v2666, 0.0
    %s2877 = scalar_lea.vmem [#allocation20], 32
    %v2878 = vld [vmem:[%s2877] sm:$0xff]
    %v2879 = vld [vmem:[%s2877 + $0x8] sm:$0xff]
    %v2881 = vsel %vm833, %v2873, 0
    %v2884 = vsel %vm833, %v2874, 0
    %v2887 = vsel %vm833, %v2875, 0
    %v2890 = vsel %vm833, %v2876, 0
    %2892 = vmatprep.subr.mxu0 0.0
    %2893 = vmatpush1.msra.mxu0 %v2878
    %2894 = vmatprep.subr.mxu0 0.0
    %2895 = vmatpush1.msra.mxu0 %v2879
    %2896 = vmatprep.subr.mxu0 0.0
    %2897 = vmatpush1.msra.mxu0 0.0
    %2898 = vmatprep.subr.mxu0 0.0
    %2899 = vmatpush1.msra.mxu0 0.0
    %2900 = vmatprep.subr.mxu0 0.0
    %2901 = vmatpush1.msra.mxu0 0.0
    %2902 = vmatprep.subr.mxu0 0.0
    %2903 = vmatpush1.msra.mxu0 0.0
    %2904 = vmatprep.subr.mxu0 0.0
    %2905 = vmatpush1.msra.mxu0 0.0
    %2906 = vmatprep.subr.mxu0 0.0
    %2907 = vmatpush1.msra.mxu0 0.0
    %2908 = vmatprep.subr.mxu0 0.0
    %2909 = vmatpush1.msra.mxu0 0.0
    %2910 = vmatprep.subr.mxu0 0.0
    %2911 = vmatpush1.msra.mxu0 0.0
    %2912 = vmatprep.subr.mxu0 0.0
    %2913 = vmatpush1.msra.mxu0 0.0
    %2914 = vmatprep.subr.mxu0 0.0
    %2915 = vmatpush1.msra.mxu0 0.0
    %2916 = vmatprep.subr.mxu0 0.0
    %2917 = vmatpush1.msra.mxu0 0.0
    %2918 = vmatprep.subr.mxu0 0.0
    %2919 = vmatpush1.msra.mxu0 0.0
    %2920 = vmatprep.subr.mxu0 0.0
    %2921 = vmatpush1.msra.mxu0 0.0
    %2922 = vmatprep.subr.mxu0 0.0
    %2923 = vmatpush1.msra.mxu0 0.0
    %2924 = vmatprep.subr.mxu0 0.0
    %2925 = vmatpush1.msra.mxu0 0.0
    %2926 = vmatprep.subr.mxu0 0.0
    %2927 = vmatpush1.msra.mxu0 0.0
    %2928 = vmatprep.subr.mxu0 0.0
    %2929 = vmatpush1.msra.mxu0 0.0
    %2930 = vmatprep.subr.mxu0 0.0
    %2931 = vmatpush1.msra.mxu0 0.0
    %2932 = vmatprep.subr.mxu0 0.0
    %2933 = vmatpush1.msra.mxu0 0.0
    %2934 = vmatprep.subr.mxu0 0.0
    %2935 = vmatpush1.msra.mxu0 0.0
    %2936 = vmatprep.subr.mxu0 0.0
    %2937 = vmatpush1.msra.mxu0 0.0
    %2938 = vmatprep.subr.mxu0 0.0
    %2939 = vmatpush1.msra.mxu0 0.0
    %2940 = vmatprep.subr.mxu0 0.0
    %2941 = vmatpush1.msra.mxu0 0.0
    %2942 = vmatprep.subr.mxu0 0.0
    %2943 = vmatpush1.msra.mxu0 0.0
    %2944 = vmatprep.subr.mxu0 0.0
    %2945 = vmatpush1.msra.mxu0 0.0
    %2946 = vmatprep.subr.mxu0 0.0
    %2947 = vmatpush1.msra.mxu0 0.0
    %2948 = vmatprep.subr.mxu0 0.0
    %2949 = vmatpush1.msra.mxu0 0.0
    %2950 = vmatprep.subr.mxu0 0.0
    %2951 = vmatpush1.msra.mxu0 0.0
    %2952 = vmatprep.subr.mxu0 0.0
    %2953 = vmatpush1.msra.mxu0 0.0
    %2954 = vmatprep.subr.mxu0 0.0
    %2955 = vmatpush1.msra.mxu0 0.0
    %2956 = vmatprep.mubr.f32.mxu0 0.0
    %2957 = vmatmul.mubr.f32.gmra.mrb[0].mxu0 %v2881
    %v2958 = vpop.f32.mrb[0].mxu0
    %v2959 = vadd.f32 0.0, %v2958
    %v2960 = vpop.f32.mrb[0].mxu0
    %2961 = vmatprep.mubr.f32.mxu0 0.0
    %2962 = vmatmul.mubr.f32.gmra.mrb[0].mxu0 %v2884
    %v2963 = vpop.f32.mrb[0].mxu0
    %v2964 = vadd.f32 0.0, %v2963
    %v2965 = vpop.f32.mrb[0].mxu0
    %2966 = vmatprep.mubr.f32.mxu0 0.0
    %2967 = vmatmul.mubr.f32.gmra.mrb[0].mxu0 %v2887
    %v2968 = vpop.f32.mrb[0].mxu0
    %v2969 = vadd.f32 0.0, %v2968
    %v2970 = vpop.f32.mrb[0].mxu0
    %2971 = vmatprep.mubr.f32.mxu0 0.0
    %2972 = vmatmul.mubr.f32.gmra.mrb[0].mxu0 %v2890
    %v2973 = vpop.f32.mrb[0].mxu0
    %v2974 = vadd.f32 0.0, %v2973
    %v2975 = vpop.f32.mrb[0].mxu0
    %2976 = vdwg.mxu0
    %v2977 = vadd.f32 %v2849, %v2959
    %v2978 = vadd.f32 %v2854, %v2964
    %v2979 = vadd.f32 %v2859, %v2969
    %v2980 = vadd.f32 %v2864, %v2974
    %v2981 = vld [vmem:[#allocation22] sm:$0x1]
    %v2983 = vlaneseq
    %v2984 = vshrl.u32 %v2983, 7
    %v2985 = vsub.s32 0, %v2984
    %v2986 = vrot.slane %v2981, %v2985
    %v2988 = vadd.f32 %v2977, %v2986
    %v2989 = vadd.f32 %v2978, %v2986
    %v2990 = vadd.f32 %v2979, %v2986
    %v2991 = vadd.f32 %v2980, %v2986
    %v2992 = vmul.f32 %v2988, 0.5
    %v2993 = vmul.f32 %v2989, 0.5
    %v2994 = vmul.f32 %v2990, 0.5
    %v2995 = vmul.f32 %v2991, 0.5
    %v2996 = vmul.f32 %v2988, 0.70710677
    %v2997 = vmul.f32 %v2989, 0.70710677
    %v2998 = vmul.f32 %v2990, 0.70710677
    %v2999 = vmul.f32 %v2991, 0.70710677
    %v3000 = vand.u32 2147483647, %v2996
    %v3001 = vand.u32 2147483647, %v2997
    %v3002 = vand.u32 2147483647, %v2998
    %v3003 = vand.u32 2147483647, %v2999
    %v3004 = vmul.f32 %v3000, 0.3275911
    %v3005 = vmul.f32 %v3001, 0.3275911
    %v3006 = vmul.f32 %v3002, 0.3275911
    %v3007 = vmul.f32 %v3003, 0.3275911
    %v3008 = vadd.f32 %v3004, 1.0
    %v3009 = vadd.f32 %v3005, 1.0
    %v3010 = vadd.f32 %v3006, 1.0
    %v3011 = vadd.f32 %v3007, 1.0
    %v3012 = vrcp.pop %v3008
    %v3013 = vrcp.pop %v3009
    %v3014 = vrcp.pop %v3010
    %v3015 = vrcp.pop %v3011
    %v3016 = vmul.f32 %v3012, 1.0614054
    %v3017 = vmul.f32 %v3013, 1.0614054
    %v3018 = vmul.f32 %v3014, 1.0614054
    %v3019 = vmul.f32 %v3015, 1.0614054
    %v3020 = vadd.f32 %v3016, -1.4531521
    %v3021 = vadd.f32 %v3017, -1.4531521
    %v3022 = vadd.f32 %v3018, -1.4531521
    %v3023 = vadd.f32 %v3019, -1.4531521
    %v3024 = vmul.f32 %v3012, %v3020
    %v3025 = vmul.f32 %v3013, %v3021
    %v3026 = vmul.f32 %v3014, %v3022
    %v3027 = vmul.f32 %v3015, %v3023
    %v3028 = vadd.f32 %v3024, 1.4214138
    %v3029 = vadd.f32 %v3025, 1.4214138
    %v3030 = vadd.f32 %v3026, 1.4214138
    %v3031 = vadd.f32 %v3027, 1.4214138
    %v3032 = vmul.f32 %v3012, %v3028
    %v3033 = vmul.f32 %v3013, %v3029
    %v3034 = vmul.f32 %v3014, %v3030
    %v3035 = vmul.f32 %v3015, %v3031
    %v3036 = vadd.f32 %v3032, -0.28449672
    %v3037 = vadd.f32 %v3033, -0.28449672
    %v3038 = vadd.f32 %v3034, -0.28449672
    %v3039 = vadd.f32 %v3035, -0.28449672
    %v3040 = vmul.f32 %v3012, %v3036
    %v3041 = vmul.f32 %v3013, %v3037
    %v3042 = vmul.f32 %v3014, %v3038
    %v3043 = vmul.f32 %v3015, %v3039
    %v3044 = vadd.f32 %v3040, 0.2548296
    %v3045 = vadd.f32 %v3041, 0.2548296
    %v3046 = vadd.f32 %v3042, 0.2548296
    %v3047 = vadd.f32 %v3043, 0.2548296
    %v3048 = vmul.f32 %v3012, %v3044
    %v3049 = vmul.f32 %v3013, %v3045
    %v3050 = vmul.f32 %v3014, %v3046
    %v3051 = vmul.f32 %v3015, %v3047
    %v3052 = vmul.f32 %v3000, %v3000
    %v3053 = vmul.f32 %v3001, %v3001
    %v3054 = vmul.f32 %v3002, %v3002
    %v3055 = vmul.f32 %v3003, %v3003
    %v3056 = vsub.f32 0.0, %v3052
    %v3057 = vsub.f32 0.0, %v3053
    %v3058 = vsub.f32 0.0, %v3054
    %v3059 = vsub.f32 0.0, %v3055
    %v3060 = vmul.f32 %v3056, 1.442695
    %v3061 = vpow.pop %v3060
    %v3062 = vmul.f32 %v3057, 1.442695
    %v3063 = vpow.pop %v3062
    %v3064 = vmul.f32 %v3058, 1.442695
    %v3065 = vpow.pop %v3064
    %v3066 = vmul.f32 %v3059, 1.442695
    %v3067 = vpow.pop %v3066
    %v3068 = vmul.f32 %v3048, %v3061
    %v3069 = vmul.f32 %v3049, %v3063
    %v3070 = vmul.f32 %v3050, %v3065
    %v3071 = vmul.f32 %v3051, %v3067
    %v3072 = vsub.f32 1.0, %v3068
    %v3073 = vsub.f32 1.0, %v3069
    %v3074 = vsub.f32 1.0, %v3070
    %v3075 = vsub.f32 1.0, %v3071
    %vm3076 = vcmp.lt.f32.partialorder %v2996, 0.0
    %vm3077 = vcmp.lt.f32.partialorder %v2997, 0.0
    %vm3078 = vcmp.lt.f32.partialorder %v2998, 0.0
    %vm3079 = vcmp.lt.f32.partialorder %v2999, 0.0
    %v3080 = vsub.f32 0.0, %v3072
    %v3081 = vsub.f32 0.0, %v3073
    %v3082 = vsub.f32 0.0, %v3074
    %v3083 = vsub.f32 0.0, %v3075
    %v3084 = vsel %vm3076, %v3080, %v3072
    %v3085 = vsel %vm3077, %v3081, %v3073
    %v3086 = vsel %vm3078, %v3082, %v3074
    %v3087 = vsel %vm3079, %v3083, %v3075
    %v3088 = vadd.f32 %v3084, 1.0
    %v3089 = vadd.f32 %v3085, 1.0
    %v3090 = vadd.f32 %v3086, 1.0
    %v3091 = vadd.f32 %v3087, 1.0
    %v3092 = vmul.f32 %v2992, %v3088
    %v3093 = vmul.f32 %v2993, %v3089
    %v3094 = vmul.f32 %v2994, %v3090
    %v3095 = vmul.f32 %v2995, %v3091
    %s3096 = scalar_lea.vmem [#allocation23], 16
    %v3097 = vld [vmem:[%s3096] sm:$0xff]
    %v3098 = vld [vmem:[%s3096 + $0x8] sm:$0xff]
    %v3100 = vrot.slane %v3095, 4
    %v3105 = vrot.slane %v3092, 4
    %v3106 = vrot.slane %v3093, 4
    %v3107 = vsel %vm711, %v3105, %v3106
    %v3108 = vrot.slane %v3094, 4
    %v3109 = vsel %vm711, %v3106, %v3108
    %v3110 = vsel %vm711, %v3108, %v3100
    %v3115 = vsel %vm711, %v3100, %v3105
    %v3116 = vsel %vm2669, %v3115, 0.0
    %v3117 = vsel %vm2670, %v3107, 0.0
    %v3118 = vsel %vm2669, %v3109, 0.0
    %v3119 = vsel %vm2670, %v3110, 0.0
    %v3120 = vld [vmem:[#allocation23] sm:$0xff]
    %v3121 = vld [vmem:[#allocation23 + $0x8] sm:$0xff]
    %v3123 = vsel %vm833, %v3116, 0
    %v3126 = vsel %vm833, %v3117, 0
    %v3129 = vsel %vm833, %v3118, 0
    %v3132 = vsel %vm833, %v3119, 0
    %3134 = vmatprep.subr.mxu0 0.0
    %3135 = vmatpush1.msra.mxu0 %v3120
    %3136 = vmatprep.subr.mxu0 0.0
    %3137 = vmatpush1.msra.mxu0 %v3121
    %3138 = vmatprep.subr.mxu0 0.0
    %3139 = vmatpush1.msra.mxu0 0.0
    %3140 = vmatprep.subr.mxu0 0.0
    %3141 = vmatpush1.msra.mxu0 0.0
    %3142 = vmatprep.subr.mxu0 0.0
    %3143 = vmatpush1.msra.mxu0 0.0
    %3144 = vmatprep.subr.mxu0 0.0
    %3145 = vmatpush1.msra.mxu0 0.0
    %3146 = vmatprep.subr.mxu0 0.0
    %3147 = vmatpush1.msra.mxu0 0.0
    %3148 = vmatprep.subr.mxu0 0.0
    %3149 = vmatpush1.msra.mxu0 0.0
    %3150 = vmatprep.subr.mxu0 0.0
    %3151 = vmatpush1.msra.mxu0 0.0
    %3152 = vmatprep.subr.mxu0 0.0
    %3153 = vmatpush1.msra.mxu0 0.0
    %3154 = vmatprep.subr.mxu0 0.0
    %3155 = vmatpush1.msra.mxu0 0.0
    %3156 = vmatprep.subr.mxu0 0.0
    %3157 = vmatpush1.msra.mxu0 0.0
    %3158 = vmatprep.subr.mxu0 0.0
    %3159 = vmatpush1.msra.mxu0 0.0
    %3160 = vmatprep.subr.mxu0 0.0
    %3161 = vmatpush1.msra.mxu0 0.0
    %3162 = vmatprep.subr.mxu0 0.0
    %3163 = vmatpush1.msra.mxu0 0.0
    %3164 = vmatprep.subr.mxu0 0.0
    %3165 = vmatpush1.msra.mxu0 0.0
    %3166 = vmatprep.subr.mxu0 0.0
    %3167 = vmatpush1.msra.mxu0 0.0
    %3168 = vmatprep.subr.mxu0 0.0
    %3169 = vmatpush1.msra.mxu0 0.0
    %3170 = vmatprep.subr.mxu0 0.0
    %3171 = vmatpush1.msra.mxu0 0.0
    %3172 = vmatprep.subr.mxu0 0.0
    %3173 = vmatpush1.msra.mxu0 0.0
    %3174 = vmatprep.subr.mxu0 0.0
    %3175 = vmatpush1.msra.mxu0 0.0
    %3176 = vmatprep.subr.mxu0 0.0
    %3177 = vmatpush1.msra.mxu0 0.0
    %3178 = vmatprep.subr.mxu0 0.0
    %3179 = vmatpush1.msra.mxu0 0.0
    %3180 = vmatprep.subr.mxu0 0.0
    %3181 = vmatpush1.msra.mxu0 0.0
    %3182 = vmatprep.subr.mxu0 0.0
    %3183 = vmatpush1.msra.mxu0 0.0
    %3184 = vmatprep.subr.mxu0 0.0
    %3185 = vmatpush1.msra.mxu0 0.0
    %3186 = vmatprep.subr.mxu0 0.0
    %3187 = vmatpush1.msra.mxu0 0.0
    %3188 = vmatprep.subr.mxu0 0.0
    %3189 = vmatpush1.msra.mxu0 0.0
    %3190 = vmatprep.subr.mxu0 0.0
    %3191 = vmatpush1.msra.mxu0 0.0
    %3192 = vmatprep.subr.mxu0 0.0
    %3193 = vmatpush1.msra.mxu0 0.0
    %3194 = vmatprep.subr.mxu0 0.0
    %3195 = vmatpush1.msra.mxu0 0.0
    %3196 = vmatprep.subr.mxu0 0.0
    %3197 = vmatpush1.msra.mxu0 0.0
    %3198 = vmatprep.mubr.f32.mxu0 0.0
    %3199 = vmatmul.mubr.f32.gmra.mrb[0].mxu0 %v3123
    %v3200 = vpop.f32.mrb[0].mxu0
    %v3201 = vadd.f32 0.0, %v3200
    %v3202 = vpop.f32.mrb[0].mxu0
    %3203 = vmatprep.mubr.f32.mxu0 0.0
    %3204 = vmatmul.mubr.f32.gmra.mrb[0].mxu0 %v3126
    %v3205 = vpop.f32.mrb[0].mxu0
    %v3206 = vadd.f32 0.0, %v3205
    %v3207 = vpop.f32.mrb[0].mxu0
    %3208 = vmatprep.mubr.f32.mxu0 0.0
    %3209 = vmatmul.mubr.f32.gmra.mrb[0].mxu0 %v3129
    %v3210 = vpop.f32.mrb[0].mxu0
    %v3211 = vadd.f32 0.0, %v3210
    %v3212 = vpop.f32.mrb[0].mxu0
    %3213 = vmatprep.mubr.f32.mxu0 0.0
    %3214 = vmatmul.mubr.f32.gmra.mrb[0].mxu0 %v3132
    %v3215 = vpop.f32.mrb[0].mxu0
    %v3216 = vadd.f32 0.0, %v3215
    %v3217 = vpop.f32.mrb[0].mxu0
    %3218 = vdwg.mxu0
    %v3219 = vsel %vm833, %v3092, 0
    %v3221 = vsel %vm833, %v3093, 0
    %v3223 = vsel %vm833, %v3094, 0
    %v3225 = vsel %vm833, %v3095, 0
    %3227 = vmatprep.subr.mxu0 0.0
    %3228 = vmatpush1.msra.mxu0 %v3097
    %3229 = vmatprep.subr.mxu0 0.0
    %3230 = vmatpush1.msra.mxu0 %v3098
    %3231 = vmatprep.subr.mxu0 0.0
    %3232 = vmatpush1.msra.mxu0 0.0
    %3233 = vmatprep.subr.mxu0 0.0
    %3234 = vmatpush1.msra.mxu0 0.0
    %3235 = vmatprep.subr.mxu0 0.0
    %3236 = vmatpush1.msra.mxu0 0.0
    %3237 = vmatprep.subr.mxu0 0.0
    %3238 = vmatpush1.msra.mxu0 0.0
    %3239 = vmatprep.subr.mxu0 0.0
    %3240 = vmatpush1.msra.mxu0 0.0
    %3241 = vmatprep.subr.mxu0 0.0
    %3242 = vmatpush1.msra.mxu0 0.0
    %3243 = vmatprep.subr.mxu0 0.0
    %3244 = vmatpush1.msra.mxu0 0.0
    %3245 = vmatprep.subr.mxu0 0.0
    %3246 = vmatpush1.msra.mxu0 0.0
    %3247 = vmatprep.subr.mxu0 0.0
    %3248 = vmatpush1.msra.mxu0 0.0
    %3249 = vmatprep.subr.mxu0 0.0
    %3250 = vmatpush1.msra.mxu0 0.0
    %3251 = vmatprep.subr.mxu0 0.0
    %3252 = vmatpush1.msra.mxu0 0.0
    %3253 = vmatprep.subr.mxu0 0.0
    %3254 = vmatpush1.msra.mxu0 0.0
    %3255 = vmatprep.subr.mxu0 0.0
    %3256 = vmatpush1.msra.mxu0 0.0
    %3257 = vmatprep.subr.mxu0 0.0
    %3258 = vmatpush1.msra.mxu0 0.0
    %3259 = vmatprep.subr.mxu0 0.0
    %3260 = vmatpush1.msra.mxu0 0.0
    %3261 = vmatprep.subr.mxu0 0.0
    %3262 = vmatpush1.msra.mxu0 0.0
    %3263 = vmatprep.subr.mxu0 0.0
    %3264 = vmatpush1.msra.mxu0 0.0
    %3265 = vmatprep.subr.mxu0 0.0
    %3266 = vmatpush1.msra.mxu0 0.0
    %3267 = vmatprep.subr.mxu0 0.0
    %3268 = vmatpush1.msra.mxu0 0.0
    %3269 = vmatprep.subr.mxu0 0.0
    %3270 = vmatpush1.msra.mxu0 0.0
    %3271 = vmatprep.subr.mxu0 0.0
    %3272 = vmatpush1.msra.mxu0 0.0
    %3273 = vmatprep.subr.mxu0 0.0
    %3274 = vmatpush1.msra.mxu0 0.0
    %3275 = vmatprep.subr.mxu0 0.0
    %3276 = vmatpush1.msra.mxu0 0.0
    %3277 = vmatprep.subr.mxu0 0.0
    %3278 = vmatpush1.msra.mxu0 0.0
    %3279 = vmatprep.subr.mxu0 0.0
    %3280 = vmatpush1.msra.mxu0 0.0
    %3281 = vmatprep.subr.mxu0 0.0
    %3282 = vmatpush1.msra.mxu0 0.0
    %3283 = vmatprep.subr.mxu0 0.0
    %3284 = vmatpush1.msra.mxu0 0.0
    %3285 = vmatprep.subr.mxu0 0.0
    %3286 = vmatpush1.msra.mxu0 0.0
    %3287 = vmatprep.subr.mxu0 0.0
    %3288 = vmatpush1.msra.mxu0 0.0
    %3289 = vmatprep.subr.mxu0 0.0
    %3290 = vmatpush1.msra.mxu0 0.0
    %3291 = vmatprep.mubr.f32.mxu0 0.0
    %3292 = vmatmul.mubr.f32.gmra.mrb[0].mxu0 %v3219
    %v3293 = vpop.f32.mrb[0].mxu0
    %v3294 = vadd.f32 %v3201, %v3293
    %v3295 = vpop.f32.mrb[0].mxu0
    %3296 = vmatprep.mubr.f32.mxu0 0.0
    %3297 = vmatmul.mubr.f32.gmra.mrb[0].mxu0 %v3221
    %v3298 = vpop.f32.mrb[0].mxu0
    %v3299 = vadd.f32 %v3206, %v3298
    %v3300 = vpop.f32.mrb[0].mxu0
    %3301 = vmatprep.mubr.f32.mxu0 0.0
    %3302 = vmatmul.mubr.f32.gmra.mrb[0].mxu0 %v3223
    %v3303 = vpop.f32.mrb[0].mxu0
    %v3304 = vadd.f32 %v3211, %v3303
    %v3305 = vpop.f32.mrb[0].mxu0
    %3306 = vmatprep.mubr.f32.mxu0 0.0
    %3307 = vmatmul.mubr.f32.gmra.mrb[0].mxu0 %v3225
    %v3308 = vpop.f32.mrb[0].mxu0
    %v3309 = vadd.f32 %v3216, %v3308
    %v3310 = vpop.f32.mrb[0].mxu0
    %3311 = vdwg.mxu0
    %v3312 = vsel %vm2871, %v3107, 0.0
    %v3313 = vsel %vm2872, %v3109, 0.0
    %v3314 = vsel %vm2871, %v3110, 0.0
    %v3315 = vsel %vm2872, %v3115, 0.0
    %s3316 = scalar_lea.vmem [#allocation23], 32
    %v3317 = vld [vmem:[%s3316] sm:$0xff]
    %v3318 = vld [vmem:[%s3316 + $0x8] sm:$0xff]
    %v3320 = vsel %vm833, %v3312, 0
    %v3323 = vsel %vm833, %v3313, 0
    %v3326 = vsel %vm833, %v3314, 0
    %v3329 = vsel %vm833, %v3315, 0
    %3331 = vmatprep.subr.mxu0 0.0
    %3332 = vmatpush1.msra.mxu0 %v3317
    %3333 = vmatprep.subr.mxu0 0.0
    %3334 = vmatpush1.msra.mxu0 %v3318
    %3335 = vmatprep.subr.mxu0 0.0
    %3336 = vmatpush1.msra.mxu0 0.0
    %3337 = vmatprep.subr.mxu0 0.0
    %3338 = vmatpush1.msra.mxu0 0.0
    %3339 = vmatprep.subr.mxu0 0.0
    %3340 = vmatpush1.msra.mxu0 0.0
    %3341 = vmatprep.subr.mxu0 0.0
    %3342 = vmatpush1.msra.mxu0 0.0
    %3343 = vmatprep.subr.mxu0 0.0
    %3344 = vmatpush1.msra.mxu0 0.0
    %3345 = vmatprep.subr.mxu0 0.0
    %3346 = vmatpush1.msra.mxu0 0.0
    %3347 = vmatprep.subr.mxu0 0.0
    %3348 = vmatpush1.msra.mxu0 0.0
    %3349 = vmatprep.subr.mxu0 0.0
    %3350 = vmatpush1.msra.mxu0 0.0
    %3351 = vmatprep.subr.mxu0 0.0
    %3352 = vmatpush1.msra.mxu0 0.0
    %3353 = vmatprep.subr.mxu0 0.0
    %3354 = vmatpush1.msra.mxu0 0.0
    %3355 = vmatprep.subr.mxu0 0.0
    %3356 = vmatpush1.msra.mxu0 0.0
    %3357 = vmatprep.subr.mxu0 0.0
    %3358 = vmatpush1.msra.mxu0 0.0
    %3359 = vmatprep.subr.mxu0 0.0
    %3360 = vmatpush1.msra.mxu0 0.0
    %3361 = vmatprep.subr.mxu0 0.0
    %3362 = vmatpush1.msra.mxu0 0.0
    %3363 = vmatprep.subr.mxu0 0.0
    %3364 = vmatpush1.msra.mxu0 0.0
    %3365 = vmatprep.subr.mxu0 0.0
    %3366 = vmatpush1.msra.mxu0 0.0
    %3367 = vmatprep.subr.mxu0 0.0
    %3368 = vmatpush1.msra.mxu0 0.0
    %3369 = vmatprep.subr.mxu0 0.0
    %3370 = vmatpush1.msra.mxu0 0.0
    %3371 = vmatprep.subr.mxu0 0.0
    %3372 = vmatpush1.msra.mxu0 0.0
    %3373 = vmatprep.subr.mxu0 0.0
    %3374 = vmatpush1.msra.mxu0 0.0
    %3375 = vmatprep.subr.mxu0 0.0
    %3376 = vmatpush1.msra.mxu0 0.0
    %3377 = vmatprep.subr.mxu0 0.0
    %3378 = vmatpush1.msra.mxu0 0.0
    %3379 = vmatprep.subr.mxu0 0.0
    %3380 = vmatpush1.msra.mxu0 0.0
    %3381 = vmatprep.subr.mxu0 0.0
    %3382 = vmatpush1.msra.mxu0 0.0
    %3383 = vmatprep.subr.mxu0 0.0
    %3384 = vmatpush1.msra.mxu0 0.0
    %3385 = vmatprep.subr.mxu0 0.0
    %3386 = vmatpush1.msra.mxu0 0.0
    %3387 = vmatprep.subr.mxu0 0.0
    %3388 = vmatpush1.msra.mxu0 0.0
    %3389 = vmatprep.subr.mxu0 0.0
    %3390 = vmatpush1.msra.mxu0 0.0
    %3391 = vmatprep.subr.mxu0 0.0
    %3392 = vmatpush1.msra.mxu0 0.0
    %3393 = vmatprep.subr.mxu0 0.0
    %3394 = vmatpush1.msra.mxu0 0.0
    %3395 = vmatprep.mubr.f32.mxu0 0.0
    %3396 = vmatmul.mubr.f32.gmra.mrb[0].mxu0 %v3320
    %v3397 = vpop.f32.mrb[0].mxu0
    %v3398 = vadd.f32 0.0, %v3397
    %v3399 = vpop.f32.mrb[0].mxu0
    %3400 = vmatprep.mubr.f32.mxu0 0.0
    %3401 = vmatmul.mubr.f32.gmra.mrb[0].mxu0 %v3323
    %v3402 = vpop.f32.mrb[0].mxu0
    %v3403 = vadd.f32 0.0, %v3402
    %v3404 = vpop.f32.mrb[0].mxu0
    %3405 = vmatprep.mubr.f32.mxu0 0.0
    %3406 = vmatmul.mubr.f32.gmra.mrb[0].mxu0 %v3326
    %v3407 = vpop.f32.mrb[0].mxu0
    %v3408 = vadd.f32 0.0, %v3407
    %v3409 = vpop.f32.mrb[0].mxu0
    %3410 = vmatprep.mubr.f32.mxu0 0.0
    %3411 = vmatmul.mubr.f32.gmra.mrb[0].mxu0 %v3329
    %v3412 = vpop.f32.mrb[0].mxu0
    %v3413 = vadd.f32 0.0, %v3412
    %v3414 = vpop.f32.mrb[0].mxu0
    %3415 = vdwg.mxu0
    %v3416 = vadd.f32 %v3294, %v3398
    %v3417 = vadd.f32 %v3299, %v3403
    %v3418 = vadd.f32 %v3304, %v3408
    %v3419 = vadd.f32 %v3309, %v3413
    %v3420 = vld [vmem:[#allocation25] sm:$0x1]
    %v3422 = vlaneseq
    %v3423 = vshrl.u32 %v3422, 7
    %v3424 = vsub.s32 0, %v3423
    %v3425 = vrot.slane %v3420, %v3424
    %v3427 = vadd.f32 %v3416, %v3425
    %v3428 = vadd.f32 %v3417, %v3425
    %v3429 = vadd.f32 %v3418, %v3425
    %v3430 = vadd.f32 %v3419, %v3425
    %v3431 = vmul.f32 %v3427, 0.5
    %v3432 = vmul.f32 %v3428, 0.5
    %v3433 = vmul.f32 %v3429, 0.5
    %v3434 = vmul.f32 %v3430, 0.5
    %v3435 = vmul.f32 %v3427, 0.70710677
    %v3436 = vmul.f32 %v3428, 0.70710677
    %v3437 = vmul.f32 %v3429, 0.70710677
    %v3438 = vmul.f32 %v3430, 0.70710677
    %v3439 = vand.u32 2147483647, %v3435
    %v3440 = vand.u32 2147483647, %v3436
    %v3441 = vand.u32 2147483647, %v3437
    %v3442 = vand.u32 2147483647, %v3438
    %v3443 = vmul.f32 %v3439, 0.3275911
    %v3444 = vmul.f32 %v3440, 0.3275911
    %v3445 = vmul.f32 %v3441, 0.3275911
    %v3446 = vmul.f32 %v3442, 0.3275911
    %v3447 = vadd.f32 %v3443, 1.0
    %v3448 = vadd.f32 %v3444, 1.0
    %v3449 = vadd.f32 %v3445, 1.0
    %v3450 = vadd.f32 %v3446, 1.0
    %v3451 = vrcp.pop %v3447
    %v3452 = vrcp.pop %v3448
    %v3453 = vrcp.pop %v3449
    %v3454 = vrcp.pop %v3450
    %v3455 = vmul.f32 %v3451, 1.0614054
    %v3456 = vmul.f32 %v3452, 1.0614054
    %v3457 = vmul.f32 %v3453, 1.0614054
    %v3458 = vmul.f32 %v3454, 1.0614054
    %v3459 = vadd.f32 %v3455, -1.4531521
    %v3460 = vadd.f32 %v3456, -1.4531521
    %v3461 = vadd.f32 %v3457, -1.4531521
    %v3462 = vadd.f32 %v3458, -1.4531521
    %v3463 = vmul.f32 %v3451, %v3459
    %v3464 = vmul.f32 %v3452, %v3460
    %v3465 = vmul.f32 %v3453, %v3461
    %v3466 = vmul.f32 %v3454, %v3462
    %v3467 = vadd.f32 %v3463, 1.4214138
    %v3468 = vadd.f32 %v3464, 1.4214138
    %v3469 = vadd.f32 %v3465, 1.4214138
    %v3470 = vadd.f32 %v3466, 1.4214138
    %v3471 = vmul.f32 %v3451, %v3467
    %v3472 = vmul.f32 %v3452, %v3468
    %v3473 = vmul.f32 %v3453, %v3469
    %v3474 = vmul.f32 %v3454, %v3470
    %v3475 = vadd.f32 %v3471, -0.28449672
    %v3476 = vadd.f32 %v3472, -0.28449672
    %v3477 = vadd.f32 %v3473, -0.28449672
    %v3478 = vadd.f32 %v3474, -0.28449672
    %v3479 = vmul.f32 %v3451, %v3475
    %v3480 = vmul.f32 %v3452, %v3476
    %v3481 = vmul.f32 %v3453, %v3477
    %v3482 = vmul.f32 %v3454, %v3478
    %v3483 = vadd.f32 %v3479, 0.2548296
    %v3484 = vadd.f32 %v3480, 0.2548296
    %v3485 = vadd.f32 %v3481, 0.2548296
    %v3486 = vadd.f32 %v3482, 0.2548296
    %v3487 = vmul.f32 %v3451, %v3483
    %v3488 = vmul.f32 %v3452, %v3484
    %v3489 = vmul.f32 %v3453, %v3485
    %v3490 = vmul.f32 %v3454, %v3486
    %v3491 = vmul.f32 %v3439, %v3439
    %v3492 = vmul.f32 %v3440, %v3440
    %v3493 = vmul.f32 %v3441, %v3441
    %v3494 = vmul.f32 %v3442, %v3442
    %v3495 = vsub.f32 0.0, %v3491
    %v3496 = vsub.f32 0.0, %v3492
    %v3497 = vsub.f32 0.0, %v3493
    %v3498 = vsub.f32 0.0, %v3494
    %v3499 = vmul.f32 %v3495, 1.442695
    %v3500 = vpow.pop %v3499
    %v3501 = vmul.f32 %v3496, 1.442695
    %v3502 = vpow.pop %v3501
    %v3503 = vmul.f32 %v3497, 1.442695
    %v3504 = vpow.pop %v3503
    %v3505 = vmul.f32 %v3498, 1.442695
    %v3506 = vpow.pop %v3505
    %v3507 = vmul.f32 %v3487, %v3500
    %v3508 = vmul.f32 %v3488, %v3502
    %v3509 = vmul.f32 %v3489, %v3504
    %v3510 = vmul.f32 %v3490, %v3506
    %v3511 = vsub.f32 1.0, %v3507
    %v3512 = vsub.f32 1.0, %v3508
    %v3513 = vsub.f32 1.0, %v3509
    %v3514 = vsub.f32 1.0, %v3510
    %vm3515 = vcmp.lt.f32.partialorder %v3435, 0.0
    %vm3516 = vcmp.lt.f32.partialorder %v3436, 0.0
    %vm3517 = vcmp.lt.f32.partialorder %v3437, 0.0
    %vm3518 = vcmp.lt.f32.partialorder %v3438, 0.0
    %v3519 = vsub.f32 0.0, %v3511
    %v3520 = vsub.f32 0.0, %v3512
    %v3521 = vsub.f32 0.0, %v3513
    %v3522 = vsub.f32 0.0, %v3514
    %v3523 = vsel %vm3515, %v3519, %v3511
    %v3524 = vsel %vm3516, %v3520, %v3512
    %v3525 = vsel %vm3517, %v3521, %v3513
    %v3526 = vsel %vm3518, %v3522, %v3514
    %v3527 = vadd.f32 %v3523, 1.0
    %v3528 = vadd.f32 %v3524, 1.0
    %v3529 = vadd.f32 %v3525, 1.0
    %v3530 = vadd.f32 %v3526, 1.0
    %v3531 = vmul.f32 %v3431, %v3527
    %v3532 = vmul.f32 %v3432, %v3528
    %v3533 = vmul.f32 %v3433, %v3529
    %v3534 = vmul.f32 %v3434, %v3530
    %v3535 = vadd.f32 %v3531, %v2641
    %v3536 = vadd.f32 %v3532, %v2642
    %v3537 = vadd.f32 %v3533, %v2643
    %v3538 = vadd.f32 %v3534, %v2644
    %s3539 = scalar_lea.vmem [#allocation26], 16
    %v3540 = vld [vmem:[%s3539] sm:$0xff]
    %v3541 = vld [vmem:[%s3539 + $0x8] sm:$0xff]
    %vm3542 = vcmp.ge.s32.totalorder %v688, 8
    %vm3543 = vcmp.ge.s32.totalorder %v689, 8
    %v3544 = vsel %vm3542, 1, 0
    %v3545 = vsel %vm3543, 1, 0
    %vm3546 = vcmp.eq.s32.totalorder %v3544, 1
    %vm3547 = vcmp.eq.s32.totalorder %v3545, 1
    %v3548 = vsel %vm3546, %v3538, 0.0
    %v3549 = vsel %vm3547, %v3535, 0.0
    %v3550 = vsel %vm3546, %v3536, 0.0
    %v3551 = vsel %vm3547, %v3537, 0.0
    %v3552 = vld [vmem:[#allocation26] sm:$0xff]
    %v3553 = vld [vmem:[#allocation26 + $0x8] sm:$0xff]
    %v3555 = vsel %vm833, %v3548, 0
    %v3558 = vsel %vm833, %v3549, 0
    %v3561 = vsel %vm833, %v3550, 0
    %v3564 = vsel %vm833, %v3551, 0
    %3566 = vmatprep.subr.mxu0 0.0
    %3567 = vmatpush1.msra.mxu0 %v3552
    %3568 = vmatprep.subr.mxu0 0.0
    %3569 = vmatpush1.msra.mxu0 %v3553
    %3570 = vmatprep.subr.mxu0 0.0
    %3571 = vmatpush1.msra.mxu0 0.0
    %3572 = vmatprep.subr.mxu0 0.0
    %3573 = vmatpush1.msra.mxu0 0.0
    %3574 = vmatprep.subr.mxu0 0.0
    %3575 = vmatpush1.msra.mxu0 0.0
    %3576 = vmatprep.subr.mxu0 0.0
    %3577 = vmatpush1.msra.mxu0 0.0
    %3578 = vmatprep.subr.mxu0 0.0
    %3579 = vmatpush1.msra.mxu0 0.0
    %3580 = vmatprep.subr.mxu0 0.0
    %3581 = vmatpush1.msra.mxu0 0.0
    %3582 = vmatprep.subr.mxu0 0.0
    %3583 = vmatpush1.msra.mxu0 0.0
    %3584 = vmatprep.subr.mxu0 0.0
    %3585 = vmatpush1.msra.mxu0 0.0
    %3586 = vmatprep.subr.mxu0 0.0
    %3587 = vmatpush1.msra.mxu0 0.0
    %3588 = vmatprep.subr.mxu0 0.0
    %3589 = vmatpush1.msra.mxu0 0.0
    %3590 = vmatprep.subr.mxu0 0.0
    %3591 = vmatpush1.msra.mxu0 0.0
    %3592 = vmatprep.subr.mxu0 0.0
    %3593 = vmatpush1.msra.mxu0 0.0
    %3594 = vmatprep.subr.mxu0 0.0
    %3595 = vmatpush1.msra.mxu0 0.0
    %3596 = vmatprep.subr.mxu0 0.0
    %3597 = vmatpush1.msra.mxu0 0.0
    %3598 = vmatprep.subr.mxu0 0.0
    %3599 = vmatpush1.msra.mxu0 0.0
    %3600 = vmatprep.subr.mxu0 0.0
    %3601 = vmatpush1.msra.mxu0 0.0
    %3602 = vmatprep.subr.mxu0 0.0
    %3603 = vmatpush1.msra.mxu0 0.0
    %3604 = vmatprep.subr.mxu0 0.0
    %3605 = vmatpush1.msra.mxu0 0.0
    %3606 = vmatprep.subr.mxu0 0.0
    %3607 = vmatpush1.msra.mxu0 0.0
    %3608 = vmatprep.subr.mxu0 0.0
    %3609 = vmatpush1.msra.mxu0 0.0
    %3610 = vmatprep.subr.mxu0 0.0
    %3611 = vmatpush1.msra.mxu0 0.0
    %3612 = vmatprep.subr.mxu0 0.0
    %3613 = vmatpush1.msra.mxu0 0.0
    %3614 = vmatprep.subr.mxu0 0.0
    %3615 = vmatpush1.msra.mxu0 0.0
    %3616 = vmatprep.subr.mxu0 0.0
    %3617 = vmatpush1.msra.mxu0 0.0
    %3618 = vmatprep.subr.mxu0 0.0
    %3619 = vmatpush1.msra.mxu0 0.0
    %3620 = vmatprep.subr.mxu0 0.0
    %3621 = vmatpush1.msra.mxu0 0.0
    %3622 = vmatprep.subr.mxu0 0.0
    %3623 = vmatpush1.msra.mxu0 0.0
    %3624 = vmatprep.subr.mxu0 0.0
    %3625 = vmatpush1.msra.mxu0 0.0
    %3626 = vmatprep.subr.mxu0 0.0
    %3627 = vmatpush1.msra.mxu0 0.0
    %3628 = vmatprep.subr.mxu0 0.0
    %3629 = vmatpush1.msra.mxu0 0.0
    %3630 = vmatprep.mubr.f32.mxu0 0.0
    %3631 = vmatmul.mubr.f32.gmra.mrb[0].mxu0 %v3555
    %v3632 = vpop.f32.mrb[0].mxu0
    %v3633 = vadd.f32 0.0, %v3632
    %v3634 = vpop.f32.mrb[0].mxu0
    %3635 = vmatprep.mubr.f32.mxu0 0.0
    %3636 = vmatmul.mubr.f32.gmra.mrb[0].mxu0 %v3558
    %v3637 = vpop.f32.mrb[0].mxu0
    %v3638 = vadd.f32 0.0, %v3637
    %v3639 = vpop.f32.mrb[0].mxu0
    %3640 = vmatprep.mubr.f32.mxu0 0.0
    %3641 = vmatmul.mubr.f32.gmra.mrb[0].mxu0 %v3561
    %v3642 = vpop.f32.mrb[0].mxu0
    %v3643 = vadd.f32 0.0, %v3642
    %v3644 = vpop.f32.mrb[0].mxu0
    %3645 = vmatprep.mubr.f32.mxu0 0.0
    %3646 = vmatmul.mubr.f32.gmra.mrb[0].mxu0 %v3564
    %v3647 = vpop.f32.mrb[0].mxu0
    %v3648 = vadd.f32 0.0, %v3647
    %v3649 = vpop.f32.mrb[0].mxu0
    %3650 = vdwg.mxu0
    %v3652 = vsel %vm833, %v3535, 0
    %v3655 = vsel %vm833, %v3536, 0
    %v3658 = vsel %vm833, %v3537, 0
    %v3661 = vsel %vm833, %v3538, 0
    %3663 = vmatprep.subr.mxu0 0.0
    %3664 = vmatpush1.msra.mxu0 %v3540
    %3665 = vmatprep.subr.mxu0 0.0
    %3666 = vmatpush1.msra.mxu0 %v3541
    %3667 = vmatprep.subr.mxu0 0.0
    %3668 = vmatpush1.msra.mxu0 0.0
    %3669 = vmatprep.subr.mxu0 0.0
    %3670 = vmatpush1.msra.mxu0 0.0
    %3671 = vmatprep.subr.mxu0 0.0
    %3672 = vmatpush1.msra.mxu0 0.0
    %3673 = vmatprep.subr.mxu0 0.0
    %3674 = vmatpush1.msra.mxu0 0.0
    %3675 = vmatprep.subr.mxu0 0.0
    %3676 = vmatpush1.msra.mxu0 0.0
    %3677 = vmatprep.subr.mxu0 0.0
    %3678 = vmatpush1.msra.mxu0 0.0
    %3679 = vmatprep.subr.mxu0 0.0
    %3680 = vmatpush1.msra.mxu0 0.0
    %3681 = vmatprep.subr.mxu0 0.0
    %3682 = vmatpush1.msra.mxu0 0.0
    %3683 = vmatprep.subr.mxu0 0.0
    %3684 = vmatpush1.msra.mxu0 0.0
    %3685 = vmatprep.subr.mxu0 0.0
    %3686 = vmatpush1.msra.mxu0 0.0
    %3687 = vmatprep.subr.mxu0 0.0
    %3688 = vmatpush1.msra.mxu0 0.0
    %3689 = vmatprep.subr.mxu0 0.0
    %3690 = vmatpush1.msra.mxu0 0.0
    %3691 = vmatprep.subr.mxu0 0.0
    %3692 = vmatpush1.msra.mxu0 0.0
    %3693 = vmatprep.subr.mxu0 0.0
    %3694 = vmatpush1.msra.mxu0 0.0
    %3695 = vmatprep.subr.mxu0 0.0
    %3696 = vmatpush1.msra.mxu0 0.0
    %3697 = vmatprep.subr.mxu0 0.0
    %3698 = vmatpush1.msra.mxu0 0.0
    %3699 = vmatprep.subr.mxu0 0.0
    %3700 = vmatpush1.msra.mxu0 0.0
    %3701 = vmatprep.subr.mxu0 0.0
    %3702 = vmatpush1.msra.mxu0 0.0
    %3703 = vmatprep.subr.mxu0 0.0
    %3704 = vmatpush1.msra.mxu0 0.0
    %3705 = vmatprep.subr.mxu0 0.0
    %3706 = vmatpush1.msra.mxu0 0.0
    %3707 = vmatprep.subr.mxu0 0.0
    %3708 = vmatpush1.msra.mxu0 0.0
    %3709 = vmatprep.subr.mxu0 0.0
    %3710 = vmatpush1.msra.mxu0 0.0
    %3711 = vmatprep.subr.mxu0 0.0
    %3712 = vmatpush1.msra.mxu0 0.0
    %3713 = vmatprep.subr.mxu0 0.0
    %3714 = vmatpush1.msra.mxu0 0.0
    %3715 = vmatprep.subr.mxu0 0.0
    %3716 = vmatpush1.msra.mxu0 0.0
    %3717 = vmatprep.subr.mxu0 0.0
    %3718 = vmatpush1.msra.mxu0 0.0
    %3719 = vmatprep.subr.mxu0 0.0
    %3720 = vmatpush1.msra.mxu0 0.0
    %3721 = vmatprep.subr.mxu0 0.0
    %3722 = vmatpush1.msra.mxu0 0.0
    %3723 = vmatprep.subr.mxu0 0.0
    %3724 = vmatpush1.msra.mxu0 0.0
    %3725 = vmatprep.subr.mxu0 0.0
    %3726 = vmatpush1.msra.mxu0 0.0
    %3727 = vmatprep.mubr.f32.mxu0 0.0
    %3728 = vmatmul.mubr.f32.gmra.mrb[0].mxu0 %v3652
    %v3729 = vpop.f32.mrb[0].mxu0
    %v3730 = vadd.f32 %v3633, %v3729
    %v3731 = vpop.f32.mrb[0].mxu0
    %3732 = vmatprep.mubr.f32.mxu0 0.0
    %3733 = vmatmul.mubr.f32.gmra.mrb[0].mxu0 %v3655
    %v3734 = vpop.f32.mrb[0].mxu0
    %v3735 = vadd.f32 %v3638, %v3734
    %v3736 = vpop.f32.mrb[0].mxu0
    %3737 = vmatprep.mubr.f32.mxu0 0.0
    %3738 = vmatmul.mubr.f32.gmra.mrb[0].mxu0 %v3658
    %v3739 = vpop.f32.mrb[0].mxu0
    %v3740 = vadd.f32 %v3643, %v3739
    %v3741 = vpop.f32.mrb[0].mxu0
    %3742 = vmatprep.mubr.f32.mxu0 0.0
    %3743 = vmatmul.mubr.f32.gmra.mrb[0].mxu0 %v3661
    %v3744 = vpop.f32.mrb[0].mxu0
    %v3745 = vadd.f32 %v3648, %v3744
    %v3746 = vpop.f32.mrb[0].mxu0
    %3747 = vdwg.mxu0
    %vm3748 = vcmp.lt.s32.totalorder %v688, 8
    %vm3749 = vcmp.lt.s32.totalorder %v689, 8
    %v3750 = vsel %vm3748, 1, 0
    %v3751 = vsel %vm3749, 1, 0
    %vm3752 = vcmp.eq.s32.totalorder %v3750, 1
    %vm3753 = vcmp.eq.s32.totalorder %v3751, 1
    %v3754 = vsel %vm3752, %v3536, 0.0
    %v3755 = vsel %vm3753, %v3537, 0.0
    %v3756 = vsel %vm3752, %v3538, 0.0
    %v3757 = vsel %vm3753, %v3535, 0.0
    %s3758 = scalar_lea.vmem [#allocation26], 32
    %v3759 = vld [vmem:[%s3758] sm:$0xff]
    %v3760 = vld [vmem:[%s3758 + $0x8] sm:$0xff]
    %v3762 = vsel %vm833, %v3754, 0
    %v3765 = vsel %vm833, %v3755, 0
    %v3768 = vsel %vm833, %v3756, 0
    %v3771 = vsel %vm833, %v3757, 0
    %3773 = vmatprep.subr.mxu0 0.0
    %3774 = vmatpush1.msra.mxu0 %v3759
    %3775 = vmatprep.subr.mxu0 0.0
    %3776 = vmatpush1.msra.mxu0 %v3760
    %3777 = vmatprep.subr.mxu0 0.0
    %3778 = vmatpush1.msra.mxu0 0.0
    %3779 = vmatprep.subr.mxu0 0.0
    %3780 = vmatpush1.msra.mxu0 0.0
    %3781 = vmatprep.subr.mxu0 0.0
    %3782 = vmatpush1.msra.mxu0 0.0
    %3783 = vmatprep.subr.mxu0 0.0
    %3784 = vmatpush1.msra.mxu0 0.0
    %3785 = vmatprep.subr.mxu0 0.0
    %3786 = vmatpush1.msra.mxu0 0.0
    %3787 = vmatprep.subr.mxu0 0.0
    %3788 = vmatpush1.msra.mxu0 0.0
    %3789 = vmatprep.subr.mxu0 0.0
    %3790 = vmatpush1.msra.mxu0 0.0
    %3791 = vmatprep.subr.mxu0 0.0
    %3792 = vmatpush1.msra.mxu0 0.0
    %3793 = vmatprep.subr.mxu0 0.0
    %3794 = vmatpush1.msra.mxu0 0.0
    %3795 = vmatprep.subr.mxu0 0.0
    %3796 = vmatpush1.msra.mxu0 0.0
    %3797 = vmatprep.subr.mxu0 0.0
    %3798 = vmatpush1.msra.mxu0 0.0
    %3799 = vmatprep.subr.mxu0 0.0
    %3800 = vmatpush1.msra.mxu0 0.0
    %3801 = vmatprep.subr.mxu0 0.0
    %3802 = vmatpush1.msra.mxu0 0.0
    %3803 = vmatprep.subr.mxu0 0.0
    %3804 = vmatpush1.msra.mxu0 0.0
    %3805 = vmatprep.subr.mxu0 0.0
    %3806 = vmatpush1.msra.mxu0 0.0
    %3807 = vmatprep.subr.mxu0 0.0
    %3808 = vmatpush1.msra.mxu0 0.0
    %3809 = vmatprep.subr.mxu0 0.0
    %3810 = vmatpush1.msra.mxu0 0.0
    %3811 = vmatprep.subr.mxu0 0.0
    %3812 = vmatpush1.msra.mxu0 0.0
    %3813 = vmatprep.subr.mxu0 0.0
    %3814 = vmatpush1.msra.mxu0 0.0
    %3815 = vmatprep.subr.mxu0 0.0
    %3816 = vmatpush1.msra.mxu0 0.0
    %3817 = vmatprep.subr.mxu0 0.0
    %3818 = vmatpush1.msra.mxu0 0.0
    %3819 = vmatprep.subr.mxu0 0.0
    %3820 = vmatpush1.msra.mxu0 0.0
    %3821 = vmatprep.subr.mxu0 0.0
    %3822 = vmatpush1.msra.mxu0 0.0
    %3823 = vmatprep.subr.mxu0 0.0
    %3824 = vmatpush1.msra.mxu0 0.0
    %3825 = vmatprep.subr.mxu0 0.0
    %3826 = vmatpush1.msra.mxu0 0.0
    %3827 = vmatprep.subr.mxu0 0.0
    %3828 = vmatpush1.msra.mxu0 0.0
    %3829 = vmatprep.subr.mxu0 0.0
    %3830 = vmatpush1.msra.mxu0 0.0
    %3831 = vmatprep.subr.mxu0 0.0
    %3832 = vmatpush1.msra.mxu0 0.0
    %3833 = vmatprep.subr.mxu0 0.0
    %3834 = vmatpush1.msra.mxu0 0.0
    %3835 = vmatprep.subr.mxu0 0.0
    %3836 = vmatpush1.msra.mxu0 0.0
    %3837 = vmatprep.mubr.f32.mxu0 0.0
    %3838 = vmatmul.mubr.f32.gmra.mrb[0].mxu0 %v3762
    %v3839 = vpop.f32.mrb[0].mxu0
    %v3840 = vadd.f32 0.0, %v3839
    %v3841 = vpop.f32.mrb[0].mxu0
    %3842 = vmatprep.mubr.f32.mxu0 0.0
    %3843 = vmatmul.mubr.f32.gmra.mrb[0].mxu0 %v3765
    %v3844 = vpop.f32.mrb[0].mxu0
    %v3845 = vadd.f32 0.0, %v3844
    %v3846 = vpop.f32.mrb[0].mxu0
    %3847 = vmatprep.mubr.f32.mxu0 0.0
    %3848 = vmatmul.mubr.f32.gmra.mrb[0].mxu0 %v3768
    %v3849 = vpop.f32.mrb[0].mxu0
    %v3850 = vadd.f32 0.0, %v3849
    %v3851 = vpop.f32.mrb[0].mxu0
    %3852 = vmatprep.mubr.f32.mxu0 0.0
    %3853 = vmatmul.mubr.f32.gmra.mrb[0].mxu0 %v3771
    %v3854 = vpop.f32.mrb[0].mxu0
    %v3855 = vadd.f32 0.0, %v3854
    %v3856 = vpop.f32.mrb[0].mxu0
    %3857 = vdwg.mxu0
    %v3858 = vadd.f32 %v3730, %v3840
    %v3859 = vadd.f32 %v3735, %v3845
    %v3860 = vadd.f32 %v3740, %v3850
    %v3861 = vadd.f32 %v3745, %v3855
    %v3862 = vld [vmem:[#allocation28] sm:$0x1]
    %v3864 = vlaneseq
    %v3865 = vshrl.u32 %v3864, 7
    %v3866 = vsub.s32 0, %v3865
    %v3867 = vrot.slane %v3862, %v3866
    %v3869 = vadd.f32 %v3858, %v3867
    %v3870 = vadd.f32 %v3859, %v3867
    %v3871 = vadd.f32 %v3860, %v3867
    %v3872 = vadd.f32 %v3861, %v3867
    %v3873 = vmul.f32 %v3869, 0.5
    %v3874 = vmul.f32 %v3870, 0.5
    %v3875 = vmul.f32 %v3871, 0.5
    %v3876 = vmul.f32 %v3872, 0.5
    %v3877 = vmul.f32 %v3869, 0.70710677
    %v3878 = vmul.f32 %v3870, 0.70710677
    %v3879 = vmul.f32 %v3871, 0.70710677
    %v3880 = vmul.f32 %v3872, 0.70710677
    %v3881 = vand.u32 2147483647, %v3877
    %v3882 = vand.u32 2147483647, %v3878
    %v3883 = vand.u32 2147483647, %v3879
    %v3884 = vand.u32 2147483647, %v3880
    %v3885 = vmul.f32 %v3881, 0.3275911
    %v3886 = vmul.f32 %v3882, 0.3275911
    %v3887 = vmul.f32 %v3883, 0.3275911
    %v3888 = vmul.f32 %v3884, 0.3275911
    %v3889 = vadd.f32 %v3885, 1.0
    %v3890 = vadd.f32 %v3886, 1.0
    %v3891 = vadd.f32 %v3887, 1.0
    %v3892 = vadd.f32 %v3888, 1.0
    %v3893 = vrcp.pop %v3889
    %v3894 = vrcp.pop %v3890
    %v3895 = vrcp.pop %v3891
    %v3896 = vrcp.pop %v3892
    %v3897 = vmul.f32 %v3893, 1.0614054
    %v3898 = vmul.f32 %v3894, 1.0614054
    %v3899 = vmul.f32 %v3895, 1.0614054
    %v3900 = vmul.f32 %v3896, 1.0614054
    %v3901 = vadd.f32 %v3897, -1.4531521
    %v3902 = vadd.f32 %v3898, -1.4531521
    %v3903 = vadd.f32 %v3899, -1.4531521
    %v3904 = vadd.f32 %v3900, -1.4531521
    %v3905 = vmul.f32 %v3893, %v3901
    %v3906 = vmul.f32 %v3894, %v3902
    %v3907 = vmul.f32 %v3895, %v3903
    %v3908 = vmul.f32 %v3896, %v3904
    %v3909 = vadd.f32 %v3905, 1.4214138
    %v3910 = vadd.f32 %v3906, 1.4214138
    %v3911 = vadd.f32 %v3907, 1.4214138
    %v3912 = vadd.f32 %v3908, 1.4214138
    %v3913 = vmul.f32 %v3893, %v3909
    %v3914 = vmul.f32 %v3894, %v3910
    %v3915 = vmul.f32 %v3895, %v3911
    %v3916 = vmul.f32 %v3896, %v3912
    %v3917 = vadd.f32 %v3913, -0.28449672
    %v3918 = vadd.f32 %v3914, -0.28449672
    %v3919 = vadd.f32 %v3915, -0.28449672
    %v3920 = vadd.f32 %v3916, -0.28449672
    %v3921 = vmul.f32 %v3893, %v3917
    %v3922 = vmul.f32 %v3894, %v3918
    %v3923 = vmul.f32 %v3895, %v3919
    %v3924 = vmul.f32 %v3896, %v3920
    %v3925 = vadd.f32 %v3921, 0.2548296
    %v3926 = vadd.f32 %v3922, 0.2548296
    %v3927 = vadd.f32 %v3923, 0.2548296
    %v3928 = vadd.f32 %v3924, 0.2548296
    %v3929 = vmul.f32 %v3893, %v3925
    %v3930 = vmul.f32 %v3894, %v3926
    %v3931 = vmul.f32 %v3895, %v3927
    %v3932 = vmul.f32 %v3896, %v3928
    %v3933 = vmul.f32 %v3881, %v3881
    %v3934 = vmul.f32 %v3882, %v3882
    %v3935 = vmul.f32 %v3883, %v3883
    %v3936 = vmul.f32 %v3884, %v3884
    %v3937 = vsub.f32 0.0, %v3933
    %v3938 = vsub.f32 0.0, %v3934
    %v3939 = vsub.f32 0.0, %v3935
    %v3940 = vsub.f32 0.0, %v3936
    %v3941 = vmul.f32 %v3937, 1.442695
    %v3942 = vpow.pop %v3941
    %v3943 = vmul.f32 %v3938, 1.442695
    %v3944 = vpow.pop %v3943
    %v3945 = vmul.f32 %v3939, 1.442695
    %v3946 = vpow.pop %v3945
    %v3947 = vmul.f32 %v3940, 1.442695
    %v3948 = vpow.pop %v3947
    %v3949 = vmul.f32 %v3929, %v3942
    %v3950 = vmul.f32 %v3930, %v3944
    %v3951 = vmul.f32 %v3931, %v3946
    %v3952 = vmul.f32 %v3932, %v3948
    %v3953 = vsub.f32 1.0, %v3949
    %v3954 = vsub.f32 1.0, %v3950
    %v3955 = vsub.f32 1.0, %v3951
    %v3956 = vsub.f32 1.0, %v3952
    %vm3957 = vcmp.lt.f32.partialorder %v3877, 0.0
    %vm3958 = vcmp.lt.f32.partialorder %v3878, 0.0
    %vm3959 = vcmp.lt.f32.partialorder %v3879, 0.0
    %vm3960 = vcmp.lt.f32.partialorder %v3880, 0.0
    %v3961 = vsub.f32 0.0, %v3953
    %v3962 = vsub.f32 0.0, %v3954
    %v3963 = vsub.f32 0.0, %v3955
    %v3964 = vsub.f32 0.0, %v3956
    %v3965 = vsel %vm3957, %v3961, %v3953
    %v3966 = vsel %vm3958, %v3962, %v3954
    %v3967 = vsel %vm3959, %v3963, %v3955
    %v3968 = vsel %vm3960, %v3964, %v3956
    %v3969 = vadd.f32 %v3965, 1.0
    %v3970 = vadd.f32 %v3966, 1.0
    %v3971 = vadd.f32 %v3967, 1.0
    %v3972 = vadd.f32 %v3968, 1.0
    %v3973 = vmul.f32 %v3873, %v3969
    %v3974 = vmul.f32 %v3874, %v3970
    %v3975 = vmul.f32 %v3875, %v3971
    %v3976 = vmul.f32 %v3876, %v3972
    %s3977 = scalar_lea.vmem [#allocation29], 16
    %v3978 = vld [vmem:[%s3977] sm:$0xff]
    %v3979 = vld [vmem:[%s3977 + $0x8] sm:$0xff]
    %v3980 = vsel %vm3546, %v3976, 0.0
    %v3981 = vsel %vm3547, %v3973, 0.0
    %v3982 = vsel %vm3546, %v3974, 0.0
    %v3983 = vsel %vm3547, %v3975, 0.0
    %v3984 = vld [vmem:[#allocation29] sm:$0xff]
    %v3985 = vld [vmem:[#allocation29 + $0x8] sm:$0xff]
    %v3987 = vsel %vm833, %v3980, 0
    %v3990 = vsel %vm833, %v3981, 0
    %v3993 = vsel %vm833, %v3982, 0
    %v3996 = vsel %vm833, %v3983, 0
    %3998 = vmatprep.subr.mxu0 0.0
    %3999 = vmatpush1.msra.mxu0 %v3984
    %4000 = vmatprep.subr.mxu0 0.0
    %4001 = vmatpush1.msra.mxu0 %v3985
    %4002 = vmatprep.subr.mxu0 0.0
    %4003 = vmatpush1.msra.mxu0 0.0
    %4004 = vmatprep.subr.mxu0 0.0
    %4005 = vmatpush1.msra.mxu0 0.0
    %4006 = vmatprep.subr.mxu0 0.0
    %4007 = vmatpush1.msra.mxu0 0.0
    %4008 = vmatprep.subr.mxu0 0.0
    %4009 = vmatpush1.msra.mxu0 0.0
    %4010 = vmatprep.subr.mxu0 0.0
    %4011 = vmatpush1.msra.mxu0 0.0
    %4012 = vmatprep.subr.mxu0 0.0
    %4013 = vmatpush1.msra.mxu0 0.0
    %4014 = vmatprep.subr.mxu0 0.0
    %4015 = vmatpush1.msra.mxu0 0.0
    %4016 = vmatprep.subr.mxu0 0.0
    %4017 = vmatpush1.msra.mxu0 0.0
    %4018 = vmatprep.subr.mxu0 0.0
    %4019 = vmatpush1.msra.mxu0 0.0
    %4020 = vmatprep.subr.mxu0 0.0
    %4021 = vmatpush1.msra.mxu0 0.0
    %4022 = vmatprep.subr.mxu0 0.0
    %4023 = vmatpush1.msra.mxu0 0.0
    %4024 = vmatprep.subr.mxu0 0.0
    %4025 = vmatpush1.msra.mxu0 0.0
    %4026 = vmatprep.subr.mxu0 0.0
    %4027 = vmatpush1.msra.mxu0 0.0
    %4028 = vmatprep.subr.mxu0 0.0
    %4029 = vmatpush1.msra.mxu0 0.0
    %4030 = vmatprep.subr.mxu0 0.0
    %4031 = vmatpush1.msra.mxu0 0.0
    %4032 = vmatprep.subr.mxu0 0.0
    %4033 = vmatpush1.msra.mxu0 0.0
    %4034 = vmatprep.subr.mxu0 0.0
    %4035 = vmatpush1.msra.mxu0 0.0
    %4036 = vmatprep.subr.mxu0 0.0
    %4037 = vmatpush1.msra.mxu0 0.0
    %4038 = vmatprep.subr.mxu0 0.0
    %4039 = vmatpush1.msra.mxu0 0.0
    %4040 = vmatprep.subr.mxu0 0.0
    %4041 = vmatpush1.msra.mxu0 0.0
    %4042 = vmatprep.subr.mxu0 0.0
    %4043 = vmatpush1.msra.mxu0 0.0
    %4044 = vmatprep.subr.mxu0 0.0
    %4045 = vmatpush1.msra.mxu0 0.0
    %4046 = vmatprep.subr.mxu0 0.0
    %4047 = vmatpush1.msra.mxu0 0.0
    %4048 = vmatprep.subr.mxu0 0.0
    %4049 = vmatpush1.msra.mxu0 0.0
    %4050 = vmatprep.subr.mxu0 0.0
    %4051 = vmatpush1.msra.mxu0 0.0
    %4052 = vmatprep.subr.mxu0 0.0
    %4053 = vmatpush1.msra.mxu0 0.0
    %4054 = vmatprep.subr.mxu0 0.0
    %4055 = vmatpush1.msra.mxu0 0.0
    %4056 = vmatprep.subr.mxu0 0.0
    %4057 = vmatpush1.msra.mxu0 0.0
    %4058 = vmatprep.subr.mxu0 0.0
    %4059 = vmatpush1.msra.mxu0 0.0
    %4060 = vmatprep.subr.mxu0 0.0
    %4061 = vmatpush1.msra.mxu0 0.0
    %4062 = vmatprep.mubr.f32.mxu0 0.0
    %4063 = vmatmul.mubr.f32.gmra.mrb[0].mxu0 %v3987
    %v4064 = vpop.f32.mrb[0].mxu0
    %v4065 = vadd.f32 0.0, %v4064
    %v4066 = vpop.f32.mrb[0].mxu0
    %4067 = vmatprep.mubr.f32.mxu0 0.0
    %4068 = vmatmul.mubr.f32.gmra.mrb[0].mxu0 %v3990
    %v4069 = vpop.f32.mrb[0].mxu0
    %v4070 = vadd.f32 0.0, %v4069
    %v4071 = vpop.f32.mrb[0].mxu0
    %4072 = vmatprep.mubr.f32.mxu0 0.0
    %4073 = vmatmul.mubr.f32.gmra.mrb[0].mxu0 %v3993
    %v4074 = vpop.f32.mrb[0].mxu0
    %v4075 = vadd.f32 0.0, %v4074
    %v4076 = vpop.f32.mrb[0].mxu0
    %4077 = vmatprep.mubr.f32.mxu0 0.0
    %4078 = vmatmul.mubr.f32.gmra.mrb[0].mxu0 %v3996
    %v4079 = vpop.f32.mrb[0].mxu0
    %v4080 = vadd.f32 0.0, %v4079
    %v4081 = vpop.f32.mrb[0].mxu0
    %4082 = vdwg.mxu0
    %v4084 = vsel %vm833, %v3973, 0
    %v4087 = vsel %vm833, %v3974, 0
    %v4090 = vsel %vm833, %v3975, 0
    %v4093 = vsel %vm833, %v3976, 0
    %4095 = vmatprep.subr.mxu0 0.0
    %4096 = vmatpush1.msra.mxu0 %v3978
    %4097 = vmatprep.subr.mxu0 0.0
    %4098 = vmatpush1.msra.mxu0 %v3979
    %4099 = vmatprep.subr.mxu0 0.0
    %4100 = vmatpush1.msra.mxu0 0.0
    %4101 = vmatprep.subr.mxu0 0.0
    %4102 = vmatpush1.msra.mxu0 0.0
    %4103 = vmatprep.subr.mxu0 0.0
    %4104 = vmatpush1.msra.mxu0 0.0
    %4105 = vmatprep.subr.mxu0 0.0
    %4106 = vmatpush1.msra.mxu0 0.0
    %4107 = vmatprep.subr.mxu0 0.0
    %4108 = vmatpush1.msra.mxu0 0.0
    %4109 = vmatprep.subr.mxu0 0.0
    %4110 = vmatpush1.msra.mxu0 0.0
    %4111 = vmatprep.subr.mxu0 0.0
    %4112 = vmatpush1.msra.mxu0 0.0
    %4113 = vmatprep.subr.mxu0 0.0
    %4114 = vmatpush1.msra.mxu0 0.0
    %4115 = vmatprep.subr.mxu0 0.0
    %4116 = vmatpush1.msra.mxu0 0.0
    %4117 = vmatprep.subr.mxu0 0.0
    %4118 = vmatpush1.msra.mxu0 0.0
    %4119 = vmatprep.subr.mxu0 0.0
    %4120 = vmatpush1.msra.mxu0 0.0
    %4121 = vmatprep.subr.mxu0 0.0
    %4122 = vmatpush1.msra.mxu0 0.0
    %4123 = vmatprep.subr.mxu0 0.0
    %4124 = vmatpush1.msra.mxu0 0.0
    %4125 = vmatprep.subr.mxu0 0.0
    %4126 = vmatpush1.msra.mxu0 0.0
    %4127 = vmatprep.subr.mxu0 0.0
    %4128 = vmatpush1.msra.mxu0 0.0
    %4129 = vmatprep.subr.mxu0 0.0
    %4130 = vmatpush1.msra.mxu0 0.0
    %4131 = vmatprep.subr.mxu0 0.0
    %4132 = vmatpush1.msra.mxu0 0.0
    %4133 = vmatprep.subr.mxu0 0.0
    %4134 = vmatpush1.msra.mxu0 0.0
    %4135 = vmatprep.subr.mxu0 0.0
    %4136 = vmatpush1.msra.mxu0 0.0
    %4137 = vmatprep.subr.mxu0 0.0
    %4138 = vmatpush1.msra.mxu0 0.0
    %4139 = vmatprep.subr.mxu0 0.0
    %4140 = vmatpush1.msra.mxu0 0.0
    %4141 = vmatprep.subr.mxu0 0.0
    %4142 = vmatpush1.msra.mxu0 0.0
    %4143 = vmatprep.subr.mxu0 0.0
    %4144 = vmatpush1.msra.mxu0 0.0
    %4145 = vmatprep.subr.mxu0 0.0
    %4146 = vmatpush1.msra.mxu0 0.0
    %4147 = vmatprep.subr.mxu0 0.0
    %4148 = vmatpush1.msra.mxu0 0.0
    %4149 = vmatprep.subr.mxu0 0.0
    %4150 = vmatpush1.msra.mxu0 0.0
    %4151 = vmatprep.subr.mxu0 0.0
    %4152 = vmatpush1.msra.mxu0 0.0
    %4153 = vmatprep.subr.mxu0 0.0
    %4154 = vmatpush1.msra.mxu0 0.0
    %4155 = vmatprep.subr.mxu0 0.0
    %4156 = vmatpush1.msra.mxu0 0.0
    %4157 = vmatprep.subr.mxu0 0.0
    %4158 = vmatpush1.msra.mxu0 0.0
    %4159 = vmatprep.mubr.f32.mxu0 0.0
    %4160 = vmatmul.mubr.f32.gmra.mrb[0].mxu0 %v4084
    %v4161 = vpop.f32.mrb[0].mxu0
    %v4162 = vadd.f32 %v4065, %v4161
    %v4163 = vpop.f32.mrb[0].mxu0
    %4164 = vmatprep.mubr.f32.mxu0 0.0
    %4165 = vmatmul.mubr.f32.gmra.mrb[0].mxu0 %v4087
    %v4166 = vpop.f32.mrb[0].mxu0
    %v4167 = vadd.f32 %v4070, %v4166
    %v4168 = vpop.f32.mrb[0].mxu0
    %4169 = vmatprep.mubr.f32.mxu0 0.0
    %4170 = vmatmul.mubr.f32.gmra.mrb[0].mxu0 %v4090
    %v4171 = vpop.f32.mrb[0].mxu0
    %v4172 = vadd.f32 %v4075, %v4171
    %v4173 = vpop.f32.mrb[0].mxu0
    %4174 = vmatprep.mubr.f32.mxu0 0.0
    %4175 = vmatmul.mubr.f32.gmra.mrb[0].mxu0 %v4093
    %v4176 = vpop.f32.mrb[0].mxu0
    %v4177 = vadd.f32 %v4080, %v4176
    %v4178 = vpop.f32.mrb[0].mxu0
    %4179 = vdwg.mxu0
    %v4180 = vsel %vm3752, %v3974, 0.0
    %v4181 = vsel %vm3753, %v3975, 0.0
    %v4182 = vsel %vm3752, %v3976, 0.0
    %v4183 = vsel %vm3753, %v3973, 0.0
    %s4184 = scalar_lea.vmem [#allocation29], 32
    %v4185 = vld [vmem:[%s4184] sm:$0xff]
    %v4186 = vld [vmem:[%s4184 + $0x8] sm:$0xff]
    %v4188 = vsel %vm833, %v4180, 0
    %v4191 = vsel %vm833, %v4181, 0
    %v4194 = vsel %vm833, %v4182, 0
    %v4197 = vsel %vm833, %v4183, 0
    %4199 = vmatprep.subr.mxu0 0.0
    %4200 = vmatpush1.msra.mxu0 %v4185
    %4201 = vmatprep.subr.mxu0 0.0
    %4202 = vmatpush1.msra.mxu0 %v4186
    %4203 = vmatprep.subr.mxu0 0.0
    %4204 = vmatpush1.msra.mxu0 0.0
    %4205 = vmatprep.subr.mxu0 0.0
    %4206 = vmatpush1.msra.mxu0 0.0
    %4207 = vmatprep.subr.mxu0 0.0
    %4208 = vmatpush1.msra.mxu0 0.0
    %4209 = vmatprep.subr.mxu0 0.0
    %4210 = vmatpush1.msra.mxu0 0.0
    %4211 = vmatprep.subr.mxu0 0.0
    %4212 = vmatpush1.msra.mxu0 0.0
    %4213 = vmatprep.subr.mxu0 0.0
    %4214 = vmatpush1.msra.mxu0 0.0
    %4215 = vmatprep.subr.mxu0 0.0
    %4216 = vmatpush1.msra.mxu0 0.0
    %4217 = vmatprep.subr.mxu0 0.0
    %4218 = vmatpush1.msra.mxu0 0.0
    %4219 = vmatprep.subr.mxu0 0.0
    %4220 = vmatpush1.msra.mxu0 0.0
    %4221 = vmatprep.subr.mxu0 0.0
    %4222 = vmatpush1.msra.mxu0 0.0
    %4223 = vmatprep.subr.mxu0 0.0
    %4224 = vmatpush1.msra.mxu0 0.0
    %4225 = vmatprep.subr.mxu0 0.0
    %4226 = vmatpush1.msra.mxu0 0.0
    %4227 = vmatprep.subr.mxu0 0.0
    %4228 = vmatpush1.msra.mxu0 0.0
    %4229 = vmatprep.subr.mxu0 0.0
    %4230 = vmatpush1.msra.mxu0 0.0
    %4231 = vmatprep.subr.mxu0 0.0
    %4232 = vmatpush1.msra.mxu0 0.0
    %4233 = vmatprep.subr.mxu0 0.0
    %4234 = vmatpush1.msra.mxu0 0.0
    %4235 = vmatprep.subr.mxu0 0.0
    %4236 = vmatpush1.msra.mxu0 0.0
    %4237 = vmatprep.subr.mxu0 0.0
    %4238 = vmatpush1.msra.mxu0 0.0
    %4239 = vmatprep.subr.mxu0 0.0
    %4240 = vmatpush1.msra.mxu0 0.0
    %4241 = vmatprep.subr.mxu0 0.0
    %4242 = vmatpush1.msra.mxu0 0.0
    %4243 = vmatprep.subr.mxu0 0.0
    %4244 = vmatpush1.msra.mxu0 0.0
    %4245 = vmatprep.subr.mxu0 0.0
    %4246 = vmatpush1.msra.mxu0 0.0
    %4247 = vmatprep.subr.mxu0 0.0
    %4248 = vmatpush1.msra.mxu0 0.0
    %4249 = vmatprep.subr.mxu0 0.0
    %4250 = vmatpush1.msra.mxu0 0.0
    %4251 = vmatprep.subr.mxu0 0.0
    %4252 = vmatpush1.msra.mxu0 0.0
    %4253 = vmatprep.subr.mxu0 0.0
    %4254 = vmatpush1.msra.mxu0 0.0
    %4255 = vmatprep.subr.mxu0 0.0
    %4256 = vmatpush1.msra.mxu0 0.0
    %4257 = vmatprep.subr.mxu0 0.0
    %4258 = vmatpush1.msra.mxu0 0.0
    %4259 = vmatprep.subr.mxu0 0.0
    %4260 = vmatpush1.msra.mxu0 0.0
    %4261 = vmatprep.subr.mxu0 0.0
    %4262 = vmatpush1.msra.mxu0 0.0
    %4263 = vmatprep.mubr.f32.mxu0 0.0
    %4264 = vmatmul.mubr.f32.gmra.mrb[0].mxu0 %v4188
    %v4265 = vpop.f32.mrb[0].mxu0
    %v4266 = vadd.f32 0.0, %v4265
    %v4267 = vpop.f32.mrb[0].mxu0
    %4268 = vmatprep.mubr.f32.mxu0 0.0
    %4269 = vmatmul.mubr.f32.gmra.mrb[0].mxu0 %v4191
    %v4270 = vpop.f32.mrb[0].mxu0
    %v4271 = vadd.f32 0.0, %v4270
    %v4272 = vpop.f32.mrb[0].mxu0
    %4273 = vmatprep.mubr.f32.mxu0 0.0
    %4274 = vmatmul.mubr.f32.gmra.mrb[0].mxu0 %v4194
    %v4275 = vpop.f32.mrb[0].mxu0
    %v4276 = vadd.f32 0.0, %v4275
    %v4277 = vpop.f32.mrb[0].mxu0
    %4278 = vmatprep.mubr.f32.mxu0 0.0
    %4279 = vmatmul.mubr.f32.gmra.mrb[0].mxu0 %v4197
    %v4280 = vpop.f32.mrb[0].mxu0
    %v4281 = vadd.f32 0.0, %v4280
    %v4282 = vpop.f32.mrb[0].mxu0
    %4283 = vdwg.mxu0
    %v4284 = vadd.f32 %v4162, %v4266
    %v4285 = vadd.f32 %v4167, %v4271
    %v4286 = vadd.f32 %v4172, %v4276
    %v4287 = vadd.f32 %v4177, %v4281
    %v4288 = vld [vmem:[#allocation31] sm:$0x1]
    %v4290 = vlaneseq
    %v4291 = vshrl.u32 %v4290, 7
    %v4292 = vsub.s32 0, %v4291
    %v4293 = vrot.slane %v4288, %v4292
    %v4295 = vadd.f32 %v4284, %v4293
    %v4296 = vadd.f32 %v4285, %v4293
    %v4297 = vadd.f32 %v4286, %v4293
    %v4298 = vadd.f32 %v4287, %v4293
    %v4299 = vmul.f32 %v4295, 0.5
    %v4300 = vmul.f32 %v4296, 0.5
    %v4301 = vmul.f32 %v4297, 0.5
    %v4302 = vmul.f32 %v4298, 0.5
    %v4303 = vmul.f32 %v4295, 0.70710677
    %v4304 = vmul.f32 %v4296, 0.70710677
    %v4305 = vmul.f32 %v4297, 0.70710677
    %v4306 = vmul.f32 %v4298, 0.70710677
    %v4307 = vand.u32 2147483647, %v4303
    %v4308 = vand.u32 2147483647, %v4304
    %v4309 = vand.u32 2147483647, %v4305
    %v4310 = vand.u32 2147483647, %v4306
    %v4311 = vmul.f32 %v4307, 0.3275911
    %v4312 = vmul.f32 %v4308, 0.3275911
    %v4313 = vmul.f32 %v4309, 0.3275911
    %v4314 = vmul.f32 %v4310, 0.3275911
    %v4315 = vadd.f32 %v4311, 1.0
    %v4316 = vadd.f32 %v4312, 1.0
    %v4317 = vadd.f32 %v4313, 1.0
    %v4318 = vadd.f32 %v4314, 1.0
    %v4319 = vrcp.pop %v4315
    %v4320 = vrcp.pop %v4316
    %v4321 = vrcp.pop %v4317
    %v4322 = vrcp.pop %v4318
    %v4323 = vmul.f32 %v4319, 1.0614054
    %v4324 = vmul.f32 %v4320, 1.0614054
    %v4325 = vmul.f32 %v4321, 1.0614054
    %v4326 = vmul.f32 %v4322, 1.0614054
    %v4327 = vadd.f32 %v4323, -1.4531521
    %v4328 = vadd.f32 %v4324, -1.4531521
    %v4329 = vadd.f32 %v4325, -1.4531521
    %v4330 = vadd.f32 %v4326, -1.4531521
    %v4331 = vmul.f32 %v4319, %v4327
    %v4332 = vmul.f32 %v4320, %v4328
    %v4333 = vmul.f32 %v4321, %v4329
    %v4334 = vmul.f32 %v4322, %v4330
    %v4335 = vadd.f32 %v4331, 1.4214138
    %v4336 = vadd.f32 %v4332, 1.4214138
    %v4337 = vadd.f32 %v4333, 1.4214138
    %v4338 = vadd.f32 %v4334, 1.4214138
    %v4339 = vmul.f32 %v4319, %v4335
    %v4340 = vmul.f32 %v4320, %v4336
    %v4341 = vmul.f32 %v4321, %v4337
    %v4342 = vmul.f32 %v4322, %v4338
    %v4343 = vadd.f32 %v4339, -0.28449672
    %v4344 = vadd.f32 %v4340, -0.28449672
    %v4345 = vadd.f32 %v4341, -0.28449672
    %v4346 = vadd.f32 %v4342, -0.28449672
    %v4347 = vmul.f32 %v4319, %v4343
    %v4348 = vmul.f32 %v4320, %v4344
    %v4349 = vmul.f32 %v4321, %v4345
    %v4350 = vmul.f32 %v4322, %v4346
    %v4351 = vadd.f32 %v4347, 0.2548296
    %v4352 = vadd.f32 %v4348, 0.2548296
    %v4353 = vadd.f32 %v4349, 0.2548296
    %v4354 = vadd.f32 %v4350, 0.2548296
    %v4355 = vmul.f32 %v4319, %v4351
    %v4356 = vmul.f32 %v4320, %v4352
    %v4357 = vmul.f32 %v4321, %v4353
    %v4358 = vmul.f32 %v4322, %v4354
    %v4359 = vmul.f32 %v4307, %v4307
    %v4360 = vmul.f32 %v4308, %v4308
    %v4361 = vmul.f32 %v4309, %v4309
    %v4362 = vmul.f32 %v4310, %v4310
    %v4363 = vsub.f32 0.0, %v4359
    %v4364 = vsub.f32 0.0, %v4360
    %v4365 = vsub.f32 0.0, %v4361
    %v4366 = vsub.f32 0.0, %v4362
    %v4367 = vmul.f32 %v4363, 1.442695
    %v4368 = vpow.pop %v4367
    %v4369 = vmul.f32 %v4364, 1.442695
    %v4370 = vpow.pop %v4369
    %v4371 = vmul.f32 %v4365, 1.442695
    %v4372 = vpow.pop %v4371
    %v4373 = vmul.f32 %v4366, 1.442695
    %v4374 = vpow.pop %v4373
    %v4375 = vmul.f32 %v4355, %v4368
    %v4376 = vmul.f32 %v4356, %v4370
    %v4377 = vmul.f32 %v4357, %v4372
    %v4378 = vmul.f32 %v4358, %v4374
    %v4379 = vsub.f32 1.0, %v4375
    %v4380 = vsub.f32 1.0, %v4376
    %v4381 = vsub.f32 1.0, %v4377
    %v4382 = vsub.f32 1.0, %v4378
    %vm4383 = vcmp.lt.f32.partialorder %v4303, 0.0
    %vm4384 = vcmp.lt.f32.partialorder %v4304, 0.0
    %vm4385 = vcmp.lt.f32.partialorder %v4305, 0.0
    %vm4386 = vcmp.lt.f32.partialorder %v4306, 0.0
    %v4387 = vsub.f32 0.0, %v4379
    %v4388 = vsub.f32 0.0, %v4380
    %v4389 = vsub.f32 0.0, %v4381
    %v4390 = vsub.f32 0.0, %v4382
    %v4391 = vsel %vm4383, %v4387, %v4379
    %v4392 = vsel %vm4384, %v4388, %v4380
    %v4393 = vsel %vm4385, %v4389, %v4381
    %v4394 = vsel %vm4386, %v4390, %v4382
    %v4395 = vadd.f32 %v4391, 1.0
    %v4396 = vadd.f32 %v4392, 1.0
    %v4397 = vadd.f32 %v4393, 1.0
    %v4398 = vadd.f32 %v4394, 1.0
    %v4399 = vmul.f32 %v4299, %v4395
    %v4400 = vmul.f32 %v4300, %v4396
    %v4401 = vmul.f32 %v4301, %v4397
    %v4402 = vmul.f32 %v4302, %v4398
    %v4403 = vadd.f32 %v4399, %v3535
    %v4404 = vadd.f32 %v4400, %v3536
    %v4405 = vadd.f32 %v4401, %v3537
    %v4406 = vadd.f32 %v4402, %v3538
    %s4407 = scalar_lea.vmem [#allocation32], 16
    %v4408 = vld [vmem:[%s4407] sm:$0xff]
    %v4409 = vld [vmem:[%s4407 + $0x8] sm:$0xff]
    %v4410 = vld [vmem:[#allocation34] sm:$0x1]
    %v4412 = vlaneseq
    %v4413 = vshrl.u32 %v4412, 7
    %v4414 = vsub.s32 0, %v4413
    %v4415 = vrot.slane %v4410, %v4414
    %v4418 = vsel %vm833, %v4403, 0
    %v4421 = vsel %vm833, %v4404, 0
    %v4424 = vsel %vm833, %v4405, 0
    %v4427 = vsel %vm833, %v4406, 0
    %4429 = vmatprep.subr.mxu0 0.0
    %4430 = vmatpush1.msra.mxu0 %v4408
    %4431 = vmatprep.subr.mxu0 0.0
    %4432 = vmatpush1.msra.mxu0 %v4409
    %4433 = vmatprep.subr.mxu0 0.0
    %4434 = vmatpush1.msra.mxu0 0.0
    %4435 = vmatprep.subr.mxu0 0.0
    %4436 = vmatpush1.msra.mxu0 0.0
    %4437 = vmatprep.subr.mxu0 0.0
    %4438 = vmatpush1.msra.mxu0 0.0
    %4439 = vmatprep.subr.mxu0 0.0
    %4440 = vmatpush1.msra.mxu0 0.0
    %4441 = vmatprep.subr.mxu0 0.0
    %4442 = vmatpush1.msra.mxu0 0.0
    %4443 = vmatprep.subr.mxu0 0.0
    %4444 = vmatpush1.msra.mxu0 0.0
    %4445 = vmatprep.subr.mxu0 0.0
    %4446 = vmatpush1.msra.mxu0 0.0
    %4447 = vmatprep.subr.mxu0 0.0
    %4448 = vmatpush1.msra.mxu0 0.0
    %4449 = vmatprep.subr.mxu0 0.0
    %4450 = vmatpush1.msra.mxu0 0.0
    %4451 = vmatprep.subr.mxu0 0.0
    %4452 = vmatpush1.msra.mxu0 0.0
    %4453 = vmatprep.subr.mxu0 0.0
    %4454 = vmatpush1.msra.mxu0 0.0
    %4455 = vmatprep.subr.mxu0 0.0
    %4456 = vmatpush1.msra.mxu0 0.0
    %4457 = vmatprep.subr.mxu0 0.0
    %4458 = vmatpush1.msra.mxu0 0.0
    %4459 = vmatprep.subr.mxu0 0.0
    %4460 = vmatpush1.msra.mxu0 0.0
    %4461 = vmatprep.subr.mxu0 0.0
    %4462 = vmatpush1.msra.mxu0 0.0
    %4463 = vmatprep.subr.mxu0 0.0
    %4464 = vmatpush1.msra.mxu0 0.0
    %4465 = vmatprep.subr.mxu0 0.0
    %4466 = vmatpush1.msra.mxu0 0.0
    %4467 = vmatprep.subr.mxu0 0.0
    %4468 = vmatpush1.msra.mxu0 0.0
    %4469 = vmatprep.subr.mxu0 0.0
    %4470 = vmatpush1.msra.mxu0 0.0
    %4471 = vmatprep.subr.mxu0 0.0
    %4472 = vmatpush1.msra.mxu0 0.0
    %4473 = vmatprep.subr.mxu0 0.0
    %4474 = vmatpush1.msra.mxu0 0.0
    %4475 = vmatprep.subr.mxu0 0.0
    %4476 = vmatpush1.msra.mxu0 0.0
    %4477 = vmatprep.subr.mxu0 0.0
    %4478 = vmatpush1.msra.mxu0 0.0
    %4479 = vmatprep.subr.mxu0 0.0
    %4480 = vmatpush1.msra.mxu0 0.0
    %4481 = vmatprep.subr.mxu0 0.0
    %4482 = vmatpush1.msra.mxu0 0.0
    %4483 = vmatprep.subr.mxu0 0.0
    %4484 = vmatpush1.msra.mxu0 0.0
    %4485 = vmatprep.subr.mxu0 0.0
    %4486 = vmatpush1.msra.mxu0 0.0
    %4487 = vmatprep.subr.mxu0 0.0
    %4488 = vmatpush1.msra.mxu0 0.0
    %4489 = vmatprep.subr.mxu0 0.0
    %4490 = vmatpush1.msra.mxu0 0.0
    %4491 = vmatprep.subr.mxu0 0.0
    %4492 = vmatpush1.msra.mxu0 0.0
    %4493 = vmatprep.mubr.f32.mxu0 0.0
    %4494 = vmatmul.mubr.f32.gmra.mrb[0].mxu0 %v4418
    %v4495 = vpop.f32.mrb[0].mxu0
    %v4496 = vadd.f32 %v4415, %v4495
    %v4497 = vpop.f32.mrb[0].mxu0
    %4498 = vmatprep.mubr.f32.mxu0 0.0
    %4499 = vmatmul.mubr.f32.gmra.mrb[0].mxu0 %v4421
    %v4500 = vpop.f32.mrb[0].mxu0
    %v4501 = vadd.f32 %v4415, %v4500
    %v4502 = vpop.f32.mrb[0].mxu0
    %4503 = vmatprep.mubr.f32.mxu0 0.0
    %4504 = vmatmul.mubr.f32.gmra.mrb[0].mxu0 %v4424
    %v4505 = vpop.f32.mrb[0].mxu0
    %v4506 = vadd.f32 %v4415, %v4505
    %v4507 = vpop.f32.mrb[0].mxu0
    %4508 = vmatprep.mubr.f32.mxu0 0.0
    %4509 = vmatmul.mubr.f32.gmra.mrb[0].mxu0 %v4427
    %v4510 = vpop.f32.mrb[0].mxu0
    %v4511 = vadd.f32 %v4415, %v4510
    %v4512 = vpop.f32.mrb[0].mxu0
    %4513 = vdwg.mxu0
    %v4514 = vmul.f32 %v4496, 0.5
    %v4515 = vmul.f32 %v4501, 0.5
    %v4516 = vmul.f32 %v4506, 0.5
    %v4517 = vmul.f32 %v4511, 0.5
    %v4518 = vmul.f32 %v4496, 0.70710677
    %v4519 = vmul.f32 %v4501, 0.70710677
    %v4520 = vmul.f32 %v4506, 0.70710677
    %v4521 = vmul.f32 %v4511, 0.70710677
    %v4522 = vand.u32 2147483647, %v4518
    %v4523 = vand.u32 2147483647, %v4519
    %v4524 = vand.u32 2147483647, %v4520
    %v4525 = vand.u32 2147483647, %v4521
    %v4526 = vmul.f32 %v4522, 0.3275911
    %v4527 = vmul.f32 %v4523, 0.3275911
    %v4528 = vmul.f32 %v4524, 0.3275911
    %v4529 = vmul.f32 %v4525, 0.3275911
    %v4530 = vadd.f32 %v4526, 1.0
    %v4531 = vadd.f32 %v4527, 1.0
    %v4532 = vadd.f32 %v4528, 1.0
    %v4533 = vadd.f32 %v4529, 1.0
    %v4534 = vrcp.pop %v4530
    %v4535 = vrcp.pop %v4531
    %v4536 = vrcp.pop %v4532
    %v4537 = vrcp.pop %v4533
    %v4538 = vmul.f32 %v4534, 1.0614054
    %v4539 = vmul.f32 %v4535, 1.0614054
    %v4540 = vmul.f32 %v4536, 1.0614054
    %v4541 = vmul.f32 %v4537, 1.0614054
    %v4542 = vadd.f32 %v4538, -1.4531521
    %v4543 = vadd.f32 %v4539, -1.4531521
    %v4544 = vadd.f32 %v4540, -1.4531521
    %v4545 = vadd.f32 %v4541, -1.4531521
    %v4546 = vmul.f32 %v4534, %v4542
    %v4547 = vmul.f32 %v4535, %v4543
    %v4548 = vmul.f32 %v4536, %v4544
    %v4549 = vmul.f32 %v4537, %v4545
    %v4550 = vadd.f32 %v4546, 1.4214138
    %v4551 = vadd.f32 %v4547, 1.4214138
    %v4552 = vadd.f32 %v4548, 1.4214138
    %v4553 = vadd.f32 %v4549, 1.4214138
    %v4554 = vmul.f32 %v4534, %v4550
    %v4555 = vmul.f32 %v4535, %v4551
    %v4556 = vmul.f32 %v4536, %v4552
    %v4557 = vmul.f32 %v4537, %v4553
    %v4558 = vadd.f32 %v4554, -0.28449672
    %v4559 = vadd.f32 %v4555, -0.28449672
    %v4560 = vadd.f32 %v4556, -0.28449672
    %v4561 = vadd.f32 %v4557, -0.28449672
    %v4562 = vmul.f32 %v4534, %v4558
    %v4563 = vmul.f32 %v4535, %v4559
    %v4564 = vmul.f32 %v4536, %v4560
    %v4565 = vmul.f32 %v4537, %v4561
    %v4566 = vadd.f32 %v4562, 0.2548296
    %v4567 = vadd.f32 %v4563, 0.2548296
    %v4568 = vadd.f32 %v4564, 0.2548296
    %v4569 = vadd.f32 %v4565, 0.2548296
    %v4570 = vmul.f32 %v4534, %v4566
    %v4571 = vmul.f32 %v4535, %v4567
    %v4572 = vmul.f32 %v4536, %v4568
    %v4573 = vmul.f32 %v4537, %v4569
    %v4574 = vmul.f32 %v4522, %v4522
    %v4575 = vmul.f32 %v4523, %v4523
    %v4576 = vmul.f32 %v4524, %v4524
    %v4577 = vmul.f32 %v4525, %v4525
    %v4578 = vsub.f32 0.0, %v4574
    %v4579 = vsub.f32 0.0, %v4575
    %v4580 = vsub.f32 0.0, %v4576
    %v4581 = vsub.f32 0.0, %v4577
    %v4582 = vmul.f32 %v4578, 1.442695
    %v4583 = vpow.pop %v4582
    %v4584 = vmul.f32 %v4579, 1.442695
    %v4585 = vpow.pop %v4584
    %v4586 = vmul.f32 %v4580, 1.442695
    %v4587 = vpow.pop %v4586
    %v4588 = vmul.f32 %v4581, 1.442695
    %v4589 = vpow.pop %v4588
    %v4590 = vmul.f32 %v4570, %v4583
    %v4591 = vmul.f32 %v4571, %v4585
    %v4592 = vmul.f32 %v4572, %v4587
    %v4593 = vmul.f32 %v4573, %v4589
    %v4594 = vsub.f32 1.0, %v4590
    %v4595 = vsub.f32 1.0, %v4591
    %v4596 = vsub.f32 1.0, %v4592
    %v4597 = vsub.f32 1.0, %v4593
    %vm4598 = vcmp.lt.f32.partialorder %v4518, 0.0
    %vm4599 = vcmp.lt.f32.partialorder %v4519, 0.0
    %vm4600 = vcmp.lt.f32.partialorder %v4520, 0.0
    %vm4601 = vcmp.lt.f32.partialorder %v4521, 0.0
    %v4602 = vsub.f32 0.0, %v4594
    %v4603 = vsub.f32 0.0, %v4595
    %v4604 = vsub.f32 0.0, %v4596
    %v4605 = vsub.f32 0.0, %v4597
    %v4606 = vsel %vm4598, %v4602, %v4594
    %v4607 = vsel %vm4599, %v4603, %v4595
    %v4608 = vsel %vm4600, %v4604, %v4596
    %v4609 = vsel %vm4601, %v4605, %v4597
    %v4610 = vadd.f32 %v4606, 1.0
    %v4611 = vadd.f32 %v4607, 1.0
    %v4612 = vadd.f32 %v4608, 1.0
    %v4613 = vadd.f32 %v4609, 1.0
    %v4614 = vmul.f32 %v4514, %v4610
    %v4615 = vmul.f32 %v4515, %v4611
    %v4616 = vmul.f32 %v4516, %v4612
    %v4617 = vmul.f32 %v4517, %v4613
    %s4618 = scalar_lea.vmem [#allocation35], 16
    %v4619 = vld [vmem:[%s4618] sm:$0xff]
    %v4620 = vld [vmem:[%s4618 + $0x8] sm:$0xff]
    %v4621 = vld [vmem:[#allocation37] sm:$0x1]
    %v4623 = vlaneseq
    %v4624 = vshrl.u32 %v4623, 7
    %v4625 = vsub.s32 0, %v4624
    %v4626 = vrot.slane %v4621, %v4625
    %v4629 = vsel %vm833, %v4614, 0
    %v4632 = vsel %vm833, %v4615, 0
    %v4635 = vsel %vm833, %v4616, 0
    %v4638 = vsel %vm833, %v4617, 0
    %4640 = vmatprep.subr.mxu0 0.0
    %4641 = vmatpush1.msra.mxu0 %v4619
    %4642 = vmatprep.subr.mxu0 0.0
    %4643 = vmatpush1.msra.mxu0 %v4620
    %4644 = vmatprep.subr.mxu0 0.0
    %4645 = vmatpush1.msra.mxu0 0.0
    %4646 = vmatprep.subr.mxu0 0.0
    %4647 = vmatpush1.msra.mxu0 0.0
    %4648 = vmatprep.subr.mxu0 0.0
    %4649 = vmatpush1.msra.mxu0 0.0
    %4650 = vmatprep.subr.mxu0 0.0
    %4651 = vmatpush1.msra.mxu0 0.0
    %4652 = vmatprep.subr.mxu0 0.0
    %4653 = vmatpush1.msra.mxu0 0.0
    %4654 = vmatprep.subr.mxu0 0.0
    %4655 = vmatpush1.msra.mxu0 0.0
    %4656 = vmatprep.subr.mxu0 0.0
    %4657 = vmatpush1.msra.mxu0 0.0
    %4658 = vmatprep.subr.mxu0 0.0
    %4659 = vmatpush1.msra.mxu0 0.0
    %4660 = vmatprep.subr.mxu0 0.0
    %4661 = vmatpush1.msra.mxu0 0.0
    %4662 = vmatprep.subr.mxu0 0.0
    %4663 = vmatpush1.msra.mxu0 0.0
    %4664 = vmatprep.subr.mxu0 0.0
    %4665 = vmatpush1.msra.mxu0 0.0
    %4666 = vmatprep.subr.mxu0 0.0
    %4667 = vmatpush1.msra.mxu0 0.0
    %4668 = vmatprep.subr.mxu0 0.0
    %4669 = vmatpush1.msra.mxu0 0.0
    %4670 = vmatprep.subr.mxu0 0.0
    %4671 = vmatpush1.msra.mxu0 0.0
    %4672 = vmatprep.subr.mxu0 0.0
    %4673 = vmatpush1.msra.mxu0 0.0
    %4674 = vmatprep.subr.mxu0 0.0
    %4675 = vmatpush1.msra.mxu0 0.0
    %4676 = vmatprep.subr.mxu0 0.0
    %4677 = vmatpush1.msra.mxu0 0.0
    %4678 = vmatprep.subr.mxu0 0.0
    %4679 = vmatpush1.msra.mxu0 0.0
    %4680 = vmatprep.subr.mxu0 0.0
    %4681 = vmatpush1.msra.mxu0 0.0
    %4682 = vmatprep.subr.mxu0 0.0
    %4683 = vmatpush1.msra.mxu0 0.0
    %4684 = vmatprep.subr.mxu0 0.0
    %4685 = vmatpush1.msra.mxu0 0.0
    %4686 = vmatprep.subr.mxu0 0.0
    %4687 = vmatpush1.msra.mxu0 0.0
    %4688 = vmatprep.subr.mxu0 0.0
    %4689 = vmatpush1.msra.mxu0 0.0
    %4690 = vmatprep.subr.mxu0 0.0
    %4691 = vmatpush1.msra.mxu0 0.0
    %4692 = vmatprep.subr.mxu0 0.0
    %4693 = vmatpush1.msra.mxu0 0.0
    %4694 = vmatprep.subr.mxu0 0.0
    %4695 = vmatpush1.msra.mxu0 0.0
    %4696 = vmatprep.subr.mxu0 0.0
    %4697 = vmatpush1.msra.mxu0 0.0
    %4698 = vmatprep.subr.mxu0 0.0
    %4699 = vmatpush1.msra.mxu0 0.0
    %4700 = vmatprep.subr.mxu0 0.0
    %4701 = vmatpush1.msra.mxu0 0.0
    %4702 = vmatprep.subr.mxu0 0.0
    %4703 = vmatpush1.msra.mxu0 0.0
    %4704 = vmatprep.mubr.f32.mxu0 0.0
    %4705 = vmatmul.mubr.f32.gmra.mrb[0].mxu0 %v4629
    %v4706 = vpop.f32.mrb[0].mxu0
    %v4707 = vadd.f32 %v4626, %v4706
    %v4708 = vpop.f32.mrb[0].mxu0
    %4709 = vmatprep.mubr.f32.mxu0 0.0
    %4710 = vmatmul.mubr.f32.gmra.mrb[0].mxu0 %v4632
    %v4711 = vpop.f32.mrb[0].mxu0
    %v4712 = vadd.f32 %v4626, %v4711
    %v4713 = vpop.f32.mrb[0].mxu0
    %4714 = vmatprep.mubr.f32.mxu0 0.0
    %4715 = vmatmul.mubr.f32.gmra.mrb[0].mxu0 %v4635
    %v4716 = vpop.f32.mrb[0].mxu0
    %v4717 = vadd.f32 %v4626, %v4716
    %v4718 = vpop.f32.mrb[0].mxu0
    %4719 = vmatprep.mubr.f32.mxu0 0.0
    %4720 = vmatmul.mubr.f32.gmra.mrb[0].mxu0 %v4638
    %v4721 = vpop.f32.mrb[0].mxu0
    %v4722 = vadd.f32 %v4626, %v4721
    %v4723 = vpop.f32.mrb[0].mxu0
    %4724 = vdwg.mxu0
    %v4725 = vmul.f32 %v4707, 0.5
    %v4726 = vmul.f32 %v4712, 0.5
    %v4727 = vmul.f32 %v4717, 0.5
    %v4728 = vmul.f32 %v4722, 0.5
    %v4729 = vmul.f32 %v4707, 0.70710677
    %v4730 = vmul.f32 %v4712, 0.70710677
    %v4731 = vmul.f32 %v4717, 0.70710677
    %v4732 = vmul.f32 %v4722, 0.70710677
    %v4733 = vand.u32 2147483647, %v4729
    %v4734 = vand.u32 2147483647, %v4730
    %v4735 = vand.u32 2147483647, %v4731
    %v4736 = vand.u32 2147483647, %v4732
    %v4737 = vmul.f32 %v4733, 0.3275911
    %v4738 = vmul.f32 %v4734, 0.3275911
    %v4739 = vmul.f32 %v4735, 0.3275911
    %v4740 = vmul.f32 %v4736, 0.3275911
    %v4741 = vadd.f32 %v4737, 1.0
    %v4742 = vadd.f32 %v4738, 1.0
    %v4743 = vadd.f32 %v4739, 1.0
    %v4744 = vadd.f32 %v4740, 1.0
    %v4745 = vrcp.pop %v4741
    %v4746 = vrcp.pop %v4742
    %v4747 = vrcp.pop %v4743
    %v4748 = vrcp.pop %v4744
    %v4749 = vmul.f32 %v4745, 1.0614054
    %v4750 = vmul.f32 %v4746, 1.0614054
    %v4751 = vmul.f32 %v4747, 1.0614054
    %v4752 = vmul.f32 %v4748, 1.0614054
    %v4753 = vadd.f32 %v4749, -1.4531521
    %v4754 = vadd.f32 %v4750, -1.4531521
    %v4755 = vadd.f32 %v4751, -1.4531521
    %v4756 = vadd.f32 %v4752, -1.4531521
    %v4757 = vmul.f32 %v4745, %v4753
    %v4758 = vmul.f32 %v4746, %v4754
    %v4759 = vmul.f32 %v4747, %v4755
    %v4760 = vmul.f32 %v4748, %v4756
    %v4761 = vadd.f32 %v4757, 1.4214138
    %v4762 = vadd.f32 %v4758, 1.4214138
    %v4763 = vadd.f32 %v4759, 1.4214138
    %v4764 = vadd.f32 %v4760, 1.4214138
    %v4765 = vmul.f32 %v4745, %v4761
    %v4766 = vmul.f32 %v4746, %v4762
    %v4767 = vmul.f32 %v4747, %v4763
    %v4768 = vmul.f32 %v4748, %v4764
    %v4769 = vadd.f32 %v4765, -0.28449672
    %v4770 = vadd.f32 %v4766, -0.28449672
    %v4771 = vadd.f32 %v4767, -0.28449672
    %v4772 = vadd.f32 %v4768, -0.28449672
    %v4773 = vmul.f32 %v4745, %v4769
    %v4774 = vmul.f32 %v4746, %v4770
    %v4775 = vmul.f32 %v4747, %v4771
    %v4776 = vmul.f32 %v4748, %v4772
    %v4777 = vadd.f32 %v4773, 0.2548296
    %v4778 = vadd.f32 %v4774, 0.2548296
    %v4779 = vadd.f32 %v4775, 0.2548296
    %v4780 = vadd.f32 %v4776, 0.2548296
    %v4781 = vmul.f32 %v4745, %v4777
    %v4782 = vmul.f32 %v4746, %v4778
    %v4783 = vmul.f32 %v4747, %v4779
    %v4784 = vmul.f32 %v4748, %v4780
    %v4785 = vmul.f32 %v4733, %v4733
    %v4786 = vmul.f32 %v4734, %v4734
    %v4787 = vmul.f32 %v4735, %v4735
    %v4788 = vmul.f32 %v4736, %v4736
    %v4789 = vsub.f32 0.0, %v4785
    %v4790 = vsub.f32 0.0, %v4786
    %v4791 = vsub.f32 0.0, %v4787
    %v4792 = vsub.f32 0.0, %v4788
    %v4793 = vmul.f32 %v4789, 1.442695
    %v4794 = vpow.pop %v4793
    %v4795 = vmul.f32 %v4790, 1.442695
    %v4796 = vpow.pop %v4795
    %v4797 = vmul.f32 %v4791, 1.442695
    %v4798 = vpow.pop %v4797
    %v4799 = vmul.f32 %v4792, 1.442695
    %v4800 = vpow.pop %v4799
    %v4801 = vmul.f32 %v4781, %v4794
    %v4802 = vmul.f32 %v4782, %v4796
    %v4803 = vmul.f32 %v4783, %v4798
    %v4804 = vmul.f32 %v4784, %v4800
    %v4805 = vsub.f32 1.0, %v4801
    %v4806 = vsub.f32 1.0, %v4802
    %v4807 = vsub.f32 1.0, %v4803
    %v4808 = vsub.f32 1.0, %v4804
    %vm4809 = vcmp.lt.f32.partialorder %v4729, 0.0
    %vm4810 = vcmp.lt.f32.partialorder %v4730, 0.0
    %vm4811 = vcmp.lt.f32.partialorder %v4731, 0.0
    %vm4812 = vcmp.lt.f32.partialorder %v4732, 0.0
    %v4813 = vsub.f32 0.0, %v4805
    %v4814 = vsub.f32 0.0, %v4806
    %v4815 = vsub.f32 0.0, %v4807
    %v4816 = vsub.f32 0.0, %v4808
    %v4817 = vsel %vm4809, %v4813, %v4805
    %v4818 = vsel %vm4810, %v4814, %v4806
    %v4819 = vsel %vm4811, %v4815, %v4807
    %v4820 = vsel %vm4812, %v4816, %v4808
    %v4821 = vadd.f32 %v4817, 1.0
    %v4822 = vadd.f32 %v4818, 1.0
    %v4823 = vadd.f32 %v4819, 1.0
    %v4824 = vadd.f32 %v4820, 1.0
    %v4825 = vmul.f32 %v4725, %v4821
    %v4826 = vmul.f32 %v4726, %v4822
    %v4827 = vmul.f32 %v4727, %v4823
    %v4828 = vmul.f32 %v4728, %v4824
    %v4829 = vadd.f32 %v4825, %v4403
    %v4830 = vadd.f32 %v4826, %v4404
    %v4831 = vadd.f32 %v4827, %v4405
    %v4832 = vadd.f32 %v4828, %v4406
    %s4833 = scalar_lea.vmem [#allocation38], 16
    %v4834 = vld [vmem:[%s4833] sm:$0xff]
    %v4835 = vld [vmem:[%s4833 + $0x8] sm:$0xff]
    %v4836 = vld [vmem:[#allocation40] sm:$0x1]
    %v4838 = vlaneseq
    %v4839 = vshrl.u32 %v4838, 7
    %v4840 = vsub.s32 0, %v4839
    %v4841 = vrot.slane %v4836, %v4840
    %v4844 = vsel %vm833, %v4829, 0
    %v4847 = vsel %vm833, %v4830, 0
    %v4850 = vsel %vm833, %v4831, 0
    %v4853 = vsel %vm833, %v4832, 0
    %4855 = vmatprep.subr.mxu0 0.0
    %4856 = vmatpush1.msra.mxu0 %v4834
    %4857 = vmatprep.subr.mxu0 0.0
    %4858 = vmatpush1.msra.mxu0 %v4835
    %4859 = vmatprep.subr.mxu0 0.0
    %4860 = vmatpush1.msra.mxu0 0.0
    %4861 = vmatprep.subr.mxu0 0.0
    %4862 = vmatpush1.msra.mxu0 0.0
    %4863 = vmatprep.subr.mxu0 0.0
    %4864 = vmatpush1.msra.mxu0 0.0
    %4865 = vmatprep.subr.mxu0 0.0
    %4866 = vmatpush1.msra.mxu0 0.0
    %4867 = vmatprep.subr.mxu0 0.0
    %4868 = vmatpush1.msra.mxu0 0.0
    %4869 = vmatprep.subr.mxu0 0.0
    %4870 = vmatpush1.msra.mxu0 0.0
    %4871 = vmatprep.subr.mxu0 0.0
    %4872 = vmatpush1.msra.mxu0 0.0
    %4873 = vmatprep.subr.mxu0 0.0
    %4874 = vmatpush1.msra.mxu0 0.0
    %4875 = vmatprep.subr.mxu0 0.0
    %4876 = vmatpush1.msra.mxu0 0.0
    %4877 = vmatprep.subr.mxu0 0.0
    %4878 = vmatpush1.msra.mxu0 0.0
    %4879 = vmatprep.subr.mxu0 0.0
    %4880 = vmatpush1.msra.mxu0 0.0
    %4881 = vmatprep.subr.mxu0 0.0
    %4882 = vmatpush1.msra.mxu0 0.0
    %4883 = vmatprep.subr.mxu0 0.0
    %4884 = vmatpush1.msra.mxu0 0.0
    %4885 = vmatprep.subr.mxu0 0.0
    %4886 = vmatpush1.msra.mxu0 0.0
    %4887 = vmatprep.subr.mxu0 0.0
    %4888 = vmatpush1.msra.mxu0 0.0
    %4889 = vmatprep.subr.mxu0 0.0
    %4890 = vmatpush1.msra.mxu0 0.0
    %4891 = vmatprep.subr.mxu0 0.0
    %4892 = vmatpush1.msra.mxu0 0.0
    %4893 = vmatprep.subr.mxu0 0.0
    %4894 = vmatpush1.msra.mxu0 0.0
    %4895 = vmatprep.subr.mxu0 0.0
    %4896 = vmatpush1.msra.mxu0 0.0
    %4897 = vmatprep.subr.mxu0 0.0
    %4898 = vmatpush1.msra.mxu0 0.0
    %4899 = vmatprep.subr.mxu0 0.0
    %4900 = vmatpush1.msra.mxu0 0.0
    %4901 = vmatprep.subr.mxu0 0.0
    %4902 = vmatpush1.msra.mxu0 0.0
    %4903 = vmatprep.subr.mxu0 0.0
    %4904 = vmatpush1.msra.mxu0 0.0
    %4905 = vmatprep.subr.mxu0 0.0
    %4906 = vmatpush1.msra.mxu0 0.0
    %4907 = vmatprep.subr.mxu0 0.0
    %4908 = vmatpush1.msra.mxu0 0.0
    %4909 = vmatprep.subr.mxu0 0.0
    %4910 = vmatpush1.msra.mxu0 0.0
    %4911 = vmatprep.subr.mxu0 0.0
    %4912 = vmatpush1.msra.mxu0 0.0
    %4913 = vmatprep.subr.mxu0 0.0
    %4914 = vmatpush1.msra.mxu0 0.0
    %4915 = vmatprep.subr.mxu0 0.0
    %4916 = vmatpush1.msra.mxu0 0.0
    %4917 = vmatprep.subr.mxu0 0.0
    %4918 = vmatpush1.msra.mxu0 0.0
    %4919 = vmatprep.mubr.f32.mxu0 0.0
    %4920 = vmatmul.mubr.f32.gmra.mrb[0].mxu0 %v4844
    %v4921 = vpop.f32.mrb[0].mxu0
    %v4922 = vadd.f32 %v4841, %v4921
    %v4923 = vpop.f32.mrb[0].mxu0
    %4924 = vmatprep.mubr.f32.mxu0 0.0
    %4925 = vmatmul.mubr.f32.gmra.mrb[0].mxu0 %v4847
    %v4926 = vpop.f32.mrb[0].mxu0
    %v4927 = vadd.f32 %v4841, %v4926
    %v4928 = vpop.f32.mrb[0].mxu0
    %4929 = vmatprep.mubr.f32.mxu0 0.0
    %4930 = vmatmul.mubr.f32.gmra.mrb[0].mxu0 %v4850
    %v4931 = vpop.f32.mrb[0].mxu0
    %v4932 = vadd.f32 %v4841, %v4931
    %v4933 = vpop.f32.mrb[0].mxu0
    %4934 = vmatprep.mubr.f32.mxu0 0.0
    %4935 = vmatmul.mubr.f32.gmra.mrb[0].mxu0 %v4853
    %v4936 = vpop.f32.mrb[0].mxu0
    %v4937 = vadd.f32 %v4841, %v4936
    %v4938 = vpop.f32.mrb[0].mxu0
    %4939 = vdwg.mxu0
    %v4940 = vmul.f32 %v4922, 0.5
    %v4941 = vmul.f32 %v4927, 0.5
    %v4942 = vmul.f32 %v4932, 0.5
    %v4943 = vmul.f32 %v4937, 0.5
    %v4944 = vmul.f32 %v4922, 0.70710677
    %v4945 = vmul.f32 %v4927, 0.70710677
    %v4946 = vmul.f32 %v4932, 0.70710677
    %v4947 = vmul.f32 %v4937, 0.70710677
    %v4948 = vand.u32 2147483647, %v4944
    %v4949 = vand.u32 2147483647, %v4945
    %v4950 = vand.u32 2147483647, %v4946
    %v4951 = vand.u32 2147483647, %v4947
    %v4952 = vmul.f32 %v4948, 0.3275911
    %v4953 = vmul.f32 %v4949, 0.3275911
    %v4954 = vmul.f32 %v4950, 0.3275911
    %v4955 = vmul.f32 %v4951, 0.3275911
    %v4956 = vadd.f32 %v4952, 1.0
    %v4957 = vadd.f32 %v4953, 1.0
    %v4958 = vadd.f32 %v4954, 1.0
    %v4959 = vadd.f32 %v4955, 1.0
    %v4960 = vrcp.pop %v4956
    %v4961 = vrcp.pop %v4957
    %v4962 = vrcp.pop %v4958
    %v4963 = vrcp.pop %v4959
    %v4964 = vmul.f32 %v4960, 1.0614054
    %v4965 = vmul.f32 %v4961, 1.0614054
    %v4966 = vmul.f32 %v4962, 1.0614054
    %v4967 = vmul.f32 %v4963, 1.0614054
    %v4968 = vadd.f32 %v4964, -1.4531521
    %v4969 = vadd.f32 %v4965, -1.4531521
    %v4970 = vadd.f32 %v4966, -1.4531521
    %v4971 = vadd.f32 %v4967, -1.4531521
    %v4972 = vmul.f32 %v4960, %v4968
    %v4973 = vmul.f32 %v4961, %v4969
    %v4974 = vmul.f32 %v4962, %v4970
    %v4975 = vmul.f32 %v4963, %v4971
    %v4976 = vadd.f32 %v4972, 1.4214138
    %v4977 = vadd.f32 %v4973, 1.4214138
    %v4978 = vadd.f32 %v4974, 1.4214138
    %v4979 = vadd.f32 %v4975, 1.4214138
    %v4980 = vmul.f32 %v4960, %v4976
    %v4981 = vmul.f32 %v4961, %v4977
    %v4982 = vmul.f32 %v4962, %v4978
    %v4983 = vmul.f32 %v4963, %v4979
    %v4984 = vadd.f32 %v4980, -0.28449672
    %v4985 = vadd.f32 %v4981, -0.28449672
    %v4986 = vadd.f32 %v4982, -0.28449672
    %v4987 = vadd.f32 %v4983, -0.28449672
    %v4988 = vmul.f32 %v4960, %v4984
    %v4989 = vmul.f32 %v4961, %v4985
    %v4990 = vmul.f32 %v4962, %v4986
    %v4991 = vmul.f32 %v4963, %v4987
    %v4992 = vadd.f32 %v4988, 0.2548296
    %v4993 = vadd.f32 %v4989, 0.2548296
    %v4994 = vadd.f32 %v4990, 0.2548296
    %v4995 = vadd.f32 %v4991, 0.2548296
    %v4996 = vmul.f32 %v4960, %v4992
    %v4997 = vmul.f32 %v4961, %v4993
    %v4998 = vmul.f32 %v4962, %v4994
    %v4999 = vmul.f32 %v4963, %v4995
    %v5000 = vmul.f32 %v4948, %v4948
    %v5001 = vmul.f32 %v4949, %v4949
    %v5002 = vmul.f32 %v4950, %v4950
    %v5003 = vmul.f32 %v4951, %v4951
    %v5004 = vsub.f32 0.0, %v5000
    %v5005 = vsub.f32 0.0, %v5001
    %v5006 = vsub.f32 0.0, %v5002
    %v5007 = vsub.f32 0.0, %v5003
    %v5008 = vmul.f32 %v5004, 1.442695
    %v5009 = vpow.pop %v5008
    %v5010 = vmul.f32 %v5005, 1.442695
    %v5011 = vpow.pop %v5010
    %v5012 = vmul.f32 %v5006, 1.442695
    %v5013 = vpow.pop %v5012
    %v5014 = vmul.f32 %v5007, 1.442695
    %v5015 = vpow.pop %v5014
    %v5016 = vmul.f32 %v4996, %v5009
    %v5017 = vmul.f32 %v4997, %v5011
    %v5018 = vmul.f32 %v4998, %v5013
    %v5019 = vmul.f32 %v4999, %v5015
    %v5020 = vsub.f32 1.0, %v5016
    %v5021 = vsub.f32 1.0, %v5017
    %v5022 = vsub.f32 1.0, %v5018
    %v5023 = vsub.f32 1.0, %v5019
    %vm5024 = vcmp.lt.f32.partialorder %v4944, 0.0
    %vm5025 = vcmp.lt.f32.partialorder %v4945, 0.0
    %vm5026 = vcmp.lt.f32.partialorder %v4946, 0.0
    %vm5027 = vcmp.lt.f32.partialorder %v4947, 0.0
    %v5028 = vsub.f32 0.0, %v5020
    %v5029 = vsub.f32 0.0, %v5021
    %v5030 = vsub.f32 0.0, %v5022
    %v5031 = vsub.f32 0.0, %v5023
    %v5032 = vsel %vm5024, %v5028, %v5020
    %v5033 = vsel %vm5025, %v5029, %v5021
    %v5034 = vsel %vm5026, %v5030, %v5022
    %v5035 = vsel %vm5027, %v5031, %v5023
    %v5036 = vadd.f32 %v5032, 1.0
    %v5037 = vadd.f32 %v5033, 1.0
    %v5038 = vadd.f32 %v5034, 1.0
    %v5039 = vadd.f32 %v5035, 1.0
    %v5040 = vmul.f32 %v4940, %v5036
    %v5041 = vmul.f32 %v4941, %v5037
    %v5042 = vmul.f32 %v4942, %v5038
    %v5043 = vmul.f32 %v4943, %v5039
    %v5044 = vld [vmem:[#allocation44] sm:$0xff]
    %v5045 = vld [vmem:[#allocation44 + $0x8] sm:$0xff]
    %v5046 = vld [vmem:[#allocation46] sm:$0x1]
    %v5048 = vlaneseq
    %v5049 = vshrl.u32 %v5048, 7
    %v5050 = vsub.s32 0, %v5049
    %v5051 = vrot.slane %v5046, %v5050
    %5053 = vmatprep.subr.mxu0 0.0
    %5054 = vmatpush1.msra.mxu0 %v5044
    %5055 = vmatprep.subr.mxu0 0.0
    %5056 = vmatpush1.msra.mxu0 %v5045
    %5057 = vmatprep.subr.mxu0 0.0
    %5058 = vmatpush1.msra.mxu0 0.0
    %5059 = vmatprep.subr.mxu0 0.0
    %5060 = vmatpush1.msra.mxu0 0.0
    %5061 = vmatprep.subr.mxu0 0.0
    %5062 = vmatpush1.msra.mxu0 0.0
    %5063 = vmatprep.subr.mxu0 0.0
    %5064 = vmatpush1.msra.mxu0 0.0
    %5065 = vmatprep.subr.mxu0 0.0
    %5066 = vmatpush1.msra.mxu0 0.0
    %5067 = vmatprep.subr.mxu0 0.0
    %5068 = vmatpush1.msra.mxu0 0.0
    %5069 = vmatprep.subr.mxu0 0.0
    %5070 = vmatpush1.msra.mxu0 0.0
    %5071 = vmatprep.subr.mxu0 0.0
    %5072 = vmatpush1.msra.mxu0 0.0
    %5073 = vmatprep.subr.mxu0 0.0
    %5074 = vmatpush1.msra.mxu0 0.0
    %5075 = vmatprep.subr.mxu0 0.0
    %5076 = vmatpush1.msra.mxu0 0.0
    %5077 = vmatprep.subr.mxu0 0.0
    %5078 = vmatpush1.msra.mxu0 0.0
    %5079 = vmatprep.subr.mxu0 0.0
    %5080 = vmatpush1.msra.mxu0 0.0
    %5081 = vmatprep.subr.mxu0 0.0
    %5082 = vmatpush1.msra.mxu0 0.0
    %5083 = vmatprep.subr.mxu0 0.0
    %5084 = vmatpush1.msra.mxu0 0.0
    %5085 = vmatprep.subr.mxu0 0.0
    %5086 = vmatpush1.msra.mxu0 0.0
    %5087 = vmatprep.subr.mxu0 0.0
    %5088 = vmatpush1.msra.mxu0 0.0
    %5089 = vmatprep.subr.mxu0 0.0
    %5090 = vmatpush1.msra.mxu0 0.0
    %5091 = vmatprep.subr.mxu0 0.0
    %5092 = vmatpush1.msra.mxu0 0.0
    %5093 = vmatprep.subr.mxu0 0.0
    %5094 = vmatpush1.msra.mxu0 0.0
    %5095 = vmatprep.subr.mxu0 0.0
    %5096 = vmatpush1.msra.mxu0 0.0
    %5097 = vmatprep.subr.mxu0 0.0
    %5098 = vmatpush1.msra.mxu0 0.0
    %5099 = vmatprep.subr.mxu0 0.0
    %5100 = vmatpush1.msra.mxu0 0.0
    %5101 = vmatprep.subr.mxu0 0.0
    %5102 = vmatpush1.msra.mxu0 0.0
    %5103 = vmatprep.subr.mxu0 0.0
    %5104 = vmatpush1.msra.mxu0 0.0
    %5105 = vmatprep.subr.mxu0 0.0
    %5106 = vmatpush1.msra.mxu0 0.0
    %5107 = vmatprep.subr.mxu0 0.0
    %5108 = vmatpush1.msra.mxu0 0.0
    %5109 = vmatprep.subr.mxu0 0.0
    %5110 = vmatpush1.msra.mxu0 0.0
    %5111 = vmatprep.subr.mxu0 0.0
    %5112 = vmatpush1.msra.mxu0 0.0
    %5113 = vmatprep.subr.mxu0 0.0
    %5114 = vmatpush1.msra.mxu0 0.0
    %5115 = vmatprep.subr.mxu0 0.0
    %5116 = vmatpush1.msra.mxu0 0.0
    %5117 = vmatprep.mubr.f32.mxu0 0.0
    %5118 = vmatmul.mubr.f32.gmra.mrb[0].mxu0 %v4844
    %v5119 = vpop.f32.mrb[0].mxu0
    %v5120 = vadd.f32 %v5051, %v5119
    %v5121 = vpop.f32.mrb[0].mxu0
    %5122 = vmatprep.mubr.f32.mxu0 0.0
    %5123 = vmatmul.mubr.f32.gmra.mrb[0].mxu0 %v4847
    %v5124 = vpop.f32.mrb[0].mxu0
    %v5125 = vadd.f32 %v5051, %v5124
    %v5126 = vpop.f32.mrb[0].mxu0
    %5127 = vmatprep.mubr.f32.mxu0 0.0
    %5128 = vmatmul.mubr.f32.gmra.mrb[0].mxu0 %v4850
    %v5129 = vpop.f32.mrb[0].mxu0
    %v5130 = vadd.f32 %v5051, %v5129
    %v5131 = vpop.f32.mrb[0].mxu0
    %5132 = vmatprep.mubr.f32.mxu0 0.0
    %5133 = vmatmul.mubr.f32.gmra.mrb[0].mxu0 %v4853
    %v5134 = vpop.f32.mrb[0].mxu0
    %v5135 = vadd.f32 %v5051, %v5134
    %v5136 = vpop.f32.mrb[0].mxu0
    %5137 = vdwg.mxu0
    %s5138 = scalar_lea.vmem [#allocation41], 32
    %v5139 = vld [vmem:[%s5138] sm:$0xff]
    %v5140 = vld [vmem:[%s5138 + $0x8] sm:$0xff]
    %v5141 = vld [vmem:[%s5138 + $0x10] sm:$0xff]
    %v5142 = vld [vmem:[%s5138 + $0x18] sm:$0xff]
    %v5143 = vld [vmem:[#allocation43] sm:$0x1]
    %v5145 = vlaneseq
    %v5146 = vshrl.u32 %v5145, 7
    %v5147 = vsub.s32 0, %v5146
    %v5148 = vrot.slane %v5143, %v5147
    %vm5150 = vcmask 261120
    %v5152 = vsel %vm5150, %v5040, 0
    %v5155 = vsel %vm5150, %v5041, 0
    %v5158 = vsel %vm5150, %v5042, 0
    %v5161 = vsel %vm5150, %v5043, 0
    %5163 = vmatprep.subr.mxu0 0.0
    %5164 = vmatpush1.msra.mxu0 %v5139
    %5165 = vmatprep.subr.mxu0 0.0
    %5166 = vmatpush1.msra.mxu0 %v5140
    %5167 = vmatprep.subr.mxu0 0.0
    %5168 = vmatpush1.msra.mxu0 %v5141
    %5169 = vmatprep.subr.mxu0 0.0
    %5170 = vmatpush1.msra.mxu0 %v5142
    %5171 = vmatprep.subr.mxu0 0.0
    %5172 = vmatpush1.msra.mxu0 0.0
    %5173 = vmatprep.subr.mxu0 0.0
    %5174 = vmatpush1.msra.mxu0 0.0
    %5175 = vmatprep.subr.mxu0 0.0
    %5176 = vmatpush1.msra.mxu0 0.0
    %5177 = vmatprep.subr.mxu0 0.0
    %5178 = vmatpush1.msra.mxu0 0.0
    %5179 = vmatprep.subr.mxu0 0.0
    %5180 = vmatpush1.msra.mxu0 0.0
    %5181 = vmatprep.subr.mxu0 0.0
    %5182 = vmatpush1.msra.mxu0 0.0
    %5183 = vmatprep.subr.mxu0 0.0
    %5184 = vmatpush1.msra.mxu0 0.0
    %5185 = vmatprep.subr.mxu0 0.0
    %5186 = vmatpush1.msra.mxu0 0.0
    %5187 = vmatprep.subr.mxu0 0.0
    %5188 = vmatpush1.msra.mxu0 0.0
    %5189 = vmatprep.subr.mxu0 0.0
    %5190 = vmatpush1.msra.mxu0 0.0
    %5191 = vmatprep.subr.mxu0 0.0
    %5192 = vmatpush1.msra.mxu0 0.0
    %5193 = vmatprep.subr.mxu0 0.0
    %5194 = vmatpush1.msra.mxu0 0.0
    %5195 = vmatprep.subr.mxu0 0.0
    %5196 = vmatpush1.msra.mxu0 0.0
    %5197 = vmatprep.subr.mxu0 0.0
    %5198 = vmatpush1.msra.mxu0 0.0
    %5199 = vmatprep.subr.mxu0 0.0
    %5200 = vmatpush1.msra.mxu0 0.0
    %5201 = vmatprep.subr.mxu0 0.0
    %5202 = vmatpush1.msra.mxu0 0.0
    %5203 = vmatprep.subr.mxu0 0.0
    %5204 = vmatpush1.msra.mxu0 0.0
    %5205 = vmatprep.subr.mxu0 0.0
    %5206 = vmatpush1.msra.mxu0 0.0
    %5207 = vmatprep.subr.mxu0 0.0
    %5208 = vmatpush1.msra.mxu0 0.0
    %5209 = vmatprep.subr.mxu0 0.0
    %5210 = vmatpush1.msra.mxu0 0.0
    %5211 = vmatprep.subr.mxu0 0.0
    %5212 = vmatpush1.msra.mxu0 0.0
    %5213 = vmatprep.subr.mxu0 0.0
    %5214 = vmatpush1.msra.mxu0 0.0
    %5215 = vmatprep.subr.mxu0 0.0
    %5216 = vmatpush1.msra.mxu0 0.0
    %5217 = vmatprep.subr.mxu0 0.0
    %5218 = vmatpush1.msra.mxu0 0.0
    %5219 = vmatprep.subr.mxu0 0.0
    %5220 = vmatpush1.msra.mxu0 0.0
    %5221 = vmatprep.subr.mxu0 0.0
    %5222 = vmatpush1.msra.mxu0 0.0
    %5223 = vmatprep.subr.mxu0 0.0
    %5224 = vmatpush1.msra.mxu0 0.0
    %5225 = vmatprep.subr.mxu0 0.0
    %5226 = vmatpush1.msra.mxu0 0.0
    %5227 = vmatprep.mubr.f32.mxu0 0.0
    %5228 = vmatmul.mubr.f32.gmra.mrb[0].mxu0 %v5152
    %v5229 = vpop.f32.mrb[0].mxu0
    %v5230 = vadd.f32 %v5148, %v5229
    %v5231 = vpop.f32.mrb[0].mxu0
    %5232 = vmatprep.mubr.f32.mxu0 0.0
    %5233 = vmatmul.mubr.f32.gmra.mrb[0].mxu0 %v5155
    %v5234 = vpop.f32.mrb[0].mxu0
    %v5235 = vadd.f32 %v5148, %v5234
    %v5236 = vpop.f32.mrb[0].mxu0
    %5237 = vmatprep.mubr.f32.mxu0 0.0
    %5238 = vmatmul.mubr.f32.gmra.mrb[0].mxu0 %v5158
    %v5239 = vpop.f32.mrb[0].mxu0
    %v5240 = vadd.f32 %v5148, %v5239
    %v5241 = vpop.f32.mrb[0].mxu0
    %5242 = vmatprep.mubr.f32.mxu0 0.0
    %5243 = vmatmul.mubr.f32.gmra.mrb[0].mxu0 %v5161
    %v5244 = vpop.f32.mrb[0].mxu0
    %v5245 = vadd.f32 %v5148, %v5244
    %v5246 = vpop.f32.mrb[0].mxu0
    %5247 = vdwg.mxu0
    %v5248 = vmul.f32 %v5230, 0.5
    %v5249 = vmul.f32 %v5235, 0.5
    %v5250 = vmul.f32 %v5240, 0.5
    %v5251 = vmul.f32 %v5245, 0.5
    %v5252 = vmul.f32 %v5230, 0.70710677
    %v5253 = vmul.f32 %v5235, 0.70710677
    %v5254 = vmul.f32 %v5240, 0.70710677
    %v5255 = vmul.f32 %v5245, 0.70710677
    %v5256 = vand.u32 2147483647, %v5252
    %v5257 = vand.u32 2147483647, %v5253
    %v5258 = vand.u32 2147483647, %v5254
    %v5259 = vand.u32 2147483647, %v5255
    %v5260 = vmul.f32 %v5256, 0.3275911
    %v5261 = vmul.f32 %v5257, 0.3275911
    %v5262 = vmul.f32 %v5258, 0.3275911
    %v5263 = vmul.f32 %v5259, 0.3275911
    %v5264 = vadd.f32 %v5260, 1.0
    %v5265 = vadd.f32 %v5261, 1.0
    %v5266 = vadd.f32 %v5262, 1.0
    %v5267 = vadd.f32 %v5263, 1.0
    %v5268 = vrcp.pop %v5264
    %v5269 = vrcp.pop %v5265
    %v5270 = vrcp.pop %v5266
    %v5271 = vrcp.pop %v5267
    %v5272 = vmul.f32 %v5268, 1.0614054
    %v5273 = vmul.f32 %v5269, 1.0614054
    %v5274 = vmul.f32 %v5270, 1.0614054
    %v5275 = vmul.f32 %v5271, 1.0614054
    %v5276 = vadd.f32 %v5272, -1.4531521
    %v5277 = vadd.f32 %v5273, -1.4531521
    %v5278 = vadd.f32 %v5274, -1.4531521
    %v5279 = vadd.f32 %v5275, -1.4531521
    %v5280 = vmul.f32 %v5268, %v5276
    %v5281 = vmul.f32 %v5269, %v5277
    %v5282 = vmul.f32 %v5270, %v5278
    %v5283 = vmul.f32 %v5271, %v5279
    %v5284 = vadd.f32 %v5280, 1.4214138
    %v5285 = vadd.f32 %v5281, 1.4214138
    %v5286 = vadd.f32 %v5282, 1.4214138
    %v5287 = vadd.f32 %v5283, 1.4214138
    %v5288 = vmul.f32 %v5268, %v5284
    %v5289 = vmul.f32 %v5269, %v5285
    %v5290 = vmul.f32 %v5270, %v5286
    %v5291 = vmul.f32 %v5271, %v5287
    %v5292 = vadd.f32 %v5288, -0.28449672
    %v5293 = vadd.f32 %v5289, -0.28449672
    %v5294 = vadd.f32 %v5290, -0.28449672
    %v5295 = vadd.f32 %v5291, -0.28449672
    %v5296 = vmul.f32 %v5268, %v5292
    %v5297 = vmul.f32 %v5269, %v5293
    %v5298 = vmul.f32 %v5270, %v5294
    %v5299 = vmul.f32 %v5271, %v5295
    %v5300 = vadd.f32 %v5296, 0.2548296
    %v5301 = vadd.f32 %v5297, 0.2548296
    %v5302 = vadd.f32 %v5298, 0.2548296
    %v5303 = vadd.f32 %v5299, 0.2548296
    %v5304 = vmul.f32 %v5268, %v5300
    %v5305 = vmul.f32 %v5269, %v5301
    %v5306 = vmul.f32 %v5270, %v5302
    %v5307 = vmul.f32 %v5271, %v5303
    %v5308 = vmul.f32 %v5256, %v5256
    %v5309 = vmul.f32 %v5257, %v5257
    %v5310 = vmul.f32 %v5258, %v5258
    %v5311 = vmul.f32 %v5259, %v5259
    %v5312 = vsub.f32 0.0, %v5308
    %v5313 = vsub.f32 0.0, %v5309
    %v5314 = vsub.f32 0.0, %v5310
    %v5315 = vsub.f32 0.0, %v5311
    %v5316 = vmul.f32 %v5312, 1.442695
    %v5317 = vpow.pop %v5316
    %v5318 = vmul.f32 %v5313, 1.442695
    %v5319 = vpow.pop %v5318
    %v5320 = vmul.f32 %v5314, 1.442695
    %v5321 = vpow.pop %v5320
    %v5322 = vmul.f32 %v5315, 1.442695
    %v5323 = vpow.pop %v5322
    %v5324 = vmul.f32 %v5304, %v5317
    %v5325 = vmul.f32 %v5305, %v5319
    %v5326 = vmul.f32 %v5306, %v5321
    %v5327 = vmul.f32 %v5307, %v5323
    %v5328 = vsub.f32 1.0, %v5324
    %v5329 = vsub.f32 1.0, %v5325
    %v5330 = vsub.f32 1.0, %v5326
    %v5331 = vsub.f32 1.0, %v5327
    %vm5332 = vcmp.lt.f32.partialorder %v5252, 0.0
    %vm5333 = vcmp.lt.f32.partialorder %v5253, 0.0
    %vm5334 = vcmp.lt.f32.partialorder %v5254, 0.0
    %vm5335 = vcmp.lt.f32.partialorder %v5255, 0.0
    %v5336 = vsub.f32 0.0, %v5328
    %v5337 = vsub.f32 0.0, %v5329
    %v5338 = vsub.f32 0.0, %v5330
    %v5339 = vsub.f32 0.0, %v5331
    %v5340 = vsel %vm5332, %v5336, %v5328
    %v5341 = vsel %vm5333, %v5337, %v5329
    %v5342 = vsel %vm5334, %v5338, %v5330
    %v5343 = vsel %vm5335, %v5339, %v5331
    %v5344 = vadd.f32 %v5340, 1.0
    %v5345 = vadd.f32 %v5341, 1.0
    %v5346 = vadd.f32 %v5342, 1.0
    %v5347 = vadd.f32 %v5343, 1.0
    %v5348 = vmul.f32 %v5248, %v5344
    %v5349 = vmul.f32 %v5249, %v5345
    %v5350 = vmul.f32 %v5250, %v5346
    %v5351 = vmul.f32 %v5251, %v5347
    %v5352 = vadd.f32 %v5348, %v5120
    %v5353 = vadd.f32 %v5349, %v5125
    %v5354 = vadd.f32 %v5350, %v5130
    %v5355 = vadd.f32 %v5351, %v5135
    %v5356 = vsel %vm5150, %v5352, -inf
    %v5357 = vsel %vm5150, %v5353, -inf
    %v5358 = vmax.f32 %v5356, %v5357
    %v5359 = vrot.slane %v5358, 4
    %v5360 = vmax.f32 %v5358, %v5359
    %v5361 = vrot.slane %v5360, 2
    %v5362 = vmax.f32 %v5360, %v5361
    %v5363 = vrot.slane %v5362, 1
    %v5364 = vmax.f32 %v5362, %v5363
    %v5365 = vsel %vm5150, %v5354, -inf
    %v5366 = vsel %vm5150, %v5355, -inf
    %v5367 = vmax.f32 %v5365, %v5366
    %v5368 = vrot.slane %v5367, 4
    %v5369 = vmax.f32 %v5367, %v5368
    %v5370 = vrot.slane %v5369, 2
    %v5371 = vmax.f32 %v5369, %v5370
    %v5372 = vrot.slane %v5371, 1
    %v5373 = vmax.f32 %v5371, %v5372
    %v5374 = vld [vmem:[#allocation47] sm:$0xff]
    %v5375 = vld [vmem:[#allocation47 + $0x8] sm:$0xff]
    %v5376 = vld [vmem:[#allocation47 + $0x10] sm:$0xff]
    %v5377 = vld [vmem:[#allocation47 + $0x18] sm:$0xff]
    %v5378 = vld [vmem:[#allocation49] sm:$0x1]
    %v5380 = vlaneseq
    %v5381 = vshrl.u32 %v5380, 7
    %v5382 = vsub.s32 0, %v5381
    %v5383 = vrot.slane %v5378, %v5382
    %vm5387 = vcmask 1041409
    %v5388 = vsel %vm5387, %v5373, %v5364
    %v5389 = vsel %vm5150, %v5388, 0
    %5391 = vmatprep.subr.mxu0 0.0
    %5392 = vmatpush1.msra.mxu0 %v5374
    %5393 = vmatprep.subr.mxu0 0.0
    %5394 = vmatpush1.msra.mxu0 %v5375
    %5395 = vmatprep.subr.mxu0 0.0
    %5396 = vmatpush1.msra.mxu0 %v5376
    %5397 = vmatprep.subr.mxu0 0.0
    %5398 = vmatpush1.msra.mxu0 %v5377
    %5399 = vmatprep.subr.mxu0 0.0
    %5400 = vmatpush1.msra.mxu0 0.0
    %5401 = vmatprep.subr.mxu0 0.0
    %5402 = vmatpush1.msra.mxu0 0.0
    %5403 = vmatprep.subr.mxu0 0.0
    %5404 = vmatpush1.msra.mxu0 0.0
    %5405 = vmatprep.subr.mxu0 0.0
    %5406 = vmatpush1.msra.mxu0 0.0
    %5407 = vmatprep.subr.mxu0 0.0
    %5408 = vmatpush1.msra.mxu0 0.0
    %5409 = vmatprep.subr.mxu0 0.0
    %5410 = vmatpush1.msra.mxu0 0.0
    %5411 = vmatprep.subr.mxu0 0.0
    %5412 = vmatpush1.msra.mxu0 0.0
    %5413 = vmatprep.subr.mxu0 0.0
    %5414 = vmatpush1.msra.mxu0 0.0
    %5415 = vmatprep.subr.mxu0 0.0
    %5416 = vmatpush1.msra.mxu0 0.0
    %5417 = vmatprep.subr.mxu0 0.0
    %5418 = vmatpush1.msra.mxu0 0.0
    %5419 = vmatprep.subr.mxu0 0.0
    %5420 = vmatpush1.msra.mxu0 0.0
    %5421 = vmatprep.subr.mxu0 0.0
    %5422 = vmatpush1.msra.mxu0 0.0
    %5423 = vmatprep.subr.mxu0 0.0
    %5424 = vmatpush1.msra.mxu0 0.0
    %5425 = vmatprep.subr.mxu0 0.0
    %5426 = vmatpush1.msra.mxu0 0.0
    %5427 = vmatprep.subr.mxu0 0.0
    %5428 = vmatpush1.msra.mxu0 0.0
    %5429 = vmatprep.subr.mxu0 0.0
    %5430 = vmatpush1.msra.mxu0 0.0
    %5431 = vmatprep.subr.mxu0 0.0
    %5432 = vmatpush1.msra.mxu0 0.0
    %5433 = vmatprep.subr.mxu0 0.0
    %5434 = vmatpush1.msra.mxu0 0.0
    %5435 = vmatprep.subr.mxu0 0.0
    %5436 = vmatpush1.msra.mxu0 0.0
    %5437 = vmatprep.subr.mxu0 0.0
    %5438 = vmatpush1.msra.mxu0 0.0
    %5439 = vmatprep.subr.mxu0 0.0
    %5440 = vmatpush1.msra.mxu0 0.0
    %5441 = vmatprep.subr.mxu0 0.0
    %5442 = vmatpush1.msra.mxu0 0.0
    %5443 = vmatprep.subr.mxu0 0.0
    %5444 = vmatpush1.msra.mxu0 0.0
    %5445 = vmatprep.subr.mxu0 0.0
    %5446 = vmatpush1.msra.mxu0 0.0
    %5447 = vmatprep.subr.mxu0 0.0
    %5448 = vmatpush1.msra.mxu0 0.0
    %5449 = vmatprep.subr.mxu0 0.0
    %5450 = vmatpush1.msra.mxu0 0.0
    %5451 = vmatprep.subr.mxu0 0.0
    %5452 = vmatpush1.msra.mxu0 0.0
    %5453 = vmatprep.subr.mxu0 0.0
    %5454 = vmatpush1.msra.mxu0 0.0
    %5455 = vmatprep.mubr.f32.mxu0 0.0
    %5456 = vmatmul.mubr.f32.gmra.mrb[0].mxu0 %v5389
    %v5457 = vpop.f32.mrb[0].mxu0
    %v5458 = vadd.f32 %v5383, %v5457
    %v5459 = vpop.f32.mrb[0].mxu0
    %5460 = vdwg.mxu0
    %v5461 = vld [vmem:[#allocation50] sm:$0x1]
    %v5463 = vlaneseq
    %v5464 = vshrl.u32 %v5463, 7
    %v5465 = vsub.s32 0, %v5464
    %v5466 = vrot.slane %v5461, %v5465
    %v5468 = vmul.f32 %v5458, %v5466
    %v5469 = vld [vmem:[#allocation52] sm:$0x1]
    %v5471 = vlaneseq
    %v5472 = vshrl.u32 %v5471, 7
    %v5473 = vsub.s32 0, %v5472
    %v5474 = vrot.slane %v5469, %v5473
    %v5476 = vadd.f32 %v5468, %v5474
    %v5477 = vmax.f32 %v5476, 0.0
    %v5478 = vld [vmem:[#allocation53] sm:$0xff]
    %v5479 = vld [vmem:[#allocation53 + $0x8] sm:$0xff]
    %v5480 = vld [vmem:[#allocation53 + $0x10] sm:$0xff]
    %v5481 = vld [vmem:[#allocation53 + $0x18] sm:$0xff]
    %v5482 = vld [vmem:[#allocation55] sm:$0x1]
    %v5484 = vlaneseq
    %v5485 = vshrl.u32 %v5484, 7
    %v5486 = vsub.s32 0, %v5485
    %v5487 = vrot.slane %v5482, %v5486
    %v5490 = vsel %vm5150, %v5477, 0
    %5492 = vmatprep.subr.mxu0 0.0
    %5493 = vmatpush1.msra.mxu0 %v5478
    %5494 = vmatprep.subr.mxu0 0.0
    %5495 = vmatpush1.msra.mxu0 %v5479
    %5496 = vmatprep.subr.mxu0 0.0
    %5497 = vmatpush1.msra.mxu0 %v5480
    %5498 = vmatprep.subr.mxu0 0.0
    %5499 = vmatpush1.msra.mxu0 %v5481
    %5500 = vmatprep.subr.mxu0 0.0
    %5501 = vmatpush1.msra.mxu0 0.0
    %5502 = vmatprep.subr.mxu0 0.0
    %5503 = vmatpush1.msra.mxu0 0.0
    %5504 = vmatprep.subr.mxu0 0.0
    %5505 = vmatpush1.msra.mxu0 0.0
    %5506 = vmatprep.subr.mxu0 0.0
    %5507 = vmatpush1.msra.mxu0 0.0
    %5508 = vmatprep.subr.mxu0 0.0
    %5509 = vmatpush1.msra.mxu0 0.0
    %5510 = vmatprep.subr.mxu0 0.0
    %5511 = vmatpush1.msra.mxu0 0.0
    %5512 = vmatprep.subr.mxu0 0.0
    %5513 = vmatpush1.msra.mxu0 0.0
    %5514 = vmatprep.subr.mxu0 0.0
    %5515 = vmatpush1.msra.mxu0 0.0
    %5516 = vmatprep.subr.mxu0 0.0
    %5517 = vmatpush1.msra.mxu0 0.0
    %5518 = vmatprep.subr.mxu0 0.0
    %5519 = vmatpush1.msra.mxu0 0.0
    %5520 = vmatprep.subr.mxu0 0.0
    %5521 = vmatpush1.msra.mxu0 0.0
    %5522 = vmatprep.subr.mxu0 0.0
    %5523 = vmatpush1.msra.mxu0 0.0
    %5524 = vmatprep.subr.mxu0 0.0
    %5525 = vmatpush1.msra.mxu0 0.0
    %5526 = vmatprep.subr.mxu0 0.0
    %5527 = vmatpush1.msra.mxu0 0.0
    %5528 = vmatprep.subr.mxu0 0.0
    %5529 = vmatpush1.msra.mxu0 0.0
    %5530 = vmatprep.subr.mxu0 0.0
    %5531 = vmatpush1.msra.mxu0 0.0
    %5532 = vmatprep.subr.mxu0 0.0
    %5533 = vmatpush1.msra.mxu0 0.0
    %5534 = vmatprep.subr.mxu0 0.0
    %5535 = vmatpush1.msra.mxu0 0.0
    %5536 = vmatprep.subr.mxu0 0.0
    %5537 = vmatpush1.msra.mxu0 0.0
    %5538 = vmatprep.subr.mxu0 0.0
    %5539 = vmatpush1.msra.mxu0 0.0
    %5540 = vmatprep.subr.mxu0 0.0
    %5541 = vmatpush1.msra.mxu0 0.0
    %5542 = vmatprep.subr.mxu0 0.0
    %5543 = vmatpush1.msra.mxu0 0.0
    %5544 = vmatprep.subr.mxu0 0.0
    %5545 = vmatpush1.msra.mxu0 0.0
    %5546 = vmatprep.subr.mxu0 0.0
    %5547 = vmatpush1.msra.mxu0 0.0
    %5548 = vmatprep.subr.mxu0 0.0
    %5549 = vmatpush1.msra.mxu0 0.0
    %5550 = vmatprep.subr.mxu0 0.0
    %5551 = vmatpush1.msra.mxu0 0.0
    %5552 = vmatprep.subr.mxu0 0.0
    %5553 = vmatpush1.msra.mxu0 0.0
    %5554 = vmatprep.subr.mxu0 0.0
    %5555 = vmatpush1.msra.mxu0 0.0
    %5556 = vmatprep.mubr.f32.mxu0 0.0
    %5557 = vmatmul.mubr.f32.gmra.mrb[0].mxu0 %v5490
    %v5558 = vpop.f32.mrb[0].mxu0
    %v5559 = vadd.f32 %v5487, %v5558
    %v5560 = vpop.f32.mrb[0].mxu0
    %5561 = vdwg.mxu0
    %v5562 = vld [vmem:[#allocation56] sm:$0xff]
    %v5563 = vld [vmem:[#allocation56 + $0x8] sm:$0xff]
    %v5564 = vld [vmem:[#allocation56 + $0x10] sm:$0xff]
    %v5565 = vld [vmem:[#allocation56 + $0x18] sm:$0xff]
    %v5566 = vld [vmem:[#allocation58] sm:$0x1]
    %v5568 = vlaneseq
    %v5569 = vshrl.u32 %v5568, 7
    %v5570 = vsub.s32 0, %v5569
    %v5571 = vrot.slane %v5566, %v5570
    %5573 = vmatprep.subr.mxu0 0.0
    %5574 = vmatpush1.msra.mxu0 %v5562
    %5575 = vmatprep.subr.mxu0 0.0
    %5576 = vmatpush1.msra.mxu0 %v5563
    %5577 = vmatprep.subr.mxu0 0.0
    %5578 = vmatpush1.msra.mxu0 %v5564
    %5579 = vmatprep.subr.mxu0 0.0
    %5580 = vmatpush1.msra.mxu0 %v5565
    %5581 = vmatprep.subr.mxu0 0.0
    %5582 = vmatpush1.msra.mxu0 0.0
    %5583 = vmatprep.subr.mxu0 0.0
    %5584 = vmatpush1.msra.mxu0 0.0
    %5585 = vmatprep.subr.mxu0 0.0
    %5586 = vmatpush1.msra.mxu0 0.0
    %5587 = vmatprep.subr.mxu0 0.0
    %5588 = vmatpush1.msra.mxu0 0.0
    %5589 = vmatprep.subr.mxu0 0.0
    %5590 = vmatpush1.msra.mxu0 0.0
    %5591 = vmatprep.subr.mxu0 0.0
    %5592 = vmatpush1.msra.mxu0 0.0
    %5593 = vmatprep.subr.mxu0 0.0
    %5594 = vmatpush1.msra.mxu0 0.0
    %5595 = vmatprep.subr.mxu0 0.0
    %5596 = vmatpush1.msra.mxu0 0.0
    %5597 = vmatprep.subr.mxu0 0.0
    %5598 = vmatpush1.msra.mxu0 0.0
    %5599 = vmatprep.subr.mxu0 0.0
    %5600 = vmatpush1.msra.mxu0 0.0
    %5601 = vmatprep.subr.mxu0 0.0
    %5602 = vmatpush1.msra.mxu0 0.0
    %5603 = vmatprep.subr.mxu0 0.0
    %5604 = vmatpush1.msra.mxu0 0.0
    %5605 = vmatprep.subr.mxu0 0.0
    %5606 = vmatpush1.msra.mxu0 0.0
    %5607 = vmatprep.subr.mxu0 0.0
    %5608 = vmatpush1.msra.mxu0 0.0
    %5609 = vmatprep.subr.mxu0 0.0
    %5610 = vmatpush1.msra.mxu0 0.0
    %5611 = vmatprep.subr.mxu0 0.0
    %5612 = vmatpush1.msra.mxu0 0.0
    %5613 = vmatprep.subr.mxu0 0.0
    %5614 = vmatpush1.msra.mxu0 0.0
    %5615 = vmatprep.subr.mxu0 0.0
    %5616 = vmatpush1.msra.mxu0 0.0
    %5617 = vmatprep.subr.mxu0 0.0
    %5618 = vmatpush1.msra.mxu0 0.0
    %5619 = vmatprep.subr.mxu0 0.0
    %5620 = vmatpush1.msra.mxu0 0.0
    %5621 = vmatprep.subr.mxu0 0.0
    %5622 = vmatpush1.msra.mxu0 0.0
    %5623 = vmatprep.subr.mxu0 0.0
    %5624 = vmatpush1.msra.mxu0 0.0
    %5625 = vmatprep.subr.mxu0 0.0
    %5626 = vmatpush1.msra.mxu0 0.0
    %5627 = vmatprep.subr.mxu0 0.0
    %5628 = vmatpush1.msra.mxu0 0.0
    %5629 = vmatprep.subr.mxu0 0.0
    %5630 = vmatpush1.msra.mxu0 0.0
    %5631 = vmatprep.subr.mxu0 0.0
    %5632 = vmatpush1.msra.mxu0 0.0
    %5633 = vmatprep.subr.mxu0 0.0
    %5634 = vmatpush1.msra.mxu0 0.0
    %5635 = vmatprep.subr.mxu0 0.0
    %5636 = vmatpush1.msra.mxu0 0.0
    %5637 = vmatprep.mubr.f32.mxu0 0.0
    %5638 = vmatmul.mubr.f32.gmra.mrb[0].mxu0 %v5389
    %v5639 = vpop.f32.mrb[0].mxu0
    %v5640 = vadd.f32 %v5571, %v5639
    %v5641 = vpop.f32.mrb[0].mxu0
    %5642 = vdwg.mxu0
    %v5643 = vld [vmem:[#allocation59] sm:$0x1]
    %v5645 = vlaneseq
    %v5646 = vshrl.u32 %v5645, 7
    %v5647 = vsub.s32 0, %v5646
    %v5648 = vrot.slane %v5643, %v5647
    %v5650 = vmul.f32 %v5640, %v5648
    %v5651 = vld [vmem:[#allocation61] sm:$0x1]
    %v5653 = vlaneseq
    %v5654 = vshrl.u32 %v5653, 7
    %v5655 = vsub.s32 0, %v5654
    %v5656 = vrot.slane %v5651, %v5655
    %v5658 = vadd.f32 %v5650, %v5656
    %v5659 = vmax.f32 %v5658, 0.0
    %v5660 = vld [vmem:[#allocation62] sm:$0xff]
    %v5661 = vld [vmem:[#allocation62 + $0x8] sm:$0xff]
    %v5662 = vld [vmem:[#allocation62 + $0x10] sm:$0xff]
    %v5663 = vld [vmem:[#allocation62 + $0x18] sm:$0xff]
    %v5664 = vld [vmem:[#allocation64] sm:$0x1]
    %v5666 = vlaneseq
    %v5667 = vshrl.u32 %v5666, 7
    %v5668 = vsub.s32 0, %v5667
    %v5669 = vrot.slane %v5664, %v5668
    %v5672 = vsel %vm5150, %v5659, 0
    %5674 = vmatprep.subr.mxu0 0.0
    %5675 = vmatpush1.msra.mxu0 %v5660
    %5676 = vmatprep.subr.mxu0 0.0
    %5677 = vmatpush1.msra.mxu0 %v5661
    %5678 = vmatprep.subr.mxu0 0.0
    %5679 = vmatpush1.msra.mxu0 %v5662
    %5680 = vmatprep.subr.mxu0 0.0
    %5681 = vmatpush1.msra.mxu0 %v5663
    %5682 = vmatprep.subr.mxu0 0.0
    %5683 = vmatpush1.msra.mxu0 0.0
    %5684 = vmatprep.subr.mxu0 0.0
    %5685 = vmatpush1.msra.mxu0 0.0
    %5686 = vmatprep.subr.mxu0 0.0
    %5687 = vmatpush1.msra.mxu0 0.0
    %5688 = vmatprep.subr.mxu0 0.0
    %5689 = vmatpush1.msra.mxu0 0.0
    %5690 = vmatprep.subr.mxu0 0.0
    %5691 = vmatpush1.msra.mxu0 0.0
    %5692 = vmatprep.subr.mxu0 0.0
    %5693 = vmatpush1.msra.mxu0 0.0
    %5694 = vmatprep.subr.mxu0 0.0
    %5695 = vmatpush1.msra.mxu0 0.0
    %5696 = vmatprep.subr.mxu0 0.0
    %5697 = vmatpush1.msra.mxu0 0.0
    %5698 = vmatprep.subr.mxu0 0.0
    %5699 = vmatpush1.msra.mxu0 0.0
    %5700 = vmatprep.subr.mxu0 0.0
    %5701 = vmatpush1.msra.mxu0 0.0
    %5702 = vmatprep.subr.mxu0 0.0
    %5703 = vmatpush1.msra.mxu0 0.0
    %5704 = vmatprep.subr.mxu0 0.0
    %5705 = vmatpush1.msra.mxu0 0.0
    %5706 = vmatprep.subr.mxu0 0.0
    %5707 = vmatpush1.msra.mxu0 0.0
    %5708 = vmatprep.subr.mxu0 0.0
    %5709 = vmatpush1.msra.mxu0 0.0
    %5710 = vmatprep.subr.mxu0 0.0
    %5711 = vmatpush1.msra.mxu0 0.0
    %5712 = vmatprep.subr.mxu0 0.0
    %5713 = vmatpush1.msra.mxu0 0.0
    %5714 = vmatprep.subr.mxu0 0.0
    %5715 = vmatpush1.msra.mxu0 0.0
    %5716 = vmatprep.subr.mxu0 0.0
    %5717 = vmatpush1.msra.mxu0 0.0
    %5718 = vmatprep.subr.mxu0 0.0
    %5719 = vmatpush1.msra.mxu0 0.0
    %5720 = vmatprep.subr.mxu0 0.0
    %5721 = vmatpush1.msra.mxu0 0.0
    %5722 = vmatprep.subr.mxu0 0.0
    %5723 = vmatpush1.msra.mxu0 0.0
    %5724 = vmatprep.subr.mxu0 0.0
    %5725 = vmatpush1.msra.mxu0 0.0
    %5726 = vmatprep.subr.mxu0 0.0
    %5727 = vmatpush1.msra.mxu0 0.0
    %5728 = vmatprep.subr.mxu0 0.0
    %5729 = vmatpush1.msra.mxu0 0.0
    %5730 = vmatprep.subr.mxu0 0.0
    %5731 = vmatpush1.msra.mxu0 0.0
    %5732 = vmatprep.subr.mxu0 0.0
    %5733 = vmatpush1.msra.mxu0 0.0
    %5734 = vmatprep.subr.mxu0 0.0
    %5735 = vmatpush1.msra.mxu0 0.0
    %5736 = vmatprep.subr.mxu0 0.0
    %5737 = vmatpush1.msra.mxu0 0.0
    %5738 = vmatprep.mubr.f32.mxu0 0.0
    %5739 = vmatmul.mubr.f32.gmra.mrb[0].mxu0 %v5672
    %v5740 = vpop.f32.mrb[0].mxu0
    %v5741 = vadd.f32 %v5669, %v5740
    %v5742 = vpop.f32.mrb[0].mxu0
    %5743 = vdwg.mxu0
    %v5744 = vxor.u32 %v5741, 2147483648
    %v5745 = vmul.f32 %v5744, 1.442695
    %v5746 = vpow.pop %v5745
    %v5747 = vadd.f32 %v5746, 1.0
    %v5748 = vrcp.pop %v5747
    %v5749 = vmul.f32 1.0, %v5748
    %v5752 = vunpack.c.l.s4 1966171168
    %v5753 = vunpack.c.0.s8 %v5752
    %v5754 = vlaneseq
    %v5755 = vshrl.u32 %v5754, 7
    %v5756 = vsub.s32 %v5753, %v5755
    %v5757 = vrot.slane %v5749, %v5756
    %v5758 = vcombine.high %v5757, %v5757
    %v5760 = vunpack.c.l.s4 1966171168
    %v5761 = vunpack.c.0.s8 %v5760
    %v5762 = vlaneseq
    %v5763 = vshrl.u32 %v5762, 7
    %v5764 = vsub.s32 %v5761, %v5763
    %v5765 = vrot.slane %v5757, %v5764
    %v5767 = vunpack.c.l.s4 1966171168
    %v5768 = vunpack.c.0.s8 %v5767
    %v5769 = vlaneseq
    %v5770 = vshrl.u32 %v5769, 7
    %v5771 = vsub.s32 %v5768, %v5770
    %v5772 = vrot.slane %v5758, %v5771
    %vm5775 = vcmask 8192
    %5776 = vst.msk [vmem:[#allocation65] sm:$0x1] %vm5775, %v5765
    %5777 = vst.msk [vmem:[#allocation65 + $0x1] sm:$0x1] %vm5775, %v5772
    %v5780 = vunpack.c.l.s4 1966171168
    %v5781 = vunpack.c.0.s8 %v5780
    %v5782 = vlaneseq
    %v5783 = vshrl.u32 %v5782, 7
    %v5784 = vsub.s32 %v5781, %v5783
    %v5785 = vrot.slane %v5559, %v5784
    %v5786 = vcombine.high %v5785, %v5785
    %v5788 = vunpack.c.l.s4 1966171168
    %v5789 = vunpack.c.0.s8 %v5788
    %v5790 = vlaneseq
    %v5791 = vshrl.u32 %v5790, 7
    %v5792 = vsub.s32 %v5789, %v5791
    %v5793 = vrot.slane %v5785, %v5792
    %v5795 = vunpack.c.l.s4 1966171168
    %v5796 = vunpack.c.0.s8 %v5795
    %v5797 = vlaneseq
    %v5798 = vshrl.u32 %v5797, 7
    %v5799 = vsub.s32 %v5796, %v5798
    %v5800 = vrot.slane %v5786, %v5799
    %vm5803 = vcmask 57344
    %5804 = vst.msk [vmem:[#allocation66] sm:$0x1] %vm5803, %v5793
    %5805 = vst.msk [vmem:[#allocation66 + $0x1] sm:$0x1] %vm5803, %v5800
    // Predicated region
    $region330: #{_lambda_.1} parent=1 // pred_check
      _
    $region331: #{_lambda_.1} parent=1 // pred_check_branch
      %5807 = sbr.rel (0) target = $region333
    $region332: #{_lambda_.1} parent=1 // pred_region
      %s5809 = ssub.s32 32, 32
      %5810 = vsyncadd [#allocation4], %s5809
      %s5811 = sshll.u32 [#allocation65], 4
      %s5812 = int_to_ptr.vmem [resolvable:$true] %s5811
      %5817 = dma.vmem_to_hbm [thread:$0]  %s5812, 32, %s83, [#allocation4], 16, 16, 1
    $region333: #{_lambda_.1} parent=1 // pred_fallthru
      _
    // Predicated region
    $region334: #{_lambda_.1} parent=1 // pred_check
      _
    $region335: #{_lambda_.1} parent=1 // pred_check_branch
      %5819 = sbr.rel (0) target = $region337
    $region336: #{_lambda_.1} parent=1 // pred_region
      %s5821 = ssub.s32 32, 32
      %5822 = vsyncadd [#allocation67], %s5821
      %s5823 = sshll.u32 [#allocation66], 4
      %s5824 = int_to_ptr.vmem [resolvable:$true] %s5823
      %5829 = dma.vmem_to_hbm [thread:$0]  %s5824, 32, %s85, [#allocation67], 16, 16, 1
    $region337: #{_lambda_.1} parent=1 // pred_fallthru
      _
    // Predicated region
    $region338: #{_lambda_.1} parent=1 // pred_check
      _
    $region339: #{_lambda_.1} parent=1 // pred_check_branch
      %5831 = sbr.rel (0) target = $region341
    $region340: #{_lambda_.1} parent=1 // pred_region
      %5832 = dma.done [#allocation4], 32
    $region341: #{_lambda_.1} parent=1 // pred_fallthru
      _
    // Predicated region
    $region342: #{_lambda_.1} parent=1 // pred_check
      _
    $region343: #{_lambda_.1} parent=1 // pred_check_branch
      %5834 = sbr.rel (0) target = $region345
    $region344: #{_lambda_.1} parent=1 // pred_region
      %5835 = dma.done [#allocation67], 32
    $region345: #{_lambda_.1} parent=1 // pred_fallthru
      _
    %5836 = vsyncpa [#allocation3], 1
    %5837 = vsyncpa [#allocation6], 1
    %5838 = vsyncpa [#allocation9], 1
    %5839 = vsyncpa [#allocation12], 1
    %5840 = vsyncpa [#allocation15], 1
    %5841 = vsyncpa [#allocation18], 1
    %5842 = vsyncpa [#allocation21], 1
    %5843 = vsyncpa [#allocation24], 1
    %5844 = vsyncpa [#allocation27], 1
    %5845 = vsyncpa [#allocation30], 1
    %5846 = vsyncpa [#allocation33], 1
    %5847 = vsyncpa [#allocation36], 1
    %5848 = vsyncpa [#allocation39], 1
    %5849 = vsyncpa [#allocation42], 1
    %5850 = vsyncpa [#allocation45], 1
    %5851 = vsyncpa [#allocation48], 1
    %5852 = vsyncpa [#allocation51], 1
    %5853 = vsyncpa [#allocation54], 1
    %5854 = vsyncpa [#allocation57], 1
    %5855 = vsyncpa [#allocation60], 1
    %5856 = vsyncpa [#allocation63], 1
    %5857 = vsyncpa [#allocation4], 1
    %5858 = vsyncpa [#allocation67], 1

</llo_original>
